<compile_context>
chip_gen: v5e
topology: v5e:2x2
jax: 0.10.0
libtpu: 0.0.40
codegen_flags: <defaults>
</compile_context>

<pallas_src>
import functools

import jax
import jax.numpy as jnp
from jax.experimental import pallas as pl
from jax.experimental.pallas import tpu as pltpu


def _round_up(v, m):
    return ((v + m - 1) // m) * m


def _vmem_capacity_bytes():
    """Physical VMEM of the local TPU; falls back to the v7x floor (64 MiB)."""
    try:
        info = pltpu.get_tpu_info()
        cap = int(getattr(info, "vmem_capacity_bytes", 0))
        if cap > 0:
            return cap
    except Exception:
        pass
    return 64 * 1024 * 1024


def _pick_block_x(Lx, hbm_plane_bytes, vmem_plane_bytes, target_block_bytes,
                  vmem_limit_bytes, max_bx=64):
    """Largest divisor of Lx that keeps >= 2 grid steps and fits the budgets."""
    best = 1
    for bx in range(1, min(Lx, max_bx) + 1):
        if Lx % bx:
            continue
        if Lx > 1 and Lx // bx < 2:   # >= 2 steps: v7x's 2 TCs + software pipeline
            continue
        if bx * hbm_plane_bytes > target_block_bytes:
            continue
        if 2 * bx * vmem_plane_bytes > (3 * vmem_limit_bytes) // 4:
            continue
        best = bx
    return best


def _sep_blur_kernel(*refs, bx, kr, kz, use_z, ly_out, lz_out, pad_z, unroll):
    """Blur a block of bx x-planes.

    Radial taps: sublane-offset reads from the halo-padded input.
    Axial taps:  lane rolls; the zero-padding mask is folded into wz_ref.
    """
    if use_z:
        wy_ref, wz_ref, x_ref, o_ref = refs
    else:
        wy_ref, x_ref, o_ref = refs
        wz_ref = None

    def blur_plane(b, carry):
        # ---- radial blur along Ly: acc[y, z] = sum_k w_r[b,k] * x_halo[y+k, z]
        acc = wy_ref[b, 0:1, :] * x_ref[b, 0:ly_out, :]
        for k in range(1, kr):
            acc = acc + wy_ref[b, k:k + 1, :] * x_ref[b, k:k + ly_out, :]

        # ---- axial blur along Lz: out[y,z] = sum_k wzm[b,k,z] * acc[y, z+k-pad_z]
        if use_z:
            out = None
            for k in range(kz):
                shift = (pad_z - k) % lz_out
                shifted = pltpu.roll(acc, shift, axis=1) if shift else acc
                term = wz_ref[b, k:k + 1, :] * shifted
                out = term if out is None else out + term
        else:
            out = acc

        o_ref[b] = out.astype(o_ref.dtype)
        return carry

    jax.lax.fori_loop(0, bx, blur_plane, None, unroll=unroll)


def seperable_1d_blur(x, weight_r, weight_z=None):
    """Pallas equivalent of Seperable1DBlurNet(layer_r, layer_z)(x).

    x:        (Lx, Ly, Lz) float array (object in the torch layout)
    weight_r: (Lx, Kr)  per-x-plane 1D kernel along Ly (Conv1d, groups=Lx)
    weight_z: (Lx, Kz) or None -- per-x-plane 1D kernel along Lz
    """
    Lx, Ly, Lz = x.shape
    kr = int(weight_r.shape[-1])
    use_z = weight_z is not None
    kz = int(weight_z.shape[-1]) if use_z else 0
    pad_r = (kr - 1) // 2            # torch padding='same' left pad (any K)
    pad_z = (kz - 1) // 2 if use_z else 0

    # Lane/sublane-dense padded extents; output stores stay unmasked.
    ly_out = _round_up(Ly, 8)
    lz_out = _round_up(Lz, 128)
    ly_in = _round_up(ly_out + kr - 1, 8)   # radial 'same' halo baked into input

    # Zero-pad: Ly gets the conv halo (left = pad_r), Lz only lane alignment.
    xp = jnp.pad(x, ((0, 0),
                     (pad_r, ly_in - Ly - pad_r),
                     (0, lz_out - Lz)))

    # Per-plane weight slabs broadcast along lanes: each tap does one
    # (1, lz_out) vector read + sublane broadcast (no SMEM scalar loads).
    wy = jnp.broadcast_to(weight_r.astype(jnp.float32)[:, :, None],
                          (Lx, kr, lz_out))
    inputs = [wy]
    if use_z:
        # Axial taps use a lane roll; fold the zero-padding mask into the weight.
        z = jnp.arange(lz_out, dtype=jnp.int32)[None, :]
        k = jnp.arange(kz, dtype=jnp.int32)[:, None]
        src = z + k - pad_z
        valid = ((src >= 0) & (src < Lz)).astype(jnp.float32)       # (Kz, lz_out)
        wzm = weight_z.astype(jnp.float32)[:, :, None] * valid[None]
        inputs.append(wzm)
    inputs.append(xp)

    # Generation-aware sizing (v7x: 64 MiB VMEM -> smaller blocks/limit).
    cap = _vmem_capacity_bytes()
    vmem_limit = min(cap // 2, 64 * 1024 * 1024)
    target_block_bytes = min(8 * 1024 * 1024, cap // 16)
    hbm_plane_bytes = ly_in * lz_out * x.dtype.itemsize
    vmem_plane_bytes = (ly_in + ly_out + 8 * (2 if use_z else 1)) * lz_out * 4
    bx = _pick_block_x(Lx, hbm_plane_bytes, vmem_plane_bytes,
                       target_block_bytes, vmem_limit)
    grid = (Lx // bx,)

    in_specs = [pl.BlockSpec((bx, kr, lz_out), lambda i: (i, 0, 0))]
    if use_z:
        in_specs.append(pl.BlockSpec((bx, kz, lz_out), lambda i: (i, 0, 0)))
    in_specs.append(pl.BlockSpec((bx, ly_in, lz_out), lambda i: (i, 0, 0)))
    out_spec = pl.BlockSpec((bx, ly_out, lz_out), lambda i: (i, 0, 0))

    kernel = functools.partial(
        _sep_blur_kernel, bx=bx, kr=kr, kz=kz, use_z=use_z,
        ly_out=ly_out, lz_out=lz_out, pad_z=pad_z, unroll=bool(bx <= 16))

    out = pl.pallas_call(
        kernel,
        out_shape=jax.ShapeDtypeStruct((Lx, ly_out, lz_out), x.dtype),
        grid=grid,
        in_specs=in_specs,
        out_specs=out_spec,
        compiler_params=pltpu.CompilerParams(
            dimension_semantics=("parallel",),
            vmem_limit_bytes=vmem_limit,
        ),
    )(*inputs)
    return out[:, :Ly, :Lz]


def _reference_blur(x, wr, wz=None):
    """Pure-JAX reference matching torch grouped Conv1d ('same', zeros, no bias)."""
    Lx, Ly, Lz = x.shape
    kr = wr.shape[1]
    pr = (kr - 1) // 2
    xp = jnp.pad(x, ((0, 0), (pr, kr - 1 - pr), (0, 0)))
    out = jnp.zeros_like(x)
    for k in range(kr):
        out = out + wr[:, k][:, None, None] * xp[:, k:k + Ly, :]
    if wz is None:
        return out
    kz = wz.shape[1]
    pz = (kz - 1) // 2
    op = jnp.pad(out, ((0, 0), (0, 0), (pz, kz - 1 - pz)))
    out2 = jnp.zeros_like(x)
    for k in range(kz):
        out2 = out2 + wz[:, k][:, None, None] * op[:, :, k:k + Lz]
    return out2


def _make_gaussian_weights(Lx, K):
    """Deterministic per-plane Gaussian kernels (sigma grows with plane index)."""
    pad = (K - 1) // 2
    offs = jnp.arange(K, dtype=jnp.float32) - pad
    sigma = 0.6 + 0.15 * jnp.arange(Lx, dtype=jnp.float32)
    w = jnp.exp(-0.5 * (offs[None, :] / sigma[:, None]) ** 2)
    return (w / jnp.sum(w, axis=1, keepdims=True)).astype(jnp.float32)


if __name__ == "__main__":
    # Lane/sublane-aligned demo shapes.
    Lx, Ly, Lz = 32, 32, 128
    Kr, Kz = 7, 7

    key = jax.random.PRNGKey(0)
    x = jax.random.normal(key, (Lx, Ly, Lz), dtype=jnp.float32)
    weight_r = _make_gaussian_weights(Lx, Kr)
    weight_z = _make_gaussian_weights(Lx, Kz)

    # Full model: radial + axial blur (all f32 -> tight tolerance).
    out = jax.block_until_ready(seperable_1d_blur(x, weight_r, weight_z))
    ref = _reference_blur(x, weight_r, weight_z)
    assert out.shape == (Lx, Ly, Lz)
    assert jnp.allclose(out, ref, atol=1e-4, rtol=1e-4), "mismatch vs reference (r+z)"

    # layer_z = None path (radial blur only).
    out_r = jax.block_until_ready(seperable_1d_blur(x, weight_r, None))
    ref_r = _reference_blur(x, weight_r, None)
    assert jnp.allclose(out_r, ref_r, atol=1e-4, rtol=1e-4), "mismatch vs reference (r only)"

    # Unaligned shapes: exercises the lane/sublane padding + final slice path.
    Lx2, Ly2, Lz2 = 12, 20, 96
    x2 = jax.random.normal(jax.random.PRNGKey(0), (Lx2, Ly2, Lz2), dtype=jnp.float32)
    wr2 = _make_gaussian_weights(Lx2, 5)
    wz2 = _make_gaussian_weights(Lx2, 3)
    out2 = jax.block_until_ready(seperable_1d_blur(x2, wr2, wz2))
    ref2 = _reference_blur(x2, wr2, wz2)
    assert out2.shape == (Lx2, Ly2, Lz2)
    assert jnp.allclose(out2, ref2, atol=1e-4, rtol=1e-4), "mismatch vs reference (unaligned)"

    print("KERNEL_OK")
</pallas_src>

<mosaic_0001>
module attributes {stable_mosaic.version = 11 : i64} {
  func.func @_sep_blur_kernel(%arg0: i32, %arg1: memref<16x7x128xf32, #tpu.memory_space<vmem>>, %arg2: memref<16x7x128xf32, #tpu.memory_space<vmem>>, %arg3: memref<16x40x128xf32, #tpu.memory_space<vmem>>, %arg4: memref<16x32x128xf32, #tpu.memory_space<vmem>>) attributes {dimension_semantics = [#tpu.dimension_semantics<parallel>], iteration_bounds = array<i64: 2>, scalar_prefetch = 0 : i64, scratch_operands = 0 : i64, tpu.core_type = #tpu.core_type<tc>, window_params = [{transform_indices = @transform_0, window_bounds = array<i64: 16, 7, 128>}, {transform_indices = @transform_1, window_bounds = array<i64: 16, 7, 128>}, {transform_indices = @transform_2, window_bounds = array<i64: 16, 40, 128>}, {transform_indices = @transform_3, window_bounds = array<i64: 16, 32, 128>}]} {
    %c0_i32 = arith.constant 0 : i32
    %0 = arith.index_cast %c0_i32 : i32 to index
    %c0 = arith.constant 0 : index
    %c0_0 = arith.constant 0 : index
    %1 = vector.load %arg1[%0, %c0, %c0_0] : memref<16x7x128xf32, #tpu.memory_space<vmem>>, vector<1x1x128xf32>
    %2 = vector.shape_cast %1 : vector<1x1x128xf32> to vector<1x128xf32>
    %3 = arith.index_cast %c0_i32 : i32 to index
    %c0_1 = arith.constant 0 : index
    %c0_2 = arith.constant 0 : index
    %4 = vector.load %arg3[%3, %c0_1, %c0_2] : memref<16x40x128xf32, #tpu.memory_space<vmem>>, vector<1x32x128xf32>
    %5 = vector.shape_cast %4 : vector<1x32x128xf32> to vector<32x128xf32>
    %6 = vector.broadcast %2 : vector<1x128xf32> to vector<32x128xf32>
    %7 = arith.mulf %6, %5 : vector<32x128xf32>
    %8 = arith.index_cast %c0_i32 : i32 to index
    %c1 = arith.constant 1 : index
    %c0_3 = arith.constant 0 : index
    %9 = vector.load %arg1[%8, %c1, %c0_3] : memref<16x7x128xf32, #tpu.memory_space<vmem>>, vector<1x1x128xf32>
    %10 = vector.shape_cast %9 : vector<1x1x128xf32> to vector<1x128xf32>
    %11 = arith.index_cast %c0_i32 : i32 to index
    %c1_4 = arith.constant 1 : index
    %c0_5 = arith.constant 0 : index
    %12 = vector.load %arg3[%11, %c1_4, %c0_5] : memref<16x40x128xf32, #tpu.memory_space<vmem>>, vector<1x32x128xf32>
    %13 = vector.shape_cast %12 : vector<1x32x128xf32> to vector<32x128xf32>
    %14 = vector.broadcast %10 : vector<1x128xf32> to vector<32x128xf32>
    %15 = arith.mulf %14, %13 : vector<32x128xf32>
    %16 = arith.addf %7, %15 : vector<32x128xf32>
    %17 = arith.index_cast %c0_i32 : i32 to index
    %c2 = arith.constant 2 : index
    %c0_6 = arith.constant 0 : index
    %18 = vector.load %arg1[%17, %c2, %c0_6] : memref<16x7x128xf32, #tpu.memory_space<vmem>>, vector<1x1x128xf32>
    %19 = vector.shape_cast %18 : vector<1x1x128xf32> to vector<1x128xf32>
    %20 = arith.index_cast %c0_i32 : i32 to index
    %c2_7 = arith.constant 2 : index
    %c0_8 = arith.constant 0 : index
    %21 = vector.load %arg3[%20, %c2_7, %c0_8] : memref<16x40x128xf32, #tpu.memory_space<vmem>>, vector<1x32x128xf32>
    %22 = vector.shape_cast %21 : vector<1x32x128xf32> to vector<32x128xf32>
    %23 = vector.broadcast %19 : vector<1x128xf32> to vector<32x128xf32>
    %24 = arith.mulf %23, %22 : vector<32x128xf32>
    %25 = arith.addf %16, %24 : vector<32x128xf32>
    %26 = arith.index_cast %c0_i32 : i32 to index
    %c3 = arith.constant 3 : index
    %c0_9 = arith.constant 0 : index
    %27 = vector.load %arg1[%26, %c3, %c0_9] : memref<16x7x128xf32, #tpu.memory_space<vmem>>, vector<1x1x128xf32>
    %28 = vector.shape_cast %27 : vector<1x1x128xf32> to vector<1x128xf32>
    %29 = arith.index_cast %c0_i32 : i32 to index
    %c3_10 = arith.constant 3 : index
    %c0_11 = arith.constant 0 : index
    %30 = vector.load %arg3[%29, %c3_10, %c0_11] : memref<16x40x128xf32, #tpu.memory_space<vmem>>, vector<1x32x128xf32>
    %31 = vector.shape_cast %30 : vector<1x32x128xf32> to vector<32x128xf32>
    %32 = vector.broadcast %28 : vector<1x128xf32> to vector<32x128xf32>
    %33 = arith.mulf %32, %31 : vector<32x128xf32>
    %34 = arith.addf %25, %33 : vector<32x128xf32>
    %35 = arith.index_cast %c0_i32 : i32 to index
    %c4 = arith.constant 4 : index
    %c0_12 = arith.constant 0 : index
    %36 = vector.load %arg1[%35, %c4, %c0_12] : memref<16x7x128xf32, #tpu.memory_space<vmem>>, vector<1x1x128xf32>
    %37 = vector.shape_cast %36 : vector<1x1x128xf32> to vector<1x128xf32>
    %38 = arith.index_cast %c0_i32 : i32 to index
    %c4_13 = arith.constant 4 : index
    %c0_14 = arith.constant 0 : index
    %39 = vector.load %arg3[%38, %c4_13, %c0_14] : memref<16x40x128xf32, #tpu.memory_space<vmem>>, vector<1x32x128xf32>
    %40 = vector.shape_cast %39 : vector<1x32x128xf32> to vector<32x128xf32>
    %41 = vector.broadcast %37 : vector<1x128xf32> to vector<32x128xf32>
    %42 = arith.mulf %41, %40 : vector<32x128xf32>
    %43 = arith.addf %34, %42 : vector<32x128xf32>
    %44 = arith.index_cast %c0_i32 : i32 to index
    %c5 = arith.constant 5 : index
    %c0_15 = arith.constant 0 : index
    %45 = vector.load %arg1[%44, %c5, %c0_15] : memref<16x7x128xf32, #tpu.memory_space<vmem>>, vector<1x1x128xf32>
    %46 = vector.shape_cast %45 : vector<1x1x128xf32> to vector<1x128xf32>
    %47 = arith.index_cast %c0_i32 : i32 to index
    %c5_16 = arith.constant 5 : index
    %c0_17 = arith.constant 0 : index
    %48 = vector.load %arg3[%47, %c5_16, %c0_17] : memref<16x40x128xf32, #tpu.memory_space<vmem>>, vector<1x32x128xf32>
    %49 = vector.shape_cast %48 : vector<1x32x128xf32> to vector<32x128xf32>
    %50 = vector.broadcast %46 : vector<1x128xf32> to vector<32x128xf32>
    %51 = arith.mulf %50, %49 : vector<32x128xf32>
    %52 = arith.addf %43, %51 : vector<32x128xf32>
    %53 = arith.index_cast %c0_i32 : i32 to index
    %c6 = arith.constant 6 : index
    %c0_18 = arith.constant 0 : index
    %54 = vector.load %arg1[%53, %c6, %c0_18] : memref<16x7x128xf32, #tpu.memory_space<vmem>>, vector<1x1x128xf32>
    %55 = vector.shape_cast %54 : vector<1x1x128xf32> to vector<1x128xf32>
    %56 = arith.index_cast %c0_i32 : i32 to index
    %c6_19 = arith.constant 6 : index
    %c0_20 = arith.constant 0 : index
    %57 = vector.load %arg3[%56, %c6_19, %c0_20] : memref<16x40x128xf32, #tpu.memory_space<vmem>>, vector<1x32x128xf32>
    %58 = vector.shape_cast %57 : vector<1x32x128xf32> to vector<32x128xf32>
    %59 = vector.broadcast %55 : vector<1x128xf32> to vector<32x128xf32>
    %60 = arith.mulf %59, %58 : vector<32x128xf32>
    %61 = arith.addf %52, %60 : vector<32x128xf32>
    %c3_i32 = arith.constant 3 : i32
    %62 = tpu.dynamic_rotate %61 by %c3_i32 dim 1 : vector<32x128xf32>, i32 -> vector<32x128xf32>
    %63 = arith.index_cast %c0_i32 : i32 to index
    %c0_21 = arith.constant 0 : index
    %c0_22 = arith.constant 0 : index
    %64 = vector.load %arg2[%63, %c0_21, %c0_22] : memref<16x7x128xf32, #tpu.memory_space<vmem>>, vector<1x1x128xf32>
    %65 = vector.shape_cast %64 : vector<1x1x128xf32> to vector<1x128xf32>
    %66 = vector.broadcast %65 : vector<1x128xf32> to vector<32x128xf32>
    %67 = arith.mulf %66, %62 : vector<32x128xf32>
    %c2_i32 = arith.constant 2 : i32
    %68 = tpu.dynamic_rotate %61 by %c2_i32 dim 1 : vector<32x128xf32>, i32 -> vector<32x128xf32>
    %69 = arith.index_cast %c0_i32 : i32 to index
    %c1_23 = arith.constant 1 : index
    %c0_24 = arith.constant 0 : index
    %70 = vector.load %arg2[%69, %c1_23, %c0_24] : memref<16x7x128xf32, #tpu.memory_space<vmem>>, vector<1x1x128xf32>
    %71 = vector.shape_cast %70 : vector<1x1x128xf32> to vector<1x128xf32>
    %72 = vector.broadcast %71 : vector<1x128xf32> to vector<32x128xf32>
    %73 = arith.mulf %72, %68 : vector<32x128xf32>
    %74 = arith.addf %67, %73 : vector<32x128xf32>
    %c1_i32 = arith.constant 1 : i32
    %75 = tpu.dynamic_rotate %61 by %c1_i32 dim 1 : vector<32x128xf32>, i32 -> vector<32x128xf32>
    %76 = arith.index_cast %c0_i32 : i32 to index
    %c2_25 = arith.constant 2 : index
    %c0_26 = arith.constant 0 : index
    %77 = vector.load %arg2[%76, %c2_25, %c0_26] : memref<16x7x128xf32, #tpu.memory_space<vmem>>, vector<1x1x128xf32>
    %78 = vector.shape_cast %77 : vector<1x1x128xf32> to vector<1x128xf32>
    %79 = vector.broadcast %78 : vector<1x128xf32> to vector<32x128xf32>
    %80 = arith.mulf %79, %75 : vector<32x128xf32>
    %81 = arith.addf %74, %80 : vector<32x128xf32>
    %82 = arith.index_cast %c0_i32 : i32 to index
    %c3_27 = arith.constant 3 : index
    %c0_28 = arith.constant 0 : index
    %83 = vector.load %arg2[%82, %c3_27, %c0_28] : memref<16x7x128xf32, #tpu.memory_space<vmem>>, vector<1x1x128xf32>
    %84 = vector.shape_cast %83 : vector<1x1x128xf32> to vector<1x128xf32>
    %85 = vector.broadcast %84 : vector<1x128xf32> to vector<32x128xf32>
    %86 = arith.mulf %85, %61 : vector<32x128xf32>
    %87 = arith.addf %81, %86 : vector<32x128xf32>
    %c127_i32 = arith.constant 127 : i32
    %88 = tpu.dynamic_rotate %61 by %c127_i32 dim 1 : vector<32x128xf32>, i32 -> vector<32x128xf32>
    %89 = arith.index_cast %c0_i32 : i32 to index
    %c4_29 = arith.constant 4 : index
    %c0_30 = arith.constant 0 : index
    %90 = vector.load %arg2[%89, %c4_29, %c0_30] : memref<16x7x128xf32, #tpu.memory_space<vmem>>, vector<1x1x128xf32>
    %91 = vector.shape_cast %90 : vector<1x1x128xf32> to vector<1x128xf32>
    %92 = vector.broadcast %91 : vector<1x128xf32> to vector<32x128xf32>
    %93 = arith.mulf %92, %88 : vector<32x128xf32>
    %94 = arith.addf %87, %93 : vector<32x128xf32>
    %c126_i32 = arith.constant 126 : i32
    %95 = tpu.dynamic_rotate %61 by %c126_i32 dim 1 : vector<32x128xf32>, i32 -> vector<32x128xf32>
    %96 = arith.index_cast %c0_i32 : i32 to index
    %c5_31 = arith.constant 5 : index
    %c0_32 = arith.constant 0 : index
    %97 = vector.load %arg2[%96, %c5_31, %c0_32] : memref<16x7x128xf32, #tpu.memory_space<vmem>>, vector<1x1x128xf32>
    %98 = vector.shape_cast %97 : vector<1x1x128xf32> to vector<1x128xf32>
    %99 = vector.broadcast %98 : vector<1x128xf32> to vector<32x128xf32>
    %100 = arith.mulf %99, %95 : vector<32x128xf32>
    %101 = arith.addf %94, %100 : vector<32x128xf32>
    %c125_i32 = arith.constant 125 : i32
    %102 = tpu.dynamic_rotate %61 by %c125_i32 dim 1 : vector<32x128xf32>, i32 -> vector<32x128xf32>
    %103 = arith.index_cast %c0_i32 : i32 to index
    %c6_33 = arith.constant 6 : index
    %c0_34 = arith.constant 0 : index
    %104 = vector.load %arg2[%103, %c6_33, %c0_34] : memref<16x7x128xf32, #tpu.memory_space<vmem>>, vector<1x1x128xf32>
    %105 = vector.shape_cast %104 : vector<1x1x128xf32> to vector<1x128xf32>
    %106 = vector.broadcast %105 : vector<1x128xf32> to vector<32x128xf32>
    %107 = arith.mulf %106, %102 : vector<32x128xf32>
    %108 = arith.addf %101, %107 : vector<32x128xf32>
    %109 = arith.index_cast %c0_i32 : i32 to index
    %c0_35 = arith.constant 0 : index
    %c0_36 = arith.constant 0 : index
    %110 = vector.load %arg4[%109, %c0_35, %c0_36] : memref<16x32x128xf32, #tpu.memory_space<vmem>>, vector<1x32x128xf32>
    %111 = vector.shape_cast %110 : vector<1x32x128xf32> to vector<32x128xf32>
    %112 = vector.shape_cast %108 : vector<32x128xf32> to vector<1x32x128xf32>
    tpu.vector_store %arg4[%109, %c0_35, %c0_36], %112 {strides = array<i32>} : memref<16x32x128xf32, #tpu.memory_space<vmem>>, vector<1x32x128xf32>,
    %c1_i32_37 = arith.constant 1 : i32
    %113 = arith.index_cast %c1_i32_37 : i32 to index
    %c0_38 = arith.constant 0 : index
    %c0_39 = arith.constant 0 : index
    %114 = vector.load %arg1[%113, %c0_38, %c0_39] : memref<16x7x128xf32, #tpu.memory_space<vmem>>, vector<1x1x128xf32>
    %115 = vector.shape_cast %114 : vector<1x1x128xf32> to vector<1x128xf32>
    %116 = arith.index_cast %c1_i32_37 : i32 to index
    %c0_40 = arith.constant 0 : index
    %c0_41 = arith.constant 0 : index
    %117 = vector.load %arg3[%116, %c0_40, %c0_41] : memref<16x40x128xf32, #tpu.memory_space<vmem>>, vector<1x32x128xf32>
    %118 = vector.shape_cast %117 : vector<1x32x128xf32> to vector<32x128xf32>
    %119 = vector.broadcast %115 : vector<1x128xf32> to vector<32x128xf32>
    %120 = arith.mulf %119, %118 : vector<32x128xf32>
    %121 = arith.index_cast %c1_i32_37 : i32 to index
    %c1_42 = arith.constant 1 : index
    %c0_43 = arith.constant 0 : index
    %122 = vector.load %arg1[%121, %c1_42, %c0_43] : memref<16x7x128xf32, #tpu.memory_space<vmem>>, vector<1x1x128xf32>
    %123 = vector.shape_cast %122 : vector<1x1x128xf32> to vector<1x128xf32>
    %124 = arith.index_cast %c1_i32_37 : i32 to index
    %c1_44 = arith.constant 1 : index
    %c0_45 = arith.constant 0 : index
    %125 = vector.load %arg3[%124, %c1_44, %c0_45] : memref<16x40x128xf32, #tpu.memory_space<vmem>>, vector<1x32x128xf32>
    %126 = vector.shape_cast %125 : vector<1x32x128xf32> to vector<32x128xf32>
    %127 = vector.broadcast %123 : vector<1x128xf32> to vector<32x128xf32>
    %128 = arith.mulf %127, %126 : vector<32x128xf32>
    %129 = arith.addf %120, %128 : vector<32x128xf32>
    %130 = arith.index_cast %c1_i32_37 : i32 to index
    %c2_46 = arith.constant 2 : index
    %c0_47 = arith.constant 0 : index
    %131 = vector.load %arg1[%130, %c2_46, %c0_47] : memref<16x7x128xf32, #tpu.memory_space<vmem>>, vector<1x1x128xf32>
    %132 = vector.shape_cast %131 : vector<1x1x128xf32> to vector<1x128xf32>
    %133 = arith.index_cast %c1_i32_37 : i32 to index
    %c2_48 = arith.constant 2 : index
    %c0_49 = arith.constant 0 : index
    %134 = vector.load %arg3[%133, %c2_48, %c0_49] : memref<16x40x128xf32, #tpu.memory_space<vmem>>, vector<1x32x128xf32>
    %135 = vector.shape_cast %134 : vector<1x32x128xf32> to vector<32x128xf32>
    %136 = vector.broadcast %132 : vector<1x128xf32> to vector<32x128xf32>
    %137 = arith.mulf %136, %135 : vector<32x128xf32>
    %138 = arith.addf %129, %137 : vector<32x128xf32>
    %139 = arith.index_cast %c1_i32_37 : i32 to index
    %c3_50 = arith.constant 3 : index
    %c0_51 = arith.constant 0 : index
    %140 = vector.load %arg1[%139, %c3_50, %c0_51] : memref<16x7x128xf32, #tpu.memory_space<vmem>>, vector<1x1x128xf32>
    %141 = vector.shape_cast %140 : vector<1x1x128xf32> to vector<1x128xf32>
    %142 = arith.index_cast %c1_i32_37 : i32 to index
    %c3_52 = arith.constant 3 : index
    %c0_53 = arith.constant 0 : index
    %143 = vector.load %arg3[%142, %c3_52, %c0_53] : memref<16x40x128xf32, #tpu.memory_space<vmem>>, vector<1x32x128xf32>
    %144 = vector.shape_cast %143 : vector<1x32x128xf32> to vector<32x128xf32>
    %145 = vector.broadcast %141 : vector<1x128xf32> to vector<32x128xf32>
    %146 = arith.mulf %145, %144 : vector<32x128xf32>
    %147 = arith.addf %138, %146 : vector<32x128xf32>
    %148 = arith.index_cast %c1_i32_37 : i32 to index
    %c4_54 = arith.constant 4 : index
    %c0_55 = arith.constant 0 : index
    %149 = vector.load %arg1[%148, %c4_54, %c0_55] : memref<16x7x128xf32, #tpu.memory_space<vmem>>, vector<1x1x128xf32>
    %150 = vector.shape_cast %149 : vector<1x1x128xf32> to vector<1x128xf32>
    %151 = arith.index_cast %c1_i32_37 : i32 to index
    %c4_56 = arith.constant 4 : index
    %c0_57 = arith.constant 0 : index
    %152 = vector.load %arg3[%151, %c4_56, %c0_57] : memref<16x40x128xf32, #tpu.memory_space<vmem>>, vector<1x32x128xf32>
    %153 = vector.shape_cast %152 : vector<1x32x128xf32> to vector<32x128xf32>
    %154 = vector.broadcast %150 : vector<1x128xf32> to vector<32x128xf32>
    %155 = arith.mulf %154, %153 : vector<32x128xf32>
    %156 = arith.addf %147, %155 : vector<32x128xf32>
    %157 = arith.index_cast %c1_i32_37 : i32 to index
    %c5_58 = arith.constant 5 : index
    %c0_59 = arith.constant 0 : index
    %158 = vector.load %arg1[%157, %c5_58, %c0_59] : memref<16x7x128xf32, #tpu.memory_space<vmem>>, vector<1x1x128xf32>
    %159 = vector.shape_cast %158 : vector<1x1x128xf32> to vector<1x128xf32>
    %160 = arith.index_cast %c1_i32_37 : i32 to index
    %c5_60 = arith.constant 5 : index
    %c0_61 = arith.constant 0 : index
    %161 = vector.load %arg3[%160, %c5_60, %c0_61] : memref<16x40x128xf32, #tpu.memory_space<vmem>>, vector<1x32x128xf32>
    %162 = vector.shape_cast %161 : vector<1x32x128xf32> to vector<32x128xf32>
    %163 = vector.broadcast %159 : vector<1x128xf32> to vector<32x128xf32>
    %164 = arith.mulf %163, %162 : vector<32x128xf32>
    %165 = arith.addf %156, %164 : vector<32x128xf32>
    %166 = arith.index_cast %c1_i32_37 : i32 to index
    %c6_62 = arith.constant 6 : index
    %c0_63 = arith.constant 0 : index
    %167 = vector.load %arg1[%166, %c6_62, %c0_63] : memref<16x7x128xf32, #tpu.memory_space<vmem>>, vector<1x1x128xf32>
    %168 = vector.shape_cast %167 : vector<1x1x128xf32> to vector<1x128xf32>
    %169 = arith.index_cast %c1_i32_37 : i32 to index
    %c6_64 = arith.constant 6 : index
    %c0_65 = arith.constant 0 : index
    %170 = vector.load %arg3[%169, %c6_64, %c0_65] : memref<16x40x128xf32, #tpu.memory_space<vmem>>, vector<1x32x128xf32>
    %171 = vector.shape_cast %170 : vector<1x32x128xf32> to vector<32x128xf32>
    %172 = vector.broadcast %168 : vector<1x128xf32> to vector<32x128xf32>
    %173 = arith.mulf %172, %171 : vector<32x128xf32>
    %174 = arith.addf %165, %173 : vector<32x128xf32>
    %c3_i32_66 = arith.constant 3 : i32
    %175 = tpu.dynamic_rotate %174 by %c3_i32_66 dim 1 : vector<32x128xf32>, i32 -> vector<32x128xf32>
    %176 = arith.index_cast %c1_i32_37 : i32 to index
    %c0_67 = arith.constant 0 : index
    %c0_68 = arith.constant 0 : index
    %177 = vector.load %arg2[%176, %c0_67, %c0_68] : memref<16x7x128xf32, #tpu.memory_space<vmem>>, vector<1x1x128xf32>
    %178 = vector.shape_cast %177 : vector<1x1x128xf32> to vector<1x128xf32>
    %179 = vector.broadcast %178 : vector<1x128xf32> to vector<32x128xf32>
    %180 = arith.mulf %179, %175 : vector<32x128xf32>
    %c2_i32_69 = arith.constant 2 : i32
    %181 = tpu.dynamic_rotate %174 by %c2_i32_69 dim 1 : vector<32x128xf32>, i32 -> vector<32x128xf32>
    %182 = arith.index_cast %c1_i32_37 : i32 to index
    %c1_70 = arith.constant 1 : index
    %c0_71 = arith.constant 0 : index
    %183 = vector.load %arg2[%182, %c1_70, %c0_71] : memref<16x7x128xf32, #tpu.memory_space<vmem>>, vector<1x1x128xf32>
    %184 = vector.shape_cast %183 : vector<1x1x128xf32> to vector<1x128xf32>
    %185 = vector.broadcast %184 : vector<1x128xf32> to vector<32x128xf32>
    %186 = arith.mulf %185, %181 : vector<32x128xf32>
    %187 = arith.addf %180, %186 : vector<32x128xf32>
    %c1_i32_72 = arith.constant 1 : i32
    %188 = tpu.dynamic_rotate %174 by %c1_i32_72 dim 1 : vector<32x128xf32>, i32 -> vector<32x128xf32>
    %189 = arith.index_cast %c1_i32_37 : i32 to index
    %c2_73 = arith.constant 2 : index
    %c0_74 = arith.constant 0 : index
    %190 = vector.load %arg2[%189, %c2_73, %c0_74] : memref<16x7x128xf32, #tpu.memory_space<vmem>>, vector<1x1x128xf32>
    %191 = vector.shape_cast %190 : vector<1x1x128xf32> to vector<1x128xf32>
    %192 = vector.broadcast %191 : vector<1x128xf32> to vector<32x128xf32>
    %193 = arith.mulf %192, %188 : vector<32x128xf32>
    %194 = arith.addf %187, %193 : vector<32x128xf32>
    %195 = arith.index_cast %c1_i32_37 : i32 to index
    %c3_75 = arith.constant 3 : index
    %c0_76 = arith.constant 0 : index
    %196 = vector.load %arg2[%195, %c3_75, %c0_76] : memref<16x7x128xf32, #tpu.memory_space<vmem>>, vector<1x1x128xf32>
    %197 = vector.shape_cast %196 : vector<1x1x128xf32> to vector<1x128xf32>
    %198 = vector.broadcast %197 : vector<1x128xf32> to vector<32x128xf32>
    %199 = arith.mulf %198, %174 : vector<32x128xf32>
    %200 = arith.addf %194, %199 : vector<32x128xf32>
    %c127_i32_77 = arith.constant 127 : i32
    %201 = tpu.dynamic_rotate %174 by %c127_i32_77 dim 1 : vector<32x128xf32>, i32 -> vector<32x128xf32>
    %202 = arith.index_cast %c1_i32_37 : i32 to index
    %c4_78 = arith.constant 4 : index
    %c0_79 = arith.constant 0 : index
    %203 = vector.load %arg2[%202, %c4_78, %c0_79] : memref<16x7x128xf32, #tpu.memory_space<vmem>>, vector<1x1x128xf32>
    %204 = vector.shape_cast %203 : vector<1x1x128xf32> to vector<1x128xf32>
    %205 = vector.broadcast %204 : vector<1x128xf32> to vector<32x128xf32>
    %206 = arith.mulf %205, %201 : vector<32x128xf32>
    %207 = arith.addf %200, %206 : vector<32x128xf32>
    %c126_i32_80 = arith.constant 126 : i32
    %208 = tpu.dynamic_rotate %174 by %c126_i32_80 dim 1 : vector<32x128xf32>, i32 -> vector<32x128xf32>
    %209 = arith.index_cast %c1_i32_37 : i32 to index
    %c5_81 = arith.constant 5 : index
    %c0_82 = arith.constant 0 : index
    %210 = vector.load %arg2[%209, %c5_81, %c0_82] : memref<16x7x128xf32, #tpu.memory_space<vmem>>, vector<1x1x128xf32>
    %211 = vector.shape_cast %210 : vector<1x1x128xf32> to vector<1x128xf32>
    %212 = vector.broadcast %211 : vector<1x128xf32> to vector<32x128xf32>
    %213 = arith.mulf %212, %208 : vector<32x128xf32>
    %214 = arith.addf %207, %213 : vector<32x128xf32>
    %c125_i32_83 = arith.constant 125 : i32
    %215 = tpu.dynamic_rotate %174 by %c125_i32_83 dim 1 : vector<32x128xf32>, i32 -> vector<32x128xf32>
    %216 = arith.index_cast %c1_i32_37 : i32 to index
    %c6_84 = arith.constant 6 : index
    %c0_85 = arith.constant 0 : index
    %217 = vector.load %arg2[%216, %c6_84, %c0_85] : memref<16x7x128xf32, #tpu.memory_space<vmem>>, vector<1x1x128xf32>
    %218 = vector.shape_cast %217 : vector<1x1x128xf32> to vector<1x128xf32>
    %219 = vector.broadcast %218 : vector<1x128xf32> to vector<32x128xf32>
    %220 = arith.mulf %219, %215 : vector<32x128xf32>
    %221 = arith.addf %214, %220 : vector<32x128xf32>
    %222 = arith.index_cast %c1_i32_37 : i32 to index
    %c0_86 = arith.constant 0 : index
    %c0_87 = arith.constant 0 : index
    %223 = vector.load %arg4[%222, %c0_86, %c0_87] : memref<16x32x128xf32, #tpu.memory_space<vmem>>, vector<1x32x128xf32>
    %224 = vector.shape_cast %223 : vector<1x32x128xf32> to vector<32x128xf32>
    %225 = vector.shape_cast %221 : vector<32x128xf32> to vector<1x32x128xf32>
    tpu.vector_store %arg4[%222, %c0_86, %c0_87], %225 {strides = array<i32>} : memref<16x32x128xf32, #tpu.memory_space<vmem>>, vector<1x32x128xf32>,
    %c2_i32_88 = arith.constant 2 : i32
    %226 = arith.index_cast %c2_i32_88 : i32 to index
    %c0_89 = arith.constant 0 : index
    %c0_90 = arith.constant 0 : index
    %227 = vector.load %arg1[%226, %c0_89, %c0_90] : memref<16x7x128xf32, #tpu.memory_space<vmem>>, vector<1x1x128xf32>
    %228 = vector.shape_cast %227 : vector<1x1x128xf32> to vector<1x128xf32>
    %229 = arith.index_cast %c2_i32_88 : i32 to index
    %c0_91 = arith.constant 0 : index
    %c0_92 = arith.constant 0 : index
    %230 = vector.load %arg3[%229, %c0_91, %c0_92] : memref<16x40x128xf32, #tpu.memory_space<vmem>>, vector<1x32x128xf32>
    %231 = vector.shape_cast %230 : vector<1x32x128xf32> to vector<32x128xf32>
    %232 = vector.broadcast %228 : vector<1x128xf32> to vector<32x128xf32>
    %233 = arith.mulf %232, %231 : vector<32x128xf32>
    %234 = arith.index_cast %c2_i32_88 : i32 to index
    %c1_93 = arith.constant 1 : index
    %c0_94 = arith.constant 0 : index
    %235 = vector.load %arg1[%234, %c1_93, %c0_94] : memref<16x7x128xf32, #tpu.memory_space<vmem>>, vector<1x1x128xf32>
    %236 = vector.shape_cast %235 : vector<1x1x128xf32> to vector<1x128xf32>
    %237 = arith.index_cast %c2_i32_88 : i32 to index
    %c1_95 = arith.constant 1 : index
    %c0_96 = arith.constant 0 : index
    %238 = vector.load %arg3[%237, %c1_95, %c0_96] : memref<16x40x128xf32, #tpu.memory_space<vmem>>, vector<1x32x128xf32>
    %239 = vector.shape_cast %238 : vector<1x32x128xf32> to vector<32x128xf32>
    %240 = vector.broadcast %236 : vector<1x128xf32> to vector<32x128xf32>
    %241 = arith.mulf %240, %239 : vector<32x128xf32>
    %242 = arith.addf %233, %241 : vector<32x128xf32>
    %243 = arith.index_cast %c2_i32_88 : i32 to index
    %c2_97 = arith.constant 2 : index
    %c0_98 = arith.constant 0 : index
    %244 = vector.load %arg1[%243, %c2_97, %c0_98] : memref<16x7x128xf32, #tpu.memory_space<vmem>>, vector<1x1x128xf32>
    %245 = vector.shape_cast %244 : vector<1x1x128xf32> to vector<1x128xf32>
    %246 = arith.index_cast %c2_i32_88 : i32 to index
    %c2_99 = arith.constant 2 : index
    %c0_100 = arith.constant 0 : index
    %247 = vector.load %arg3[%246, %c2_99, %c0_100] : memref<16x40x128xf32, #tpu.memory_space<vmem>>, vector<1x32x128xf32>
    %248 = vector.shape_cast %247 : vector<1x32x128xf32> to vector<32x128xf32>
    %249 = vector.broadcast %245 : vector<1x128xf32> to vector<32x128xf32>
    %250 = arith.mulf %249, %248 : vector<32x128xf32>
    %251 = arith.addf %242, %250 : vector<32x128xf32>
    %252 = arith.index_cast %c2_i32_88 : i32 to index
    %c3_101 = arith.constant 3 : index
    %c0_102 = arith.constant 0 : index
    %253 = vector.load %arg1[%252, %c3_101, %c0_102] : memref<16x7x128xf32, #tpu.memory_space<vmem>>, vector<1x1x128xf32>
    %254 = vector.shape_cast %253 : vector<1x1x128xf32> to vector<1x128xf32>
    %255 = arith.index_cast %c2_i32_88 : i32 to index
    %c3_103 = arith.constant 3 : index
    %c0_104 = arith.constant 0 : index
    %256 = vector.load %arg3[%255, %c3_103, %c0_104] : memref<16x40x128xf32, #tpu.memory_space<vmem>>, vector<1x32x128xf32>
    %257 = vector.shape_cast %256 : vector<1x32x128xf32> to vector<32x128xf32>
    %258 = vector.broadcast %254 : vector<1x128xf32> to vector<32x128xf32>
    %259 = arith.mulf %258, %257 : vector<32x128xf32>
    %260 = arith.addf %251, %259 : vector<32x128xf32>
    %261 = arith.index_cast %c2_i32_88 : i32 to index
    %c4_105 = arith.constant 4 : index
    %c0_106 = arith.constant 0 : index
    %262 = vector.load %arg1[%261, %c4_105, %c0_106] : memref<16x7x128xf32, #tpu.memory_space<vmem>>, vector<1x1x128xf32>
    %263 = vector.shape_cast %262 : vector<1x1x128xf32> to vector<1x128xf32>
    %264 = arith.index_cast %c2_i32_88 : i32 to index
    %c4_107 = arith.constant 4 : index
    %c0_108 = arith.constant 0 : index
    %265 = vector.load %arg3[%264, %c4_107, %c0_108] : memref<16x40x128xf32, #tpu.memory_space<vmem>>, vector<1x32x128xf32>
    %266 = vector.shape_cast %265 : vector<1x32x128xf32> to vector<32x128xf32>
    %267 = vector.broadcast %263 : vector<1x128xf32> to vector<32x128xf32>
    %268 = arith.mulf %267, %266 : vector<32x128xf32>
    %269 = arith.addf %260, %268 : vector<32x128xf32>
    %270 = arith.index_cast %c2_i32_88 : i32 to index
    %c5_109 = arith.constant 5 : index
    %c0_110 = arith.constant 0 : index
    %271 = vector.load %arg1[%270, %c5_109, %c0_110] : memref<16x7x128xf32, #tpu.memory_space<vmem>>, vector<1x1x128xf32>
    %272 = vector.shape_cast %271 : vector<1x1x128xf32> to vector<1x128xf32>
    %273 = arith.index_cast %c2_i32_88 : i32 to index
    %c5_111 = arith.constant 5 : index
    %c0_112 = arith.constant 0 : index
    %274 = vector.load %arg3[%273, %c5_111, %c0_112] : memref<16x40x128xf32, #tpu.memory_space<vmem>>, vector<1x32x128xf32>
    %275 = vector.shape_cast %274 : vector<1x32x128xf32> to vector<32x128xf32>
    %276 = vector.broadcast %272 : vector<1x128xf32> to vector<32x128xf32>
    %277 = arith.mulf %276, %275 : vector<32x128xf32>
    %278 = arith.addf %269, %277 : vector<32x128xf32>
    %279 = arith.index_cast %c2_i32_88 : i32 to index
    %c6_113 = arith.constant 6 : index
    %c0_114 = arith.constant 0 : index
    %280 = vector.load %arg1[%279, %c6_113, %c0_114] : memref<16x7x128xf32, #tpu.memory_space<vmem>>, vector<1x1x128xf32>
    %281 = vector.shape_cast %280 : vector<1x1x128xf32> to vector<1x128xf32>
    %282 = arith.index_cast %c2_i32_88 : i32 to index
    %c6_115 = arith.constant 6 : index
    %c0_116 = arith.constant 0 : index
    %283 = vector.load %arg3[%282, %c6_115, %c0_116] : memref<16x40x128xf32, #tpu.memory_space<vmem>>, vector<1x32x128xf32>
    %284 = vector.shape_cast %283 : vector<1x32x128xf32> to vector<32x128xf32>
    %285 = vector.broadcast %281 : vector<1x128xf32> to vector<32x128xf32>
    %286 = arith.mulf %285, %284 : vector<32x128xf32>
    %287 = arith.addf %278, %286 : vector<32x128xf32>
    %c3_i32_117 = arith.constant 3 : i32
    %288 = tpu.dynamic_rotate %287 by %c3_i32_117 dim 1 : vector<32x128xf32>, i32 -> vector<32x128xf32>
    %289 = arith.index_cast %c2_i32_88 : i32 to index
    %c0_118 = arith.constant 0 : index
    %c0_119 = arith.constant 0 : index
    %290 = vector.load %arg2[%289, %c0_118, %c0_119] : memref<16x7x128xf32, #tpu.memory_space<vmem>>, vector<1x1x128xf32>
    %291 = vector.shape_cast %290 : vector<1x1x128xf32> to vector<1x128xf32>
    %292 = vector.broadcast %291 : vector<1x128xf32> to vector<32x128xf32>
    %293 = arith.mulf %292, %288 : vector<32x128xf32>
    %c2_i32_120 = arith.constant 2 : i32
    %294 = tpu.dynamic_rotate %287 by %c2_i32_120 dim 1 : vector<32x128xf32>, i32 -> vector<32x128xf32>
    %295 = arith.index_cast %c2_i32_88 : i32 to index
    %c1_121 = arith.constant 1 : index
    %c0_122 = arith.constant 0 : index
    %296 = vector.load %arg2[%295, %c1_121, %c0_122] : memref<16x7x128xf32, #tpu.memory_space<vmem>>, vector<1x1x128xf32>
    %297 = vector.shape_cast %296 : vector<1x1x128xf32> to vector<1x128xf32>
    %298 = vector.broadcast %297 : vector<1x128xf32> to vector<32x128xf32>
    %299 = arith.mulf %298, %294 : vector<32x128xf32>
    %300 = arith.addf %293, %299 : vector<32x128xf32>
    %c1_i32_123 = arith.constant 1 : i32
    %301 = tpu.dynamic_rotate %287 by %c1_i32_123 dim 1 : vector<32x128xf32>, i32 -> vector<32x128xf32>
    %302 = arith.index_cast %c2_i32_88 : i32 to index
    %c2_124 = arith.constant 2 : index
    %c0_125 = arith.constant 0 : index
    %303 = vector.load %arg2[%302, %c2_124, %c0_125] : memref<16x7x128xf32, #tpu.memory_space<vmem>>, vector<1x1x128xf32>
    %304 = vector.shape_cast %303 : vector<1x1x128xf32> to vector<1x128xf32>
    %305 = vector.broadcast %304 : vector<1x128xf32> to vector<32x128xf32>
    %306 = arith.mulf %305, %301 : vector<32x128xf32>
    %307 = arith.addf %300, %306 : vector<32x128xf32>
    %308 = arith.index_cast %c2_i32_88 : i32 to index
    %c3_126 = arith.constant 3 : index
    %c0_127 = arith.constant 0 : index
    %309 = vector.load %arg2[%308, %c3_126, %c0_127] : memref<16x7x128xf32, #tpu.memory_space<vmem>>, vector<1x1x128xf32>
    %310 = vector.shape_cast %309 : vector<1x1x128xf32> to vector<1x128xf32>
    %311 = vector.broadcast %310 : vector<1x128xf32> to vector<32x128xf32>
    %312 = arith.mulf %311, %287 : vector<32x128xf32>
    %313 = arith.addf %307, %312 : vector<32x128xf32>
    %c127_i32_128 = arith.constant 127 : i32
    %314 = tpu.dynamic_rotate %287 by %c127_i32_128 dim 1 : vector<32x128xf32>, i32 -> vector<32x128xf32>
    %315 = arith.index_cast %c2_i32_88 : i32 to index
    %c4_129 = arith.constant 4 : index
    %c0_130 = arith.constant 0 : index
    %316 = vector.load %arg2[%315, %c4_129, %c0_130] : memref<16x7x128xf32, #tpu.memory_space<vmem>>, vector<1x1x128xf32>
    %317 = vector.shape_cast %316 : vector<1x1x128xf32> to vector<1x128xf32>
    %318 = vector.broadcast %317 : vector<1x128xf32> to vector<32x128xf32>
    %319 = arith.mulf %318, %314 : vector<32x128xf32>
    %320 = arith.addf %313, %319 : vector<32x128xf32>
    %c126_i32_131 = arith.constant 126 : i32
    %321 = tpu.dynamic_rotate %287 by %c126_i32_131 dim 1 : vector<32x128xf32>, i32 -> vector<32x128xf32>
    %322 = arith.index_cast %c2_i32_88 : i32 to index
    %c5_132 = arith.constant 5 : index
    %c0_133 = arith.constant 0 : index
    %323 = vector.load %arg2[%322, %c5_132, %c0_133] : memref<16x7x128xf32, #tpu.memory_space<vmem>>, vector<1x1x128xf32>
    %324 = vector.shape_cast %323 : vector<1x1x128xf32> to vector<1x128xf32>
    %325 = vector.broadcast %324 : vector<1x128xf32> to vector<32x128xf32>
    %326 = arith.mulf %325, %321 : vector<32x128xf32>
    %327 = arith.addf %320, %326 : vector<32x128xf32>
    %c125_i32_134 = arith.constant 125 : i32
    %328 = tpu.dynamic_rotate %287 by %c125_i32_134 dim 1 : vector<32x128xf32>, i32 -> vector<32x128xf32>
    %329 = arith.index_cast %c2_i32_88 : i32 to index
    %c6_135 = arith.constant 6 : index
    %c0_136 = arith.constant 0 : index
    %330 = vector.load %arg2[%329, %c6_135, %c0_136] : memref<16x7x128xf32, #tpu.memory_space<vmem>>, vector<1x1x128xf32>
    %331 = vector.shape_cast %330 : vector<1x1x128xf32> to vector<1x128xf32>
    %332 = vector.broadcast %331 : vector<1x128xf32> to vector<32x128xf32>
    %333 = arith.mulf %332, %328 : vector<32x128xf32>
    %334 = arith.addf %327, %333 : vector<32x128xf32>
    %335 = arith.index_cast %c2_i32_88 : i32 to index
    %c0_137 = arith.constant 0 : index
    %c0_138 = arith.constant 0 : index
    %336 = vector.load %arg4[%335, %c0_137, %c0_138] : memref<16x32x128xf32, #tpu.memory_space<vmem>>, vector<1x32x128xf32>
    %337 = vector.shape_cast %336 : vector<1x32x128xf32> to vector<32x128xf32>
    %338 = vector.shape_cast %334 : vector<32x128xf32> to vector<1x32x128xf32>
    tpu.vector_store %arg4[%335, %c0_137, %c0_138], %338 {strides = array<i32>} : memref<16x32x128xf32, #tpu.memory_space<vmem>>, vector<1x32x128xf32>,
    %c3_i32_139 = arith.constant 3 : i32
    %339 = arith.index_cast %c3_i32_139 : i32 to index
    %c0_140 = arith.constant 0 : index
    %c0_141 = arith.constant 0 : index
    %340 = vector.load %arg1[%339, %c0_140, %c0_141] : memref<16x7x128xf32, #tpu.memory_space<vmem>>, vector<1x1x128xf32>
    %341 = vector.shape_cast %340 : vector<1x1x128xf32> to vector<1x128xf32>
    %342 = arith.index_cast %c3_i32_139 : i32 to index
    %c0_142 = arith.constant 0 : index
    %c0_143 = arith.constant 0 : index
    %343 = vector.load %arg3[%342, %c0_142, %c0_143] : memref<16x40x128xf32, #tpu.memory_space<vmem>>, vector<1x32x128xf32>
    %344 = vector.shape_cast %343 : vector<1x32x128xf32> to vector<32x128xf32>
    %345 = vector.broadcast %341 : vector<1x128xf32> to vector<32x128xf32>
    %346 = arith.mulf %345, %344 : vector<32x128xf32>
    %347 = arith.index_cast %c3_i32_139 : i32 to index
    %c1_144 = arith.constant 1 : index
    %c0_145 = arith.constant 0 : index
    %348 = vector.load %arg1[%347, %c1_144, %c0_145] : memref<16x7x128xf32, #tpu.memory_space<vmem>>, vector<1x1x128xf32>
    %349 = vector.shape_cast %348 : vector<1x1x128xf32> to vector<1x128xf32>
    %350 = arith.index_cast %c3_i32_139 : i32 to index
    %c1_146 = arith.constant 1 : index
    %c0_147 = arith.constant 0 : index
    %351 = vector.load %arg3[%350, %c1_146, %c0_147] : memref<16x40x128xf32, #tpu.memory_space<vmem>>, vector<1x32x128xf32>
    %352 = vector.shape_cast %351 : vector<1x32x128xf32> to vector<32x128xf32>
    %353 = vector.broadcast %349 : vector<1x128xf32> to vector<32x128xf32>
    %354 = arith.mulf %353, %352 : vector<32x128xf32>
    %355 = arith.addf %346, %354 : vector<32x128xf32>
    %356 = arith.index_cast %c3_i32_139 : i32 to index
    %c2_148 = arith.constant 2 : index
    %c0_149 = arith.constant 0 : index
    %357 = vector.load %arg1[%356, %c2_148, %c0_149] : memref<16x7x128xf32, #tpu.memory_space<vmem>>, vector<1x1x128xf32>
    %358 = vector.shape_cast %357 : vector<1x1x128xf32> to vector<1x128xf32>
    %359 = arith.index_cast %c3_i32_139 : i32 to index
    %c2_150 = arith.constant 2 : index
    %c0_151 = arith.constant 0 : index
    %360 = vector.load %arg3[%359, %c2_150, %c0_151] : memref<16x40x128xf32, #tpu.memory_space<vmem>>, vector<1x32x128xf32>
    %361 = vector.shape_cast %360 : vector<1x32x128xf32> to vector<32x128xf32>
    %362 = vector.broadcast %358 : vector<1x128xf32> to vector<32x128xf32>
    %363 = arith.mulf %362, %361 : vector<32x128xf32>
    %364 = arith.addf %355, %363 : vector<32x128xf32>
    %365 = arith.index_cast %c3_i32_139 : i32 to index
    %c3_152 = arith.constant 3 : index
    %c0_153 = arith.constant 0 : index
    %366 = vector.load %arg1[%365, %c3_152, %c0_153] : memref<16x7x128xf32, #tpu.memory_space<vmem>>, vector<1x1x128xf32>
    %367 = vector.shape_cast %366 : vector<1x1x128xf32> to vector<1x128xf32>
    %368 = arith.index_cast %c3_i32_139 : i32 to index
    %c3_154 = arith.constant 3 : index
    %c0_155 = arith.constant 0 : index
    %369 = vector.load %arg3[%368, %c3_154, %c0_155] : memref<16x40x128xf32, #tpu.memory_space<vmem>>, vector<1x32x128xf32>
    %370 = vector.shape_cast %369 : vector<1x32x128xf32> to vector<32x128xf32>
    %371 = vector.broadcast %367 : vector<1x128xf32> to vector<32x128xf32>
    %372 = arith.mulf %371, %370 : vector<32x128xf32>
    %373 = arith.addf %364, %372 : vector<32x128xf32>
    %374 = arith.index_cast %c3_i32_139 : i32 to index
    %c4_156 = arith.constant 4 : index
    %c0_157 = arith.constant 0 : index
    %375 = vector.load %arg1[%374, %c4_156, %c0_157] : memref<16x7x128xf32, #tpu.memory_space<vmem>>, vector<1x1x128xf32>
    %376 = vector.shape_cast %375 : vector<1x1x128xf32> to vector<1x128xf32>
    %377 = arith.index_cast %c3_i32_139 : i32 to index
    %c4_158 = arith.constant 4 : index
    %c0_159 = arith.constant 0 : index
    %378 = vector.load %arg3[%377, %c4_158, %c0_159] : memref<16x40x128xf32, #tpu.memory_space<vmem>>, vector<1x32x128xf32>
    %379 = vector.shape_cast %378 : vector<1x32x128xf32> to vector<32x128xf32>
    %380 = vector.broadcast %376 : vector<1x128xf32> to vector<32x128xf32>
    %381 = arith.mulf %380, %379 : vector<32x128xf32>
    %382 = arith.addf %373, %381 : vector<32x128xf32>
    %383 = arith.index_cast %c3_i32_139 : i32 to index
    %c5_160 = arith.constant 5 : index
    %c0_161 = arith.constant 0 : index
    %384 = vector.load %arg1[%383, %c5_160, %c0_161] : memref<16x7x128xf32, #tpu.memory_space<vmem>>, vector<1x1x128xf32>
    %385 = vector.shape_cast %384 : vector<1x1x128xf32> to vector<1x128xf32>
    %386 = arith.index_cast %c3_i32_139 : i32 to index
    %c5_162 = arith.constant 5 : index
    %c0_163 = arith.constant 0 : index
    %387 = vector.load %arg3[%386, %c5_162, %c0_163] : memref<16x40x128xf32, #tpu.memory_space<vmem>>, vector<1x32x128xf32>
    %388 = vector.shape_cast %387 : vector<1x32x128xf32> to vector<32x128xf32>
    %389 = vector.broadcast %385 : vector<1x128xf32> to vector<32x128xf32>
    %390 = arith.mulf %389, %388 : vector<32x128xf32>
    %391 = arith.addf %382, %390 : vector<32x128xf32>
    %392 = arith.index_cast %c3_i32_139 : i32 to index
    %c6_164 = arith.constant 6 : index
    %c0_165 = arith.constant 0 : index
    %393 = vector.load %arg1[%392, %c6_164, %c0_165] : memref<16x7x128xf32, #tpu.memory_space<vmem>>, vector<1x1x128xf32>
    %394 = vector.shape_cast %393 : vector<1x1x128xf32> to vector<1x128xf32>
    %395 = arith.index_cast %c3_i32_139 : i32 to index
    %c6_166 = arith.constant 6 : index
    %c0_167 = arith.constant 0 : index
    %396 = vector.load %arg3[%395, %c6_166, %c0_167] : memref<16x40x128xf32, #tpu.memory_space<vmem>>, vector<1x32x128xf32>
    %397 = vector.shape_cast %396 : vector<1x32x128xf32> to vector<32x128xf32>
    %398 = vector.broadcast %394 : vector<1x128xf32> to vector<32x128xf32>
    %399 = arith.mulf %398, %397 : vector<32x128xf32>
    %400 = arith.addf %391, %399 : vector<32x128xf32>
    %c3_i32_168 = arith.constant 3 : i32
    %401 = tpu.dynamic_rotate %400 by %c3_i32_168 dim 1 : vector<32x128xf32>, i32 -> vector<32x128xf32>
    %402 = arith.index_cast %c3_i32_139 : i32 to index
    %c0_169 = arith.constant 0 : index
    %c0_170 = arith.constant 0 : index
    %403 = vector.load %arg2[%402, %c0_169, %c0_170] : memref<16x7x128xf32, #tpu.memory_space<vmem>>, vector<1x1x128xf32>
    %404 = vector.shape_cast %403 : vector<1x1x128xf32> to vector<1x128xf32>
    %405 = vector.broadcast %404 : vector<1x128xf32> to vector<32x128xf32>
    %406 = arith.mulf %405, %401 : vector<32x128xf32>
    %c2_i32_171 = arith.constant 2 : i32
    %407 = tpu.dynamic_rotate %400 by %c2_i32_171 dim 1 : vector<32x128xf32>, i32 -> vector<32x128xf32>
    %408 = arith.index_cast %c3_i32_139 : i32 to index
    %c1_172 = arith.constant 1 : index
    %c0_173 = arith.constant 0 : index
    %409 = vector.load %arg2[%408, %c1_172, %c0_173] : memref<16x7x128xf32, #tpu.memory_space<vmem>>, vector<1x1x128xf32>
    %410 = vector.shape_cast %409 : vector<1x1x128xf32> to vector<1x128xf32>
    %411 = vector.broadcast %410 : vector<1x128xf32> to vector<32x128xf32>
    %412 = arith.mulf %411, %407 : vector<32x128xf32>
    %413 = arith.addf %406, %412 : vector<32x128xf32>
    %c1_i32_174 = arith.constant 1 : i32
    %414 = tpu.dynamic_rotate %400 by %c1_i32_174 dim 1 : vector<32x128xf32>, i32 -> vector<32x128xf32>
    %415 = arith.index_cast %c3_i32_139 : i32 to index
    %c2_175 = arith.constant 2 : index
    %c0_176 = arith.constant 0 : index
    %416 = vector.load %arg2[%415, %c2_175, %c0_176] : memref<16x7x128xf32, #tpu.memory_space<vmem>>, vector<1x1x128xf32>
    %417 = vector.shape_cast %416 : vector<1x1x128xf32> to vector<1x128xf32>
    %418 = vector.broadcast %417 : vector<1x128xf32> to vector<32x128xf32>
    %419 = arith.mulf %418, %414 : vector<32x128xf32>
    %420 = arith.addf %413, %419 : vector<32x128xf32>
    %421 = arith.index_cast %c3_i32_139 : i32 to index
    %c3_177 = arith.constant 3 : index
    %c0_178 = arith.constant 0 : index
    %422 = vector.load %arg2[%421, %c3_177, %c0_178] : memref<16x7x128xf32, #tpu.memory_space<vmem>>, vector<1x1x128xf32>
    %423 = vector.shape_cast %422 : vector<1x1x128xf32> to vector<1x128xf32>
    %424 = vector.broadcast %423 : vector<1x128xf32> to vector<32x128xf32>
    %425 = arith.mulf %424, %400 : vector<32x128xf32>
    %426 = arith.addf %420, %425 : vector<32x128xf32>
    %c127_i32_179 = arith.constant 127 : i32
    %427 = tpu.dynamic_rotate %400 by %c127_i32_179 dim 1 : vector<32x128xf32>, i32 -> vector<32x128xf32>
    %428 = arith.index_cast %c3_i32_139 : i32 to index
    %c4_180 = arith.constant 4 : index
    %c0_181 = arith.constant 0 : index
    %429 = vector.load %arg2[%428, %c4_180, %c0_181] : memref<16x7x128xf32, #tpu.memory_space<vmem>>, vector<1x1x128xf32>
    %430 = vector.shape_cast %429 : vector<1x1x128xf32> to vector<1x128xf32>
    %431 = vector.broadcast %430 : vector<1x128xf32> to vector<32x128xf32>
    %432 = arith.mulf %431, %427 : vector<32x128xf32>
    %433 = arith.addf %426, %432 : vector<32x128xf32>
    %c126_i32_182 = arith.constant 126 : i32
    %434 = tpu.dynamic_rotate %400 by %c126_i32_182 dim 1 : vector<32x128xf32>, i32 -> vector<32x128xf32>
    %435 = arith.index_cast %c3_i32_139 : i32 to index
    %c5_183 = arith.constant 5 : index
    %c0_184 = arith.constant 0 : index
    %436 = vector.load %arg2[%435, %c5_183, %c0_184] : memref<16x7x128xf32, #tpu.memory_space<vmem>>, vector<1x1x128xf32>
    %437 = vector.shape_cast %436 : vector<1x1x128xf32> to vector<1x128xf32>
    %438 = vector.broadcast %437 : vector<1x128xf32> to vector<32x128xf32>
    %439 = arith.mulf %438, %434 : vector<32x128xf32>
    %440 = arith.addf %433, %439 : vector<32x128xf32>
    %c125_i32_185 = arith.constant 125 : i32
    %441 = tpu.dynamic_rotate %400 by %c125_i32_185 dim 1 : vector<32x128xf32>, i32 -> vector<32x128xf32>
    %442 = arith.index_cast %c3_i32_139 : i32 to index
    %c6_186 = arith.constant 6 : index
    %c0_187 = arith.constant 0 : index
    %443 = vector.load %arg2[%442, %c6_186, %c0_187] : memref<16x7x128xf32, #tpu.memory_space<vmem>>, vector<1x1x128xf32>
    %444 = vector.shape_cast %443 : vector<1x1x128xf32> to vector<1x128xf32>
    %445 = vector.broadcast %444 : vector<1x128xf32> to vector<32x128xf32>
    %446 = arith.mulf %445, %441 : vector<32x128xf32>
    %447 = arith.addf %440, %446 : vector<32x128xf32>
    %448 = arith.index_cast %c3_i32_139 : i32 to index
    %c0_188 = arith.constant 0 : index
    %c0_189 = arith.constant 0 : index
    %449 = vector.load %arg4[%448, %c0_188, %c0_189] : memref<16x32x128xf32, #tpu.memory_space<vmem>>, vector<1x32x128xf32>
    %450 = vector.shape_cast %449 : vector<1x32x128xf32> to vector<32x128xf32>
    %451 = vector.shape_cast %447 : vector<32x128xf32> to vector<1x32x128xf32>
    tpu.vector_store %arg4[%448, %c0_188, %c0_189], %451 {strides = array<i32>} : memref<16x32x128xf32, #tpu.memory_space<vmem>>, vector<1x32x128xf32>,
    %c4_i32 = arith.constant 4 : i32
    %452 = arith.index_cast %c4_i32 : i32 to index
    %c0_190 = arith.constant 0 : index
    %c0_191 = arith.constant 0 : index
    %453 = vector.load %arg1[%452, %c0_190, %c0_191] : memref<16x7x128xf32, #tpu.memory_space<vmem>>, vector<1x1x128xf32>
    %454 = vector.shape_cast %453 : vector<1x1x128xf32> to vector<1x128xf32>
    %455 = arith.index_cast %c4_i32 : i32 to index
    %c0_192 = arith.constant 0 : index
    %c0_193 = arith.constant 0 : index
    %456 = vector.load %arg3[%455, %c0_192, %c0_193] : memref<16x40x128xf32, #tpu.memory_space<vmem>>, vector<1x32x128xf32>
    %457 = vector.shape_cast %456 : vector<1x32x128xf32> to vector<32x128xf32>
    %458 = vector.broadcast %454 : vector<1x128xf32> to vector<32x128xf32>
    %459 = arith.mulf %458, %457 : vector<32x128xf32>
    %460 = arith.index_cast %c4_i32 : i32 to index
    %c1_194 = arith.constant 1 : index
    %c0_195 = arith.constant 0 : index
    %461 = vector.load %arg1[%460, %c1_194, %c0_195] : memref<16x7x128xf32, #tpu.memory_space<vmem>>, vector<1x1x128xf32>
    %462 = vector.shape_cast %461 : vector<1x1x128xf32> to vector<1x128xf32>
    %463 = arith.index_cast %c4_i32 : i32 to index
    %c1_196 = arith.constant 1 : index
    %c0_197 = arith.constant 0 : index
    %464 = vector.load %arg3[%463, %c1_196, %c0_197] : memref<16x40x128xf32, #tpu.memory_space<vmem>>, vector<1x32x128xf32>
    %465 = vector.shape_cast %464 : vector<1x32x128xf32> to vector<32x128xf32>
    %466 = vector.broadcast %462 : vector<1x128xf32> to vector<32x128xf32>
    %467 = arith.mulf %466, %465 : vector<32x128xf32>
    %468 = arith.addf %459, %467 : vector<32x128xf32>
    %469 = arith.index_cast %c4_i32 : i32 to index
    %c2_198 = arith.constant 2 : index
    %c0_199 = arith.constant 0 : index
    %470 = vector.load %arg1[%469, %c2_198, %c0_199] : memref<16x7x128xf32, #tpu.memory_space<vmem>>, vector<1x1x128xf32>
    %471 = vector.shape_cast %470 : vector<1x1x128xf32> to vector<1x128xf32>
    %472 = arith.index_cast %c4_i32 : i32 to index
    %c2_200 = arith.constant 2 : index
    %c0_201 = arith.constant 0 : index
    %473 = vector.load %arg3[%472, %c2_200, %c0_201] : memref<16x40x128xf32, #tpu.memory_space<vmem>>, vector<1x32x128xf32>
    %474 = vector.shape_cast %473 : vector<1x32x128xf32> to vector<32x128xf32>
    %475 = vector.broadcast %471 : vector<1x128xf32> to vector<32x128xf32>
    %476 = arith.mulf %475, %474 : vector<32x128xf32>
    %477 = arith.addf %468, %476 : vector<32x128xf32>
    %478 = arith.index_cast %c4_i32 : i32 to index
    %c3_202 = arith.constant 3 : index
    %c0_203 = arith.constant 0 : index
    %479 = vector.load %arg1[%478, %c3_202, %c0_203] : memref<16x7x128xf32, #tpu.memory_space<vmem>>, vector<1x1x128xf32>
    %480 = vector.shape_cast %479 : vector<1x1x128xf32> to vector<1x128xf32>
    %481 = arith.index_cast %c4_i32 : i32 to index
    %c3_204 = arith.constant 3 : index
    %c0_205 = arith.constant 0 : index
    %482 = vector.load %arg3[%481, %c3_204, %c0_205] : memref<16x40x128xf32, #tpu.memory_space<vmem>>, vector<1x32x128xf32>
    %483 = vector.shape_cast %482 : vector<1x32x128xf32> to vector<32x128xf32>
    %484 = vector.broadcast %480 : vector<1x128xf32> to vector<32x128xf32>
    %485 = arith.mulf %484, %483 : vector<32x128xf32>
    %486 = arith.addf %477, %485 : vector<32x128xf32>
    %487 = arith.index_cast %c4_i32 : i32 to index
    %c4_206 = arith.constant 4 : index
    %c0_207 = arith.constant 0 : index
    %488 = vector.load %arg1[%487, %c4_206, %c0_207] : memref<16x7x128xf32, #tpu.memory_space<vmem>>, vector<1x1x128xf32>
    %489 = vector.shape_cast %488 : vector<1x1x128xf32> to vector<1x128xf32>
    %490 = arith.index_cast %c4_i32 : i32 to index
    %c4_208 = arith.constant 4 : index
    %c0_209 = arith.constant 0 : index
    %491 = vector.load %arg3[%490, %c4_208, %c0_209] : memref<16x40x128xf32, #tpu.memory_space<vmem>>, vector<1x32x128xf32>
    %492 = vector.shape_cast %491 : vector<1x32x128xf32> to vector<32x128xf32>
    %493 = vector.broadcast %489 : vector<1x128xf32> to vector<32x128xf32>
    %494 = arith.mulf %493, %492 : vector<32x128xf32>
    %495 = arith.addf %486, %494 : vector<32x128xf32>
    %496 = arith.index_cast %c4_i32 : i32 to index
    %c5_210 = arith.constant 5 : index
    %c0_211 = arith.constant 0 : index
    %497 = vector.load %arg1[%496, %c5_210, %c0_211] : memref<16x7x128xf32, #tpu.memory_space<vmem>>, vector<1x1x128xf32>
    %498 = vector.shape_cast %497 : vector<1x1x128xf32> to vector<1x128xf32>
    %499 = arith.index_cast %c4_i32 : i32 to index
    %c5_212 = arith.constant 5 : index
    %c0_213 = arith.constant 0 : index
    %500 = vector.load %arg3[%499, %c5_212, %c0_213] : memref<16x40x128xf32, #tpu.memory_space<vmem>>, vector<1x32x128xf32>
    %501 = vector.shape_cast %500 : vector<1x32x128xf32> to vector<32x128xf32>
    %502 = vector.broadcast %498 : vector<1x128xf32> to vector<32x128xf32>
    %503 = arith.mulf %502, %501 : vector<32x128xf32>
    %504 = arith.addf %495, %503 : vector<32x128xf32>
    %505 = arith.index_cast %c4_i32 : i32 to index
    %c6_214 = arith.constant 6 : index
    %c0_215 = arith.constant 0 : index
    %506 = vector.load %arg1[%505, %c6_214, %c0_215] : memref<16x7x128xf32, #tpu.memory_space<vmem>>, vector<1x1x128xf32>
    %507 = vector.shape_cast %506 : vector<1x1x128xf32> to vector<1x128xf32>
    %508 = arith.index_cast %c4_i32 : i32 to index
    %c6_216 = arith.constant 6 : index
    %c0_217 = arith.constant 0 : index
    %509 = vector.load %arg3[%508, %c6_216, %c0_217] : memref<16x40x128xf32, #tpu.memory_space<vmem>>, vector<1x32x128xf32>
    %510 = vector.shape_cast %509 : vector<1x32x128xf32> to vector<32x128xf32>
    %511 = vector.broadcast %507 : vector<1x128xf32> to vector<32x128xf32>
    %512 = arith.mulf %511, %510 : vector<32x128xf32>
    %513 = arith.addf %504, %512 : vector<32x128xf32>
    %c3_i32_218 = arith.constant 3 : i32
    %514 = tpu.dynamic_rotate %513 by %c3_i32_218 dim 1 : vector<32x128xf32>, i32 -> vector<32x128xf32>
    %515 = arith.index_cast %c4_i32 : i32 to index
    %c0_219 = arith.constant 0 : index
    %c0_220 = arith.constant 0 : index
    %516 = vector.load %arg2[%515, %c0_219, %c0_220] : memref<16x7x128xf32, #tpu.memory_space<vmem>>, vector<1x1x128xf32>
    %517 = vector.shape_cast %516 : vector<1x1x128xf32> to vector<1x128xf32>
    %518 = vector.broadcast %517 : vector<1x128xf32> to vector<32x128xf32>
    %519 = arith.mulf %518, %514 : vector<32x128xf32>
    %c2_i32_221 = arith.constant 2 : i32
    %520 = tpu.dynamic_rotate %513 by %c2_i32_221 dim 1 : vector<32x128xf32>, i32 -> vector<32x128xf32>
    %521 = arith.index_cast %c4_i32 : i32 to index
    %c1_222 = arith.constant 1 : index
    %c0_223 = arith.constant 0 : index
    %522 = vector.load %arg2[%521, %c1_222, %c0_223] : memref<16x7x128xf32, #tpu.memory_space<vmem>>, vector<1x1x128xf32>
    %523 = vector.shape_cast %522 : vector<1x1x128xf32> to vector<1x128xf32>
    %524 = vector.broadcast %523 : vector<1x128xf32> to vector<32x128xf32>
    %525 = arith.mulf %524, %520 : vector<32x128xf32>
    %526 = arith.addf %519, %525 : vector<32x128xf32>
    %c1_i32_224 = arith.constant 1 : i32
    %527 = tpu.dynamic_rotate %513 by %c1_i32_224 dim 1 : vector<32x128xf32>, i32 -> vector<32x128xf32>
    %528 = arith.index_cast %c4_i32 : i32 to index
    %c2_225 = arith.constant 2 : index
    %c0_226 = arith.constant 0 : index
    %529 = vector.load %arg2[%528, %c2_225, %c0_226] : memref<16x7x128xf32, #tpu.memory_space<vmem>>, vector<1x1x128xf32>
    %530 = vector.shape_cast %529 : vector<1x1x128xf32> to vector<1x128xf32>
    %531 = vector.broadcast %530 : vector<1x128xf32> to vector<32x128xf32>
    %532 = arith.mulf %531, %527 : vector<32x128xf32>
    %533 = arith.addf %526, %532 : vector<32x128xf32>
    %534 = arith.index_cast %c4_i32 : i32 to index
    %c3_227 = arith.constant 3 : index
    %c0_228 = arith.constant 0 : index
    %535 = vector.load %arg2[%534, %c3_227, %c0_228] : memref<16x7x128xf32, #tpu.memory_space<vmem>>, vector<1x1x128xf32>
    %536 = vector.shape_cast %535 : vector<1x1x128xf32> to vector<1x128xf32>
    %537 = vector.broadcast %536 : vector<1x128xf32> to vector<32x128xf32>
    %538 = arith.mulf %537, %513 : vector<32x128xf32>
    %539 = arith.addf %533, %538 : vector<32x128xf32>
    %c127_i32_229 = arith.constant 127 : i32
    %540 = tpu.dynamic_rotate %513 by %c127_i32_229 dim 1 : vector<32x128xf32>, i32 -> vector<32x128xf32>
    %541 = arith.index_cast %c4_i32 : i32 to index
    %c4_230 = arith.constant 4 : index
    %c0_231 = arith.constant 0 : index
    %542 = vector.load %arg2[%541, %c4_230, %c0_231] : memref<16x7x128xf32, #tpu.memory_space<vmem>>, vector<1x1x128xf32>
    %543 = vector.shape_cast %542 : vector<1x1x128xf32> to vector<1x128xf32>
    %544 = vector.broadcast %543 : vector<1x128xf32> to vector<32x128xf32>
    %545 = arith.mulf %544, %540 : vector<32x128xf32>
    %546 = arith.addf %539, %545 : vector<32x128xf32>
    %c126_i32_232 = arith.constant 126 : i32
    %547 = tpu.dynamic_rotate %513 by %c126_i32_232 dim 1 : vector<32x128xf32>, i32 -> vector<32x128xf32>
    %548 = arith.index_cast %c4_i32 : i32 to index
    %c5_233 = arith.constant 5 : index
    %c0_234 = arith.constant 0 : index
    %549 = vector.load %arg2[%548, %c5_233, %c0_234] : memref<16x7x128xf32, #tpu.memory_space<vmem>>, vector<1x1x128xf32>
    %550 = vector.shape_cast %549 : vector<1x1x128xf32> to vector<1x128xf32>
    %551 = vector.broadcast %550 : vector<1x128xf32> to vector<32x128xf32>
    %552 = arith.mulf %551, %547 : vector<32x128xf32>
    %553 = arith.addf %546, %552 : vector<32x128xf32>
    %c125_i32_235 = arith.constant 125 : i32
    %554 = tpu.dynamic_rotate %513 by %c125_i32_235 dim 1 : vector<32x128xf32>, i32 -> vector<32x128xf32>
    %555 = arith.index_cast %c4_i32 : i32 to index
    %c6_236 = arith.constant 6 : index
    %c0_237 = arith.constant 0 : index
    %556 = vector.load %arg2[%555, %c6_236, %c0_237] : memref<16x7x128xf32, #tpu.memory_space<vmem>>, vector<1x1x128xf32>
    %557 = vector.shape_cast %556 : vector<1x1x128xf32> to vector<1x128xf32>
    %558 = vector.broadcast %557 : vector<1x128xf32> to vector<32x128xf32>
    %559 = arith.mulf %558, %554 : vector<32x128xf32>
    %560 = arith.addf %553, %559 : vector<32x128xf32>
    %561 = arith.index_cast %c4_i32 : i32 to index
    %c0_238 = arith.constant 0 : index
    %c0_239 = arith.constant 0 : index
    %562 = vector.load %arg4[%561, %c0_238, %c0_239] : memref<16x32x128xf32, #tpu.memory_space<vmem>>, vector<1x32x128xf32>
    %563 = vector.shape_cast %562 : vector<1x32x128xf32> to vector<32x128xf32>
    %564 = vector.shape_cast %560 : vector<32x128xf32> to vector<1x32x128xf32>
    tpu.vector_store %arg4[%561, %c0_238, %c0_239], %564 {strides = array<i32>} : memref<16x32x128xf32, #tpu.memory_space<vmem>>, vector<1x32x128xf32>,
    %c5_i32 = arith.constant 5 : i32
    %565 = arith.index_cast %c5_i32 : i32 to index
    %c0_240 = arith.constant 0 : index
    %c0_241 = arith.constant 0 : index
    %566 = vector.load %arg1[%565, %c0_240, %c0_241] : memref<16x7x128xf32, #tpu.memory_space<vmem>>, vector<1x1x128xf32>
    %567 = vector.shape_cast %566 : vector<1x1x128xf32> to vector<1x128xf32>
    %568 = arith.index_cast %c5_i32 : i32 to index
    %c0_242 = arith.constant 0 : index
    %c0_243 = arith.constant 0 : index
    %569 = vector.load %arg3[%568, %c0_242, %c0_243] : memref<16x40x128xf32, #tpu.memory_space<vmem>>, vector<1x32x128xf32>
    %570 = vector.shape_cast %569 : vector<1x32x128xf32> to vector<32x128xf32>
    %571 = vector.broadcast %567 : vector<1x128xf32> to vector<32x128xf32>
    %572 = arith.mulf %571, %570 : vector<32x128xf32>
    %573 = arith.index_cast %c5_i32 : i32 to index
    %c1_244 = arith.constant 1 : index
    %c0_245 = arith.constant 0 : index
    %574 = vector.load %arg1[%573, %c1_244, %c0_245] : memref<16x7x128xf32, #tpu.memory_space<vmem>>, vector<1x1x128xf32>
    %575 = vector.shape_cast %574 : vector<1x1x128xf32> to vector<1x128xf32>
    %576 = arith.index_cast %c5_i32 : i32 to index
    %c1_246 = arith.constant 1 : index
    %c0_247 = arith.constant 0 : index
    %577 = vector.load %arg3[%576, %c1_246, %c0_247] : memref<16x40x128xf32, #tpu.memory_space<vmem>>, vector<1x32x128xf32>
    %578 = vector.shape_cast %577 : vector<1x32x128xf32> to vector<32x128xf32>
    %579 = vector.broadcast %575 : vector<1x128xf32> to vector<32x128xf32>
    %580 = arith.mulf %579, %578 : vector<32x128xf32>
    %581 = arith.addf %572, %580 : vector<32x128xf32>
    %582 = arith.index_cast %c5_i32 : i32 to index
    %c2_248 = arith.constant 2 : index
    %c0_249 = arith.constant 0 : index
    %583 = vector.load %arg1[%582, %c2_248, %c0_249] : memref<16x7x128xf32, #tpu.memory_space<vmem>>, vector<1x1x128xf32>
    %584 = vector.shape_cast %583 : vector<1x1x128xf32> to vector<1x128xf32>
    %585 = arith.index_cast %c5_i32 : i32 to index
    %c2_250 = arith.constant 2 : index
    %c0_251 = arith.constant 0 : index
    %586 = vector.load %arg3[%585, %c2_250, %c0_251] : memref<16x40x128xf32, #tpu.memory_space<vmem>>, vector<1x32x128xf32>
    %587 = vector.shape_cast %586 : vector<1x32x128xf32> to vector<32x128xf32>
    %588 = vector.broadcast %584 : vector<1x128xf32> to vector<32x128xf32>
    %589 = arith.mulf %588, %587 : vector<32x128xf32>
    %590 = arith.addf %581, %589 : vector<32x128xf32>
    %591 = arith.index_cast %c5_i32 : i32 to index
    %c3_252 = arith.constant 3 : index
    %c0_253 = arith.constant 0 : index
    %592 = vector.load %arg1[%591, %c3_252, %c0_253] : memref<16x7x128xf32, #tpu.memory_space<vmem>>, vector<1x1x128xf32>
    %593 = vector.shape_cast %592 : vector<1x1x128xf32> to vector<1x128xf32>
    %594 = arith.index_cast %c5_i32 : i32 to index
    %c3_254 = arith.constant 3 : index
    %c0_255 = arith.constant 0 : index
    %595 = vector.load %arg3[%594, %c3_254, %c0_255] : memref<16x40x128xf32, #tpu.memory_space<vmem>>, vector<1x32x128xf32>
    %596 = vector.shape_cast %595 : vector<1x32x128xf32> to vector<32x128xf32>
    %597 = vector.broadcast %593 : vector<1x128xf32> to vector<32x128xf32>
    %598 = arith.mulf %597, %596 : vector<32x128xf32>
    %599 = arith.addf %590, %598 : vector<32x128xf32>
    %600 = arith.index_cast %c5_i32 : i32 to index
    %c4_256 = arith.constant 4 : index
    %c0_257 = arith.constant 0 : index
    %601 = vector.load %arg1[%600, %c4_256, %c0_257] : memref<16x7x128xf32, #tpu.memory_space<vmem>>, vector<1x1x128xf32>
    %602 = vector.shape_cast %601 : vector<1x1x128xf32> to vector<1x128xf32>
    %603 = arith.index_cast %c5_i32 : i32 to index
    %c4_258 = arith.constant 4 : index
    %c0_259 = arith.constant 0 : index
    %604 = vector.load %arg3[%603, %c4_258, %c0_259] : memref<16x40x128xf32, #tpu.memory_space<vmem>>, vector<1x32x128xf32>
    %605 = vector.shape_cast %604 : vector<1x32x128xf32> to vector<32x128xf32>
    %606 = vector.broadcast %602 : vector<1x128xf32> to vector<32x128xf32>
    %607 = arith.mulf %606, %605 : vector<32x128xf32>
    %608 = arith.addf %599, %607 : vector<32x128xf32>
    %609 = arith.index_cast %c5_i32 : i32 to index
    %c5_260 = arith.constant 5 : index
    %c0_261 = arith.constant 0 : index
    %610 = vector.load %arg1[%609, %c5_260, %c0_261] : memref<16x7x128xf32, #tpu.memory_space<vmem>>, vector<1x1x128xf32>
    %611 = vector.shape_cast %610 : vector<1x1x128xf32> to vector<1x128xf32>
    %612 = arith.index_cast %c5_i32 : i32 to index
    %c5_262 = arith.constant 5 : index
    %c0_263 = arith.constant 0 : index
    %613 = vector.load %arg3[%612, %c5_262, %c0_263] : memref<16x40x128xf32, #tpu.memory_space<vmem>>, vector<1x32x128xf32>
    %614 = vector.shape_cast %613 : vector<1x32x128xf32> to vector<32x128xf32>
    %615 = vector.broadcast %611 : vector<1x128xf32> to vector<32x128xf32>
    %616 = arith.mulf %615, %614 : vector<32x128xf32>
    %617 = arith.addf %608, %616 : vector<32x128xf32>
    %618 = arith.index_cast %c5_i32 : i32 to index
    %c6_264 = arith.constant 6 : index
    %c0_265 = arith.constant 0 : index
    %619 = vector.load %arg1[%618, %c6_264, %c0_265] : memref<16x7x128xf32, #tpu.memory_space<vmem>>, vector<1x1x128xf32>
    %620 = vector.shape_cast %619 : vector<1x1x128xf32> to vector<1x128xf32>
    %621 = arith.index_cast %c5_i32 : i32 to index
    %c6_266 = arith.constant 6 : index
    %c0_267 = arith.constant 0 : index
    %622 = vector.load %arg3[%621, %c6_266, %c0_267] : memref<16x40x128xf32, #tpu.memory_space<vmem>>, vector<1x32x128xf32>
    %623 = vector.shape_cast %622 : vector<1x32x128xf32> to vector<32x128xf32>
    %624 = vector.broadcast %620 : vector<1x128xf32> to vector<32x128xf32>
    %625 = arith.mulf %624, %623 : vector<32x128xf32>
    %626 = arith.addf %617, %625 : vector<32x128xf32>
    %c3_i32_268 = arith.constant 3 : i32
    %627 = tpu.dynamic_rotate %626 by %c3_i32_268 dim 1 : vector<32x128xf32>, i32 -> vector<32x128xf32>
    %628 = arith.index_cast %c5_i32 : i32 to index
    %c0_269 = arith.constant 0 : index
    %c0_270 = arith.constant 0 : index
    %629 = vector.load %arg2[%628, %c0_269, %c0_270] : memref<16x7x128xf32, #tpu.memory_space<vmem>>, vector<1x1x128xf32>
    %630 = vector.shape_cast %629 : vector<1x1x128xf32> to vector<1x128xf32>
    %631 = vector.broadcast %630 : vector<1x128xf32> to vector<32x128xf32>
    %632 = arith.mulf %631, %627 : vector<32x128xf32>
    %c2_i32_271 = arith.constant 2 : i32
    %633 = tpu.dynamic_rotate %626 by %c2_i32_271 dim 1 : vector<32x128xf32>, i32 -> vector<32x128xf32>
    %634 = arith.index_cast %c5_i32 : i32 to index
    %c1_272 = arith.constant 1 : index
    %c0_273 = arith.constant 0 : index
    %635 = vector.load %arg2[%634, %c1_272, %c0_273] : memref<16x7x128xf32, #tpu.memory_space<vmem>>, vector<1x1x128xf32>
    %636 = vector.shape_cast %635 : vector<1x1x128xf32> to vector<1x128xf32>
    %637 = vector.broadcast %636 : vector<1x128xf32> to vector<32x128xf32>
    %638 = arith.mulf %637, %633 : vector<32x128xf32>
    %639 = arith.addf %632, %638 : vector<32x128xf32>
    %c1_i32_274 = arith.constant 1 : i32
    %640 = tpu.dynamic_rotate %626 by %c1_i32_274 dim 1 : vector<32x128xf32>, i32 -> vector<32x128xf32>
    %641 = arith.index_cast %c5_i32 : i32 to index
    %c2_275 = arith.constant 2 : index
    %c0_276 = arith.constant 0 : index
    %642 = vector.load %arg2[%641, %c2_275, %c0_276] : memref<16x7x128xf32, #tpu.memory_space<vmem>>, vector<1x1x128xf32>
    %643 = vector.shape_cast %642 : vector<1x1x128xf32> to vector<1x128xf32>
    %644 = vector.broadcast %643 : vector<1x128xf32> to vector<32x128xf32>
    %645 = arith.mulf %644, %640 : vector<32x128xf32>
    %646 = arith.addf %639, %645 : vector<32x128xf32>
    %647 = arith.index_cast %c5_i32 : i32 to index
    %c3_277 = arith.constant 3 : index
    %c0_278 = arith.constant 0 : index
    %648 = vector.load %arg2[%647, %c3_277, %c0_278] : memref<16x7x128xf32, #tpu.memory_space<vmem>>, vector<1x1x128xf32>
    %649 = vector.shape_cast %648 : vector<1x1x128xf32> to vector<1x128xf32>
    %650 = vector.broadcast %649 : vector<1x128xf32> to vector<32x128xf32>
    %651 = arith.mulf %650, %626 : vector<32x128xf32>
    %652 = arith.addf %646, %651 : vector<32x128xf32>
    %c127_i32_279 = arith.constant 127 : i32
    %653 = tpu.dynamic_rotate %626 by %c127_i32_279 dim 1 : vector<32x128xf32>, i32 -> vector<32x128xf32>
    %654 = arith.index_cast %c5_i32 : i32 to index
    %c4_280 = arith.constant 4 : index
    %c0_281 = arith.constant 0 : index
    %655 = vector.load %arg2[%654, %c4_280, %c0_281] : memref<16x7x128xf32, #tpu.memory_space<vmem>>, vector<1x1x128xf32>
    %656 = vector.shape_cast %655 : vector<1x1x128xf32> to vector<1x128xf32>
    %657 = vector.broadcast %656 : vector<1x128xf32> to vector<32x128xf32>
    %658 = arith.mulf %657, %653 : vector<32x128xf32>
    %659 = arith.addf %652, %658 : vector<32x128xf32>
    %c126_i32_282 = arith.constant 126 : i32
    %660 = tpu.dynamic_rotate %626 by %c126_i32_282 dim 1 : vector<32x128xf32>, i32 -> vector<32x128xf32>
    %661 = arith.index_cast %c5_i32 : i32 to index
    %c5_283 = arith.constant 5 : index
    %c0_284 = arith.constant 0 : index
    %662 = vector.load %arg2[%661, %c5_283, %c0_284] : memref<16x7x128xf32, #tpu.memory_space<vmem>>, vector<1x1x128xf32>
    %663 = vector.shape_cast %662 : vector<1x1x128xf32> to vector<1x128xf32>
    %664 = vector.broadcast %663 : vector<1x128xf32> to vector<32x128xf32>
    %665 = arith.mulf %664, %660 : vector<32x128xf32>
    %666 = arith.addf %659, %665 : vector<32x128xf32>
    %c125_i32_285 = arith.constant 125 : i32
    %667 = tpu.dynamic_rotate %626 by %c125_i32_285 dim 1 : vector<32x128xf32>, i32 -> vector<32x128xf32>
    %668 = arith.index_cast %c5_i32 : i32 to index
    %c6_286 = arith.constant 6 : index
    %c0_287 = arith.constant 0 : index
    %669 = vector.load %arg2[%668, %c6_286, %c0_287] : memref<16x7x128xf32, #tpu.memory_space<vmem>>, vector<1x1x128xf32>
    %670 = vector.shape_cast %669 : vector<1x1x128xf32> to vector<1x128xf32>
    %671 = vector.broadcast %670 : vector<1x128xf32> to vector<32x128xf32>
    %672 = arith.mulf %671, %667 : vector<32x128xf32>
    %673 = arith.addf %666, %672 : vector<32x128xf32>
    %674 = arith.index_cast %c5_i32 : i32 to index
    %c0_288 = arith.constant 0 : index
    %c0_289 = arith.constant 0 : index
    %675 = vector.load %arg4[%674, %c0_288, %c0_289] : memref<16x32x128xf32, #tpu.memory_space<vmem>>, vector<1x32x128xf32>
    %676 = vector.shape_cast %675 : vector<1x32x128xf32> to vector<32x128xf32>
    %677 = vector.shape_cast %673 : vector<32x128xf32> to vector<1x32x128xf32>
    tpu.vector_store %arg4[%674, %c0_288, %c0_289], %677 {strides = array<i32>} : memref<16x32x128xf32, #tpu.memory_space<vmem>>, vector<1x32x128xf32>,
    %c6_i32 = arith.constant 6 : i32
    %678 = arith.index_cast %c6_i32 : i32 to index
    %c0_290 = arith.constant 0 : index
    %c0_291 = arith.constant 0 : index
    %679 = vector.load %arg1[%678, %c0_290, %c0_291] : memref<16x7x128xf32, #tpu.memory_space<vmem>>, vector<1x1x128xf32>
    %680 = vector.shape_cast %679 : vector<1x1x128xf32> to vector<1x128xf32>
    %681 = arith.index_cast %c6_i32 : i32 to index
    %c0_292 = arith.constant 0 : index
    %c0_293 = arith.constant 0 : index
    %682 = vector.load %arg3[%681, %c0_292, %c0_293] : memref<16x40x128xf32, #tpu.memory_space<vmem>>, vector<1x32x128xf32>
    %683 = vector.shape_cast %682 : vector<1x32x128xf32> to vector<32x128xf32>
    %684 = vector.broadcast %680 : vector<1x128xf32> to vector<32x128xf32>
    %685 = arith.mulf %684, %683 : vector<32x128xf32>
    %686 = arith.index_cast %c6_i32 : i32 to index
    %c1_294 = arith.constant 1 : index
    %c0_295 = arith.constant 0 : index
    %687 = vector.load %arg1[%686, %c1_294, %c0_295] : memref<16x7x128xf32, #tpu.memory_space<vmem>>, vector<1x1x128xf32>
    %688 = vector.shape_cast %687 : vector<1x1x128xf32> to vector<1x128xf32>
    %689 = arith.index_cast %c6_i32 : i32 to index
    %c1_296 = arith.constant 1 : index
    %c0_297 = arith.constant 0 : index
    %690 = vector.load %arg3[%689, %c1_296, %c0_297] : memref<16x40x128xf32, #tpu.memory_space<vmem>>, vector<1x32x128xf32>
    %691 = vector.shape_cast %690 : vector<1x32x128xf32> to vector<32x128xf32>
    %692 = vector.broadcast %688 : vector<1x128xf32> to vector<32x128xf32>
    %693 = arith.mulf %692, %691 : vector<32x128xf32>
    %694 = arith.addf %685, %693 : vector<32x128xf32>
    %695 = arith.index_cast %c6_i32 : i32 to index
    %c2_298 = arith.constant 2 : index
    %c0_299 = arith.constant 0 : index
    %696 = vector.load %arg1[%695, %c2_298, %c0_299] : memref<16x7x128xf32, #tpu.memory_space<vmem>>, vector<1x1x128xf32>
    %697 = vector.shape_cast %696 : vector<1x1x128xf32> to vector<1x128xf32>
    %698 = arith.index_cast %c6_i32 : i32 to index
    %c2_300 = arith.constant 2 : index
    %c0_301 = arith.constant 0 : index
    %699 = vector.load %arg3[%698, %c2_300, %c0_301] : memref<16x40x128xf32, #tpu.memory_space<vmem>>, vector<1x32x128xf32>
    %700 = vector.shape_cast %699 : vector<1x32x128xf32> to vector<32x128xf32>
    %701 = vector.broadcast %697 : vector<1x128xf32> to vector<32x128xf32>
    %702 = arith.mulf %701, %700 : vector<32x128xf32>
    %703 = arith.addf %694, %702 : vector<32x128xf32>
    %704 = arith.index_cast %c6_i32 : i32 to index
    %c3_302 = arith.constant 3 : index
    %c0_303 = arith.constant 0 : index
    %705 = vector.load %arg1[%704, %c3_302, %c0_303] : memref<16x7x128xf32, #tpu.memory_space<vmem>>, vector<1x1x128xf32>
    %706 = vector.shape_cast %705 : vector<1x1x128xf32> to vector<1x128xf32>
    %707 = arith.index_cast %c6_i32 : i32 to index
    %c3_304 = arith.constant 3 : index
    %c0_305 = arith.constant 0 : index
    %708 = vector.load %arg3[%707, %c3_304, %c0_305] : memref<16x40x128xf32, #tpu.memory_space<vmem>>, vector<1x32x128xf32>
    %709 = vector.shape_cast %708 : vector<1x32x128xf32> to vector<32x128xf32>
    %710 = vector.broadcast %706 : vector<1x128xf32> to vector<32x128xf32>
    %711 = arith.mulf %710, %709 : vector<32x128xf32>
    %712 = arith.addf %703, %711 : vector<32x128xf32>
    %713 = arith.index_cast %c6_i32 : i32 to index
    %c4_306 = arith.constant 4 : index
    %c0_307 = arith.constant 0 : index
    %714 = vector.load %arg1[%713, %c4_306, %c0_307] : memref<16x7x128xf32, #tpu.memory_space<vmem>>, vector<1x1x128xf32>
    %715 = vector.shape_cast %714 : vector<1x1x128xf32> to vector<1x128xf32>
    %716 = arith.index_cast %c6_i32 : i32 to index
    %c4_308 = arith.constant 4 : index
    %c0_309 = arith.constant 0 : index
    %717 = vector.load %arg3[%716, %c4_308, %c0_309] : memref<16x40x128xf32, #tpu.memory_space<vmem>>, vector<1x32x128xf32>
    %718 = vector.shape_cast %717 : vector<1x32x128xf32> to vector<32x128xf32>
    %719 = vector.broadcast %715 : vector<1x128xf32> to vector<32x128xf32>
    %720 = arith.mulf %719, %718 : vector<32x128xf32>
    %721 = arith.addf %712, %720 : vector<32x128xf32>
    %722 = arith.index_cast %c6_i32 : i32 to index
    %c5_310 = arith.constant 5 : index
    %c0_311 = arith.constant 0 : index
    %723 = vector.load %arg1[%722, %c5_310, %c0_311] : memref<16x7x128xf32, #tpu.memory_space<vmem>>, vector<1x1x128xf32>
    %724 = vector.shape_cast %723 : vector<1x1x128xf32> to vector<1x128xf32>
    %725 = arith.index_cast %c6_i32 : i32 to index
    %c5_312 = arith.constant 5 : index
    %c0_313 = arith.constant 0 : index
    %726 = vector.load %arg3[%725, %c5_312, %c0_313] : memref<16x40x128xf32, #tpu.memory_space<vmem>>, vector<1x32x128xf32>
    %727 = vector.shape_cast %726 : vector<1x32x128xf32> to vector<32x128xf32>
    %728 = vector.broadcast %724 : vector<1x128xf32> to vector<32x128xf32>
    %729 = arith.mulf %728, %727 : vector<32x128xf32>
    %730 = arith.addf %721, %729 : vector<32x128xf32>
    %731 = arith.index_cast %c6_i32 : i32 to index
    %c6_314 = arith.constant 6 : index
    %c0_315 = arith.constant 0 : index
    %732 = vector.load %arg1[%731, %c6_314, %c0_315] : memref<16x7x128xf32, #tpu.memory_space<vmem>>, vector<1x1x128xf32>
    %733 = vector.shape_cast %732 : vector<1x1x128xf32> to vector<1x128xf32>
    %734 = arith.index_cast %c6_i32 : i32 to index
    %c6_316 = arith.constant 6 : index
    %c0_317 = arith.constant 0 : index
    %735 = vector.load %arg3[%734, %c6_316, %c0_317] : memref<16x40x128xf32, #tpu.memory_space<vmem>>, vector<1x32x128xf32>
    %736 = vector.shape_cast %735 : vector<1x32x128xf32> to vector<32x128xf32>
    %737 = vector.broadcast %733 : vector<1x128xf32> to vector<32x128xf32>
    %738 = arith.mulf %737, %736 : vector<32x128xf32>
    %739 = arith.addf %730, %738 : vector<32x128xf32>
    %c3_i32_318 = arith.constant 3 : i32
    %740 = tpu.dynamic_rotate %739 by %c3_i32_318 dim 1 : vector<32x128xf32>, i32 -> vector<32x128xf32>
    %741 = arith.index_cast %c6_i32 : i32 to index
    %c0_319 = arith.constant 0 : index
    %c0_320 = arith.constant 0 : index
    %742 = vector.load %arg2[%741, %c0_319, %c0_320] : memref<16x7x128xf32, #tpu.memory_space<vmem>>, vector<1x1x128xf32>
    %743 = vector.shape_cast %742 : vector<1x1x128xf32> to vector<1x128xf32>
    %744 = vector.broadcast %743 : vector<1x128xf32> to vector<32x128xf32>
    %745 = arith.mulf %744, %740 : vector<32x128xf32>
    %c2_i32_321 = arith.constant 2 : i32
    %746 = tpu.dynamic_rotate %739 by %c2_i32_321 dim 1 : vector<32x128xf32>, i32 -> vector<32x128xf32>
    %747 = arith.index_cast %c6_i32 : i32 to index
    %c1_322 = arith.constant 1 : index
    %c0_323 = arith.constant 0 : index
    %748 = vector.load %arg2[%747, %c1_322, %c0_323] : memref<16x7x128xf32, #tpu.memory_space<vmem>>, vector<1x1x128xf32>
    %749 = vector.shape_cast %748 : vector<1x1x128xf32> to vector<1x128xf32>
    %750 = vector.broadcast %749 : vector<1x128xf32> to vector<32x128xf32>
    %751 = arith.mulf %750, %746 : vector<32x128xf32>
    %752 = arith.addf %745, %751 : vector<32x128xf32>
    %c1_i32_324 = arith.constant 1 : i32
    %753 = tpu.dynamic_rotate %739 by %c1_i32_324 dim 1 : vector<32x128xf32>, i32 -> vector<32x128xf32>
    %754 = arith.index_cast %c6_i32 : i32 to index
    %c2_325 = arith.constant 2 : index
    %c0_326 = arith.constant 0 : index
    %755 = vector.load %arg2[%754, %c2_325, %c0_326] : memref<16x7x128xf32, #tpu.memory_space<vmem>>, vector<1x1x128xf32>
    %756 = vector.shape_cast %755 : vector<1x1x128xf32> to vector<1x128xf32>
    %757 = vector.broadcast %756 : vector<1x128xf32> to vector<32x128xf32>
    %758 = arith.mulf %757, %753 : vector<32x128xf32>
    %759 = arith.addf %752, %758 : vector<32x128xf32>
    %760 = arith.index_cast %c6_i32 : i32 to index
    %c3_327 = arith.constant 3 : index
    %c0_328 = arith.constant 0 : index
    %761 = vector.load %arg2[%760, %c3_327, %c0_328] : memref<16x7x128xf32, #tpu.memory_space<vmem>>, vector<1x1x128xf32>
    %762 = vector.shape_cast %761 : vector<1x1x128xf32> to vector<1x128xf32>
    %763 = vector.broadcast %762 : vector<1x128xf32> to vector<32x128xf32>
    %764 = arith.mulf %763, %739 : vector<32x128xf32>
    %765 = arith.addf %759, %764 : vector<32x128xf32>
    %c127_i32_329 = arith.constant 127 : i32
    %766 = tpu.dynamic_rotate %739 by %c127_i32_329 dim 1 : vector<32x128xf32>, i32 -> vector<32x128xf32>
    %767 = arith.index_cast %c6_i32 : i32 to index
    %c4_330 = arith.constant 4 : index
    %c0_331 = arith.constant 0 : index
    %768 = vector.load %arg2[%767, %c4_330, %c0_331] : memref<16x7x128xf32, #tpu.memory_space<vmem>>, vector<1x1x128xf32>
    %769 = vector.shape_cast %768 : vector<1x1x128xf32> to vector<1x128xf32>
    %770 = vector.broadcast %769 : vector<1x128xf32> to vector<32x128xf32>
    %771 = arith.mulf %770, %766 : vector<32x128xf32>
    %772 = arith.addf %765, %771 : vector<32x128xf32>
    %c126_i32_332 = arith.constant 126 : i32
    %773 = tpu.dynamic_rotate %739 by %c126_i32_332 dim 1 : vector<32x128xf32>, i32 -> vector<32x128xf32>
    %774 = arith.index_cast %c6_i32 : i32 to index
    %c5_333 = arith.constant 5 : index
    %c0_334 = arith.constant 0 : index
    %775 = vector.load %arg2[%774, %c5_333, %c0_334] : memref<16x7x128xf32, #tpu.memory_space<vmem>>, vector<1x1x128xf32>
    %776 = vector.shape_cast %775 : vector<1x1x128xf32> to vector<1x128xf32>
    %777 = vector.broadcast %776 : vector<1x128xf32> to vector<32x128xf32>
    %778 = arith.mulf %777, %773 : vector<32x128xf32>
    %779 = arith.addf %772, %778 : vector<32x128xf32>
    %c125_i32_335 = arith.constant 125 : i32
    %780 = tpu.dynamic_rotate %739 by %c125_i32_335 dim 1 : vector<32x128xf32>, i32 -> vector<32x128xf32>
    %781 = arith.index_cast %c6_i32 : i32 to index
    %c6_336 = arith.constant 6 : index
    %c0_337 = arith.constant 0 : index
    %782 = vector.load %arg2[%781, %c6_336, %c0_337] : memref<16x7x128xf32, #tpu.memory_space<vmem>>, vector<1x1x128xf32>
    %783 = vector.shape_cast %782 : vector<1x1x128xf32> to vector<1x128xf32>
    %784 = vector.broadcast %783 : vector<1x128xf32> to vector<32x128xf32>
    %785 = arith.mulf %784, %780 : vector<32x128xf32>
    %786 = arith.addf %779, %785 : vector<32x128xf32>
    %787 = arith.index_cast %c6_i32 : i32 to index
    %c0_338 = arith.constant 0 : index
    %c0_339 = arith.constant 0 : index
    %788 = vector.load %arg4[%787, %c0_338, %c0_339] : memref<16x32x128xf32, #tpu.memory_space<vmem>>, vector<1x32x128xf32>
    %789 = vector.shape_cast %788 : vector<1x32x128xf32> to vector<32x128xf32>
    %790 = vector.shape_cast %786 : vector<32x128xf32> to vector<1x32x128xf32>
    tpu.vector_store %arg4[%787, %c0_338, %c0_339], %790 {strides = array<i32>} : memref<16x32x128xf32, #tpu.memory_space<vmem>>, vector<1x32x128xf32>,
    %c7_i32 = arith.constant 7 : i32
    %791 = arith.index_cast %c7_i32 : i32 to index
    %c0_340 = arith.constant 0 : index
    %c0_341 = arith.constant 0 : index
    %792 = vector.load %arg1[%791, %c0_340, %c0_341] : memref<16x7x128xf32, #tpu.memory_space<vmem>>, vector<1x1x128xf32>
    %793 = vector.shape_cast %792 : vector<1x1x128xf32> to vector<1x128xf32>
    %794 = arith.index_cast %c7_i32 : i32 to index
    %c0_342 = arith.constant 0 : index
    %c0_343 = arith.constant 0 : index
    %795 = vector.load %arg3[%794, %c0_342, %c0_343] : memref<16x40x128xf32, #tpu.memory_space<vmem>>, vector<1x32x128xf32>
    %796 = vector.shape_cast %795 : vector<1x32x128xf32> to vector<32x128xf32>
    %797 = vector.broadcast %793 : vector<1x128xf32> to vector<32x128xf32>
    %798 = arith.mulf %797, %796 : vector<32x128xf32>
    %799 = arith.index_cast %c7_i32 : i32 to index
    %c1_344 = arith.constant 1 : index
    %c0_345 = arith.constant 0 : index
    %800 = vector.load %arg1[%799, %c1_344, %c0_345] : memref<16x7x128xf32, #tpu.memory_space<vmem>>, vector<1x1x128xf32>
    %801 = vector.shape_cast %800 : vector<1x1x128xf32> to vector<1x128xf32>
    %802 = arith.index_cast %c7_i32 : i32 to index
    %c1_346 = arith.constant 1 : index
    %c0_347 = arith.constant 0 : index
    %803 = vector.load %arg3[%802, %c1_346, %c0_347] : memref<16x40x128xf32, #tpu.memory_space<vmem>>, vector<1x32x128xf32>
    %804 = vector.shape_cast %803 : vector<1x32x128xf32> to vector<32x128xf32>
    %805 = vector.broadcast %801 : vector<1x128xf32> to vector<32x128xf32>
    %806 = arith.mulf %805, %804 : vector<32x128xf32>
    %807 = arith.addf %798, %806 : vector<32x128xf32>
    %808 = arith.index_cast %c7_i32 : i32 to index
    %c2_348 = arith.constant 2 : index
    %c0_349 = arith.constant 0 : index
    %809 = vector.load %arg1[%808, %c2_348, %c0_349] : memref<16x7x128xf32, #tpu.memory_space<vmem>>, vector<1x1x128xf32>
    %810 = vector.shape_cast %809 : vector<1x1x128xf32> to vector<1x128xf32>
    %811 = arith.index_cast %c7_i32 : i32 to index
    %c2_350 = arith.constant 2 : index
    %c0_351 = arith.constant 0 : index
    %812 = vector.load %arg3[%811, %c2_350, %c0_351] : memref<16x40x128xf32, #tpu.memory_space<vmem>>, vector<1x32x128xf32>
    %813 = vector.shape_cast %812 : vector<1x32x128xf32> to vector<32x128xf32>
    %814 = vector.broadcast %810 : vector<1x128xf32> to vector<32x128xf32>
    %815 = arith.mulf %814, %813 : vector<32x128xf32>
    %816 = arith.addf %807, %815 : vector<32x128xf32>
    %817 = arith.index_cast %c7_i32 : i32 to index
    %c3_352 = arith.constant 3 : index
    %c0_353 = arith.constant 0 : index
    %818 = vector.load %arg1[%817, %c3_352, %c0_353] : memref<16x7x128xf32, #tpu.memory_space<vmem>>, vector<1x1x128xf32>
    %819 = vector.shape_cast %818 : vector<1x1x128xf32> to vector<1x128xf32>
    %820 = arith.index_cast %c7_i32 : i32 to index
    %c3_354 = arith.constant 3 : index
    %c0_355 = arith.constant 0 : index
    %821 = vector.load %arg3[%820, %c3_354, %c0_355] : memref<16x40x128xf32, #tpu.memory_space<vmem>>, vector<1x32x128xf32>
    %822 = vector.shape_cast %821 : vector<1x32x128xf32> to vector<32x128xf32>
    %823 = vector.broadcast %819 : vector<1x128xf32> to vector<32x128xf32>
    %824 = arith.mulf %823, %822 : vector<32x128xf32>
    %825 = arith.addf %816, %824 : vector<32x128xf32>
    %826 = arith.index_cast %c7_i32 : i32 to index
    %c4_356 = arith.constant 4 : index
    %c0_357 = arith.constant 0 : index
    %827 = vector.load %arg1[%826, %c4_356, %c0_357] : memref<16x7x128xf32, #tpu.memory_space<vmem>>, vector<1x1x128xf32>
    %828 = vector.shape_cast %827 : vector<1x1x128xf32> to vector<1x128xf32>
    %829 = arith.index_cast %c7_i32 : i32 to index
    %c4_358 = arith.constant 4 : index
    %c0_359 = arith.constant 0 : index
    %830 = vector.load %arg3[%829, %c4_358, %c0_359] : memref<16x40x128xf32, #tpu.memory_space<vmem>>, vector<1x32x128xf32>
    %831 = vector.shape_cast %830 : vector<1x32x128xf32> to vector<32x128xf32>
    %832 = vector.broadcast %828 : vector<1x128xf32> to vector<32x128xf32>
    %833 = arith.mulf %832, %831 : vector<32x128xf32>
    %834 = arith.addf %825, %833 : vector<32x128xf32>
    %835 = arith.index_cast %c7_i32 : i32 to index
    %c5_360 = arith.constant 5 : index
    %c0_361 = arith.constant 0 : index
    %836 = vector.load %arg1[%835, %c5_360, %c0_361] : memref<16x7x128xf32, #tpu.memory_space<vmem>>, vector<1x1x128xf32>
    %837 = vector.shape_cast %836 : vector<1x1x128xf32> to vector<1x128xf32>
    %838 = arith.index_cast %c7_i32 : i32 to index
    %c5_362 = arith.constant 5 : index
    %c0_363 = arith.constant 0 : index
    %839 = vector.load %arg3[%838, %c5_362, %c0_363] : memref<16x40x128xf32, #tpu.memory_space<vmem>>, vector<1x32x128xf32>
    %840 = vector.shape_cast %839 : vector<1x32x128xf32> to vector<32x128xf32>
    %841 = vector.broadcast %837 : vector<1x128xf32> to vector<32x128xf32>
    %842 = arith.mulf %841, %840 : vector<32x128xf32>
    %843 = arith.addf %834, %842 : vector<32x128xf32>
    %844 = arith.index_cast %c7_i32 : i32 to index
    %c6_364 = arith.constant 6 : index
    %c0_365 = arith.constant 0 : index
    %845 = vector.load %arg1[%844, %c6_364, %c0_365] : memref<16x7x128xf32, #tpu.memory_space<vmem>>, vector<1x1x128xf32>
    %846 = vector.shape_cast %845 : vector<1x1x128xf32> to vector<1x128xf32>
    %847 = arith.index_cast %c7_i32 : i32 to index
    %c6_366 = arith.constant 6 : index
    %c0_367 = arith.constant 0 : index
    %848 = vector.load %arg3[%847, %c6_366, %c0_367] : memref<16x40x128xf32, #tpu.memory_space<vmem>>, vector<1x32x128xf32>
    %849 = vector.shape_cast %848 : vector<1x32x128xf32> to vector<32x128xf32>
    %850 = vector.broadcast %846 : vector<1x128xf32> to vector<32x128xf32>
    %851 = arith.mulf %850, %849 : vector<32x128xf32>
    %852 = arith.addf %843, %851 : vector<32x128xf32>
    %c3_i32_368 = arith.constant 3 : i32
    %853 = tpu.dynamic_rotate %852 by %c3_i32_368 dim 1 : vector<32x128xf32>, i32 -> vector<32x128xf32>
    %854 = arith.index_cast %c7_i32 : i32 to index
    %c0_369 = arith.constant 0 : index
    %c0_370 = arith.constant 0 : index
    %855 = vector.load %arg2[%854, %c0_369, %c0_370] : memref<16x7x128xf32, #tpu.memory_space<vmem>>, vector<1x1x128xf32>
    %856 = vector.shape_cast %855 : vector<1x1x128xf32> to vector<1x128xf32>
    %857 = vector.broadcast %856 : vector<1x128xf32> to vector<32x128xf32>
    %858 = arith.mulf %857, %853 : vector<32x128xf32>
    %c2_i32_371 = arith.constant 2 : i32
    %859 = tpu.dynamic_rotate %852 by %c2_i32_371 dim 1 : vector<32x128xf32>, i32 -> vector<32x128xf32>
    %860 = arith.index_cast %c7_i32 : i32 to index
    %c1_372 = arith.constant 1 : index
    %c0_373 = arith.constant 0 : index
    %861 = vector.load %arg2[%860, %c1_372, %c0_373] : memref<16x7x128xf32, #tpu.memory_space<vmem>>, vector<1x1x128xf32>
    %862 = vector.shape_cast %861 : vector<1x1x128xf32> to vector<1x128xf32>
    %863 = vector.broadcast %862 : vector<1x128xf32> to vector<32x128xf32>
    %864 = arith.mulf %863, %859 : vector<32x128xf32>
    %865 = arith.addf %858, %864 : vector<32x128xf32>
    %c1_i32_374 = arith.constant 1 : i32
    %866 = tpu.dynamic_rotate %852 by %c1_i32_374 dim 1 : vector<32x128xf32>, i32 -> vector<32x128xf32>
    %867 = arith.index_cast %c7_i32 : i32 to index
    %c2_375 = arith.constant 2 : index
    %c0_376 = arith.constant 0 : index
    %868 = vector.load %arg2[%867, %c2_375, %c0_376] : memref<16x7x128xf32, #tpu.memory_space<vmem>>, vector<1x1x128xf32>
    %869 = vector.shape_cast %868 : vector<1x1x128xf32> to vector<1x128xf32>
    %870 = vector.broadcast %869 : vector<1x128xf32> to vector<32x128xf32>
    %871 = arith.mulf %870, %866 : vector<32x128xf32>
    %872 = arith.addf %865, %871 : vector<32x128xf32>
    %873 = arith.index_cast %c7_i32 : i32 to index
    %c3_377 = arith.constant 3 : index
    %c0_378 = arith.constant 0 : index
    %874 = vector.load %arg2[%873, %c3_377, %c0_378] : memref<16x7x128xf32, #tpu.memory_space<vmem>>, vector<1x1x128xf32>
    %875 = vector.shape_cast %874 : vector<1x1x128xf32> to vector<1x128xf32>
    %876 = vector.broadcast %875 : vector<1x128xf32> to vector<32x128xf32>
    %877 = arith.mulf %876, %852 : vector<32x128xf32>
    %878 = arith.addf %872, %877 : vector<32x128xf32>
    %c127_i32_379 = arith.constant 127 : i32
    %879 = tpu.dynamic_rotate %852 by %c127_i32_379 dim 1 : vector<32x128xf32>, i32 -> vector<32x128xf32>
    %880 = arith.index_cast %c7_i32 : i32 to index
    %c4_380 = arith.constant 4 : index
    %c0_381 = arith.constant 0 : index
    %881 = vector.load %arg2[%880, %c4_380, %c0_381] : memref<16x7x128xf32, #tpu.memory_space<vmem>>, vector<1x1x128xf32>
    %882 = vector.shape_cast %881 : vector<1x1x128xf32> to vector<1x128xf32>
    %883 = vector.broadcast %882 : vector<1x128xf32> to vector<32x128xf32>
    %884 = arith.mulf %883, %879 : vector<32x128xf32>
    %885 = arith.addf %878, %884 : vector<32x128xf32>
    %c126_i32_382 = arith.constant 126 : i32
    %886 = tpu.dynamic_rotate %852 by %c126_i32_382 dim 1 : vector<32x128xf32>, i32 -> vector<32x128xf32>
    %887 = arith.index_cast %c7_i32 : i32 to index
    %c5_383 = arith.constant 5 : index
    %c0_384 = arith.constant 0 : index
    %888 = vector.load %arg2[%887, %c5_383, %c0_384] : memref<16x7x128xf32, #tpu.memory_space<vmem>>, vector<1x1x128xf32>
    %889 = vector.shape_cast %888 : vector<1x1x128xf32> to vector<1x128xf32>
    %890 = vector.broadcast %889 : vector<1x128xf32> to vector<32x128xf32>
    %891 = arith.mulf %890, %886 : vector<32x128xf32>
    %892 = arith.addf %885, %891 : vector<32x128xf32>
    %c125_i32_385 = arith.constant 125 : i32
    %893 = tpu.dynamic_rotate %852 by %c125_i32_385 dim 1 : vector<32x128xf32>, i32 -> vector<32x128xf32>
    %894 = arith.index_cast %c7_i32 : i32 to index
    %c6_386 = arith.constant 6 : index
    %c0_387 = arith.constant 0 : index
    %895 = vector.load %arg2[%894, %c6_386, %c0_387] : memref<16x7x128xf32, #tpu.memory_space<vmem>>, vector<1x1x128xf32>
    %896 = vector.shape_cast %895 : vector<1x1x128xf32> to vector<1x128xf32>
    %897 = vector.broadcast %896 : vector<1x128xf32> to vector<32x128xf32>
    %898 = arith.mulf %897, %893 : vector<32x128xf32>
    %899 = arith.addf %892, %898 : vector<32x128xf32>
    %900 = arith.index_cast %c7_i32 : i32 to index
    %c0_388 = arith.constant 0 : index
    %c0_389 = arith.constant 0 : index
    %901 = vector.load %arg4[%900, %c0_388, %c0_389] : memref<16x32x128xf32, #tpu.memory_space<vmem>>, vector<1x32x128xf32>
    %902 = vector.shape_cast %901 : vector<1x32x128xf32> to vector<32x128xf32>
    %903 = vector.shape_cast %899 : vector<32x128xf32> to vector<1x32x128xf32>
    tpu.vector_store %arg4[%900, %c0_388, %c0_389], %903 {strides = array<i32>} : memref<16x32x128xf32, #tpu.memory_space<vmem>>, vector<1x32x128xf32>,
    %c8_i32 = arith.constant 8 : i32
    %904 = arith.index_cast %c8_i32 : i32 to index
    %c0_390 = arith.constant 0 : index
    %c0_391 = arith.constant 0 : index
    %905 = vector.load %arg1[%904, %c0_390, %c0_391] : memref<16x7x128xf32, #tpu.memory_space<vmem>>, vector<1x1x128xf32>
    %906 = vector.shape_cast %905 : vector<1x1x128xf32> to vector<1x128xf32>
    %907 = arith.index_cast %c8_i32 : i32 to index
    %c0_392 = arith.constant 0 : index
    %c0_393 = arith.constant 0 : index
    %908 = vector.load %arg3[%907, %c0_392, %c0_393] : memref<16x40x128xf32, #tpu.memory_space<vmem>>, vector<1x32x128xf32>
    %909 = vector.shape_cast %908 : vector<1x32x128xf32> to vector<32x128xf32>
    %910 = vector.broadcast %906 : vector<1x128xf32> to vector<32x128xf32>
    %911 = arith.mulf %910, %909 : vector<32x128xf32>
    %912 = arith.index_cast %c8_i32 : i32 to index
    %c1_394 = arith.constant 1 : index
    %c0_395 = arith.constant 0 : index
    %913 = vector.load %arg1[%912, %c1_394, %c0_395] : memref<16x7x128xf32, #tpu.memory_space<vmem>>, vector<1x1x128xf32>
    %914 = vector.shape_cast %913 : vector<1x1x128xf32> to vector<1x128xf32>
    %915 = arith.index_cast %c8_i32 : i32 to index
    %c1_396 = arith.constant 1 : index
    %c0_397 = arith.constant 0 : index
    %916 = vector.load %arg3[%915, %c1_396, %c0_397] : memref<16x40x128xf32, #tpu.memory_space<vmem>>, vector<1x32x128xf32>
    %917 = vector.shape_cast %916 : vector<1x32x128xf32> to vector<32x128xf32>
    %918 = vector.broadcast %914 : vector<1x128xf32> to vector<32x128xf32>
    %919 = arith.mulf %918, %917 : vector<32x128xf32>
    %920 = arith.addf %911, %919 : vector<32x128xf32>
    %921 = arith.index_cast %c8_i32 : i32 to index
    %c2_398 = arith.constant 2 : index
    %c0_399 = arith.constant 0 : index
    %922 = vector.load %arg1[%921, %c2_398, %c0_399] : memref<16x7x128xf32, #tpu.memory_space<vmem>>, vector<1x1x128xf32>
    %923 = vector.shape_cast %922 : vector<1x1x128xf32> to vector<1x128xf32>
    %924 = arith.index_cast %c8_i32 : i32 to index
    %c2_400 = arith.constant 2 : index
    %c0_401 = arith.constant 0 : index
    %925 = vector.load %arg3[%924, %c2_400, %c0_401] : memref<16x40x128xf32, #tpu.memory_space<vmem>>, vector<1x32x128xf32>
    %926 = vector.shape_cast %925 : vector<1x32x128xf32> to vector<32x128xf32>
    %927 = vector.broadcast %923 : vector<1x128xf32> to vector<32x128xf32>
    %928 = arith.mulf %927, %926 : vector<32x128xf32>
    %929 = arith.addf %920, %928 : vector<32x128xf32>
    %930 = arith.index_cast %c8_i32 : i32 to index
    %c3_402 = arith.constant 3 : index
    %c0_403 = arith.constant 0 : index
    %931 = vector.load %arg1[%930, %c3_402, %c0_403] : memref<16x7x128xf32, #tpu.memory_space<vmem>>, vector<1x1x128xf32>
    %932 = vector.shape_cast %931 : vector<1x1x128xf32> to vector<1x128xf32>
    %933 = arith.index_cast %c8_i32 : i32 to index
    %c3_404 = arith.constant 3 : index
    %c0_405 = arith.constant 0 : index
    %934 = vector.load %arg3[%933, %c3_404, %c0_405] : memref<16x40x128xf32, #tpu.memory_space<vmem>>, vector<1x32x128xf32>
    %935 = vector.shape_cast %934 : vector<1x32x128xf32> to vector<32x128xf32>
    %936 = vector.broadcast %932 : vector<1x128xf32> to vector<32x128xf32>
    %937 = arith.mulf %936, %935 : vector<32x128xf32>
    %938 = arith.addf %929, %937 : vector<32x128xf32>
    %939 = arith.index_cast %c8_i32 : i32 to index
    %c4_406 = arith.constant 4 : index
    %c0_407 = arith.constant 0 : index
    %940 = vector.load %arg1[%939, %c4_406, %c0_407] : memref<16x7x128xf32, #tpu.memory_space<vmem>>, vector<1x1x128xf32>
    %941 = vector.shape_cast %940 : vector<1x1x128xf32> to vector<1x128xf32>
    %942 = arith.index_cast %c8_i32 : i32 to index
    %c4_408 = arith.constant 4 : index
    %c0_409 = arith.constant 0 : index
    %943 = vector.load %arg3[%942, %c4_408, %c0_409] : memref<16x40x128xf32, #tpu.memory_space<vmem>>, vector<1x32x128xf32>
    %944 = vector.shape_cast %943 : vector<1x32x128xf32> to vector<32x128xf32>
    %945 = vector.broadcast %941 : vector<1x128xf32> to vector<32x128xf32>
    %946 = arith.mulf %945, %944 : vector<32x128xf32>
    %947 = arith.addf %938, %946 : vector<32x128xf32>
    %948 = arith.index_cast %c8_i32 : i32 to index
    %c5_410 = arith.constant 5 : index
    %c0_411 = arith.constant 0 : index
    %949 = vector.load %arg1[%948, %c5_410, %c0_411] : memref<16x7x128xf32, #tpu.memory_space<vmem>>, vector<1x1x128xf32>
    %950 = vector.shape_cast %949 : vector<1x1x128xf32> to vector<1x128xf32>
    %951 = arith.index_cast %c8_i32 : i32 to index
    %c5_412 = arith.constant 5 : index
    %c0_413 = arith.constant 0 : index
    %952 = vector.load %arg3[%951, %c5_412, %c0_413] : memref<16x40x128xf32, #tpu.memory_space<vmem>>, vector<1x32x128xf32>
    %953 = vector.shape_cast %952 : vector<1x32x128xf32> to vector<32x128xf32>
    %954 = vector.broadcast %950 : vector<1x128xf32> to vector<32x128xf32>
    %955 = arith.mulf %954, %953 : vector<32x128xf32>
    %956 = arith.addf %947, %955 : vector<32x128xf32>
    %957 = arith.index_cast %c8_i32 : i32 to index
    %c6_414 = arith.constant 6 : index
    %c0_415 = arith.constant 0 : index
    %958 = vector.load %arg1[%957, %c6_414, %c0_415] : memref<16x7x128xf32, #tpu.memory_space<vmem>>, vector<1x1x128xf32>
    %959 = vector.shape_cast %958 : vector<1x1x128xf32> to vector<1x128xf32>
    %960 = arith.index_cast %c8_i32 : i32 to index
    %c6_416 = arith.constant 6 : index
    %c0_417 = arith.constant 0 : index
    %961 = vector.load %arg3[%960, %c6_416, %c0_417] : memref<16x40x128xf32, #tpu.memory_space<vmem>>, vector<1x32x128xf32>
    %962 = vector.shape_cast %961 : vector<1x32x128xf32> to vector<32x128xf32>
    %963 = vector.broadcast %959 : vector<1x128xf32> to vector<32x128xf32>
    %964 = arith.mulf %963, %962 : vector<32x128xf32>
    %965 = arith.addf %956, %964 : vector<32x128xf32>
    %c3_i32_418 = arith.constant 3 : i32
    %966 = tpu.dynamic_rotate %965 by %c3_i32_418 dim 1 : vector<32x128xf32>, i32 -> vector<32x128xf32>
    %967 = arith.index_cast %c8_i32 : i32 to index
    %c0_419 = arith.constant 0 : index
    %c0_420 = arith.constant 0 : index
    %968 = vector.load %arg2[%967, %c0_419, %c0_420] : memref<16x7x128xf32, #tpu.memory_space<vmem>>, vector<1x1x128xf32>
    %969 = vector.shape_cast %968 : vector<1x1x128xf32> to vector<1x128xf32>
    %970 = vector.broadcast %969 : vector<1x128xf32> to vector<32x128xf32>
    %971 = arith.mulf %970, %966 : vector<32x128xf32>
    %c2_i32_421 = arith.constant 2 : i32
    %972 = tpu.dynamic_rotate %965 by %c2_i32_421 dim 1 : vector<32x128xf32>, i32 -> vector<32x128xf32>
    %973 = arith.index_cast %c8_i32 : i32 to index
    %c1_422 = arith.constant 1 : index
    %c0_423 = arith.constant 0 : index
    %974 = vector.load %arg2[%973, %c1_422, %c0_423] : memref<16x7x128xf32, #tpu.memory_space<vmem>>, vector<1x1x128xf32>
    %975 = vector.shape_cast %974 : vector<1x1x128xf32> to vector<1x128xf32>
    %976 = vector.broadcast %975 : vector<1x128xf32> to vector<32x128xf32>
    %977 = arith.mulf %976, %972 : vector<32x128xf32>
    %978 = arith.addf %971, %977 : vector<32x128xf32>
    %c1_i32_424 = arith.constant 1 : i32
    %979 = tpu.dynamic_rotate %965 by %c1_i32_424 dim 1 : vector<32x128xf32>, i32 -> vector<32x128xf32>
    %980 = arith.index_cast %c8_i32 : i32 to index
    %c2_425 = arith.constant 2 : index
    %c0_426 = arith.constant 0 : index
    %981 = vector.load %arg2[%980, %c2_425, %c0_426] : memref<16x7x128xf32, #tpu.memory_space<vmem>>, vector<1x1x128xf32>
    %982 = vector.shape_cast %981 : vector<1x1x128xf32> to vector<1x128xf32>
    %983 = vector.broadcast %982 : vector<1x128xf32> to vector<32x128xf32>
    %984 = arith.mulf %983, %979 : vector<32x128xf32>
    %985 = arith.addf %978, %984 : vector<32x128xf32>
    %986 = arith.index_cast %c8_i32 : i32 to index
    %c3_427 = arith.constant 3 : index
    %c0_428 = arith.constant 0 : index
    %987 = vector.load %arg2[%986, %c3_427, %c0_428] : memref<16x7x128xf32, #tpu.memory_space<vmem>>, vector<1x1x128xf32>
    %988 = vector.shape_cast %987 : vector<1x1x128xf32> to vector<1x128xf32>
    %989 = vector.broadcast %988 : vector<1x128xf32> to vector<32x128xf32>
    %990 = arith.mulf %989, %965 : vector<32x128xf32>
    %991 = arith.addf %985, %990 : vector<32x128xf32>
    %c127_i32_429 = arith.constant 127 : i32
    %992 = tpu.dynamic_rotate %965 by %c127_i32_429 dim 1 : vector<32x128xf32>, i32 -> vector<32x128xf32>
    %993 = arith.index_cast %c8_i32 : i32 to index
    %c4_430 = arith.constant 4 : index
    %c0_431 = arith.constant 0 : index
    %994 = vector.load %arg2[%993, %c4_430, %c0_431] : memref<16x7x128xf32, #tpu.memory_space<vmem>>, vector<1x1x128xf32>
    %995 = vector.shape_cast %994 : vector<1x1x128xf32> to vector<1x128xf32>
    %996 = vector.broadcast %995 : vector<1x128xf32> to vector<32x128xf32>
    %997 = arith.mulf %996, %992 : vector<32x128xf32>
    %998 = arith.addf %991, %997 : vector<32x128xf32>
    %c126_i32_432 = arith.constant 126 : i32
    %999 = tpu.dynamic_rotate %965 by %c126_i32_432 dim 1 : vector<32x128xf32>, i32 -> vector<32x128xf32>
    %1000 = arith.index_cast %c8_i32 : i32 to index
    %c5_433 = arith.constant 5 : index
    %c0_434 = arith.constant 0 : index
    %1001 = vector.load %arg2[%1000, %c5_433, %c0_434] : memref<16x7x128xf32, #tpu.memory_space<vmem>>, vector<1x1x128xf32>
    %1002 = vector.shape_cast %1001 : vector<1x1x128xf32> to vector<1x128xf32>
    %1003 = vector.broadcast %1002 : vector<1x128xf32> to vector<32x128xf32>
    %1004 = arith.mulf %1003, %999 : vector<32x128xf32>
    %1005 = arith.addf %998, %1004 : vector<32x128xf32>
    %c125_i32_435 = arith.constant 125 : i32
    %1006 = tpu.dynamic_rotate %965 by %c125_i32_435 dim 1 : vector<32x128xf32>, i32 -> vector<32x128xf32>
    %1007 = arith.index_cast %c8_i32 : i32 to index
    %c6_436 = arith.constant 6 : index
    %c0_437 = arith.constant 0 : index
    %1008 = vector.load %arg2[%1007, %c6_436, %c0_437] : memref<16x7x128xf32, #tpu.memory_space<vmem>>, vector<1x1x128xf32>
    %1009 = vector.shape_cast %1008 : vector<1x1x128xf32> to vector<1x128xf32>
    %1010 = vector.broadcast %1009 : vector<1x128xf32> to vector<32x128xf32>
    %1011 = arith.mulf %1010, %1006 : vector<32x128xf32>
    %1012 = arith.addf %1005, %1011 : vector<32x128xf32>
    %1013 = arith.index_cast %c8_i32 : i32 to index
    %c0_438 = arith.constant 0 : index
    %c0_439 = arith.constant 0 : index
    %1014 = vector.load %arg4[%1013, %c0_438, %c0_439] : memref<16x32x128xf32, #tpu.memory_space<vmem>>, vector<1x32x128xf32>
    %1015 = vector.shape_cast %1014 : vector<1x32x128xf32> to vector<32x128xf32>
    %1016 = vector.shape_cast %1012 : vector<32x128xf32> to vector<1x32x128xf32>
    tpu.vector_store %arg4[%1013, %c0_438, %c0_439], %1016 {strides = array<i32>} : memref<16x32x128xf32, #tpu.memory_space<vmem>>, vector<1x32x128xf32>,
    %c9_i32 = arith.constant 9 : i32
    %1017 = arith.index_cast %c9_i32 : i32 to index
    %c0_440 = arith.constant 0 : index
    %c0_441 = arith.constant 0 : index
    %1018 = vector.load %arg1[%1017, %c0_440, %c0_441] : memref<16x7x128xf32, #tpu.memory_space<vmem>>, vector<1x1x128xf32>
    %1019 = vector.shape_cast %1018 : vector<1x1x128xf32> to vector<1x128xf32>
    %1020 = arith.index_cast %c9_i32 : i32 to index
    %c0_442 = arith.constant 0 : index
    %c0_443 = arith.constant 0 : index
    %1021 = vector.load %arg3[%1020, %c0_442, %c0_443] : memref<16x40x128xf32, #tpu.memory_space<vmem>>, vector<1x32x128xf32>
    %1022 = vector.shape_cast %1021 : vector<1x32x128xf32> to vector<32x128xf32>
    %1023 = vector.broadcast %1019 : vector<1x128xf32> to vector<32x128xf32>
    %1024 = arith.mulf %1023, %1022 : vector<32x128xf32>
    %1025 = arith.index_cast %c9_i32 : i32 to index
    %c1_444 = arith.constant 1 : index
    %c0_445 = arith.constant 0 : index
    %1026 = vector.load %arg1[%1025, %c1_444, %c0_445] : memref<16x7x128xf32, #tpu.memory_space<vmem>>, vector<1x1x128xf32>
    %1027 = vector.shape_cast %1026 : vector<1x1x128xf32> to vector<1x128xf32>
    %1028 = arith.index_cast %c9_i32 : i32 to index
    %c1_446 = arith.constant 1 : index
    %c0_447 = arith.constant 0 : index
    %1029 = vector.load %arg3[%1028, %c1_446, %c0_447] : memref<16x40x128xf32, #tpu.memory_space<vmem>>, vector<1x32x128xf32>
    %1030 = vector.shape_cast %1029 : vector<1x32x128xf32> to vector<32x128xf32>
    %1031 = vector.broadcast %1027 : vector<1x128xf32> to vector<32x128xf32>
    %1032 = arith.mulf %1031, %1030 : vector<32x128xf32>
    %1033 = arith.addf %1024, %1032 : vector<32x128xf32>
    %1034 = arith.index_cast %c9_i32 : i32 to index
    %c2_448 = arith.constant 2 : index
    %c0_449 = arith.constant 0 : index
    %1035 = vector.load %arg1[%1034, %c2_448, %c0_449] : memref<16x7x128xf32, #tpu.memory_space<vmem>>, vector<1x1x128xf32>
    %1036 = vector.shape_cast %1035 : vector<1x1x128xf32> to vector<1x128xf32>
    %1037 = arith.index_cast %c9_i32 : i32 to index
    %c2_450 = arith.constant 2 : index
    %c0_451 = arith.constant 0 : index
    %1038 = vector.load %arg3[%1037, %c2_450, %c0_451] : memref<16x40x128xf32, #tpu.memory_space<vmem>>, vector<1x32x128xf32>
    %1039 = vector.shape_cast %1038 : vector<1x32x128xf32> to vector<32x128xf32>
    %1040 = vector.broadcast %1036 : vector<1x128xf32> to vector<32x128xf32>
    %1041 = arith.mulf %1040, %1039 : vector<32x128xf32>
    %1042 = arith.addf %1033, %1041 : vector<32x128xf32>
    %1043 = arith.index_cast %c9_i32 : i32 to index
    %c3_452 = arith.constant 3 : index
    %c0_453 = arith.constant 0 : index
    %1044 = vector.load %arg1[%1043, %c3_452, %c0_453] : memref<16x7x128xf32, #tpu.memory_space<vmem>>, vector<1x1x128xf32>
    %1045 = vector.shape_cast %1044 : vector<1x1x128xf32> to vector<1x128xf32>
    %1046 = arith.index_cast %c9_i32 : i32 to index
    %c3_454 = arith.constant 3 : index
    %c0_455 = arith.constant 0 : index
    %1047 = vector.load %arg3[%1046, %c3_454, %c0_455] : memref<16x40x128xf32, #tpu.memory_space<vmem>>, vector<1x32x128xf32>
    %1048 = vector.shape_cast %1047 : vector<1x32x128xf32> to vector<32x128xf32>
    %1049 = vector.broadcast %1045 : vector<1x128xf32> to vector<32x128xf32>
    %1050 = arith.mulf %1049, %1048 : vector<32x128xf32>
    %1051 = arith.addf %1042, %1050 : vector<32x128xf32>
    %1052 = arith.index_cast %c9_i32 : i32 to index
    %c4_456 = arith.constant 4 : index
    %c0_457 = arith.constant 0 : index
    %1053 = vector.load %arg1[%1052, %c4_456, %c0_457] : memref<16x7x128xf32, #tpu.memory_space<vmem>>, vector<1x1x128xf32>
    %1054 = vector.shape_cast %1053 : vector<1x1x128xf32> to vector<1x128xf32>
    %1055 = arith.index_cast %c9_i32 : i32 to index
    %c4_458 = arith.constant 4 : index
    %c0_459 = arith.constant 0 : index
    %1056 = vector.load %arg3[%1055, %c4_458, %c0_459] : memref<16x40x128xf32, #tpu.memory_space<vmem>>, vector<1x32x128xf32>
    %1057 = vector.shape_cast %1056 : vector<1x32x128xf32> to vector<32x128xf32>
    %1058 = vector.broadcast %1054 : vector<1x128xf32> to vector<32x128xf32>
    %1059 = arith.mulf %1058, %1057 : vector<32x128xf32>
    %1060 = arith.addf %1051, %1059 : vector<32x128xf32>
    %1061 = arith.index_cast %c9_i32 : i32 to index
    %c5_460 = arith.constant 5 : index
    %c0_461 = arith.constant 0 : index
    %1062 = vector.load %arg1[%1061, %c5_460, %c0_461] : memref<16x7x128xf32, #tpu.memory_space<vmem>>, vector<1x1x128xf32>
    %1063 = vector.shape_cast %1062 : vector<1x1x128xf32> to vector<1x128xf32>
    %1064 = arith.index_cast %c9_i32 : i32 to index
    %c5_462 = arith.constant 5 : index
    %c0_463 = arith.constant 0 : index
    %1065 = vector.load %arg3[%1064, %c5_462, %c0_463] : memref<16x40x128xf32, #tpu.memory_space<vmem>>, vector<1x32x128xf32>
    %1066 = vector.shape_cast %1065 : vector<1x32x128xf32> to vector<32x128xf32>
    %1067 = vector.broadcast %1063 : vector<1x128xf32> to vector<32x128xf32>
    %1068 = arith.mulf %1067, %1066 : vector<32x128xf32>
    %1069 = arith.addf %1060, %1068 : vector<32x128xf32>
    %1070 = arith.index_cast %c9_i32 : i32 to index
    %c6_464 = arith.constant 6 : index
    %c0_465 = arith.constant 0 : index
    %1071 = vector.load %arg1[%1070, %c6_464, %c0_465] : memref<16x7x128xf32, #tpu.memory_space<vmem>>, vector<1x1x128xf32>
    %1072 = vector.shape_cast %1071 : vector<1x1x128xf32> to vector<1x128xf32>
    %1073 = arith.index_cast %c9_i32 : i32 to index
    %c6_466 = arith.constant 6 : index
    %c0_467 = arith.constant 0 : index
    %1074 = vector.load %arg3[%1073, %c6_466, %c0_467] : memref<16x40x128xf32, #tpu.memory_space<vmem>>, vector<1x32x128xf32>
    %1075 = vector.shape_cast %1074 : vector<1x32x128xf32> to vector<32x128xf32>
    %1076 = vector.broadcast %1072 : vector<1x128xf32> to vector<32x128xf32>
    %1077 = arith.mulf %1076, %1075 : vector<32x128xf32>
    %1078 = arith.addf %1069, %1077 : vector<32x128xf32>
    %c3_i32_468 = arith.constant 3 : i32
    %1079 = tpu.dynamic_rotate %1078 by %c3_i32_468 dim 1 : vector<32x128xf32>, i32 -> vector<32x128xf32>
    %1080 = arith.index_cast %c9_i32 : i32 to index
    %c0_469 = arith.constant 0 : index
    %c0_470 = arith.constant 0 : index
    %1081 = vector.load %arg2[%1080, %c0_469, %c0_470] : memref<16x7x128xf32, #tpu.memory_space<vmem>>, vector<1x1x128xf32>
    %1082 = vector.shape_cast %1081 : vector<1x1x128xf32> to vector<1x128xf32>
    %1083 = vector.broadcast %1082 : vector<1x128xf32> to vector<32x128xf32>
    %1084 = arith.mulf %1083, %1079 : vector<32x128xf32>
    %c2_i32_471 = arith.constant 2 : i32
    %1085 = tpu.dynamic_rotate %1078 by %c2_i32_471 dim 1 : vector<32x128xf32>, i32 -> vector<32x128xf32>
    %1086 = arith.index_cast %c9_i32 : i32 to index
    %c1_472 = arith.constant 1 : index
    %c0_473 = arith.constant 0 : index
    %1087 = vector.load %arg2[%1086, %c1_472, %c0_473] : memref<16x7x128xf32, #tpu.memory_space<vmem>>, vector<1x1x128xf32>
    %1088 = vector.shape_cast %1087 : vector<1x1x128xf32> to vector<1x128xf32>
    %1089 = vector.broadcast %1088 : vector<1x128xf32> to vector<32x128xf32>
    %1090 = arith.mulf %1089, %1085 : vector<32x128xf32>
    %1091 = arith.addf %1084, %1090 : vector<32x128xf32>
    %c1_i32_474 = arith.constant 1 : i32
    %1092 = tpu.dynamic_rotate %1078 by %c1_i32_474 dim 1 : vector<32x128xf32>, i32 -> vector<32x128xf32>
    %1093 = arith.index_cast %c9_i32 : i32 to index
    %c2_475 = arith.constant 2 : index
    %c0_476 = arith.constant 0 : index
    %1094 = vector.load %arg2[%1093, %c2_475, %c0_476] : memref<16x7x128xf32, #tpu.memory_space<vmem>>, vector<1x1x128xf32>
    %1095 = vector.shape_cast %1094 : vector<1x1x128xf32> to vector<1x128xf32>
    %1096 = vector.broadcast %1095 : vector<1x128xf32> to vector<32x128xf32>
    %1097 = arith.mulf %1096, %1092 : vector<32x128xf32>
    %1098 = arith.addf %1091, %1097 : vector<32x128xf32>
    %1099 = arith.index_cast %c9_i32 : i32 to index
    %c3_477 = arith.constant 3 : index
    %c0_478 = arith.constant 0 : index
    %1100 = vector.load %arg2[%1099, %c3_477, %c0_478] : memref<16x7x128xf32, #tpu.memory_space<vmem>>, vector<1x1x128xf32>
    %1101 = vector.shape_cast %1100 : vector<1x1x128xf32> to vector<1x128xf32>
    %1102 = vector.broadcast %1101 : vector<1x128xf32> to vector<32x128xf32>
    %1103 = arith.mulf %1102, %1078 : vector<32x128xf32>
    %1104 = arith.addf %1098, %1103 : vector<32x128xf32>
    %c127_i32_479 = arith.constant 127 : i32
    %1105 = tpu.dynamic_rotate %1078 by %c127_i32_479 dim 1 : vector<32x128xf32>, i32 -> vector<32x128xf32>
    %1106 = arith.index_cast %c9_i32 : i32 to index
    %c4_480 = arith.constant 4 : index
    %c0_481 = arith.constant 0 : index
    %1107 = vector.load %arg2[%1106, %c4_480, %c0_481] : memref<16x7x128xf32, #tpu.memory_space<vmem>>, vector<1x1x128xf32>
    %1108 = vector.shape_cast %1107 : vector<1x1x128xf32> to vector<1x128xf32>
    %1109 = vector.broadcast %1108 : vector<1x128xf32> to vector<32x128xf32>
    %1110 = arith.mulf %1109, %1105 : vector<32x128xf32>
    %1111 = arith.addf %1104, %1110 : vector<32x128xf32>
    %c126_i32_482 = arith.constant 126 : i32
    %1112 = tpu.dynamic_rotate %1078 by %c126_i32_482 dim 1 : vector<32x128xf32>, i32 -> vector<32x128xf32>
    %1113 = arith.index_cast %c9_i32 : i32 to index
    %c5_483 = arith.constant 5 : index
    %c0_484 = arith.constant 0 : index
    %1114 = vector.load %arg2[%1113, %c5_483, %c0_484] : memref<16x7x128xf32, #tpu.memory_space<vmem>>, vector<1x1x128xf32>
    %1115 = vector.shape_cast %1114 : vector<1x1x128xf32> to vector<1x128xf32>
    %1116 = vector.broadcast %1115 : vector<1x128xf32> to vector<32x128xf32>
    %1117 = arith.mulf %1116, %1112 : vector<32x128xf32>
    %1118 = arith.addf %1111, %1117 : vector<32x128xf32>
    %c125_i32_485 = arith.constant 125 : i32
    %1119 = tpu.dynamic_rotate %1078 by %c125_i32_485 dim 1 : vector<32x128xf32>, i32 -> vector<32x128xf32>
    %1120 = arith.index_cast %c9_i32 : i32 to index
    %c6_486 = arith.constant 6 : index
    %c0_487 = arith.constant 0 : index
    %1121 = vector.load %arg2[%1120, %c6_486, %c0_487] : memref<16x7x128xf32, #tpu.memory_space<vmem>>, vector<1x1x128xf32>
    %1122 = vector.shape_cast %1121 : vector<1x1x128xf32> to vector<1x128xf32>
    %1123 = vector.broadcast %1122 : vector<1x128xf32> to vector<32x128xf32>
    %1124 = arith.mulf %1123, %1119 : vector<32x128xf32>
    %1125 = arith.addf %1118, %1124 : vector<32x128xf32>
    %1126 = arith.index_cast %c9_i32 : i32 to index
    %c0_488 = arith.constant 0 : index
    %c0_489 = arith.constant 0 : index
    %1127 = vector.load %arg4[%1126, %c0_488, %c0_489] : memref<16x32x128xf32, #tpu.memory_space<vmem>>, vector<1x32x128xf32>
    %1128 = vector.shape_cast %1127 : vector<1x32x128xf32> to vector<32x128xf32>
    %1129 = vector.shape_cast %1125 : vector<32x128xf32> to vector<1x32x128xf32>
    tpu.vector_store %arg4[%1126, %c0_488, %c0_489], %1129 {strides = array<i32>} : memref<16x32x128xf32, #tpu.memory_space<vmem>>, vector<1x32x128xf32>,
    %c10_i32 = arith.constant 10 : i32
    %1130 = arith.index_cast %c10_i32 : i32 to index
    %c0_490 = arith.constant 0 : index
    %c0_491 = arith.constant 0 : index
    %1131 = vector.load %arg1[%1130, %c0_490, %c0_491] : memref<16x7x128xf32, #tpu.memory_space<vmem>>, vector<1x1x128xf32>
    %1132 = vector.shape_cast %1131 : vector<1x1x128xf32> to vector<1x128xf32>
    %1133 = arith.index_cast %c10_i32 : i32 to index
    %c0_492 = arith.constant 0 : index
    %c0_493 = arith.constant 0 : index
    %1134 = vector.load %arg3[%1133, %c0_492, %c0_493] : memref<16x40x128xf32, #tpu.memory_space<vmem>>, vector<1x32x128xf32>
    %1135 = vector.shape_cast %1134 : vector<1x32x128xf32> to vector<32x128xf32>
    %1136 = vector.broadcast %1132 : vector<1x128xf32> to vector<32x128xf32>
    %1137 = arith.mulf %1136, %1135 : vector<32x128xf32>
    %1138 = arith.index_cast %c10_i32 : i32 to index
    %c1_494 = arith.constant 1 : index
    %c0_495 = arith.constant 0 : index
    %1139 = vector.load %arg1[%1138, %c1_494, %c0_495] : memref<16x7x128xf32, #tpu.memory_space<vmem>>, vector<1x1x128xf32>
    %1140 = vector.shape_cast %1139 : vector<1x1x128xf32> to vector<1x128xf32>
    %1141 = arith.index_cast %c10_i32 : i32 to index
    %c1_496 = arith.constant 1 : index
    %c0_497 = arith.constant 0 : index
    %1142 = vector.load %arg3[%1141, %c1_496, %c0_497] : memref<16x40x128xf32, #tpu.memory_space<vmem>>, vector<1x32x128xf32>
    %1143 = vector.shape_cast %1142 : vector<1x32x128xf32> to vector<32x128xf32>
    %1144 = vector.broadcast %1140 : vector<1x128xf32> to vector<32x128xf32>
    %1145 = arith.mulf %1144, %1143 : vector<32x128xf32>
    %1146 = arith.addf %1137, %1145 : vector<32x128xf32>
    %1147 = arith.index_cast %c10_i32 : i32 to index
    %c2_498 = arith.constant 2 : index
    %c0_499 = arith.constant 0 : index
    %1148 = vector.load %arg1[%1147, %c2_498, %c0_499] : memref<16x7x128xf32, #tpu.memory_space<vmem>>, vector<1x1x128xf32>
    %1149 = vector.shape_cast %1148 : vector<1x1x128xf32> to vector<1x128xf32>
    %1150 = arith.index_cast %c10_i32 : i32 to index
    %c2_500 = arith.constant 2 : index
    %c0_501 = arith.constant 0 : index
    %1151 = vector.load %arg3[%1150, %c2_500, %c0_501] : memref<16x40x128xf32, #tpu.memory_space<vmem>>, vector<1x32x128xf32>
    %1152 = vector.shape_cast %1151 : vector<1x32x128xf32> to vector<32x128xf32>
    %1153 = vector.broadcast %1149 : vector<1x128xf32> to vector<32x128xf32>
    %1154 = arith.mulf %1153, %1152 : vector<32x128xf32>
    %1155 = arith.addf %1146, %1154 : vector<32x128xf32>
    %1156 = arith.index_cast %c10_i32 : i32 to index
    %c3_502 = arith.constant 3 : index
    %c0_503 = arith.constant 0 : index
    %1157 = vector.load %arg1[%1156, %c3_502, %c0_503] : memref<16x7x128xf32, #tpu.memory_space<vmem>>, vector<1x1x128xf32>
    %1158 = vector.shape_cast %1157 : vector<1x1x128xf32> to vector<1x128xf32>
    %1159 = arith.index_cast %c10_i32 : i32 to index
    %c3_504 = arith.constant 3 : index
    %c0_505 = arith.constant 0 : index
    %1160 = vector.load %arg3[%1159, %c3_504, %c0_505] : memref<16x40x128xf32, #tpu.memory_space<vmem>>, vector<1x32x128xf32>
    %1161 = vector.shape_cast %1160 : vector<1x32x128xf32> to vector<32x128xf32>
    %1162 = vector.broadcast %1158 : vector<1x128xf32> to vector<32x128xf32>
    %1163 = arith.mulf %1162, %1161 : vector<32x128xf32>
    %1164 = arith.addf %1155, %1163 : vector<32x128xf32>
    %1165 = arith.index_cast %c10_i32 : i32 to index
    %c4_506 = arith.constant 4 : index
    %c0_507 = arith.constant 0 : index
    %1166 = vector.load %arg1[%1165, %c4_506, %c0_507] : memref<16x7x128xf32, #tpu.memory_space<vmem>>, vector<1x1x128xf32>
    %1167 = vector.shape_cast %1166 : vector<1x1x128xf32> to vector<1x128xf32>
    %1168 = arith.index_cast %c10_i32 : i32 to index
    %c4_508 = arith.constant 4 : index
    %c0_509 = arith.constant 0 : index
    %1169 = vector.load %arg3[%1168, %c4_508, %c0_509] : memref<16x40x128xf32, #tpu.memory_space<vmem>>, vector<1x32x128xf32>
    %1170 = vector.shape_cast %1169 : vector<1x32x128xf32> to vector<32x128xf32>
    %1171 = vector.broadcast %1167 : vector<1x128xf32> to vector<32x128xf32>
    %1172 = arith.mulf %1171, %1170 : vector<32x128xf32>
    %1173 = arith.addf %1164, %1172 : vector<32x128xf32>
    %1174 = arith.index_cast %c10_i32 : i32 to index
    %c5_510 = arith.constant 5 : index
    %c0_511 = arith.constant 0 : index
    %1175 = vector.load %arg1[%1174, %c5_510, %c0_511] : memref<16x7x128xf32, #tpu.memory_space<vmem>>, vector<1x1x128xf32>
    %1176 = vector.shape_cast %1175 : vector<1x1x128xf32> to vector<1x128xf32>
    %1177 = arith.index_cast %c10_i32 : i32 to index
    %c5_512 = arith.constant 5 : index
    %c0_513 = arith.constant 0 : index
    %1178 = vector.load %arg3[%1177, %c5_512, %c0_513] : memref<16x40x128xf32, #tpu.memory_space<vmem>>, vector<1x32x128xf32>
    %1179 = vector.shape_cast %1178 : vector<1x32x128xf32> to vector<32x128xf32>
    %1180 = vector.broadcast %1176 : vector<1x128xf32> to vector<32x128xf32>
    %1181 = arith.mulf %1180, %1179 : vector<32x128xf32>
    %1182 = arith.addf %1173, %1181 : vector<32x128xf32>
    %1183 = arith.index_cast %c10_i32 : i32 to index
    %c6_514 = arith.constant 6 : index
    %c0_515 = arith.constant 0 : index
    %1184 = vector.load %arg1[%1183, %c6_514, %c0_515] : memref<16x7x128xf32, #tpu.memory_space<vmem>>, vector<1x1x128xf32>
    %1185 = vector.shape_cast %1184 : vector<1x1x128xf32> to vector<1x128xf32>
    %1186 = arith.index_cast %c10_i32 : i32 to index
    %c6_516 = arith.constant 6 : index
    %c0_517 = arith.constant 0 : index
    %1187 = vector.load %arg3[%1186, %c6_516, %c0_517] : memref<16x40x128xf32, #tpu.memory_space<vmem>>, vector<1x32x128xf32>
    %1188 = vector.shape_cast %1187 : vector<1x32x128xf32> to vector<32x128xf32>
    %1189 = vector.broadcast %1185 : vector<1x128xf32> to vector<32x128xf32>
    %1190 = arith.mulf %1189, %1188 : vector<32x128xf32>
    %1191 = arith.addf %1182, %1190 : vector<32x128xf32>
    %c3_i32_518 = arith.constant 3 : i32
    %1192 = tpu.dynamic_rotate %1191 by %c3_i32_518 dim 1 : vector<32x128xf32>, i32 -> vector<32x128xf32>
    %1193 = arith.index_cast %c10_i32 : i32 to index
    %c0_519 = arith.constant 0 : index
    %c0_520 = arith.constant 0 : index
    %1194 = vector.load %arg2[%1193, %c0_519, %c0_520] : memref<16x7x128xf32, #tpu.memory_space<vmem>>, vector<1x1x128xf32>
    %1195 = vector.shape_cast %1194 : vector<1x1x128xf32> to vector<1x128xf32>
    %1196 = vector.broadcast %1195 : vector<1x128xf32> to vector<32x128xf32>
    %1197 = arith.mulf %1196, %1192 : vector<32x128xf32>
    %c2_i32_521 = arith.constant 2 : i32
    %1198 = tpu.dynamic_rotate %1191 by %c2_i32_521 dim 1 : vector<32x128xf32>, i32 -> vector<32x128xf32>
    %1199 = arith.index_cast %c10_i32 : i32 to index
    %c1_522 = arith.constant 1 : index
    %c0_523 = arith.constant 0 : index
    %1200 = vector.load %arg2[%1199, %c1_522, %c0_523] : memref<16x7x128xf32, #tpu.memory_space<vmem>>, vector<1x1x128xf32>
    %1201 = vector.shape_cast %1200 : vector<1x1x128xf32> to vector<1x128xf32>
    %1202 = vector.broadcast %1201 : vector<1x128xf32> to vector<32x128xf32>
    %1203 = arith.mulf %1202, %1198 : vector<32x128xf32>
    %1204 = arith.addf %1197, %1203 : vector<32x128xf32>
    %c1_i32_524 = arith.constant 1 : i32
    %1205 = tpu.dynamic_rotate %1191 by %c1_i32_524 dim 1 : vector<32x128xf32>, i32 -> vector<32x128xf32>
    %1206 = arith.index_cast %c10_i32 : i32 to index
    %c2_525 = arith.constant 2 : index
    %c0_526 = arith.constant 0 : index
    %1207 = vector.load %arg2[%1206, %c2_525, %c0_526] : memref<16x7x128xf32, #tpu.memory_space<vmem>>, vector<1x1x128xf32>
    %1208 = vector.shape_cast %1207 : vector<1x1x128xf32> to vector<1x128xf32>
    %1209 = vector.broadcast %1208 : vector<1x128xf32> to vector<32x128xf32>
    %1210 = arith.mulf %1209, %1205 : vector<32x128xf32>
    %1211 = arith.addf %1204, %1210 : vector<32x128xf32>
    %1212 = arith.index_cast %c10_i32 : i32 to index
    %c3_527 = arith.constant 3 : index
    %c0_528 = arith.constant 0 : index
    %1213 = vector.load %arg2[%1212, %c3_527, %c0_528] : memref<16x7x128xf32, #tpu.memory_space<vmem>>, vector<1x1x128xf32>
    %1214 = vector.shape_cast %1213 : vector<1x1x128xf32> to vector<1x128xf32>
    %1215 = vector.broadcast %1214 : vector<1x128xf32> to vector<32x128xf32>
    %1216 = arith.mulf %1215, %1191 : vector<32x128xf32>
    %1217 = arith.addf %1211, %1216 : vector<32x128xf32>
    %c127_i32_529 = arith.constant 127 : i32
    %1218 = tpu.dynamic_rotate %1191 by %c127_i32_529 dim 1 : vector<32x128xf32>, i32 -> vector<32x128xf32>
    %1219 = arith.index_cast %c10_i32 : i32 to index
    %c4_530 = arith.constant 4 : index
    %c0_531 = arith.constant 0 : index
    %1220 = vector.load %arg2[%1219, %c4_530, %c0_531] : memref<16x7x128xf32, #tpu.memory_space<vmem>>, vector<1x1x128xf32>
    %1221 = vector.shape_cast %1220 : vector<1x1x128xf32> to vector<1x128xf32>
    %1222 = vector.broadcast %1221 : vector<1x128xf32> to vector<32x128xf32>
    %1223 = arith.mulf %1222, %1218 : vector<32x128xf32>
    %1224 = arith.addf %1217, %1223 : vector<32x128xf32>
    %c126_i32_532 = arith.constant 126 : i32
    %1225 = tpu.dynamic_rotate %1191 by %c126_i32_532 dim 1 : vector<32x128xf32>, i32 -> vector<32x128xf32>
    %1226 = arith.index_cast %c10_i32 : i32 to index
    %c5_533 = arith.constant 5 : index
    %c0_534 = arith.constant 0 : index
    %1227 = vector.load %arg2[%1226, %c5_533, %c0_534] : memref<16x7x128xf32, #tpu.memory_space<vmem>>, vector<1x1x128xf32>
    %1228 = vector.shape_cast %1227 : vector<1x1x128xf32> to vector<1x128xf32>
    %1229 = vector.broadcast %1228 : vector<1x128xf32> to vector<32x128xf32>
    %1230 = arith.mulf %1229, %1225 : vector<32x128xf32>
    %1231 = arith.addf %1224, %1230 : vector<32x128xf32>
    %c125_i32_535 = arith.constant 125 : i32
    %1232 = tpu.dynamic_rotate %1191 by %c125_i32_535 dim 1 : vector<32x128xf32>, i32 -> vector<32x128xf32>
    %1233 = arith.index_cast %c10_i32 : i32 to index
    %c6_536 = arith.constant 6 : index
    %c0_537 = arith.constant 0 : index
    %1234 = vector.load %arg2[%1233, %c6_536, %c0_537] : memref<16x7x128xf32, #tpu.memory_space<vmem>>, vector<1x1x128xf32>
    %1235 = vector.shape_cast %1234 : vector<1x1x128xf32> to vector<1x128xf32>
    %1236 = vector.broadcast %1235 : vector<1x128xf32> to vector<32x128xf32>
    %1237 = arith.mulf %1236, %1232 : vector<32x128xf32>
    %1238 = arith.addf %1231, %1237 : vector<32x128xf32>
    %1239 = arith.index_cast %c10_i32 : i32 to index
    %c0_538 = arith.constant 0 : index
    %c0_539 = arith.constant 0 : index
    %1240 = vector.load %arg4[%1239, %c0_538, %c0_539] : memref<16x32x128xf32, #tpu.memory_space<vmem>>, vector<1x32x128xf32>
    %1241 = vector.shape_cast %1240 : vector<1x32x128xf32> to vector<32x128xf32>
    %1242 = vector.shape_cast %1238 : vector<32x128xf32> to vector<1x32x128xf32>
    tpu.vector_store %arg4[%1239, %c0_538, %c0_539], %1242 {strides = array<i32>} : memref<16x32x128xf32, #tpu.memory_space<vmem>>, vector<1x32x128xf32>,
    %c11_i32 = arith.constant 11 : i32
    %1243 = arith.index_cast %c11_i32 : i32 to index
    %c0_540 = arith.constant 0 : index
    %c0_541 = arith.constant 0 : index
    %1244 = vector.load %arg1[%1243, %c0_540, %c0_541] : memref<16x7x128xf32, #tpu.memory_space<vmem>>, vector<1x1x128xf32>
    %1245 = vector.shape_cast %1244 : vector<1x1x128xf32> to vector<1x128xf32>
    %1246 = arith.index_cast %c11_i32 : i32 to index
    %c0_542 = arith.constant 0 : index
    %c0_543 = arith.constant 0 : index
    %1247 = vector.load %arg3[%1246, %c0_542, %c0_543] : memref<16x40x128xf32, #tpu.memory_space<vmem>>, vector<1x32x128xf32>
    %1248 = vector.shape_cast %1247 : vector<1x32x128xf32> to vector<32x128xf32>
    %1249 = vector.broadcast %1245 : vector<1x128xf32> to vector<32x128xf32>
    %1250 = arith.mulf %1249, %1248 : vector<32x128xf32>
    %1251 = arith.index_cast %c11_i32 : i32 to index
    %c1_544 = arith.constant 1 : index
    %c0_545 = arith.constant 0 : index
    %1252 = vector.load %arg1[%1251, %c1_544, %c0_545] : memref<16x7x128xf32, #tpu.memory_space<vmem>>, vector<1x1x128xf32>
    %1253 = vector.shape_cast %1252 : vector<1x1x128xf32> to vector<1x128xf32>
    %1254 = arith.index_cast %c11_i32 : i32 to index
    %c1_546 = arith.constant 1 : index
    %c0_547 = arith.constant 0 : index
    %1255 = vector.load %arg3[%1254, %c1_546, %c0_547] : memref<16x40x128xf32, #tpu.memory_space<vmem>>, vector<1x32x128xf32>
    %1256 = vector.shape_cast %1255 : vector<1x32x128xf32> to vector<32x128xf32>
    %1257 = vector.broadcast %1253 : vector<1x128xf32> to vector<32x128xf32>
    %1258 = arith.mulf %1257, %1256 : vector<32x128xf32>
    %1259 = arith.addf %1250, %1258 : vector<32x128xf32>
    %1260 = arith.index_cast %c11_i32 : i32 to index
    %c2_548 = arith.constant 2 : index
    %c0_549 = arith.constant 0 : index
    %1261 = vector.load %arg1[%1260, %c2_548, %c0_549] : memref<16x7x128xf32, #tpu.memory_space<vmem>>, vector<1x1x128xf32>
    %1262 = vector.shape_cast %1261 : vector<1x1x128xf32> to vector<1x128xf32>
    %1263 = arith.index_cast %c11_i32 : i32 to index
    %c2_550 = arith.constant 2 : index
    %c0_551 = arith.constant 0 : index
    %1264 = vector.load %arg3[%1263, %c2_550, %c0_551] : memref<16x40x128xf32, #tpu.memory_space<vmem>>, vector<1x32x128xf32>
    %1265 = vector.shape_cast %1264 : vector<1x32x128xf32> to vector<32x128xf32>
    %1266 = vector.broadcast %1262 : vector<1x128xf32> to vector<32x128xf32>
    %1267 = arith.mulf %1266, %1265 : vector<32x128xf32>
    %1268 = arith.addf %1259, %1267 : vector<32x128xf32>
    %1269 = arith.index_cast %c11_i32 : i32 to index
    %c3_552 = arith.constant 3 : index
    %c0_553 = arith.constant 0 : index
    %1270 = vector.load %arg1[%1269, %c3_552, %c0_553] : memref<16x7x128xf32, #tpu.memory_space<vmem>>, vector<1x1x128xf32>
    %1271 = vector.shape_cast %1270 : vector<1x1x128xf32> to vector<1x128xf32>
    %1272 = arith.index_cast %c11_i32 : i32 to index
    %c3_554 = arith.constant 3 : index
    %c0_555 = arith.constant 0 : index
    %1273 = vector.load %arg3[%1272, %c3_554, %c0_555] : memref<16x40x128xf32, #tpu.memory_space<vmem>>, vector<1x32x128xf32>
    %1274 = vector.shape_cast %1273 : vector<1x32x128xf32> to vector<32x128xf32>
    %1275 = vector.broadcast %1271 : vector<1x128xf32> to vector<32x128xf32>
    %1276 = arith.mulf %1275, %1274 : vector<32x128xf32>
    %1277 = arith.addf %1268, %1276 : vector<32x128xf32>
    %1278 = arith.index_cast %c11_i32 : i32 to index
    %c4_556 = arith.constant 4 : index
    %c0_557 = arith.constant 0 : index
    %1279 = vector.load %arg1[%1278, %c4_556, %c0_557] : memref<16x7x128xf32, #tpu.memory_space<vmem>>, vector<1x1x128xf32>
    %1280 = vector.shape_cast %1279 : vector<1x1x128xf32> to vector<1x128xf32>
    %1281 = arith.index_cast %c11_i32 : i32 to index
    %c4_558 = arith.constant 4 : index
    %c0_559 = arith.constant 0 : index
    %1282 = vector.load %arg3[%1281, %c4_558, %c0_559] : memref<16x40x128xf32, #tpu.memory_space<vmem>>, vector<1x32x128xf32>
    %1283 = vector.shape_cast %1282 : vector<1x32x128xf32> to vector<32x128xf32>
    %1284 = vector.broadcast %1280 : vector<1x128xf32> to vector<32x128xf32>
    %1285 = arith.mulf %1284, %1283 : vector<32x128xf32>
    %1286 = arith.addf %1277, %1285 : vector<32x128xf32>
    %1287 = arith.index_cast %c11_i32 : i32 to index
    %c5_560 = arith.constant 5 : index
    %c0_561 = arith.constant 0 : index
    %1288 = vector.load %arg1[%1287, %c5_560, %c0_561] : memref<16x7x128xf32, #tpu.memory_space<vmem>>, vector<1x1x128xf32>
    %1289 = vector.shape_cast %1288 : vector<1x1x128xf32> to vector<1x128xf32>
    %1290 = arith.index_cast %c11_i32 : i32 to index
    %c5_562 = arith.constant 5 : index
    %c0_563 = arith.constant 0 : index
    %1291 = vector.load %arg3[%1290, %c5_562, %c0_563] : memref<16x40x128xf32, #tpu.memory_space<vmem>>, vector<1x32x128xf32>
    %1292 = vector.shape_cast %1291 : vector<1x32x128xf32> to vector<32x128xf32>
    %1293 = vector.broadcast %1289 : vector<1x128xf32> to vector<32x128xf32>
    %1294 = arith.mulf %1293, %1292 : vector<32x128xf32>
    %1295 = arith.addf %1286, %1294 : vector<32x128xf32>
    %1296 = arith.index_cast %c11_i32 : i32 to index
    %c6_564 = arith.constant 6 : index
    %c0_565 = arith.constant 0 : index
    %1297 = vector.load %arg1[%1296, %c6_564, %c0_565] : memref<16x7x128xf32, #tpu.memory_space<vmem>>, vector<1x1x128xf32>
    %1298 = vector.shape_cast %1297 : vector<1x1x128xf32> to vector<1x128xf32>
    %1299 = arith.index_cast %c11_i32 : i32 to index
    %c6_566 = arith.constant 6 : index
    %c0_567 = arith.constant 0 : index
    %1300 = vector.load %arg3[%1299, %c6_566, %c0_567] : memref<16x40x128xf32, #tpu.memory_space<vmem>>, vector<1x32x128xf32>
    %1301 = vector.shape_cast %1300 : vector<1x32x128xf32> to vector<32x128xf32>
    %1302 = vector.broadcast %1298 : vector<1x128xf32> to vector<32x128xf32>
    %1303 = arith.mulf %1302, %1301 : vector<32x128xf32>
    %1304 = arith.addf %1295, %1303 : vector<32x128xf32>
    %c3_i32_568 = arith.constant 3 : i32
    %1305 = tpu.dynamic_rotate %1304 by %c3_i32_568 dim 1 : vector<32x128xf32>, i32 -> vector<32x128xf32>
    %1306 = arith.index_cast %c11_i32 : i32 to index
    %c0_569 = arith.constant 0 : index
    %c0_570 = arith.constant 0 : index
    %1307 = vector.load %arg2[%1306, %c0_569, %c0_570] : memref<16x7x128xf32, #tpu.memory_space<vmem>>, vector<1x1x128xf32>
    %1308 = vector.shape_cast %1307 : vector<1x1x128xf32> to vector<1x128xf32>
    %1309 = vector.broadcast %1308 : vector<1x128xf32> to vector<32x128xf32>
    %1310 = arith.mulf %1309, %1305 : vector<32x128xf32>
    %c2_i32_571 = arith.constant 2 : i32
    %1311 = tpu.dynamic_rotate %1304 by %c2_i32_571 dim 1 : vector<32x128xf32>, i32 -> vector<32x128xf32>
    %1312 = arith.index_cast %c11_i32 : i32 to index
    %c1_572 = arith.constant 1 : index
    %c0_573 = arith.constant 0 : index
    %1313 = vector.load %arg2[%1312, %c1_572, %c0_573] : memref<16x7x128xf32, #tpu.memory_space<vmem>>, vector<1x1x128xf32>
    %1314 = vector.shape_cast %1313 : vector<1x1x128xf32> to vector<1x128xf32>
    %1315 = vector.broadcast %1314 : vector<1x128xf32> to vector<32x128xf32>
    %1316 = arith.mulf %1315, %1311 : vector<32x128xf32>
    %1317 = arith.addf %1310, %1316 : vector<32x128xf32>
    %c1_i32_574 = arith.constant 1 : i32
    %1318 = tpu.dynamic_rotate %1304 by %c1_i32_574 dim 1 : vector<32x128xf32>, i32 -> vector<32x128xf32>
    %1319 = arith.index_cast %c11_i32 : i32 to index
    %c2_575 = arith.constant 2 : index
    %c0_576 = arith.constant 0 : index
    %1320 = vector.load %arg2[%1319, %c2_575, %c0_576] : memref<16x7x128xf32, #tpu.memory_space<vmem>>, vector<1x1x128xf32>
    %1321 = vector.shape_cast %1320 : vector<1x1x128xf32> to vector<1x128xf32>
    %1322 = vector.broadcast %1321 : vector<1x128xf32> to vector<32x128xf32>
    %1323 = arith.mulf %1322, %1318 : vector<32x128xf32>
    %1324 = arith.addf %1317, %1323 : vector<32x128xf32>
    %1325 = arith.index_cast %c11_i32 : i32 to index
    %c3_577 = arith.constant 3 : index
    %c0_578 = arith.constant 0 : index
    %1326 = vector.load %arg2[%1325, %c3_577, %c0_578] : memref<16x7x128xf32, #tpu.memory_space<vmem>>, vector<1x1x128xf32>
    %1327 = vector.shape_cast %1326 : vector<1x1x128xf32> to vector<1x128xf32>
    %1328 = vector.broadcast %1327 : vector<1x128xf32> to vector<32x128xf32>
    %1329 = arith.mulf %1328, %1304 : vector<32x128xf32>
    %1330 = arith.addf %1324, %1329 : vector<32x128xf32>
    %c127_i32_579 = arith.constant 127 : i32
    %1331 = tpu.dynamic_rotate %1304 by %c127_i32_579 dim 1 : vector<32x128xf32>, i32 -> vector<32x128xf32>
    %1332 = arith.index_cast %c11_i32 : i32 to index
    %c4_580 = arith.constant 4 : index
    %c0_581 = arith.constant 0 : index
    %1333 = vector.load %arg2[%1332, %c4_580, %c0_581] : memref<16x7x128xf32, #tpu.memory_space<vmem>>, vector<1x1x128xf32>
    %1334 = vector.shape_cast %1333 : vector<1x1x128xf32> to vector<1x128xf32>
    %1335 = vector.broadcast %1334 : vector<1x128xf32> to vector<32x128xf32>
    %1336 = arith.mulf %1335, %1331 : vector<32x128xf32>
    %1337 = arith.addf %1330, %1336 : vector<32x128xf32>
    %c126_i32_582 = arith.constant 126 : i32
    %1338 = tpu.dynamic_rotate %1304 by %c126_i32_582 dim 1 : vector<32x128xf32>, i32 -> vector<32x128xf32>
    %1339 = arith.index_cast %c11_i32 : i32 to index
    %c5_583 = arith.constant 5 : index
    %c0_584 = arith.constant 0 : index
    %1340 = vector.load %arg2[%1339, %c5_583, %c0_584] : memref<16x7x128xf32, #tpu.memory_space<vmem>>, vector<1x1x128xf32>
    %1341 = vector.shape_cast %1340 : vector<1x1x128xf32> to vector<1x128xf32>
    %1342 = vector.broadcast %1341 : vector<1x128xf32> to vector<32x128xf32>
    %1343 = arith.mulf %1342, %1338 : vector<32x128xf32>
    %1344 = arith.addf %1337, %1343 : vector<32x128xf32>
    %c125_i32_585 = arith.constant 125 : i32
    %1345 = tpu.dynamic_rotate %1304 by %c125_i32_585 dim 1 : vector<32x128xf32>, i32 -> vector<32x128xf32>
    %1346 = arith.index_cast %c11_i32 : i32 to index
    %c6_586 = arith.constant 6 : index
    %c0_587 = arith.constant 0 : index
    %1347 = vector.load %arg2[%1346, %c6_586, %c0_587] : memref<16x7x128xf32, #tpu.memory_space<vmem>>, vector<1x1x128xf32>
    %1348 = vector.shape_cast %1347 : vector<1x1x128xf32> to vector<1x128xf32>
    %1349 = vector.broadcast %1348 : vector<1x128xf32> to vector<32x128xf32>
    %1350 = arith.mulf %1349, %1345 : vector<32x128xf32>
    %1351 = arith.addf %1344, %1350 : vector<32x128xf32>
    %1352 = arith.index_cast %c11_i32 : i32 to index
    %c0_588 = arith.constant 0 : index
    %c0_589 = arith.constant 0 : index
    %1353 = vector.load %arg4[%1352, %c0_588, %c0_589] : memref<16x32x128xf32, #tpu.memory_space<vmem>>, vector<1x32x128xf32>
    %1354 = vector.shape_cast %1353 : vector<1x32x128xf32> to vector<32x128xf32>
    %1355 = vector.shape_cast %1351 : vector<32x128xf32> to vector<1x32x128xf32>
    tpu.vector_store %arg4[%1352, %c0_588, %c0_589], %1355 {strides = array<i32>} : memref<16x32x128xf32, #tpu.memory_space<vmem>>, vector<1x32x128xf32>,
    %c12_i32 = arith.constant 12 : i32
    %1356 = arith.index_cast %c12_i32 : i32 to index
    %c0_590 = arith.constant 0 : index
    %c0_591 = arith.constant 0 : index
    %1357 = vector.load %arg1[%1356, %c0_590, %c0_591] : memref<16x7x128xf32, #tpu.memory_space<vmem>>, vector<1x1x128xf32>
    %1358 = vector.shape_cast %1357 : vector<1x1x128xf32> to vector<1x128xf32>
    %1359 = arith.index_cast %c12_i32 : i32 to index
    %c0_592 = arith.constant 0 : index
    %c0_593 = arith.constant 0 : index
    %1360 = vector.load %arg3[%1359, %c0_592, %c0_593] : memref<16x40x128xf32, #tpu.memory_space<vmem>>, vector<1x32x128xf32>
    %1361 = vector.shape_cast %1360 : vector<1x32x128xf32> to vector<32x128xf32>
    %1362 = vector.broadcast %1358 : vector<1x128xf32> to vector<32x128xf32>
    %1363 = arith.mulf %1362, %1361 : vector<32x128xf32>
    %1364 = arith.index_cast %c12_i32 : i32 to index
    %c1_594 = arith.constant 1 : index
    %c0_595 = arith.constant 0 : index
    %1365 = vector.load %arg1[%1364, %c1_594, %c0_595] : memref<16x7x128xf32, #tpu.memory_space<vmem>>, vector<1x1x128xf32>
    %1366 = vector.shape_cast %1365 : vector<1x1x128xf32> to vector<1x128xf32>
    %1367 = arith.index_cast %c12_i32 : i32 to index
    %c1_596 = arith.constant 1 : index
    %c0_597 = arith.constant 0 : index
    %1368 = vector.load %arg3[%1367, %c1_596, %c0_597] : memref<16x40x128xf32, #tpu.memory_space<vmem>>, vector<1x32x128xf32>
    %1369 = vector.shape_cast %1368 : vector<1x32x128xf32> to vector<32x128xf32>
    %1370 = vector.broadcast %1366 : vector<1x128xf32> to vector<32x128xf32>
    %1371 = arith.mulf %1370, %1369 : vector<32x128xf32>
    %1372 = arith.addf %1363, %1371 : vector<32x128xf32>
    %1373 = arith.index_cast %c12_i32 : i32 to index
    %c2_598 = arith.constant 2 : index
    %c0_599 = arith.constant 0 : index
    %1374 = vector.load %arg1[%1373, %c2_598, %c0_599] : memref<16x7x128xf32, #tpu.memory_space<vmem>>, vector<1x1x128xf32>
    %1375 = vector.shape_cast %1374 : vector<1x1x128xf32> to vector<1x128xf32>
    %1376 = arith.index_cast %c12_i32 : i32 to index
    %c2_600 = arith.constant 2 : index
    %c0_601 = arith.constant 0 : index
    %1377 = vector.load %arg3[%1376, %c2_600, %c0_601] : memref<16x40x128xf32, #tpu.memory_space<vmem>>, vector<1x32x128xf32>
    %1378 = vector.shape_cast %1377 : vector<1x32x128xf32> to vector<32x128xf32>
    %1379 = vector.broadcast %1375 : vector<1x128xf32> to vector<32x128xf32>
    %1380 = arith.mulf %1379, %1378 : vector<32x128xf32>
    %1381 = arith.addf %1372, %1380 : vector<32x128xf32>
    %1382 = arith.index_cast %c12_i32 : i32 to index
    %c3_602 = arith.constant 3 : index
    %c0_603 = arith.constant 0 : index
    %1383 = vector.load %arg1[%1382, %c3_602, %c0_603] : memref<16x7x128xf32, #tpu.memory_space<vmem>>, vector<1x1x128xf32>
    %1384 = vector.shape_cast %1383 : vector<1x1x128xf32> to vector<1x128xf32>
    %1385 = arith.index_cast %c12_i32 : i32 to index
    %c3_604 = arith.constant 3 : index
    %c0_605 = arith.constant 0 : index
    %1386 = vector.load %arg3[%1385, %c3_604, %c0_605] : memref<16x40x128xf32, #tpu.memory_space<vmem>>, vector<1x32x128xf32>
    %1387 = vector.shape_cast %1386 : vector<1x32x128xf32> to vector<32x128xf32>
    %1388 = vector.broadcast %1384 : vector<1x128xf32> to vector<32x128xf32>
    %1389 = arith.mulf %1388, %1387 : vector<32x128xf32>
    %1390 = arith.addf %1381, %1389 : vector<32x128xf32>
    %1391 = arith.index_cast %c12_i32 : i32 to index
    %c4_606 = arith.constant 4 : index
    %c0_607 = arith.constant 0 : index
    %1392 = vector.load %arg1[%1391, %c4_606, %c0_607] : memref<16x7x128xf32, #tpu.memory_space<vmem>>, vector<1x1x128xf32>
    %1393 = vector.shape_cast %1392 : vector<1x1x128xf32> to vector<1x128xf32>
    %1394 = arith.index_cast %c12_i32 : i32 to index
    %c4_608 = arith.constant 4 : index
    %c0_609 = arith.constant 0 : index
    %1395 = vector.load %arg3[%1394, %c4_608, %c0_609] : memref<16x40x128xf32, #tpu.memory_space<vmem>>, vector<1x32x128xf32>
    %1396 = vector.shape_cast %1395 : vector<1x32x128xf32> to vector<32x128xf32>
    %1397 = vector.broadcast %1393 : vector<1x128xf32> to vector<32x128xf32>
    %1398 = arith.mulf %1397, %1396 : vector<32x128xf32>
    %1399 = arith.addf %1390, %1398 : vector<32x128xf32>
    %1400 = arith.index_cast %c12_i32 : i32 to index
    %c5_610 = arith.constant 5 : index
    %c0_611 = arith.constant 0 : index
    %1401 = vector.load %arg1[%1400, %c5_610, %c0_611] : memref<16x7x128xf32, #tpu.memory_space<vmem>>, vector<1x1x128xf32>
    %1402 = vector.shape_cast %1401 : vector<1x1x128xf32> to vector<1x128xf32>
    %1403 = arith.index_cast %c12_i32 : i32 to index
    %c5_612 = arith.constant 5 : index
    %c0_613 = arith.constant 0 : index
    %1404 = vector.load %arg3[%1403, %c5_612, %c0_613] : memref<16x40x128xf32, #tpu.memory_space<vmem>>, vector<1x32x128xf32>
    %1405 = vector.shape_cast %1404 : vector<1x32x128xf32> to vector<32x128xf32>
    %1406 = vector.broadcast %1402 : vector<1x128xf32> to vector<32x128xf32>
    %1407 = arith.mulf %1406, %1405 : vector<32x128xf32>
    %1408 = arith.addf %1399, %1407 : vector<32x128xf32>
    %1409 = arith.index_cast %c12_i32 : i32 to index
    %c6_614 = arith.constant 6 : index
    %c0_615 = arith.constant 0 : index
    %1410 = vector.load %arg1[%1409, %c6_614, %c0_615] : memref<16x7x128xf32, #tpu.memory_space<vmem>>, vector<1x1x128xf32>
    %1411 = vector.shape_cast %1410 : vector<1x1x128xf32> to vector<1x128xf32>
    %1412 = arith.index_cast %c12_i32 : i32 to index
    %c6_616 = arith.constant 6 : index
    %c0_617 = arith.constant 0 : index
    %1413 = vector.load %arg3[%1412, %c6_616, %c0_617] : memref<16x40x128xf32, #tpu.memory_space<vmem>>, vector<1x32x128xf32>
    %1414 = vector.shape_cast %1413 : vector<1x32x128xf32> to vector<32x128xf32>
    %1415 = vector.broadcast %1411 : vector<1x128xf32> to vector<32x128xf32>
    %1416 = arith.mulf %1415, %1414 : vector<32x128xf32>
    %1417 = arith.addf %1408, %1416 : vector<32x128xf32>
    %c3_i32_618 = arith.constant 3 : i32
    %1418 = tpu.dynamic_rotate %1417 by %c3_i32_618 dim 1 : vector<32x128xf32>, i32 -> vector<32x128xf32>
    %1419 = arith.index_cast %c12_i32 : i32 to index
    %c0_619 = arith.constant 0 : index
    %c0_620 = arith.constant 0 : index
    %1420 = vector.load %arg2[%1419, %c0_619, %c0_620] : memref<16x7x128xf32, #tpu.memory_space<vmem>>, vector<1x1x128xf32>
    %1421 = vector.shape_cast %1420 : vector<1x1x128xf32> to vector<1x128xf32>
    %1422 = vector.broadcast %1421 : vector<1x128xf32> to vector<32x128xf32>
    %1423 = arith.mulf %1422, %1418 : vector<32x128xf32>
    %c2_i32_621 = arith.constant 2 : i32
    %1424 = tpu.dynamic_rotate %1417 by %c2_i32_621 dim 1 : vector<32x128xf32>, i32 -> vector<32x128xf32>
    %1425 = arith.index_cast %c12_i32 : i32 to index
    %c1_622 = arith.constant 1 : index
    %c0_623 = arith.constant 0 : index
    %1426 = vector.load %arg2[%1425, %c1_622, %c0_623] : memref<16x7x128xf32, #tpu.memory_space<vmem>>, vector<1x1x128xf32>
    %1427 = vector.shape_cast %1426 : vector<1x1x128xf32> to vector<1x128xf32>
    %1428 = vector.broadcast %1427 : vector<1x128xf32> to vector<32x128xf32>
    %1429 = arith.mulf %1428, %1424 : vector<32x128xf32>
    %1430 = arith.addf %1423, %1429 : vector<32x128xf32>
    %c1_i32_624 = arith.constant 1 : i32
    %1431 = tpu.dynamic_rotate %1417 by %c1_i32_624 dim 1 : vector<32x128xf32>, i32 -> vector<32x128xf32>
    %1432 = arith.index_cast %c12_i32 : i32 to index
    %c2_625 = arith.constant 2 : index
    %c0_626 = arith.constant 0 : index
    %1433 = vector.load %arg2[%1432, %c2_625, %c0_626] : memref<16x7x128xf32, #tpu.memory_space<vmem>>, vector<1x1x128xf32>
    %1434 = vector.shape_cast %1433 : vector<1x1x128xf32> to vector<1x128xf32>
    %1435 = vector.broadcast %1434 : vector<1x128xf32> to vector<32x128xf32>
    %1436 = arith.mulf %1435, %1431 : vector<32x128xf32>
    %1437 = arith.addf %1430, %1436 : vector<32x128xf32>
    %1438 = arith.index_cast %c12_i32 : i32 to index
    %c3_627 = arith.constant 3 : index
    %c0_628 = arith.constant 0 : index
    %1439 = vector.load %arg2[%1438, %c3_627, %c0_628] : memref<16x7x128xf32, #tpu.memory_space<vmem>>, vector<1x1x128xf32>
    %1440 = vector.shape_cast %1439 : vector<1x1x128xf32> to vector<1x128xf32>
    %1441 = vector.broadcast %1440 : vector<1x128xf32> to vector<32x128xf32>
    %1442 = arith.mulf %1441, %1417 : vector<32x128xf32>
    %1443 = arith.addf %1437, %1442 : vector<32x128xf32>
    %c127_i32_629 = arith.constant 127 : i32
    %1444 = tpu.dynamic_rotate %1417 by %c127_i32_629 dim 1 : vector<32x128xf32>, i32 -> vector<32x128xf32>
    %1445 = arith.index_cast %c12_i32 : i32 to index
    %c4_630 = arith.constant 4 : index
    %c0_631 = arith.constant 0 : index
    %1446 = vector.load %arg2[%1445, %c4_630, %c0_631] : memref<16x7x128xf32, #tpu.memory_space<vmem>>, vector<1x1x128xf32>
    %1447 = vector.shape_cast %1446 : vector<1x1x128xf32> to vector<1x128xf32>
    %1448 = vector.broadcast %1447 : vector<1x128xf32> to vector<32x128xf32>
    %1449 = arith.mulf %1448, %1444 : vector<32x128xf32>
    %1450 = arith.addf %1443, %1449 : vector<32x128xf32>
    %c126_i32_632 = arith.constant 126 : i32
    %1451 = tpu.dynamic_rotate %1417 by %c126_i32_632 dim 1 : vector<32x128xf32>, i32 -> vector<32x128xf32>
    %1452 = arith.index_cast %c12_i32 : i32 to index
    %c5_633 = arith.constant 5 : index
    %c0_634 = arith.constant 0 : index
    %1453 = vector.load %arg2[%1452, %c5_633, %c0_634] : memref<16x7x128xf32, #tpu.memory_space<vmem>>, vector<1x1x128xf32>
    %1454 = vector.shape_cast %1453 : vector<1x1x128xf32> to vector<1x128xf32>
    %1455 = vector.broadcast %1454 : vector<1x128xf32> to vector<32x128xf32>
    %1456 = arith.mulf %1455, %1451 : vector<32x128xf32>
    %1457 = arith.addf %1450, %1456 : vector<32x128xf32>
    %c125_i32_635 = arith.constant 125 : i32
    %1458 = tpu.dynamic_rotate %1417 by %c125_i32_635 dim 1 : vector<32x128xf32>, i32 -> vector<32x128xf32>
    %1459 = arith.index_cast %c12_i32 : i32 to index
    %c6_636 = arith.constant 6 : index
    %c0_637 = arith.constant 0 : index
    %1460 = vector.load %arg2[%1459, %c6_636, %c0_637] : memref<16x7x128xf32, #tpu.memory_space<vmem>>, vector<1x1x128xf32>
    %1461 = vector.shape_cast %1460 : vector<1x1x128xf32> to vector<1x128xf32>
    %1462 = vector.broadcast %1461 : vector<1x128xf32> to vector<32x128xf32>
    %1463 = arith.mulf %1462, %1458 : vector<32x128xf32>
    %1464 = arith.addf %1457, %1463 : vector<32x128xf32>
    %1465 = arith.index_cast %c12_i32 : i32 to index
    %c0_638 = arith.constant 0 : index
    %c0_639 = arith.constant 0 : index
    %1466 = vector.load %arg4[%1465, %c0_638, %c0_639] : memref<16x32x128xf32, #tpu.memory_space<vmem>>, vector<1x32x128xf32>
    %1467 = vector.shape_cast %1466 : vector<1x32x128xf32> to vector<32x128xf32>
    %1468 = vector.shape_cast %1464 : vector<32x128xf32> to vector<1x32x128xf32>
    tpu.vector_store %arg4[%1465, %c0_638, %c0_639], %1468 {strides = array<i32>} : memref<16x32x128xf32, #tpu.memory_space<vmem>>, vector<1x32x128xf32>,
    %c13_i32 = arith.constant 13 : i32
    %1469 = arith.index_cast %c13_i32 : i32 to index
    %c0_640 = arith.constant 0 : index
    %c0_641 = arith.constant 0 : index
    %1470 = vector.load %arg1[%1469, %c0_640, %c0_641] : memref<16x7x128xf32, #tpu.memory_space<vmem>>, vector<1x1x128xf32>
    %1471 = vector.shape_cast %1470 : vector<1x1x128xf32> to vector<1x128xf32>
    %1472 = arith.index_cast %c13_i32 : i32 to index
    %c0_642 = arith.constant 0 : index
    %c0_643 = arith.constant 0 : index
    %1473 = vector.load %arg3[%1472, %c0_642, %c0_643] : memref<16x40x128xf32, #tpu.memory_space<vmem>>, vector<1x32x128xf32>
    %1474 = vector.shape_cast %1473 : vector<1x32x128xf32> to vector<32x128xf32>
    %1475 = vector.broadcast %1471 : vector<1x128xf32> to vector<32x128xf32>
    %1476 = arith.mulf %1475, %1474 : vector<32x128xf32>
    %1477 = arith.index_cast %c13_i32 : i32 to index
    %c1_644 = arith.constant 1 : index
    %c0_645 = arith.constant 0 : index
    %1478 = vector.load %arg1[%1477, %c1_644, %c0_645] : memref<16x7x128xf32, #tpu.memory_space<vmem>>, vector<1x1x128xf32>
    %1479 = vector.shape_cast %1478 : vector<1x1x128xf32> to vector<1x128xf32>
    %1480 = arith.index_cast %c13_i32 : i32 to index
    %c1_646 = arith.constant 1 : index
    %c0_647 = arith.constant 0 : index
    %1481 = vector.load %arg3[%1480, %c1_646, %c0_647] : memref<16x40x128xf32, #tpu.memory_space<vmem>>, vector<1x32x128xf32>
    %1482 = vector.shape_cast %1481 : vector<1x32x128xf32> to vector<32x128xf32>
    %1483 = vector.broadcast %1479 : vector<1x128xf32> to vector<32x128xf32>
    %1484 = arith.mulf %1483, %1482 : vector<32x128xf32>
    %1485 = arith.addf %1476, %1484 : vector<32x128xf32>
    %1486 = arith.index_cast %c13_i32 : i32 to index
    %c2_648 = arith.constant 2 : index
    %c0_649 = arith.constant 0 : index
    %1487 = vector.load %arg1[%1486, %c2_648, %c0_649] : memref<16x7x128xf32, #tpu.memory_space<vmem>>, vector<1x1x128xf32>
    %1488 = vector.shape_cast %1487 : vector<1x1x128xf32> to vector<1x128xf32>
    %1489 = arith.index_cast %c13_i32 : i32 to index
    %c2_650 = arith.constant 2 : index
    %c0_651 = arith.constant 0 : index
    %1490 = vector.load %arg3[%1489, %c2_650, %c0_651] : memref<16x40x128xf32, #tpu.memory_space<vmem>>, vector<1x32x128xf32>
    %1491 = vector.shape_cast %1490 : vector<1x32x128xf32> to vector<32x128xf32>
    %1492 = vector.broadcast %1488 : vector<1x128xf32> to vector<32x128xf32>
    %1493 = arith.mulf %1492, %1491 : vector<32x128xf32>
    %1494 = arith.addf %1485, %1493 : vector<32x128xf32>
    %1495 = arith.index_cast %c13_i32 : i32 to index
    %c3_652 = arith.constant 3 : index
    %c0_653 = arith.constant 0 : index
    %1496 = vector.load %arg1[%1495, %c3_652, %c0_653] : memref<16x7x128xf32, #tpu.memory_space<vmem>>, vector<1x1x128xf32>
    %1497 = vector.shape_cast %1496 : vector<1x1x128xf32> to vector<1x128xf32>
    %1498 = arith.index_cast %c13_i32 : i32 to index
    %c3_654 = arith.constant 3 : index
    %c0_655 = arith.constant 0 : index
    %1499 = vector.load %arg3[%1498, %c3_654, %c0_655] : memref<16x40x128xf32, #tpu.memory_space<vmem>>, vector<1x32x128xf32>
    %1500 = vector.shape_cast %1499 : vector<1x32x128xf32> to vector<32x128xf32>
    %1501 = vector.broadcast %1497 : vector<1x128xf32> to vector<32x128xf32>
    %1502 = arith.mulf %1501, %1500 : vector<32x128xf32>
    %1503 = arith.addf %1494, %1502 : vector<32x128xf32>
    %1504 = arith.index_cast %c13_i32 : i32 to index
    %c4_656 = arith.constant 4 : index
    %c0_657 = arith.constant 0 : index
    %1505 = vector.load %arg1[%1504, %c4_656, %c0_657] : memref<16x7x128xf32, #tpu.memory_space<vmem>>, vector<1x1x128xf32>
    %1506 = vector.shape_cast %1505 : vector<1x1x128xf32> to vector<1x128xf32>
    %1507 = arith.index_cast %c13_i32 : i32 to index
    %c4_658 = arith.constant 4 : index
    %c0_659 = arith.constant 0 : index
    %1508 = vector.load %arg3[%1507, %c4_658, %c0_659] : memref<16x40x128xf32, #tpu.memory_space<vmem>>, vector<1x32x128xf32>
    %1509 = vector.shape_cast %1508 : vector<1x32x128xf32> to vector<32x128xf32>
    %1510 = vector.broadcast %1506 : vector<1x128xf32> to vector<32x128xf32>
    %1511 = arith.mulf %1510, %1509 : vector<32x128xf32>
    %1512 = arith.addf %1503, %1511 : vector<32x128xf32>
    %1513 = arith.index_cast %c13_i32 : i32 to index
    %c5_660 = arith.constant 5 : index
    %c0_661 = arith.constant 0 : index
    %1514 = vector.load %arg1[%1513, %c5_660, %c0_661] : memref<16x7x128xf32, #tpu.memory_space<vmem>>, vector<1x1x128xf32>
    %1515 = vector.shape_cast %1514 : vector<1x1x128xf32> to vector<1x128xf32>
    %1516 = arith.index_cast %c13_i32 : i32 to index
    %c5_662 = arith.constant 5 : index
    %c0_663 = arith.constant 0 : index
    %1517 = vector.load %arg3[%1516, %c5_662, %c0_663] : memref<16x40x128xf32, #tpu.memory_space<vmem>>, vector<1x32x128xf32>
    %1518 = vector.shape_cast %1517 : vector<1x32x128xf32> to vector<32x128xf32>
    %1519 = vector.broadcast %1515 : vector<1x128xf32> to vector<32x128xf32>
    %1520 = arith.mulf %1519, %1518 : vector<32x128xf32>
    %1521 = arith.addf %1512, %1520 : vector<32x128xf32>
    %1522 = arith.index_cast %c13_i32 : i32 to index
    %c6_664 = arith.constant 6 : index
    %c0_665 = arith.constant 0 : index
    %1523 = vector.load %arg1[%1522, %c6_664, %c0_665] : memref<16x7x128xf32, #tpu.memory_space<vmem>>, vector<1x1x128xf32>
    %1524 = vector.shape_cast %1523 : vector<1x1x128xf32> to vector<1x128xf32>
    %1525 = arith.index_cast %c13_i32 : i32 to index
    %c6_666 = arith.constant 6 : index
    %c0_667 = arith.constant 0 : index
    %1526 = vector.load %arg3[%1525, %c6_666, %c0_667] : memref<16x40x128xf32, #tpu.memory_space<vmem>>, vector<1x32x128xf32>
    %1527 = vector.shape_cast %1526 : vector<1x32x128xf32> to vector<32x128xf32>
    %1528 = vector.broadcast %1524 : vector<1x128xf32> to vector<32x128xf32>
    %1529 = arith.mulf %1528, %1527 : vector<32x128xf32>
    %1530 = arith.addf %1521, %1529 : vector<32x128xf32>
    %c3_i32_668 = arith.constant 3 : i32
    %1531 = tpu.dynamic_rotate %1530 by %c3_i32_668 dim 1 : vector<32x128xf32>, i32 -> vector<32x128xf32>
    %1532 = arith.index_cast %c13_i32 : i32 to index
    %c0_669 = arith.constant 0 : index
    %c0_670 = arith.constant 0 : index
    %1533 = vector.load %arg2[%1532, %c0_669, %c0_670] : memref<16x7x128xf32, #tpu.memory_space<vmem>>, vector<1x1x128xf32>
    %1534 = vector.shape_cast %1533 : vector<1x1x128xf32> to vector<1x128xf32>
    %1535 = vector.broadcast %1534 : vector<1x128xf32> to vector<32x128xf32>
    %1536 = arith.mulf %1535, %1531 : vector<32x128xf32>
    %c2_i32_671 = arith.constant 2 : i32
    %1537 = tpu.dynamic_rotate %1530 by %c2_i32_671 dim 1 : vector<32x128xf32>, i32 -> vector<32x128xf32>
    %1538 = arith.index_cast %c13_i32 : i32 to index
    %c1_672 = arith.constant 1 : index
    %c0_673 = arith.constant 0 : index
    %1539 = vector.load %arg2[%1538, %c1_672, %c0_673] : memref<16x7x128xf32, #tpu.memory_space<vmem>>, vector<1x1x128xf32>
    %1540 = vector.shape_cast %1539 : vector<1x1x128xf32> to vector<1x128xf32>
    %1541 = vector.broadcast %1540 : vector<1x128xf32> to vector<32x128xf32>
    %1542 = arith.mulf %1541, %1537 : vector<32x128xf32>
    %1543 = arith.addf %1536, %1542 : vector<32x128xf32>
    %c1_i32_674 = arith.constant 1 : i32
    %1544 = tpu.dynamic_rotate %1530 by %c1_i32_674 dim 1 : vector<32x128xf32>, i32 -> vector<32x128xf32>
    %1545 = arith.index_cast %c13_i32 : i32 to index
    %c2_675 = arith.constant 2 : index
    %c0_676 = arith.constant 0 : index
    %1546 = vector.load %arg2[%1545, %c2_675, %c0_676] : memref<16x7x128xf32, #tpu.memory_space<vmem>>, vector<1x1x128xf32>
    %1547 = vector.shape_cast %1546 : vector<1x1x128xf32> to vector<1x128xf32>
    %1548 = vector.broadcast %1547 : vector<1x128xf32> to vector<32x128xf32>
    %1549 = arith.mulf %1548, %1544 : vector<32x128xf32>
    %1550 = arith.addf %1543, %1549 : vector<32x128xf32>
    %1551 = arith.index_cast %c13_i32 : i32 to index
    %c3_677 = arith.constant 3 : index
    %c0_678 = arith.constant 0 : index
    %1552 = vector.load %arg2[%1551, %c3_677, %c0_678] : memref<16x7x128xf32, #tpu.memory_space<vmem>>, vector<1x1x128xf32>
    %1553 = vector.shape_cast %1552 : vector<1x1x128xf32> to vector<1x128xf32>
    %1554 = vector.broadcast %1553 : vector<1x128xf32> to vector<32x128xf32>
    %1555 = arith.mulf %1554, %1530 : vector<32x128xf32>
    %1556 = arith.addf %1550, %1555 : vector<32x128xf32>
    %c127_i32_679 = arith.constant 127 : i32
    %1557 = tpu.dynamic_rotate %1530 by %c127_i32_679 dim 1 : vector<32x128xf32>, i32 -> vector<32x128xf32>
    %1558 = arith.index_cast %c13_i32 : i32 to index
    %c4_680 = arith.constant 4 : index
    %c0_681 = arith.constant 0 : index
    %1559 = vector.load %arg2[%1558, %c4_680, %c0_681] : memref<16x7x128xf32, #tpu.memory_space<vmem>>, vector<1x1x128xf32>
    %1560 = vector.shape_cast %1559 : vector<1x1x128xf32> to vector<1x128xf32>
    %1561 = vector.broadcast %1560 : vector<1x128xf32> to vector<32x128xf32>
    %1562 = arith.mulf %1561, %1557 : vector<32x128xf32>
    %1563 = arith.addf %1556, %1562 : vector<32x128xf32>
    %c126_i32_682 = arith.constant 126 : i32
    %1564 = tpu.dynamic_rotate %1530 by %c126_i32_682 dim 1 : vector<32x128xf32>, i32 -> vector<32x128xf32>
    %1565 = arith.index_cast %c13_i32 : i32 to index
    %c5_683 = arith.constant 5 : index
    %c0_684 = arith.constant 0 : index
    %1566 = vector.load %arg2[%1565, %c5_683, %c0_684] : memref<16x7x128xf32, #tpu.memory_space<vmem>>, vector<1x1x128xf32>
    %1567 = vector.shape_cast %1566 : vector<1x1x128xf32> to vector<1x128xf32>
    %1568 = vector.broadcast %1567 : vector<1x128xf32> to vector<32x128xf32>
    %1569 = arith.mulf %1568, %1564 : vector<32x128xf32>
    %1570 = arith.addf %1563, %1569 : vector<32x128xf32>
    %c125_i32_685 = arith.constant 125 : i32
    %1571 = tpu.dynamic_rotate %1530 by %c125_i32_685 dim 1 : vector<32x128xf32>, i32 -> vector<32x128xf32>
    %1572 = arith.index_cast %c13_i32 : i32 to index
    %c6_686 = arith.constant 6 : index
    %c0_687 = arith.constant 0 : index
    %1573 = vector.load %arg2[%1572, %c6_686, %c0_687] : memref<16x7x128xf32, #tpu.memory_space<vmem>>, vector<1x1x128xf32>
    %1574 = vector.shape_cast %1573 : vector<1x1x128xf32> to vector<1x128xf32>
    %1575 = vector.broadcast %1574 : vector<1x128xf32> to vector<32x128xf32>
    %1576 = arith.mulf %1575, %1571 : vector<32x128xf32>
    %1577 = arith.addf %1570, %1576 : vector<32x128xf32>
    %1578 = arith.index_cast %c13_i32 : i32 to index
    %c0_688 = arith.constant 0 : index
    %c0_689 = arith.constant 0 : index
    %1579 = vector.load %arg4[%1578, %c0_688, %c0_689] : memref<16x32x128xf32, #tpu.memory_space<vmem>>, vector<1x32x128xf32>
    %1580 = vector.shape_cast %1579 : vector<1x32x128xf32> to vector<32x128xf32>
    %1581 = vector.shape_cast %1577 : vector<32x128xf32> to vector<1x32x128xf32>
    tpu.vector_store %arg4[%1578, %c0_688, %c0_689], %1581 {strides = array<i32>} : memref<16x32x128xf32, #tpu.memory_space<vmem>>, vector<1x32x128xf32>,
    %c14_i32 = arith.constant 14 : i32
    %1582 = arith.index_cast %c14_i32 : i32 to index
    %c0_690 = arith.constant 0 : index
    %c0_691 = arith.constant 0 : index
    %1583 = vector.load %arg1[%1582, %c0_690, %c0_691] : memref<16x7x128xf32, #tpu.memory_space<vmem>>, vector<1x1x128xf32>
    %1584 = vector.shape_cast %1583 : vector<1x1x128xf32> to vector<1x128xf32>
    %1585 = arith.index_cast %c14_i32 : i32 to index
    %c0_692 = arith.constant 0 : index
    %c0_693 = arith.constant 0 : index
    %1586 = vector.load %arg3[%1585, %c0_692, %c0_693] : memref<16x40x128xf32, #tpu.memory_space<vmem>>, vector<1x32x128xf32>
    %1587 = vector.shape_cast %1586 : vector<1x32x128xf32> to vector<32x128xf32>
    %1588 = vector.broadcast %1584 : vector<1x128xf32> to vector<32x128xf32>
    %1589 = arith.mulf %1588, %1587 : vector<32x128xf32>
    %1590 = arith.index_cast %c14_i32 : i32 to index
    %c1_694 = arith.constant 1 : index
    %c0_695 = arith.constant 0 : index
    %1591 = vector.load %arg1[%1590, %c1_694, %c0_695] : memref<16x7x128xf32, #tpu.memory_space<vmem>>, vector<1x1x128xf32>
    %1592 = vector.shape_cast %1591 : vector<1x1x128xf32> to vector<1x128xf32>
    %1593 = arith.index_cast %c14_i32 : i32 to index
    %c1_696 = arith.constant 1 : index
    %c0_697 = arith.constant 0 : index
    %1594 = vector.load %arg3[%1593, %c1_696, %c0_697] : memref<16x40x128xf32, #tpu.memory_space<vmem>>, vector<1x32x128xf32>
    %1595 = vector.shape_cast %1594 : vector<1x32x128xf32> to vector<32x128xf32>
    %1596 = vector.broadcast %1592 : vector<1x128xf32> to vector<32x128xf32>
    %1597 = arith.mulf %1596, %1595 : vector<32x128xf32>
    %1598 = arith.addf %1589, %1597 : vector<32x128xf32>
    %1599 = arith.index_cast %c14_i32 : i32 to index
    %c2_698 = arith.constant 2 : index
    %c0_699 = arith.constant 0 : index
    %1600 = vector.load %arg1[%1599, %c2_698, %c0_699] : memref<16x7x128xf32, #tpu.memory_space<vmem>>, vector<1x1x128xf32>
    %1601 = vector.shape_cast %1600 : vector<1x1x128xf32> to vector<1x128xf32>
    %1602 = arith.index_cast %c14_i32 : i32 to index
    %c2_700 = arith.constant 2 : index
    %c0_701 = arith.constant 0 : index
    %1603 = vector.load %arg3[%1602, %c2_700, %c0_701] : memref<16x40x128xf32, #tpu.memory_space<vmem>>, vector<1x32x128xf32>
    %1604 = vector.shape_cast %1603 : vector<1x32x128xf32> to vector<32x128xf32>
    %1605 = vector.broadcast %1601 : vector<1x128xf32> to vector<32x128xf32>
    %1606 = arith.mulf %1605, %1604 : vector<32x128xf32>
    %1607 = arith.addf %1598, %1606 : vector<32x128xf32>
    %1608 = arith.index_cast %c14_i32 : i32 to index
    %c3_702 = arith.constant 3 : index
    %c0_703 = arith.constant 0 : index
    %1609 = vector.load %arg1[%1608, %c3_702, %c0_703] : memref<16x7x128xf32, #tpu.memory_space<vmem>>, vector<1x1x128xf32>
    %1610 = vector.shape_cast %1609 : vector<1x1x128xf32> to vector<1x128xf32>
    %1611 = arith.index_cast %c14_i32 : i32 to index
    %c3_704 = arith.constant 3 : index
    %c0_705 = arith.constant 0 : index
    %1612 = vector.load %arg3[%1611, %c3_704, %c0_705] : memref<16x40x128xf32, #tpu.memory_space<vmem>>, vector<1x32x128xf32>
    %1613 = vector.shape_cast %1612 : vector<1x32x128xf32> to vector<32x128xf32>
    %1614 = vector.broadcast %1610 : vector<1x128xf32> to vector<32x128xf32>
    %1615 = arith.mulf %1614, %1613 : vector<32x128xf32>
    %1616 = arith.addf %1607, %1615 : vector<32x128xf32>
    %1617 = arith.index_cast %c14_i32 : i32 to index
    %c4_706 = arith.constant 4 : index
    %c0_707 = arith.constant 0 : index
    %1618 = vector.load %arg1[%1617, %c4_706, %c0_707] : memref<16x7x128xf32, #tpu.memory_space<vmem>>, vector<1x1x128xf32>
    %1619 = vector.shape_cast %1618 : vector<1x1x128xf32> to vector<1x128xf32>
    %1620 = arith.index_cast %c14_i32 : i32 to index
    %c4_708 = arith.constant 4 : index
    %c0_709 = arith.constant 0 : index
    %1621 = vector.load %arg3[%1620, %c4_708, %c0_709] : memref<16x40x128xf32, #tpu.memory_space<vmem>>, vector<1x32x128xf32>
    %1622 = vector.shape_cast %1621 : vector<1x32x128xf32> to vector<32x128xf32>
    %1623 = vector.broadcast %1619 : vector<1x128xf32> to vector<32x128xf32>
    %1624 = arith.mulf %1623, %1622 : vector<32x128xf32>
    %1625 = arith.addf %1616, %1624 : vector<32x128xf32>
    %1626 = arith.index_cast %c14_i32 : i32 to index
    %c5_710 = arith.constant 5 : index
    %c0_711 = arith.constant 0 : index
    %1627 = vector.load %arg1[%1626, %c5_710, %c0_711] : memref<16x7x128xf32, #tpu.memory_space<vmem>>, vector<1x1x128xf32>
    %1628 = vector.shape_cast %1627 : vector<1x1x128xf32> to vector<1x128xf32>
    %1629 = arith.index_cast %c14_i32 : i32 to index
    %c5_712 = arith.constant 5 : index
    %c0_713 = arith.constant 0 : index
    %1630 = vector.load %arg3[%1629, %c5_712, %c0_713] : memref<16x40x128xf32, #tpu.memory_space<vmem>>, vector<1x32x128xf32>
    %1631 = vector.shape_cast %1630 : vector<1x32x128xf32> to vector<32x128xf32>
    %1632 = vector.broadcast %1628 : vector<1x128xf32> to vector<32x128xf32>
    %1633 = arith.mulf %1632, %1631 : vector<32x128xf32>
    %1634 = arith.addf %1625, %1633 : vector<32x128xf32>
    %1635 = arith.index_cast %c14_i32 : i32 to index
    %c6_714 = arith.constant 6 : index
    %c0_715 = arith.constant 0 : index
    %1636 = vector.load %arg1[%1635, %c6_714, %c0_715] : memref<16x7x128xf32, #tpu.memory_space<vmem>>, vector<1x1x128xf32>
    %1637 = vector.shape_cast %1636 : vector<1x1x128xf32> to vector<1x128xf32>
    %1638 = arith.index_cast %c14_i32 : i32 to index
    %c6_716 = arith.constant 6 : index
    %c0_717 = arith.constant 0 : index
    %1639 = vector.load %arg3[%1638, %c6_716, %c0_717] : memref<16x40x128xf32, #tpu.memory_space<vmem>>, vector<1x32x128xf32>
    %1640 = vector.shape_cast %1639 : vector<1x32x128xf32> to vector<32x128xf32>
    %1641 = vector.broadcast %1637 : vector<1x128xf32> to vector<32x128xf32>
    %1642 = arith.mulf %1641, %1640 : vector<32x128xf32>
    %1643 = arith.addf %1634, %1642 : vector<32x128xf32>
    %c3_i32_718 = arith.constant 3 : i32
    %1644 = tpu.dynamic_rotate %1643 by %c3_i32_718 dim 1 : vector<32x128xf32>, i32 -> vector<32x128xf32>
    %1645 = arith.index_cast %c14_i32 : i32 to index
    %c0_719 = arith.constant 0 : index
    %c0_720 = arith.constant 0 : index
    %1646 = vector.load %arg2[%1645, %c0_719, %c0_720] : memref<16x7x128xf32, #tpu.memory_space<vmem>>, vector<1x1x128xf32>
    %1647 = vector.shape_cast %1646 : vector<1x1x128xf32> to vector<1x128xf32>
    %1648 = vector.broadcast %1647 : vector<1x128xf32> to vector<32x128xf32>
    %1649 = arith.mulf %1648, %1644 : vector<32x128xf32>
    %c2_i32_721 = arith.constant 2 : i32
    %1650 = tpu.dynamic_rotate %1643 by %c2_i32_721 dim 1 : vector<32x128xf32>, i32 -> vector<32x128xf32>
    %1651 = arith.index_cast %c14_i32 : i32 to index
    %c1_722 = arith.constant 1 : index
    %c0_723 = arith.constant 0 : index
    %1652 = vector.load %arg2[%1651, %c1_722, %c0_723] : memref<16x7x128xf32, #tpu.memory_space<vmem>>, vector<1x1x128xf32>
    %1653 = vector.shape_cast %1652 : vector<1x1x128xf32> to vector<1x128xf32>
    %1654 = vector.broadcast %1653 : vector<1x128xf32> to vector<32x128xf32>
    %1655 = arith.mulf %1654, %1650 : vector<32x128xf32>
    %1656 = arith.addf %1649, %1655 : vector<32x128xf32>
    %c1_i32_724 = arith.constant 1 : i32
    %1657 = tpu.dynamic_rotate %1643 by %c1_i32_724 dim 1 : vector<32x128xf32>, i32 -> vector<32x128xf32>
    %1658 = arith.index_cast %c14_i32 : i32 to index
    %c2_725 = arith.constant 2 : index
    %c0_726 = arith.constant 0 : index
    %1659 = vector.load %arg2[%1658, %c2_725, %c0_726] : memref<16x7x128xf32, #tpu.memory_space<vmem>>, vector<1x1x128xf32>
    %1660 = vector.shape_cast %1659 : vector<1x1x128xf32> to vector<1x128xf32>
    %1661 = vector.broadcast %1660 : vector<1x128xf32> to vector<32x128xf32>
    %1662 = arith.mulf %1661, %1657 : vector<32x128xf32>
    %1663 = arith.addf %1656, %1662 : vector<32x128xf32>
    %1664 = arith.index_cast %c14_i32 : i32 to index
    %c3_727 = arith.constant 3 : index
    %c0_728 = arith.constant 0 : index
    %1665 = vector.load %arg2[%1664, %c3_727, %c0_728] : memref<16x7x128xf32, #tpu.memory_space<vmem>>, vector<1x1x128xf32>
    %1666 = vector.shape_cast %1665 : vector<1x1x128xf32> to vector<1x128xf32>
    %1667 = vector.broadcast %1666 : vector<1x128xf32> to vector<32x128xf32>
    %1668 = arith.mulf %1667, %1643 : vector<32x128xf32>
    %1669 = arith.addf %1663, %1668 : vector<32x128xf32>
    %c127_i32_729 = arith.constant 127 : i32
    %1670 = tpu.dynamic_rotate %1643 by %c127_i32_729 dim 1 : vector<32x128xf32>, i32 -> vector<32x128xf32>
    %1671 = arith.index_cast %c14_i32 : i32 to index
    %c4_730 = arith.constant 4 : index
    %c0_731 = arith.constant 0 : index
    %1672 = vector.load %arg2[%1671, %c4_730, %c0_731] : memref<16x7x128xf32, #tpu.memory_space<vmem>>, vector<1x1x128xf32>
    %1673 = vector.shape_cast %1672 : vector<1x1x128xf32> to vector<1x128xf32>
    %1674 = vector.broadcast %1673 : vector<1x128xf32> to vector<32x128xf32>
    %1675 = arith.mulf %1674, %1670 : vector<32x128xf32>
    %1676 = arith.addf %1669, %1675 : vector<32x128xf32>
    %c126_i32_732 = arith.constant 126 : i32
    %1677 = tpu.dynamic_rotate %1643 by %c126_i32_732 dim 1 : vector<32x128xf32>, i32 -> vector<32x128xf32>
    %1678 = arith.index_cast %c14_i32 : i32 to index
    %c5_733 = arith.constant 5 : index
    %c0_734 = arith.constant 0 : index
    %1679 = vector.load %arg2[%1678, %c5_733, %c0_734] : memref<16x7x128xf32, #tpu.memory_space<vmem>>, vector<1x1x128xf32>
    %1680 = vector.shape_cast %1679 : vector<1x1x128xf32> to vector<1x128xf32>
    %1681 = vector.broadcast %1680 : vector<1x128xf32> to vector<32x128xf32>
    %1682 = arith.mulf %1681, %1677 : vector<32x128xf32>
    %1683 = arith.addf %1676, %1682 : vector<32x128xf32>
    %c125_i32_735 = arith.constant 125 : i32
    %1684 = tpu.dynamic_rotate %1643 by %c125_i32_735 dim 1 : vector<32x128xf32>, i32 -> vector<32x128xf32>
    %1685 = arith.index_cast %c14_i32 : i32 to index
    %c6_736 = arith.constant 6 : index
    %c0_737 = arith.constant 0 : index
    %1686 = vector.load %arg2[%1685, %c6_736, %c0_737] : memref<16x7x128xf32, #tpu.memory_space<vmem>>, vector<1x1x128xf32>
    %1687 = vector.shape_cast %1686 : vector<1x1x128xf32> to vector<1x128xf32>
    %1688 = vector.broadcast %1687 : vector<1x128xf32> to vector<32x128xf32>
    %1689 = arith.mulf %1688, %1684 : vector<32x128xf32>
    %1690 = arith.addf %1683, %1689 : vector<32x128xf32>
    %1691 = arith.index_cast %c14_i32 : i32 to index
    %c0_738 = arith.constant 0 : index
    %c0_739 = arith.constant 0 : index
    %1692 = vector.load %arg4[%1691, %c0_738, %c0_739] : memref<16x32x128xf32, #tpu.memory_space<vmem>>, vector<1x32x128xf32>
    %1693 = vector.shape_cast %1692 : vector<1x32x128xf32> to vector<32x128xf32>
    %1694 = vector.shape_cast %1690 : vector<32x128xf32> to vector<1x32x128xf32>
    tpu.vector_store %arg4[%1691, %c0_738, %c0_739], %1694 {strides = array<i32>} : memref<16x32x128xf32, #tpu.memory_space<vmem>>, vector<1x32x128xf32>,
    %c15_i32 = arith.constant 15 : i32
    %1695 = arith.index_cast %c15_i32 : i32 to index
    %c0_740 = arith.constant 0 : index
    %c0_741 = arith.constant 0 : index
    %1696 = vector.load %arg1[%1695, %c0_740, %c0_741] : memref<16x7x128xf32, #tpu.memory_space<vmem>>, vector<1x1x128xf32>
    %1697 = vector.shape_cast %1696 : vector<1x1x128xf32> to vector<1x128xf32>
    %1698 = arith.index_cast %c15_i32 : i32 to index
    %c0_742 = arith.constant 0 : index
    %c0_743 = arith.constant 0 : index
    %1699 = vector.load %arg3[%1698, %c0_742, %c0_743] : memref<16x40x128xf32, #tpu.memory_space<vmem>>, vector<1x32x128xf32>
    %1700 = vector.shape_cast %1699 : vector<1x32x128xf32> to vector<32x128xf32>
    %1701 = vector.broadcast %1697 : vector<1x128xf32> to vector<32x128xf32>
    %1702 = arith.mulf %1701, %1700 : vector<32x128xf32>
    %1703 = arith.index_cast %c15_i32 : i32 to index
    %c1_744 = arith.constant 1 : index
    %c0_745 = arith.constant 0 : index
    %1704 = vector.load %arg1[%1703, %c1_744, %c0_745] : memref<16x7x128xf32, #tpu.memory_space<vmem>>, vector<1x1x128xf32>
    %1705 = vector.shape_cast %1704 : vector<1x1x128xf32> to vector<1x128xf32>
    %1706 = arith.index_cast %c15_i32 : i32 to index
    %c1_746 = arith.constant 1 : index
    %c0_747 = arith.constant 0 : index
    %1707 = vector.load %arg3[%1706, %c1_746, %c0_747] : memref<16x40x128xf32, #tpu.memory_space<vmem>>, vector<1x32x128xf32>
    %1708 = vector.shape_cast %1707 : vector<1x32x128xf32> to vector<32x128xf32>
    %1709 = vector.broadcast %1705 : vector<1x128xf32> to vector<32x128xf32>
    %1710 = arith.mulf %1709, %1708 : vector<32x128xf32>
    %1711 = arith.addf %1702, %1710 : vector<32x128xf32>
    %1712 = arith.index_cast %c15_i32 : i32 to index
    %c2_748 = arith.constant 2 : index
    %c0_749 = arith.constant 0 : index
    %1713 = vector.load %arg1[%1712, %c2_748, %c0_749] : memref<16x7x128xf32, #tpu.memory_space<vmem>>, vector<1x1x128xf32>
    %1714 = vector.shape_cast %1713 : vector<1x1x128xf32> to vector<1x128xf32>
    %1715 = arith.index_cast %c15_i32 : i32 to index
    %c2_750 = arith.constant 2 : index
    %c0_751 = arith.constant 0 : index
    %1716 = vector.load %arg3[%1715, %c2_750, %c0_751] : memref<16x40x128xf32, #tpu.memory_space<vmem>>, vector<1x32x128xf32>
    %1717 = vector.shape_cast %1716 : vector<1x32x128xf32> to vector<32x128xf32>
    %1718 = vector.broadcast %1714 : vector<1x128xf32> to vector<32x128xf32>
    %1719 = arith.mulf %1718, %1717 : vector<32x128xf32>
    %1720 = arith.addf %1711, %1719 : vector<32x128xf32>
    %1721 = arith.index_cast %c15_i32 : i32 to index
    %c3_752 = arith.constant 3 : index
    %c0_753 = arith.constant 0 : index
    %1722 = vector.load %arg1[%1721, %c3_752, %c0_753] : memref<16x7x128xf32, #tpu.memory_space<vmem>>, vector<1x1x128xf32>
    %1723 = vector.shape_cast %1722 : vector<1x1x128xf32> to vector<1x128xf32>
    %1724 = arith.index_cast %c15_i32 : i32 to index
    %c3_754 = arith.constant 3 : index
    %c0_755 = arith.constant 0 : index
    %1725 = vector.load %arg3[%1724, %c3_754, %c0_755] : memref<16x40x128xf32, #tpu.memory_space<vmem>>, vector<1x32x128xf32>
    %1726 = vector.shape_cast %1725 : vector<1x32x128xf32> to vector<32x128xf32>
    %1727 = vector.broadcast %1723 : vector<1x128xf32> to vector<32x128xf32>
    %1728 = arith.mulf %1727, %1726 : vector<32x128xf32>
    %1729 = arith.addf %1720, %1728 : vector<32x128xf32>
    %1730 = arith.index_cast %c15_i32 : i32 to index
    %c4_756 = arith.constant 4 : index
    %c0_757 = arith.constant 0 : index
    %1731 = vector.load %arg1[%1730, %c4_756, %c0_757] : memref<16x7x128xf32, #tpu.memory_space<vmem>>, vector<1x1x128xf32>
    %1732 = vector.shape_cast %1731 : vector<1x1x128xf32> to vector<1x128xf32>
    %1733 = arith.index_cast %c15_i32 : i32 to index
    %c4_758 = arith.constant 4 : index
    %c0_759 = arith.constant 0 : index
    %1734 = vector.load %arg3[%1733, %c4_758, %c0_759] : memref<16x40x128xf32, #tpu.memory_space<vmem>>, vector<1x32x128xf32>
    %1735 = vector.shape_cast %1734 : vector<1x32x128xf32> to vector<32x128xf32>
    %1736 = vector.broadcast %1732 : vector<1x128xf32> to vector<32x128xf32>
    %1737 = arith.mulf %1736, %1735 : vector<32x128xf32>
    %1738 = arith.addf %1729, %1737 : vector<32x128xf32>
    %1739 = arith.index_cast %c15_i32 : i32 to index
    %c5_760 = arith.constant 5 : index
    %c0_761 = arith.constant 0 : index
    %1740 = vector.load %arg1[%1739, %c5_760, %c0_761] : memref<16x7x128xf32, #tpu.memory_space<vmem>>, vector<1x1x128xf32>
    %1741 = vector.shape_cast %1740 : vector<1x1x128xf32> to vector<1x128xf32>
    %1742 = arith.index_cast %c15_i32 : i32 to index
    %c5_762 = arith.constant 5 : index
    %c0_763 = arith.constant 0 : index
    %1743 = vector.load %arg3[%1742, %c5_762, %c0_763] : memref<16x40x128xf32, #tpu.memory_space<vmem>>, vector<1x32x128xf32>
    %1744 = vector.shape_cast %1743 : vector<1x32x128xf32> to vector<32x128xf32>
    %1745 = vector.broadcast %1741 : vector<1x128xf32> to vector<32x128xf32>
    %1746 = arith.mulf %1745, %1744 : vector<32x128xf32>
    %1747 = arith.addf %1738, %1746 : vector<32x128xf32>
    %1748 = arith.index_cast %c15_i32 : i32 to index
    %c6_764 = arith.constant 6 : index
    %c0_765 = arith.constant 0 : index
    %1749 = vector.load %arg1[%1748, %c6_764, %c0_765] : memref<16x7x128xf32, #tpu.memory_space<vmem>>, vector<1x1x128xf32>
    %1750 = vector.shape_cast %1749 : vector<1x1x128xf32> to vector<1x128xf32>
    %1751 = arith.index_cast %c15_i32 : i32 to index
    %c6_766 = arith.constant 6 : index
    %c0_767 = arith.constant 0 : index
    %1752 = vector.load %arg3[%1751, %c6_766, %c0_767] : memref<16x40x128xf32, #tpu.memory_space<vmem>>, vector<1x32x128xf32>
    %1753 = vector.shape_cast %1752 : vector<1x32x128xf32> to vector<32x128xf32>
    %1754 = vector.broadcast %1750 : vector<1x128xf32> to vector<32x128xf32>
    %1755 = arith.mulf %1754, %1753 : vector<32x128xf32>
    %1756 = arith.addf %1747, %1755 : vector<32x128xf32>
    %c3_i32_768 = arith.constant 3 : i32
    %1757 = tpu.dynamic_rotate %1756 by %c3_i32_768 dim 1 : vector<32x128xf32>, i32 -> vector<32x128xf32>
    %1758 = arith.index_cast %c15_i32 : i32 to index
    %c0_769 = arith.constant 0 : index
    %c0_770 = arith.constant 0 : index
    %1759 = vector.load %arg2[%1758, %c0_769, %c0_770] : memref<16x7x128xf32, #tpu.memory_space<vmem>>, vector<1x1x128xf32>
    %1760 = vector.shape_cast %1759 : vector<1x1x128xf32> to vector<1x128xf32>
    %1761 = vector.broadcast %1760 : vector<1x128xf32> to vector<32x128xf32>
    %1762 = arith.mulf %1761, %1757 : vector<32x128xf32>
    %c2_i32_771 = arith.constant 2 : i32
    %1763 = tpu.dynamic_rotate %1756 by %c2_i32_771 dim 1 : vector<32x128xf32>, i32 -> vector<32x128xf32>
    %1764 = arith.index_cast %c15_i32 : i32 to index
    %c1_772 = arith.constant 1 : index
    %c0_773 = arith.constant 0 : index
    %1765 = vector.load %arg2[%1764, %c1_772, %c0_773] : memref<16x7x128xf32, #tpu.memory_space<vmem>>, vector<1x1x128xf32>
    %1766 = vector.shape_cast %1765 : vector<1x1x128xf32> to vector<1x128xf32>
    %1767 = vector.broadcast %1766 : vector<1x128xf32> to vector<32x128xf32>
    %1768 = arith.mulf %1767, %1763 : vector<32x128xf32>
    %1769 = arith.addf %1762, %1768 : vector<32x128xf32>
    %c1_i32_774 = arith.constant 1 : i32
    %1770 = tpu.dynamic_rotate %1756 by %c1_i32_774 dim 1 : vector<32x128xf32>, i32 -> vector<32x128xf32>
    %1771 = arith.index_cast %c15_i32 : i32 to index
    %c2_775 = arith.constant 2 : index
    %c0_776 = arith.constant 0 : index
    %1772 = vector.load %arg2[%1771, %c2_775, %c0_776] : memref<16x7x128xf32, #tpu.memory_space<vmem>>, vector<1x1x128xf32>
    %1773 = vector.shape_cast %1772 : vector<1x1x128xf32> to vector<1x128xf32>
    %1774 = vector.broadcast %1773 : vector<1x128xf32> to vector<32x128xf32>
    %1775 = arith.mulf %1774, %1770 : vector<32x128xf32>
    %1776 = arith.addf %1769, %1775 : vector<32x128xf32>
    %1777 = arith.index_cast %c15_i32 : i32 to index
    %c3_777 = arith.constant 3 : index
    %c0_778 = arith.constant 0 : index
    %1778 = vector.load %arg2[%1777, %c3_777, %c0_778] : memref<16x7x128xf32, #tpu.memory_space<vmem>>, vector<1x1x128xf32>
    %1779 = vector.shape_cast %1778 : vector<1x1x128xf32> to vector<1x128xf32>
    %1780 = vector.broadcast %1779 : vector<1x128xf32> to vector<32x128xf32>
    %1781 = arith.mulf %1780, %1756 : vector<32x128xf32>
    %1782 = arith.addf %1776, %1781 : vector<32x128xf32>
    %c127_i32_779 = arith.constant 127 : i32
    %1783 = tpu.dynamic_rotate %1756 by %c127_i32_779 dim 1 : vector<32x128xf32>, i32 -> vector<32x128xf32>
    %1784 = arith.index_cast %c15_i32 : i32 to index
    %c4_780 = arith.constant 4 : index
    %c0_781 = arith.constant 0 : index
    %1785 = vector.load %arg2[%1784, %c4_780, %c0_781] : memref<16x7x128xf32, #tpu.memory_space<vmem>>, vector<1x1x128xf32>
    %1786 = vector.shape_cast %1785 : vector<1x1x128xf32> to vector<1x128xf32>
    %1787 = vector.broadcast %1786 : vector<1x128xf32> to vector<32x128xf32>
    %1788 = arith.mulf %1787, %1783 : vector<32x128xf32>
    %1789 = arith.addf %1782, %1788 : vector<32x128xf32>
    %c126_i32_782 = arith.constant 126 : i32
    %1790 = tpu.dynamic_rotate %1756 by %c126_i32_782 dim 1 : vector<32x128xf32>, i32 -> vector<32x128xf32>
    %1791 = arith.index_cast %c15_i32 : i32 to index
    %c5_783 = arith.constant 5 : index
    %c0_784 = arith.constant 0 : index
    %1792 = vector.load %arg2[%1791, %c5_783, %c0_784] : memref<16x7x128xf32, #tpu.memory_space<vmem>>, vector<1x1x128xf32>
    %1793 = vector.shape_cast %1792 : vector<1x1x128xf32> to vector<1x128xf32>
    %1794 = vector.broadcast %1793 : vector<1x128xf32> to vector<32x128xf32>
    %1795 = arith.mulf %1794, %1790 : vector<32x128xf32>
    %1796 = arith.addf %1789, %1795 : vector<32x128xf32>
    %c125_i32_785 = arith.constant 125 : i32
    %1797 = tpu.dynamic_rotate %1756 by %c125_i32_785 dim 1 : vector<32x128xf32>, i32 -> vector<32x128xf32>
    %1798 = arith.index_cast %c15_i32 : i32 to index
    %c6_786 = arith.constant 6 : index
    %c0_787 = arith.constant 0 : index
    %1799 = vector.load %arg2[%1798, %c6_786, %c0_787] : memref<16x7x128xf32, #tpu.memory_space<vmem>>, vector<1x1x128xf32>
    %1800 = vector.shape_cast %1799 : vector<1x1x128xf32> to vector<1x128xf32>
    %1801 = vector.broadcast %1800 : vector<1x128xf32> to vector<32x128xf32>
    %1802 = arith.mulf %1801, %1797 : vector<32x128xf32>
    %1803 = arith.addf %1796, %1802 : vector<32x128xf32>
    %1804 = arith.index_cast %c15_i32 : i32 to index
    %c0_788 = arith.constant 0 : index
    %c0_789 = arith.constant 0 : index
    %1805 = vector.load %arg4[%1804, %c0_788, %c0_789] : memref<16x32x128xf32, #tpu.memory_space<vmem>>, vector<1x32x128xf32>
    %1806 = vector.shape_cast %1805 : vector<1x32x128xf32> to vector<32x128xf32>
    %1807 = vector.shape_cast %1803 : vector<32x128xf32> to vector<1x32x128xf32>
    tpu.vector_store %arg4[%1804, %c0_788, %c0_789], %1807 {strides = array<i32>} : memref<16x32x128xf32, #tpu.memory_space<vmem>>, vector<1x32x128xf32>,
    %c16_i32 = arith.constant 16 : i32
    return
  }
  func.func @transform_0(%arg0: i32) -> (i32, i32, i32) {
    %c0_i32 = arith.constant 0 : i32
    %c0_i32_0 = arith.constant 0 : i32
    %c0_i32_1 = arith.constant 0 : i32
    return %arg0, %c0_i32, %c0_i32_0 : i32, i32, i32
  }
  func.func @transform_1(%arg0: i32) -> (i32, i32, i32) {
    %c0_i32 = arith.constant 0 : i32
    %c0_i32_0 = arith.constant 0 : i32
    %c0_i32_1 = arith.constant 0 : i32
    return %arg0, %c0_i32, %c0_i32_0 : i32, i32, i32
  }
  func.func @transform_2(%arg0: i32) -> (i32, i32, i32) {
    %c0_i32 = arith.constant 0 : i32
    %c0_i32_0 = arith.constant 0 : i32
    %c0_i32_1 = arith.constant 0 : i32
    return %arg0, %c0_i32, %c0_i32_0 : i32, i32, i32
  }
  func.func @transform_3(%arg0: i32) -> (i32, i32, i32) {
    %c0_i32 = arith.constant 0 : i32
    %c0_i32_0 = arith.constant 0 : i32
    %c0_i32_1 = arith.constant 0 : i32
    return %arg0, %c0_i32, %c0_i32_0 : i32, i32, i32
  }
}

</mosaic_0001>

<llo_original>
// kernel: tpu_custom_call.1
$region0: #{tpu_custom_call.1}
  #allocation0 [shape = 'u32[]', space=smem, size = 0x4, offset = 0x4, fixed_abs, tag = 'smem constant byte address 0x4 - core index']
  #allocation1 [shape = 'u32[72,128]{1,0:T(1,128)}', space=vmem, size = 0x9000, scoped, tag = 'internal scratch']
  %s0 = inlined_call_operand.vmem [shape: f32[32,7,128], index: 0, kind: input, shape index: {}]
  %s1 = inlined_call_operand.vmem [shape: f32[32,7,128], index: 1, kind: input, shape index: {}]
  %s2 = inlined_call_operand.hbm [shape: f32[32,40,128], index: 2, kind: input, shape index: {}]
  %s3 = inlined_call_operand.hbm [shape: f32[32,32,128], index: 3, kind: output, shape index: {}]
  %s4 = sld [smem:[#allocation0]]
  $region49: #{tpu_custom_call.1} parent=0
    _
  %s6 = ssub.s32 1, %s4
  %s7 = scalar_select 0, %s6, %s4
  $region1: #{tpu_custom_call.1} parent=0
    #allocation2 [shape = 'u8[655360]{0}', space=vmem, size = 0xa0000, scoped, tag = 'input window, operand 2']
    #allocation3 [shape = 's32[2]{0}', space=sflag, size = 0x8, scoped, tag = 'scoped memory for tpu_custom_call.1']
    #allocation4 [shape = 's32[2]{0}', space=sflag, size = 0x8, scoped, tag = 'scoped memory for tpu_custom_call.1']
    #allocation5 [shape = 'u8[524288]{0}', space=vmem, size = 0x80000, scoped, tag = 'output window, operand 0']
    %8 = vsyncpa [#allocation3], 0
    %s9 = scalar_lea.sflag [#allocation3], 1
    %10 = vsyncpa %s9, 0
    %11 = vsyncpa [#allocation4], 0
    %s12 = scalar_lea.sflag [#allocation4], 1
    %13 = vsyncpa %s12, 0
    loop: start=0, step=1, limit=4
    $region2: #{tpu_custom_call.1} parent=1 // loop_pre_header
      _
    $region3: #{tpu_custom_call.1} parent=1 // loop_header
      %s15 = sphi 0, %s19
      %p16 = scmp.ge.s32.totalorder %s15, 4
      %s25 = sphi 0, %s27
      %s28 = sphi 0, %s25
      %s29 = sphi 0, %s28
      %s45 = sphi 0, %s29
      %s51 = sphi 0, %s53
      %s54 = sphi 0, %s51
      %s55 = sphi 0, %s54
      %s71 = sphi 0, %s55
      %s77 = sphi 0, %s79
      %s80 = sphi 0, %s77
      %s81 = sphi 0, %s80
      %s97 = sphi 0, %s81
      %s103 = sphi 0, %s105
      %s106 = sphi 0, %s103
      %s107 = sphi 0, %s106
      %s123 = sphi 0, %s107
    $region4: #{tpu_custom_call.1} parent=1 // loop_header_branch
      %18 = sbr.rel (%p16) target = $region8
    $region5: #{tpu_custom_call.1} parent=1 // loop_body
      %s20 = ssub.s32 %s15, 1
      %s21 = ssub.s32 %s15, 2
      %s22 = sadd.s32 %s15, 1
      %s23 = ssub.s32 %s15, %s22
      %p24 = scmp.eq.s32.totalorder %s23, 0
      %s26 = sadd.s32 %s25, 1
      %s27 = scalar_select %p24, %s25, %s26
      %p30 = pneg %p24
      %p31 = scmp.eq.s32.totalorder %s15, 1
      %p32 = por %p30, %p31
      %p33 = scmp.ne.s32.totalorder %s25, %s28
      %p34 = scmp.eq.s32.totalorder %s15, 0
      %p35 = por %p33, %p34
      %p36 = scmp.ne.s32.totalorder %s25, %s28
      %p37 = scmp.eq.s32.totalorder %s20, 1
      %p38 = por %p36, %p37
      %p39 = scmp.ne.s32.totalorder %s28, %s29
      %p40 = scmp.eq.s32.totalorder %s20, 0
      %p41 = por %p39, %p40
      %p42 = scmp.ne.s32.totalorder %s28, %s29
      %p43 = scmp.eq.s32.totalorder %s21, 1
      %p44 = por %p42, %p43
      %p46 = scmp.ne.s32.totalorder %s29, %s45
      %p47 = scmp.eq.s32.totalorder %s21, 0
      %p48 = por %p46, %p47
      %s49 = ssub.s32 %s15, %s22
      %p50 = scmp.eq.s32.totalorder %s49, 0
      %s52 = sadd.s32 %s51, 1
      %s53 = scalar_select %p50, %s51, %s52
      %p56 = pneg %p50
      %p57 = scmp.eq.s32.totalorder %s15, 1
      %p58 = por %p56, %p57
      %p59 = scmp.ne.s32.totalorder %s51, %s54
      %p60 = scmp.eq.s32.totalorder %s15, 0
      %p61 = por %p59, %p60
      %p62 = scmp.ne.s32.totalorder %s51, %s54
      %p63 = scmp.eq.s32.totalorder %s20, 1
      %p64 = por %p62, %p63
      %p65 = scmp.ne.s32.totalorder %s54, %s55
      %p66 = scmp.eq.s32.totalorder %s20, 0
      %p67 = por %p65, %p66
      %p68 = scmp.ne.s32.totalorder %s54, %s55
      %p69 = scmp.eq.s32.totalorder %s21, 1
      %p70 = por %p68, %p69
      %p72 = scmp.ne.s32.totalorder %s55, %s71
      %p73 = scmp.eq.s32.totalorder %s21, 0
      %p74 = por %p72, %p73
      %s75 = ssub.s32 %s15, %s22
      %p76 = scmp.eq.s32.totalorder %s75, 0
      %s78 = sadd.s32 %s77, 1
      %s79 = scalar_select %p76, %s77, %s78
      %p82 = pneg %p76
      %p83 = scmp.eq.s32.totalorder %s15, 1
      %p84 = por %p82, %p83
      %p85 = scmp.ne.s32.totalorder %s77, %s80
      %p86 = scmp.eq.s32.totalorder %s15, 0
      %p87 = por %p85, %p86
      %p88 = scmp.ne.s32.totalorder %s77, %s80
      %p89 = scmp.eq.s32.totalorder %s20, 1
      %p90 = por %p88, %p89
      %p91 = scmp.ne.s32.totalorder %s80, %s81
      %p92 = scmp.eq.s32.totalorder %s20, 0
      %p93 = por %p91, %p92
      %p94 = scmp.ne.s32.totalorder %s80, %s81
      %p95 = scmp.eq.s32.totalorder %s21, 1
      %p96 = por %p94, %p95
      %p98 = scmp.ne.s32.totalorder %s81, %s97
      %p99 = scmp.eq.s32.totalorder %s21, 0
      %p100 = por %p98, %p99
      %s101 = ssub.s32 %s15, %s22
      %p102 = scmp.eq.s32.totalorder %s101, 0
      %s104 = sadd.s32 %s103, 1
      %s105 = scalar_select %p102, %s103, %s104
      %p108 = pneg %p102
      %p109 = scmp.eq.s32.totalorder %s15, 1
      %p110 = por %p108, %p109
      %p111 = scmp.ne.s32.totalorder %s103, %s106
      %p112 = scmp.eq.s32.totalorder %s15, 0
      %p113 = por %p111, %p112
      %p114 = scmp.ne.s32.totalorder %s103, %s106
      %p115 = scmp.eq.s32.totalorder %s20, 1
      %p116 = por %p114, %p115
      %p117 = scmp.ne.s32.totalorder %s106, %s107
      %p118 = scmp.eq.s32.totalorder %s20, 0
      %p119 = por %p117, %p118
      %p120 = scmp.ne.s32.totalorder %s106, %s107
      %p121 = scmp.eq.s32.totalorder %s21, 1
      %p122 = por %p120, %p121
      %p124 = scmp.ne.s32.totalorder %s107, %s123
      %p125 = scmp.eq.s32.totalorder %s21, 0
      %p126 = por %p124, %p125
      %p127 = scmp.le.s32.totalorder 1, %s15
      %p128 = scmp.lt.s32.totalorder %s15, 3
      %p129 = pnand %p127, %p128
      %p130 = pneg %p129
      // Predicated region
      $region9: #{tpu_custom_call.1} parent=5 // pred_check
        _
      $region10: #{tpu_custom_call.1} parent=5 // pred_check_branch
        %132 = sbr.rel (%p129) target = $region12
      $region11: #{tpu_custom_call.1} parent=5 // pred_region
        %s133 = ssub.s32 %s15, 1
      $region12: #{tpu_custom_call.1} parent=5 // pred_fallthru
        _
      %p134 = scmp.lt.s32.totalorder %s15, 2
      // Predicated region
      $region13: #{tpu_custom_call.1} parent=5 // pred_check
        %p135 = pneg %p134
      $region14: #{tpu_custom_call.1} parent=5 // pred_check_branch
        %137 = sbr.rel (%p135) target = $region16
      $region15: #{tpu_custom_call.1} parent=5 // pred_region
        // Predicated region
        $region17: #{tpu_custom_call.1} parent=15 // pred_check
          %p138 = pneg %p35
        $region18: #{tpu_custom_call.1} parent=15 // pred_check_branch
          %140 = sbr.rel (%p138) target = $region20
        $region19: #{tpu_custom_call.1} parent=15 // pred_region
          %s141 = smul.u32 16, %s15
          %p142 = scmp.lt.s32.totalorder %s141, 31
          %s143 = scalar_select %p142, %s141, 31
          %s144 = smul.addr %s143, 8
          %s145 = scalar_lea.vmem %s0, %s144
          %s146 = smul.u32 16, %s15
        $region20: #{tpu_custom_call.1} parent=15 // pred_fallthru
          _
        // Predicated region
        $region21: #{tpu_custom_call.1} parent=15 // pred_check
          %p147 = pneg %p61
        $region22: #{tpu_custom_call.1} parent=15 // pred_check_branch
          %149 = sbr.rel (%p147) target = $region24
        $region23: #{tpu_custom_call.1} parent=15 // pred_region
          %s150 = smul.u32 16, %s15
          %p151 = scmp.lt.s32.totalorder %s150, 31
          %s152 = scalar_select %p151, %s150, 31
          %s153 = smul.addr %s152, 8
          %s154 = scalar_lea.vmem %s1, %s153
          %s155 = smul.u32 16, %s15
        $region24: #{tpu_custom_call.1} parent=15 // pred_fallthru
          _
        // Predicated region
        $region25: #{tpu_custom_call.1} parent=15 // pred_check
          %p156 = pneg %p87
        $region26: #{tpu_custom_call.1} parent=15 // pred_check_branch
          %158 = sbr.rel (%p156) target = $region28
        $region27: #{tpu_custom_call.1} parent=15 // pred_region
          %s159 = sand.u32 %s77, 1
          %s160 = scalar_lea.sflag [#allocation3], %s159
          %s161 = sand.u32 %s77, 1
          %s162 = smul.addr %s161, 640
          %s163 = scalar_lea.vmem [#allocation2], %s162
          %s164 = smul.u32 16, %s15
          %166 = vsyncadd %s160, 0
          %s167 = smul.addr %s164, 5
          %s168 = smul.addr %s167, 8
          %s169 = scalar_lea.hbm %s2, %s168
          %s170 = sshll.u32 %s169, 4
          %s171 = int_to_ptr.hbm [resolvable:$true] %s170
          %s172 = sshll.u32 %s163, 4
          %s173 = int_to_ptr.vmem [resolvable:$true] %s172
          %178 = dma.hbm_to_vmem [thread:$0]  %s171, 10240, %s173, %s160, 128, 128, 8
        $region28: #{tpu_custom_call.1} parent=15 // pred_fallthru
          _
      $region16: #{tpu_custom_call.1} parent=5 // pred_fallthru
        _
      %p179 = scmp.le.s32.totalorder 1, %s15
      %p180 = scmp.lt.s32.totalorder %s15, 3
      %p181 = pnand %p179, %p180
      %p182 = pneg %p181
      // Predicated region
      $region29: #{tpu_custom_call.1} parent=5 // pred_check
        _
      $region30: #{tpu_custom_call.1} parent=5 // pred_check_branch
        %184 = sbr.rel (%p181) target = $region32
      $region31: #{tpu_custom_call.1} parent=5 // pred_region
        %s185 = ssub.s32 %s15, 1
        %s186 = sand.u32 %s80, 1
        %s187 = scalar_lea.sflag [#allocation3], %s186
        %s188 = sand.u32 %s80, 1
        %s189 = smul.addr %s188, 640
        %s190 = scalar_lea.vmem [#allocation2], %s189
        // Predicated region
        $region33: #{tpu_custom_call.1} parent=31 // pred_check
          %p191 = pneg %p93
        $region34: #{tpu_custom_call.1} parent=31 // pred_check_branch
          %193 = sbr.rel (%p191) target = $region36
        $region35: #{tpu_custom_call.1} parent=31 // pred_region
          %195 = dma.done %s187, 10240
        $region36: #{tpu_custom_call.1} parent=31 // pred_fallthru
          _
        %s196 = smul.u32 16, %s20
        %p197 = scmp.lt.s32.totalorder %s196, 31
        %s198 = scalar_select %p197, %s196, 31
        %s199 = smul.addr %s198, 8
        %s200 = scalar_lea.vmem %s0, %s199
        %p201 = pneg %p41
        %p202 = pneg %p38
        %s203 = smul.u32 16, %s20
        %p204 = scmp.lt.s32.totalorder %s203, 31
        %s205 = scalar_select %p204, %s203, 31
        %s206 = smul.addr %s205, 8
        %s207 = scalar_lea.vmem %s1, %s206
        %p208 = pneg %p67
        %p209 = pneg %p64
        %s210 = sand.u32 %s80, 1
        %s211 = scalar_lea.sflag [#allocation3], %s210
        %s212 = sand.u32 %s80, 1
        %s213 = smul.addr %s212, 640
        %s214 = scalar_lea.vmem [#allocation2], %s213
        %p215 = pneg %p93
        %p216 = pneg %p90
        %p217 = pneg %p119
        %p218 = pneg %p116
        %s219 = sand.u32 %s106, 1
        %s220 = scalar_lea.sflag [#allocation4], %s219
        %s221 = sand.u32 %s106, 1
        %s222 = smul.addr %s221, 512
        %s223 = scalar_lea.vmem [#allocation5], %s222
        %s224 = smul.u32 16, %s20
        %p225 = scmp.lt.s32.totalorder %s224, 31
        %s226 = scalar_select %p225, %s224, 31
        %s227 = smul.addr %s226, 8
        %s228 = scalar_lea.vmem %s0, %s227
        %s229 = smul.u32 16, %s20
        %s230 = smul.u32 16, %s20
        %p231 = scmp.lt.s32.totalorder %s230, 31
        %s232 = scalar_select %p231, %s230, 31
        %s233 = smul.addr %s232, 8
        %s234 = scalar_lea.vmem %s1, %s233
        %s235 = smul.u32 16, %s20
        %s236 = smul.u32 16, %s20
        %s237 = smul.u32 16, %s20
        %v238 = vld [vmem:[%s228] sm:$0x1]
        %v239 = vld [vmem:[%s190] sm:$0xff]
        %v240 = vld [vmem:[%s190 + $0x8] sm:$0xff]
        %v241 = vld [vmem:[%s190 + $0x10] sm:$0xff]
        %v242 = vld [vmem:[%s190 + $0x18] sm:$0xff]
        %v243 = vperm.slane %v238, 0
        %v244 = vmul.f32 %v243, %v239
        %v245 = vmul.f32 %v243, %v240
        %v246 = vmul.f32 %v243, %v241
        %v247 = vmul.f32 %v243, %v242
        %v248 = vld [vmem:[%s228 + $0x1] sm:$0x1]
        %v249 = vld [vmem:[%s190 + $0x1] sm:$0xff]
        %v250 = vld [vmem:[%s190 + $0x9] sm:$0xff]
        %v251 = vld [vmem:[%s190 + $0x11] sm:$0xff]
        %v252 = vld [vmem:[%s190 + $0x19] sm:$0xff]
        %v253 = vperm.slane %v248, 0
        %v254 = vmul.f32 %v253, %v249
        %v255 = vmul.f32 %v253, %v250
        %v256 = vmul.f32 %v253, %v251
        %v257 = vmul.f32 %v253, %v252
        %v258 = vadd.f32 %v244, %v254
        %v259 = vadd.f32 %v245, %v255
        %v260 = vadd.f32 %v246, %v256
        %v261 = vadd.f32 %v247, %v257
        %v262 = vld [vmem:[%s228 + $0x2] sm:$0x1]
        %v263 = vld [vmem:[%s190 + $0x2] sm:$0xff]
        %v264 = vld [vmem:[%s190 + $0xa] sm:$0xff]
        %v265 = vld [vmem:[%s190 + $0x12] sm:$0xff]
        %v266 = vld [vmem:[%s190 + $0x1a] sm:$0xff]
        %v267 = vperm.slane %v262, 0
        %v268 = vmul.f32 %v267, %v263
        %v269 = vmul.f32 %v267, %v264
        %v270 = vmul.f32 %v267, %v265
        %v271 = vmul.f32 %v267, %v266
        %v272 = vadd.f32 %v258, %v268
        %v273 = vadd.f32 %v259, %v269
        %v274 = vadd.f32 %v260, %v270
        %v275 = vadd.f32 %v261, %v271
        %v276 = vld [vmem:[%s228 + $0x3] sm:$0x1]
        %v277 = vld [vmem:[%s190 + $0x3] sm:$0xff]
        %v278 = vld [vmem:[%s190 + $0xb] sm:$0xff]
        %v279 = vld [vmem:[%s190 + $0x13] sm:$0xff]
        %v280 = vld [vmem:[%s190 + $0x1b] sm:$0xff]
        %v281 = vperm.slane %v276, 0
        %v282 = vmul.f32 %v281, %v277
        %v283 = vmul.f32 %v281, %v278
        %v284 = vmul.f32 %v281, %v279
        %v285 = vmul.f32 %v281, %v280
        %v286 = vadd.f32 %v272, %v282
        %v287 = vadd.f32 %v273, %v283
        %v288 = vadd.f32 %v274, %v284
        %v289 = vadd.f32 %v275, %v285
        %v290 = vld [vmem:[%s228 + $0x4] sm:$0x1]
        %v291 = vld [vmem:[%s190 + $0x4] sm:$0xff]
        %v292 = vld [vmem:[%s190 + $0xc] sm:$0xff]
        %v293 = vld [vmem:[%s190 + $0x14] sm:$0xff]
        %v294 = vld [vmem:[%s190 + $0x1c] sm:$0xff]
        %v295 = vperm.slane %v290, 0
        %v296 = vmul.f32 %v295, %v291
        %v297 = vmul.f32 %v295, %v292
        %v298 = vmul.f32 %v295, %v293
        %v299 = vmul.f32 %v295, %v294
        %v300 = vadd.f32 %v286, %v296
        %v301 = vadd.f32 %v287, %v297
        %v302 = vadd.f32 %v288, %v298
        %v303 = vadd.f32 %v289, %v299
        %v304 = vld [vmem:[%s228 + $0x5] sm:$0x1]
        %v305 = vld [vmem:[%s190 + $0x5] sm:$0xff]
        %v306 = vld [vmem:[%s190 + $0xd] sm:$0xff]
        %v307 = vld [vmem:[%s190 + $0x15] sm:$0xff]
        %v308 = vld [vmem:[%s190 + $0x1d] sm:$0xff]
        %v309 = vperm.slane %v304, 0
        %v310 = vmul.f32 %v309, %v305
        %v311 = vmul.f32 %v309, %v306
        %v312 = vmul.f32 %v309, %v307
        %v313 = vmul.f32 %v309, %v308
        %v314 = vadd.f32 %v300, %v310
        %v315 = vadd.f32 %v301, %v311
        %v316 = vadd.f32 %v302, %v312
        %v317 = vadd.f32 %v303, %v313
        %v318 = vld [vmem:[%s228 + $0x6] sm:$0x1]
        %v319 = vld [vmem:[%s190 + $0x6] sm:$0xff]
        %v320 = vld [vmem:[%s190 + $0xe] sm:$0xff]
        %v321 = vld [vmem:[%s190 + $0x16] sm:$0xff]
        %v322 = vld [vmem:[%s190 + $0x1e] sm:$0xff]
        %v323 = vperm.slane %v318, 0
        %v324 = vmul.f32 %v323, %v319
        %v325 = vmul.f32 %v323, %v320
        %v326 = vmul.f32 %v323, %v321
        %v327 = vmul.f32 %v323, %v322
        %v328 = vadd.f32 %v314, %v324
        %v329 = vadd.f32 %v315, %v325
        %v330 = vadd.f32 %v316, %v326
        %v331 = vadd.f32 %v317, %v327
        %332 = vrot.lane.b32.xlu0 %v328, 3
        %v333 = vpop.permute.xlu0 %332
        %334 = vrot.lane.b32.xlu0 %v329, 3
        %v335 = vpop.permute.xlu0 %334
        %336 = vrot.lane.b32.xlu0 %v330, 3
        %v337 = vpop.permute.xlu0 %336
        %338 = vrot.lane.b32.xlu0 %v331, 3
        %v339 = vpop.permute.xlu0 %338
        %v340 = vld [vmem:[%s234] sm:$0x1]
        %v341 = vperm.slane %v340, 0
        %v342 = vmul.f32 %v341, %v333
        %v343 = vmul.f32 %v341, %v335
        %v344 = vmul.f32 %v341, %v337
        %v345 = vmul.f32 %v341, %v339
        %346 = vrot.lane.b32.xlu0 %v328, 2
        %v347 = vpop.permute.xlu0 %346
        %348 = vrot.lane.b32.xlu0 %v329, 2
        %v349 = vpop.permute.xlu0 %348
        %350 = vrot.lane.b32.xlu0 %v330, 2
        %v351 = vpop.permute.xlu0 %350
        %352 = vrot.lane.b32.xlu0 %v331, 2
        %v353 = vpop.permute.xlu0 %352
        %v354 = vld [vmem:[%s234 + $0x1] sm:$0x1]
        %v355 = vperm.slane %v354, 0
        %v356 = vmul.f32 %v355, %v347
        %v357 = vmul.f32 %v355, %v349
        %v358 = vmul.f32 %v355, %v351
        %v359 = vmul.f32 %v355, %v353
        %v360 = vadd.f32 %v342, %v356
        %v361 = vadd.f32 %v343, %v357
        %v362 = vadd.f32 %v344, %v358
        %v363 = vadd.f32 %v345, %v359
        %364 = vrot.lane.b32.xlu0 %v328, 1
        %v365 = vpop.permute.xlu0 %364
        %366 = vrot.lane.b32.xlu0 %v329, 1
        %v367 = vpop.permute.xlu0 %366
        %368 = vrot.lane.b32.xlu0 %v330, 1
        %v369 = vpop.permute.xlu0 %368
        %370 = vrot.lane.b32.xlu0 %v331, 1
        %v371 = vpop.permute.xlu0 %370
        %v372 = vld [vmem:[%s234 + $0x2] sm:$0x1]
        %v373 = vperm.slane %v372, 0
        %v374 = vmul.f32 %v373, %v365
        %v375 = vmul.f32 %v373, %v367
        %v376 = vmul.f32 %v373, %v369
        %v377 = vmul.f32 %v373, %v371
        %v378 = vadd.f32 %v360, %v374
        %v379 = vadd.f32 %v361, %v375
        %v380 = vadd.f32 %v362, %v376
        %v381 = vadd.f32 %v363, %v377
        %v382 = vld [vmem:[%s234 + $0x3] sm:$0x1]
        %v383 = vperm.slane %v382, 0
        %v384 = vmul.f32 %v383, %v328
        %v385 = vmul.f32 %v383, %v329
        %v386 = vmul.f32 %v383, %v330
        %v387 = vmul.f32 %v383, %v331
        %v388 = vadd.f32 %v378, %v384
        %v389 = vadd.f32 %v379, %v385
        %v390 = vadd.f32 %v380, %v386
        %v391 = vadd.f32 %v381, %v387
        %392 = vrot.lane.b32.xlu0 %v328, 127
        %v393 = vpop.permute.xlu0 %392
        %394 = vrot.lane.b32.xlu0 %v329, 127
        %v395 = vpop.permute.xlu0 %394
        %396 = vrot.lane.b32.xlu0 %v330, 127
        %v397 = vpop.permute.xlu0 %396
        %398 = vrot.lane.b32.xlu0 %v331, 127
        %v399 = vpop.permute.xlu0 %398
        %v400 = vld [vmem:[%s234 + $0x4] sm:$0x1]
        %v401 = vperm.slane %v400, 0
        %v402 = vmul.f32 %v401, %v393
        %v403 = vmul.f32 %v401, %v395
        %v404 = vmul.f32 %v401, %v397
        %v405 = vmul.f32 %v401, %v399
        %v406 = vadd.f32 %v388, %v402
        %v407 = vadd.f32 %v389, %v403
        %v408 = vadd.f32 %v390, %v404
        %v409 = vadd.f32 %v391, %v405
        %410 = vrot.lane.b32.xlu0 %v328, 126
        %v411 = vpop.permute.xlu0 %410
        %412 = vrot.lane.b32.xlu0 %v329, 126
        %v413 = vpop.permute.xlu0 %412
        %414 = vrot.lane.b32.xlu0 %v330, 126
        %v415 = vpop.permute.xlu0 %414
        %416 = vrot.lane.b32.xlu0 %v331, 126
        %v417 = vpop.permute.xlu0 %416
        %v418 = vld [vmem:[%s234 + $0x5] sm:$0x1]
        %v419 = vperm.slane %v418, 0
        %v420 = vmul.f32 %v419, %v411
        %v421 = vmul.f32 %v419, %v413
        %v422 = vmul.f32 %v419, %v415
        %v423 = vmul.f32 %v419, %v417
        %v424 = vadd.f32 %v406, %v420
        %v425 = vadd.f32 %v407, %v421
        %v426 = vadd.f32 %v408, %v422
        %v427 = vadd.f32 %v409, %v423
        %428 = vrot.lane.b32.xlu0 %v328, 125
        %v429 = vpop.permute.xlu0 %428
        %430 = vrot.lane.b32.xlu0 %v329, 125
        %v431 = vpop.permute.xlu0 %430
        %432 = vrot.lane.b32.xlu0 %v330, 125
        %v433 = vpop.permute.xlu0 %432
        %434 = vrot.lane.b32.xlu0 %v331, 125
        %v435 = vpop.permute.xlu0 %434
        %v436 = vld [vmem:[%s234 + $0x6] sm:$0x1]
        %v437 = vperm.slane %v436, 0
        %v438 = vmul.f32 %v437, %v429
        %v439 = vmul.f32 %v437, %v431
        %v440 = vmul.f32 %v437, %v433
        %v441 = vmul.f32 %v437, %v435
        %v442 = vadd.f32 %v424, %v438
        %v443 = vadd.f32 %v425, %v439
        %v444 = vadd.f32 %v426, %v440
        %v445 = vadd.f32 %v427, %v441
        %446 = vst [vmem:[%s223] sm:$0xff] %v442
        %447 = vst [vmem:[%s223 + $0x8] sm:$0xff] %v443
        %448 = vst [vmem:[%s223 + $0x10] sm:$0xff] %v444
        %449 = vst [vmem:[%s223 + $0x18] sm:$0xff] %v445
        %s450 = scalar_lea.vmem %s228, 8
        %v451 = vld [vmem:[%s450] sm:$0x1]
        %s452 = scalar_lea.vmem %s190, 40 [#allocation2]
        %v453 = vld [vmem:[%s452] sm:$0xff]
        %v454 = vld [vmem:[%s452 + $0x8] sm:$0xff]
        %v455 = vld [vmem:[%s452 + $0x10] sm:$0xff]
        %v456 = vld [vmem:[%s452 + $0x18] sm:$0xff]
        %v457 = vperm.slane %v451, 0
        %v458 = vmul.f32 %v457, %v453
        %v459 = vmul.f32 %v457, %v454
        %v460 = vmul.f32 %v457, %v455
        %v461 = vmul.f32 %v457, %v456
        %v462 = vld [vmem:[%s450 + $0x1] sm:$0x1]
        %v463 = vld [vmem:[%s452 + $0x1] sm:$0xff]
        %v464 = vld [vmem:[%s452 + $0x9] sm:$0xff]
        %v465 = vld [vmem:[%s452 + $0x11] sm:$0xff]
        %v466 = vld [vmem:[%s452 + $0x19] sm:$0xff]
        %v467 = vperm.slane %v462, 0
        %v468 = vmul.f32 %v467, %v463
        %v469 = vmul.f32 %v467, %v464
        %v470 = vmul.f32 %v467, %v465
        %v471 = vmul.f32 %v467, %v466
        %v472 = vadd.f32 %v458, %v468
        %v473 = vadd.f32 %v459, %v469
        %v474 = vadd.f32 %v460, %v470
        %v475 = vadd.f32 %v461, %v471
        %v476 = vld [vmem:[%s450 + $0x2] sm:$0x1]
        %v477 = vld [vmem:[%s452 + $0x2] sm:$0xff]
        %v478 = vld [vmem:[%s452 + $0xa] sm:$0xff]
        %v479 = vld [vmem:[%s452 + $0x12] sm:$0xff]
        %v480 = vld [vmem:[%s452 + $0x1a] sm:$0xff]
        %v481 = vperm.slane %v476, 0
        %v482 = vmul.f32 %v481, %v477
        %v483 = vmul.f32 %v481, %v478
        %v484 = vmul.f32 %v481, %v479
        %v485 = vmul.f32 %v481, %v480
        %v486 = vadd.f32 %v472, %v482
        %v487 = vadd.f32 %v473, %v483
        %v488 = vadd.f32 %v474, %v484
        %v489 = vadd.f32 %v475, %v485
        %v490 = vld [vmem:[%s450 + $0x3] sm:$0x1]
        %v491 = vld [vmem:[%s452 + $0x3] sm:$0xff]
        %v492 = vld [vmem:[%s452 + $0xb] sm:$0xff]
        %v493 = vld [vmem:[%s452 + $0x13] sm:$0xff]
        %v494 = vld [vmem:[%s452 + $0x1b] sm:$0xff]
        %v495 = vperm.slane %v490, 0
        %v496 = vmul.f32 %v495, %v491
        %v497 = vmul.f32 %v495, %v492
        %v498 = vmul.f32 %v495, %v493
        %v499 = vmul.f32 %v495, %v494
        %v500 = vadd.f32 %v486, %v496
        %v501 = vadd.f32 %v487, %v497
        %v502 = vadd.f32 %v488, %v498
        %v503 = vadd.f32 %v489, %v499
        %v504 = vld [vmem:[%s450 + $0x4] sm:$0x1]
        %v505 = vld [vmem:[%s452 + $0x4] sm:$0xff]
        %v506 = vld [vmem:[%s452 + $0xc] sm:$0xff]
        %v507 = vld [vmem:[%s452 + $0x14] sm:$0xff]
        %v508 = vld [vmem:[%s452 + $0x1c] sm:$0xff]
        %v509 = vperm.slane %v504, 0
        %v510 = vmul.f32 %v509, %v505
        %v511 = vmul.f32 %v509, %v506
        %v512 = vmul.f32 %v509, %v507
        %v513 = vmul.f32 %v509, %v508
        %v514 = vadd.f32 %v500, %v510
        %v515 = vadd.f32 %v501, %v511
        %v516 = vadd.f32 %v502, %v512
        %v517 = vadd.f32 %v503, %v513
        %v518 = vld [vmem:[%s450 + $0x5] sm:$0x1]
        %v519 = vld [vmem:[%s452 + $0x5] sm:$0xff]
        %v520 = vld [vmem:[%s452 + $0xd] sm:$0xff]
        %v521 = vld [vmem:[%s452 + $0x15] sm:$0xff]
        %v522 = vld [vmem:[%s452 + $0x1d] sm:$0xff]
        %v523 = vperm.slane %v518, 0
        %v524 = vmul.f32 %v523, %v519
        %v525 = vmul.f32 %v523, %v520
        %v526 = vmul.f32 %v523, %v521
        %v527 = vmul.f32 %v523, %v522
        %v528 = vadd.f32 %v514, %v524
        %v529 = vadd.f32 %v515, %v525
        %v530 = vadd.f32 %v516, %v526
        %v531 = vadd.f32 %v517, %v527
        %v532 = vld [vmem:[%s450 + $0x6] sm:$0x1]
        %v533 = vld [vmem:[%s452 + $0x6] sm:$0xff]
        %v534 = vld [vmem:[%s452 + $0xe] sm:$0xff]
        %v535 = vld [vmem:[%s452 + $0x16] sm:$0xff]
        %v536 = vld [vmem:[%s452 + $0x1e] sm:$0xff]
        %v537 = vperm.slane %v532, 0
        %v538 = vmul.f32 %v537, %v533
        %v539 = vmul.f32 %v537, %v534
        %v540 = vmul.f32 %v537, %v535
        %v541 = vmul.f32 %v537, %v536
        %v542 = vadd.f32 %v528, %v538
        %v543 = vadd.f32 %v529, %v539
        %v544 = vadd.f32 %v530, %v540
        %v545 = vadd.f32 %v531, %v541
        %546 = vrot.lane.b32.xlu0 %v542, 3
        %v547 = vpop.permute.xlu0 %546
        %548 = vrot.lane.b32.xlu0 %v543, 3
        %v549 = vpop.permute.xlu0 %548
        %550 = vrot.lane.b32.xlu0 %v544, 3
        %v551 = vpop.permute.xlu0 %550
        %552 = vrot.lane.b32.xlu0 %v545, 3
        %v553 = vpop.permute.xlu0 %552
        %s554 = scalar_lea.vmem %s234, 8
        %v555 = vld [vmem:[%s554] sm:$0x1]
        %v556 = vperm.slane %v555, 0
        %v557 = vmul.f32 %v556, %v547
        %v558 = vmul.f32 %v556, %v549
        %v559 = vmul.f32 %v556, %v551
        %v560 = vmul.f32 %v556, %v553
        %561 = vrot.lane.b32.xlu0 %v542, 2
        %v562 = vpop.permute.xlu0 %561
        %563 = vrot.lane.b32.xlu0 %v543, 2
        %v564 = vpop.permute.xlu0 %563
        %565 = vrot.lane.b32.xlu0 %v544, 2
        %v566 = vpop.permute.xlu0 %565
        %567 = vrot.lane.b32.xlu0 %v545, 2
        %v568 = vpop.permute.xlu0 %567
        %v569 = vld [vmem:[%s554 + $0x1] sm:$0x1]
        %v570 = vperm.slane %v569, 0
        %v571 = vmul.f32 %v570, %v562
        %v572 = vmul.f32 %v570, %v564
        %v573 = vmul.f32 %v570, %v566
        %v574 = vmul.f32 %v570, %v568
        %v575 = vadd.f32 %v557, %v571
        %v576 = vadd.f32 %v558, %v572
        %v577 = vadd.f32 %v559, %v573
        %v578 = vadd.f32 %v560, %v574
        %579 = vrot.lane.b32.xlu0 %v542, 1
        %v580 = vpop.permute.xlu0 %579
        %581 = vrot.lane.b32.xlu0 %v543, 1
        %v582 = vpop.permute.xlu0 %581
        %583 = vrot.lane.b32.xlu0 %v544, 1
        %v584 = vpop.permute.xlu0 %583
        %585 = vrot.lane.b32.xlu0 %v545, 1
        %v586 = vpop.permute.xlu0 %585
        %v587 = vld [vmem:[%s554 + $0x2] sm:$0x1]
        %v588 = vperm.slane %v587, 0
        %v589 = vmul.f32 %v588, %v580
        %v590 = vmul.f32 %v588, %v582
        %v591 = vmul.f32 %v588, %v584
        %v592 = vmul.f32 %v588, %v586
        %v593 = vadd.f32 %v575, %v589
        %v594 = vadd.f32 %v576, %v590
        %v595 = vadd.f32 %v577, %v591
        %v596 = vadd.f32 %v578, %v592
        %v597 = vld [vmem:[%s554 + $0x3] sm:$0x1]
        %v598 = vperm.slane %v597, 0
        %v599 = vmul.f32 %v598, %v542
        %v600 = vmul.f32 %v598, %v543
        %v601 = vmul.f32 %v598, %v544
        %v602 = vmul.f32 %v598, %v545
        %v603 = vadd.f32 %v593, %v599
        %v604 = vadd.f32 %v594, %v600
        %v605 = vadd.f32 %v595, %v601
        %v606 = vadd.f32 %v596, %v602
        %607 = vrot.lane.b32.xlu0 %v542, 127
        %v608 = vpop.permute.xlu0 %607
        %609 = vrot.lane.b32.xlu0 %v543, 127
        %v610 = vpop.permute.xlu0 %609
        %611 = vrot.lane.b32.xlu0 %v544, 127
        %v612 = vpop.permute.xlu0 %611
        %613 = vrot.lane.b32.xlu0 %v545, 127
        %v614 = vpop.permute.xlu0 %613
        %v615 = vld [vmem:[%s554 + $0x4] sm:$0x1]
        %v616 = vperm.slane %v615, 0
        %v617 = vmul.f32 %v616, %v608
        %v618 = vmul.f32 %v616, %v610
        %v619 = vmul.f32 %v616, %v612
        %v620 = vmul.f32 %v616, %v614
        %v621 = vadd.f32 %v603, %v617
        %v622 = vadd.f32 %v604, %v618
        %v623 = vadd.f32 %v605, %v619
        %v624 = vadd.f32 %v606, %v620
        %625 = vrot.lane.b32.xlu0 %v542, 126
        %v626 = vpop.permute.xlu0 %625
        %627 = vrot.lane.b32.xlu0 %v543, 126
        %v628 = vpop.permute.xlu0 %627
        %629 = vrot.lane.b32.xlu0 %v544, 126
        %v630 = vpop.permute.xlu0 %629
        %631 = vrot.lane.b32.xlu0 %v545, 126
        %v632 = vpop.permute.xlu0 %631
        %v633 = vld [vmem:[%s554 + $0x5] sm:$0x1]
        %v634 = vperm.slane %v633, 0
        %v635 = vmul.f32 %v634, %v626
        %v636 = vmul.f32 %v634, %v628
        %v637 = vmul.f32 %v634, %v630
        %v638 = vmul.f32 %v634, %v632
        %v639 = vadd.f32 %v621, %v635
        %v640 = vadd.f32 %v622, %v636
        %v641 = vadd.f32 %v623, %v637
        %v642 = vadd.f32 %v624, %v638
        %643 = vrot.lane.b32.xlu0 %v542, 125
        %v644 = vpop.permute.xlu0 %643
        %645 = vrot.lane.b32.xlu0 %v543, 125
        %v646 = vpop.permute.xlu0 %645
        %647 = vrot.lane.b32.xlu0 %v544, 125
        %v648 = vpop.permute.xlu0 %647
        %649 = vrot.lane.b32.xlu0 %v545, 125
        %v650 = vpop.permute.xlu0 %649
        %v651 = vld [vmem:[%s554 + $0x6] sm:$0x1]
        %v652 = vperm.slane %v651, 0
        %v653 = vmul.f32 %v652, %v644
        %v654 = vmul.f32 %v652, %v646
        %v655 = vmul.f32 %v652, %v648
        %v656 = vmul.f32 %v652, %v650
        %v657 = vadd.f32 %v639, %v653
        %v658 = vadd.f32 %v640, %v654
        %v659 = vadd.f32 %v641, %v655
        %v660 = vadd.f32 %v642, %v656
        %s661 = scalar_lea.vmem %s223, 32 [#allocation5]
        %662 = vst [vmem:[%s661] sm:$0xff] %v657
        %663 = vst [vmem:[%s661 + $0x8] sm:$0xff] %v658
        %664 = vst [vmem:[%s661 + $0x10] sm:$0xff] %v659
        %665 = vst [vmem:[%s661 + $0x18] sm:$0xff] %v660
        %s666 = scalar_lea.vmem %s228, 16
        %v667 = vld [vmem:[%s666] sm:$0x1]
        %s668 = scalar_lea.vmem %s190, 80 [#allocation2]
        %v669 = vld [vmem:[%s668] sm:$0xff]
        %v670 = vld [vmem:[%s668 + $0x8] sm:$0xff]
        %v671 = vld [vmem:[%s668 + $0x10] sm:$0xff]
        %v672 = vld [vmem:[%s668 + $0x18] sm:$0xff]
        %v673 = vperm.slane %v667, 0
        %v674 = vmul.f32 %v673, %v669
        %v675 = vmul.f32 %v673, %v670
        %v676 = vmul.f32 %v673, %v671
        %v677 = vmul.f32 %v673, %v672
        %v678 = vld [vmem:[%s666 + $0x1] sm:$0x1]
        %v679 = vld [vmem:[%s668 + $0x1] sm:$0xff]
        %v680 = vld [vmem:[%s668 + $0x9] sm:$0xff]
        %v681 = vld [vmem:[%s668 + $0x11] sm:$0xff]
        %v682 = vld [vmem:[%s668 + $0x19] sm:$0xff]
        %v683 = vperm.slane %v678, 0
        %v684 = vmul.f32 %v683, %v679
        %v685 = vmul.f32 %v683, %v680
        %v686 = vmul.f32 %v683, %v681
        %v687 = vmul.f32 %v683, %v682
        %v688 = vadd.f32 %v674, %v684
        %v689 = vadd.f32 %v675, %v685
        %v690 = vadd.f32 %v676, %v686
        %v691 = vadd.f32 %v677, %v687
        %v692 = vld [vmem:[%s666 + $0x2] sm:$0x1]
        %v693 = vld [vmem:[%s668 + $0x2] sm:$0xff]
        %v694 = vld [vmem:[%s668 + $0xa] sm:$0xff]
        %v695 = vld [vmem:[%s668 + $0x12] sm:$0xff]
        %v696 = vld [vmem:[%s668 + $0x1a] sm:$0xff]
        %v697 = vperm.slane %v692, 0
        %v698 = vmul.f32 %v697, %v693
        %v699 = vmul.f32 %v697, %v694
        %v700 = vmul.f32 %v697, %v695
        %v701 = vmul.f32 %v697, %v696
        %v702 = vadd.f32 %v688, %v698
        %v703 = vadd.f32 %v689, %v699
        %v704 = vadd.f32 %v690, %v700
        %v705 = vadd.f32 %v691, %v701
        %v706 = vld [vmem:[%s666 + $0x3] sm:$0x1]
        %v707 = vld [vmem:[%s668 + $0x3] sm:$0xff]
        %v708 = vld [vmem:[%s668 + $0xb] sm:$0xff]
        %v709 = vld [vmem:[%s668 + $0x13] sm:$0xff]
        %v710 = vld [vmem:[%s668 + $0x1b] sm:$0xff]
        %v711 = vperm.slane %v706, 0
        %v712 = vmul.f32 %v711, %v707
        %v713 = vmul.f32 %v711, %v708
        %v714 = vmul.f32 %v711, %v709
        %v715 = vmul.f32 %v711, %v710
        %v716 = vadd.f32 %v702, %v712
        %v717 = vadd.f32 %v703, %v713
        %v718 = vadd.f32 %v704, %v714
        %v719 = vadd.f32 %v705, %v715
        %v720 = vld [vmem:[%s666 + $0x4] sm:$0x1]
        %v721 = vld [vmem:[%s668 + $0x4] sm:$0xff]
        %v722 = vld [vmem:[%s668 + $0xc] sm:$0xff]
        %v723 = vld [vmem:[%s668 + $0x14] sm:$0xff]
        %v724 = vld [vmem:[%s668 + $0x1c] sm:$0xff]
        %v725 = vperm.slane %v720, 0
        %v726 = vmul.f32 %v725, %v721
        %v727 = vmul.f32 %v725, %v722
        %v728 = vmul.f32 %v725, %v723
        %v729 = vmul.f32 %v725, %v724
        %v730 = vadd.f32 %v716, %v726
        %v731 = vadd.f32 %v717, %v727
        %v732 = vadd.f32 %v718, %v728
        %v733 = vadd.f32 %v719, %v729
        %v734 = vld [vmem:[%s666 + $0x5] sm:$0x1]
        %v735 = vld [vmem:[%s668 + $0x5] sm:$0xff]
        %v736 = vld [vmem:[%s668 + $0xd] sm:$0xff]
        %v737 = vld [vmem:[%s668 + $0x15] sm:$0xff]
        %v738 = vld [vmem:[%s668 + $0x1d] sm:$0xff]
        %v739 = vperm.slane %v734, 0
        %v740 = vmul.f32 %v739, %v735
        %v741 = vmul.f32 %v739, %v736
        %v742 = vmul.f32 %v739, %v737
        %v743 = vmul.f32 %v739, %v738
        %v744 = vadd.f32 %v730, %v740
        %v745 = vadd.f32 %v731, %v741
        %v746 = vadd.f32 %v732, %v742
        %v747 = vadd.f32 %v733, %v743
        %v748 = vld [vmem:[%s666 + $0x6] sm:$0x1]
        %v749 = vld [vmem:[%s668 + $0x6] sm:$0xff]
        %v750 = vld [vmem:[%s668 + $0xe] sm:$0xff]
        %v751 = vld [vmem:[%s668 + $0x16] sm:$0xff]
        %v752 = vld [vmem:[%s668 + $0x1e] sm:$0xff]
        %v753 = vperm.slane %v748, 0
        %v754 = vmul.f32 %v753, %v749
        %v755 = vmul.f32 %v753, %v750
        %v756 = vmul.f32 %v753, %v751
        %v757 = vmul.f32 %v753, %v752
        %v758 = vadd.f32 %v744, %v754
        %v759 = vadd.f32 %v745, %v755
        %v760 = vadd.f32 %v746, %v756
        %v761 = vadd.f32 %v747, %v757
        %762 = vrot.lane.b32.xlu0 %v758, 3
        %v763 = vpop.permute.xlu0 %762
        %764 = vrot.lane.b32.xlu0 %v759, 3
        %v765 = vpop.permute.xlu0 %764
        %766 = vrot.lane.b32.xlu0 %v760, 3
        %v767 = vpop.permute.xlu0 %766
        %768 = vrot.lane.b32.xlu0 %v761, 3
        %v769 = vpop.permute.xlu0 %768
        %s770 = scalar_lea.vmem %s234, 16
        %v771 = vld [vmem:[%s770] sm:$0x1]
        %v772 = vperm.slane %v771, 0
        %v773 = vmul.f32 %v772, %v763
        %v774 = vmul.f32 %v772, %v765
        %v775 = vmul.f32 %v772, %v767
        %v776 = vmul.f32 %v772, %v769
        %777 = vrot.lane.b32.xlu0 %v758, 2
        %v778 = vpop.permute.xlu0 %777
        %779 = vrot.lane.b32.xlu0 %v759, 2
        %v780 = vpop.permute.xlu0 %779
        %781 = vrot.lane.b32.xlu0 %v760, 2
        %v782 = vpop.permute.xlu0 %781
        %783 = vrot.lane.b32.xlu0 %v761, 2
        %v784 = vpop.permute.xlu0 %783
        %v785 = vld [vmem:[%s770 + $0x1] sm:$0x1]
        %v786 = vperm.slane %v785, 0
        %v787 = vmul.f32 %v786, %v778
        %v788 = vmul.f32 %v786, %v780
        %v789 = vmul.f32 %v786, %v782
        %v790 = vmul.f32 %v786, %v784
        %v791 = vadd.f32 %v773, %v787
        %v792 = vadd.f32 %v774, %v788
        %v793 = vadd.f32 %v775, %v789
        %v794 = vadd.f32 %v776, %v790
        %795 = vrot.lane.b32.xlu0 %v758, 1
        %v796 = vpop.permute.xlu0 %795
        %797 = vrot.lane.b32.xlu0 %v759, 1
        %v798 = vpop.permute.xlu0 %797
        %799 = vrot.lane.b32.xlu0 %v760, 1
        %v800 = vpop.permute.xlu0 %799
        %801 = vrot.lane.b32.xlu0 %v761, 1
        %v802 = vpop.permute.xlu0 %801
        %v803 = vld [vmem:[%s770 + $0x2] sm:$0x1]
        %v804 = vperm.slane %v803, 0
        %v805 = vmul.f32 %v804, %v796
        %v806 = vmul.f32 %v804, %v798
        %v807 = vmul.f32 %v804, %v800
        %v808 = vmul.f32 %v804, %v802
        %v809 = vadd.f32 %v791, %v805
        %v810 = vadd.f32 %v792, %v806
        %v811 = vadd.f32 %v793, %v807
        %v812 = vadd.f32 %v794, %v808
        %v813 = vld [vmem:[%s770 + $0x3] sm:$0x1]
        %v814 = vperm.slane %v813, 0
        %v815 = vmul.f32 %v814, %v758
        %v816 = vmul.f32 %v814, %v759
        %v817 = vmul.f32 %v814, %v760
        %v818 = vmul.f32 %v814, %v761
        %v819 = vadd.f32 %v809, %v815
        %v820 = vadd.f32 %v810, %v816
        %v821 = vadd.f32 %v811, %v817
        %v822 = vadd.f32 %v812, %v818
        %823 = vrot.lane.b32.xlu0 %v758, 127
        %v824 = vpop.permute.xlu0 %823
        %825 = vrot.lane.b32.xlu0 %v759, 127
        %v826 = vpop.permute.xlu0 %825
        %827 = vrot.lane.b32.xlu0 %v760, 127
        %v828 = vpop.permute.xlu0 %827
        %829 = vrot.lane.b32.xlu0 %v761, 127
        %v830 = vpop.permute.xlu0 %829
        %v831 = vld [vmem:[%s770 + $0x4] sm:$0x1]
        %v832 = vperm.slane %v831, 0
        %v833 = vmul.f32 %v832, %v824
        %v834 = vmul.f32 %v832, %v826
        %v835 = vmul.f32 %v832, %v828
        %v836 = vmul.f32 %v832, %v830
        %v837 = vadd.f32 %v819, %v833
        %v838 = vadd.f32 %v820, %v834
        %v839 = vadd.f32 %v821, %v835
        %v840 = vadd.f32 %v822, %v836
        %841 = vrot.lane.b32.xlu0 %v758, 126
        %v842 = vpop.permute.xlu0 %841
        %843 = vrot.lane.b32.xlu0 %v759, 126
        %v844 = vpop.permute.xlu0 %843
        %845 = vrot.lane.b32.xlu0 %v760, 126
        %v846 = vpop.permute.xlu0 %845
        %847 = vrot.lane.b32.xlu0 %v761, 126
        %v848 = vpop.permute.xlu0 %847
        %v849 = vld [vmem:[%s770 + $0x5] sm:$0x1]
        %v850 = vperm.slane %v849, 0
        %v851 = vmul.f32 %v850, %v842
        %v852 = vmul.f32 %v850, %v844
        %v853 = vmul.f32 %v850, %v846
        %v854 = vmul.f32 %v850, %v848
        %v855 = vadd.f32 %v837, %v851
        %v856 = vadd.f32 %v838, %v852
        %v857 = vadd.f32 %v839, %v853
        %v858 = vadd.f32 %v840, %v854
        %859 = vrot.lane.b32.xlu0 %v758, 125
        %v860 = vpop.permute.xlu0 %859
        %861 = vrot.lane.b32.xlu0 %v759, 125
        %v862 = vpop.permute.xlu0 %861
        %863 = vrot.lane.b32.xlu0 %v760, 125
        %v864 = vpop.permute.xlu0 %863
        %865 = vrot.lane.b32.xlu0 %v761, 125
        %v866 = vpop.permute.xlu0 %865
        %v867 = vld [vmem:[%s770 + $0x6] sm:$0x1]
        %v868 = vperm.slane %v867, 0
        %v869 = vmul.f32 %v868, %v860
        %v870 = vmul.f32 %v868, %v862
        %v871 = vmul.f32 %v868, %v864
        %v872 = vmul.f32 %v868, %v866
        %v873 = vadd.f32 %v855, %v869
        %v874 = vadd.f32 %v856, %v870
        %v875 = vadd.f32 %v857, %v871
        %v876 = vadd.f32 %v858, %v872
        %s877 = scalar_lea.vmem %s223, 64 [#allocation5]
        %878 = vst [vmem:[%s877] sm:$0xff] %v873
        %879 = vst [vmem:[%s877 + $0x8] sm:$0xff] %v874
        %880 = vst [vmem:[%s877 + $0x10] sm:$0xff] %v875
        %881 = vst [vmem:[%s877 + $0x18] sm:$0xff] %v876
        %s882 = scalar_lea.vmem %s228, 24
        %v883 = vld [vmem:[%s882] sm:$0x1]
        %s884 = scalar_lea.vmem %s190, 120 [#allocation2]
        %v885 = vld [vmem:[%s884] sm:$0xff]
        %v886 = vld [vmem:[%s884 + $0x8] sm:$0xff]
        %v887 = vld [vmem:[%s884 + $0x10] sm:$0xff]
        %v888 = vld [vmem:[%s884 + $0x18] sm:$0xff]
        %v889 = vperm.slane %v883, 0
        %v890 = vmul.f32 %v889, %v885
        %v891 = vmul.f32 %v889, %v886
        %v892 = vmul.f32 %v889, %v887
        %v893 = vmul.f32 %v889, %v888
        %v894 = vld [vmem:[%s882 + $0x1] sm:$0x1]
        %v895 = vld [vmem:[%s884 + $0x1] sm:$0xff]
        %v896 = vld [vmem:[%s884 + $0x9] sm:$0xff]
        %v897 = vld [vmem:[%s884 + $0x11] sm:$0xff]
        %v898 = vld [vmem:[%s884 + $0x19] sm:$0xff]
        %v899 = vperm.slane %v894, 0
        %v900 = vmul.f32 %v899, %v895
        %v901 = vmul.f32 %v899, %v896
        %v902 = vmul.f32 %v899, %v897
        %v903 = vmul.f32 %v899, %v898
        %v904 = vadd.f32 %v890, %v900
        %v905 = vadd.f32 %v891, %v901
        %v906 = vadd.f32 %v892, %v902
        %v907 = vadd.f32 %v893, %v903
        %v908 = vld [vmem:[%s882 + $0x2] sm:$0x1]
        %v909 = vld [vmem:[%s884 + $0x2] sm:$0xff]
        %v910 = vld [vmem:[%s884 + $0xa] sm:$0xff]
        %v911 = vld [vmem:[%s884 + $0x12] sm:$0xff]
        %v912 = vld [vmem:[%s884 + $0x1a] sm:$0xff]
        %v913 = vperm.slane %v908, 0
        %v914 = vmul.f32 %v913, %v909
        %v915 = vmul.f32 %v913, %v910
        %v916 = vmul.f32 %v913, %v911
        %v917 = vmul.f32 %v913, %v912
        %v918 = vadd.f32 %v904, %v914
        %v919 = vadd.f32 %v905, %v915
        %v920 = vadd.f32 %v906, %v916
        %v921 = vadd.f32 %v907, %v917
        %v922 = vld [vmem:[%s882 + $0x3] sm:$0x1]
        %v923 = vld [vmem:[%s884 + $0x3] sm:$0xff]
        %v924 = vld [vmem:[%s884 + $0xb] sm:$0xff]
        %v925 = vld [vmem:[%s884 + $0x13] sm:$0xff]
        %v926 = vld [vmem:[%s884 + $0x1b] sm:$0xff]
        %v927 = vperm.slane %v922, 0
        %v928 = vmul.f32 %v927, %v923
        %v929 = vmul.f32 %v927, %v924
        %v930 = vmul.f32 %v927, %v925
        %v931 = vmul.f32 %v927, %v926
        %v932 = vadd.f32 %v918, %v928
        %v933 = vadd.f32 %v919, %v929
        %v934 = vadd.f32 %v920, %v930
        %v935 = vadd.f32 %v921, %v931
        %v936 = vld [vmem:[%s882 + $0x4] sm:$0x1]
        %v937 = vld [vmem:[%s884 + $0x4] sm:$0xff]
        %v938 = vld [vmem:[%s884 + $0xc] sm:$0xff]
        %v939 = vld [vmem:[%s884 + $0x14] sm:$0xff]
        %v940 = vld [vmem:[%s884 + $0x1c] sm:$0xff]
        %v941 = vperm.slane %v936, 0
        %v942 = vmul.f32 %v941, %v937
        %v943 = vmul.f32 %v941, %v938
        %v944 = vmul.f32 %v941, %v939
        %v945 = vmul.f32 %v941, %v940
        %v946 = vadd.f32 %v932, %v942
        %v947 = vadd.f32 %v933, %v943
        %v948 = vadd.f32 %v934, %v944
        %v949 = vadd.f32 %v935, %v945
        %v950 = vld [vmem:[%s882 + $0x5] sm:$0x1]
        %v951 = vld [vmem:[%s884 + $0x5] sm:$0xff]
        %v952 = vld [vmem:[%s884 + $0xd] sm:$0xff]
        %v953 = vld [vmem:[%s884 + $0x15] sm:$0xff]
        %v954 = vld [vmem:[%s884 + $0x1d] sm:$0xff]
        %v955 = vperm.slane %v950, 0
        %v956 = vmul.f32 %v955, %v951
        %v957 = vmul.f32 %v955, %v952
        %v958 = vmul.f32 %v955, %v953
        %v959 = vmul.f32 %v955, %v954
        %v960 = vadd.f32 %v946, %v956
        %v961 = vadd.f32 %v947, %v957
        %v962 = vadd.f32 %v948, %v958
        %v963 = vadd.f32 %v949, %v959
        %v964 = vld [vmem:[%s882 + $0x6] sm:$0x1]
        %v965 = vld [vmem:[%s884 + $0x6] sm:$0xff]
        %v966 = vld [vmem:[%s884 + $0xe] sm:$0xff]
        %v967 = vld [vmem:[%s884 + $0x16] sm:$0xff]
        %v968 = vld [vmem:[%s884 + $0x1e] sm:$0xff]
        %v969 = vperm.slane %v964, 0
        %v970 = vmul.f32 %v969, %v965
        %v971 = vmul.f32 %v969, %v966
        %v972 = vmul.f32 %v969, %v967
        %v973 = vmul.f32 %v969, %v968
        %v974 = vadd.f32 %v960, %v970
        %v975 = vadd.f32 %v961, %v971
        %v976 = vadd.f32 %v962, %v972
        %v977 = vadd.f32 %v963, %v973
        %978 = vrot.lane.b32.xlu0 %v974, 3
        %v979 = vpop.permute.xlu0 %978
        %980 = vrot.lane.b32.xlu0 %v975, 3
        %v981 = vpop.permute.xlu0 %980
        %982 = vrot.lane.b32.xlu0 %v976, 3
        %v983 = vpop.permute.xlu0 %982
        %984 = vrot.lane.b32.xlu0 %v977, 3
        %v985 = vpop.permute.xlu0 %984
        %s986 = scalar_lea.vmem %s234, 24
        %v987 = vld [vmem:[%s986] sm:$0x1]
        %v988 = vperm.slane %v987, 0
        %v989 = vmul.f32 %v988, %v979
        %v990 = vmul.f32 %v988, %v981
        %v991 = vmul.f32 %v988, %v983
        %v992 = vmul.f32 %v988, %v985
        %993 = vrot.lane.b32.xlu0 %v974, 2
        %v994 = vpop.permute.xlu0 %993
        %995 = vrot.lane.b32.xlu0 %v975, 2
        %v996 = vpop.permute.xlu0 %995
        %997 = vrot.lane.b32.xlu0 %v976, 2
        %v998 = vpop.permute.xlu0 %997
        %999 = vrot.lane.b32.xlu0 %v977, 2
        %v1000 = vpop.permute.xlu0 %999
        %v1001 = vld [vmem:[%s986 + $0x1] sm:$0x1]
        %v1002 = vperm.slane %v1001, 0
        %v1003 = vmul.f32 %v1002, %v994
        %v1004 = vmul.f32 %v1002, %v996
        %v1005 = vmul.f32 %v1002, %v998
        %v1006 = vmul.f32 %v1002, %v1000
        %v1007 = vadd.f32 %v989, %v1003
        %v1008 = vadd.f32 %v990, %v1004
        %v1009 = vadd.f32 %v991, %v1005
        %v1010 = vadd.f32 %v992, %v1006
        %1011 = vrot.lane.b32.xlu0 %v974, 1
        %v1012 = vpop.permute.xlu0 %1011
        %1013 = vrot.lane.b32.xlu0 %v975, 1
        %v1014 = vpop.permute.xlu0 %1013
        %1015 = vrot.lane.b32.xlu0 %v976, 1
        %v1016 = vpop.permute.xlu0 %1015
        %1017 = vrot.lane.b32.xlu0 %v977, 1
        %v1018 = vpop.permute.xlu0 %1017
        %v1019 = vld [vmem:[%s986 + $0x2] sm:$0x1]
        %v1020 = vperm.slane %v1019, 0
        %v1021 = vmul.f32 %v1020, %v1012
        %v1022 = vmul.f32 %v1020, %v1014
        %v1023 = vmul.f32 %v1020, %v1016
        %v1024 = vmul.f32 %v1020, %v1018
        %v1025 = vadd.f32 %v1007, %v1021
        %v1026 = vadd.f32 %v1008, %v1022
        %v1027 = vadd.f32 %v1009, %v1023
        %v1028 = vadd.f32 %v1010, %v1024
        %v1029 = vld [vmem:[%s986 + $0x3] sm:$0x1]
        %v1030 = vperm.slane %v1029, 0
        %v1031 = vmul.f32 %v1030, %v974
        %v1032 = vmul.f32 %v1030, %v975
        %v1033 = vmul.f32 %v1030, %v976
        %v1034 = vmul.f32 %v1030, %v977
        %v1035 = vadd.f32 %v1025, %v1031
        %v1036 = vadd.f32 %v1026, %v1032
        %v1037 = vadd.f32 %v1027, %v1033
        %v1038 = vadd.f32 %v1028, %v1034
        %1039 = vrot.lane.b32.xlu0 %v974, 127
        %v1040 = vpop.permute.xlu0 %1039
        %1041 = vrot.lane.b32.xlu0 %v975, 127
        %v1042 = vpop.permute.xlu0 %1041
        %1043 = vrot.lane.b32.xlu0 %v976, 127
        %v1044 = vpop.permute.xlu0 %1043
        %1045 = vrot.lane.b32.xlu0 %v977, 127
        %v1046 = vpop.permute.xlu0 %1045
        %v1047 = vld [vmem:[%s986 + $0x4] sm:$0x1]
        %v1048 = vperm.slane %v1047, 0
        %v1049 = vmul.f32 %v1048, %v1040
        %v1050 = vmul.f32 %v1048, %v1042
        %v1051 = vmul.f32 %v1048, %v1044
        %v1052 = vmul.f32 %v1048, %v1046
        %v1053 = vadd.f32 %v1035, %v1049
        %v1054 = vadd.f32 %v1036, %v1050
        %v1055 = vadd.f32 %v1037, %v1051
        %v1056 = vadd.f32 %v1038, %v1052
        %1057 = vrot.lane.b32.xlu0 %v974, 126
        %v1058 = vpop.permute.xlu0 %1057
        %1059 = vrot.lane.b32.xlu0 %v975, 126
        %v1060 = vpop.permute.xlu0 %1059
        %1061 = vrot.lane.b32.xlu0 %v976, 126
        %v1062 = vpop.permute.xlu0 %1061
        %1063 = vrot.lane.b32.xlu0 %v977, 126
        %v1064 = vpop.permute.xlu0 %1063
        %v1065 = vld [vmem:[%s986 + $0x5] sm:$0x1]
        %v1066 = vperm.slane %v1065, 0
        %v1067 = vmul.f32 %v1066, %v1058
        %v1068 = vmul.f32 %v1066, %v1060
        %v1069 = vmul.f32 %v1066, %v1062
        %v1070 = vmul.f32 %v1066, %v1064
        %v1071 = vadd.f32 %v1053, %v1067
        %v1072 = vadd.f32 %v1054, %v1068
        %v1073 = vadd.f32 %v1055, %v1069
        %v1074 = vadd.f32 %v1056, %v1070
        %1075 = vrot.lane.b32.xlu0 %v974, 125
        %v1076 = vpop.permute.xlu0 %1075
        %1077 = vrot.lane.b32.xlu0 %v975, 125
        %v1078 = vpop.permute.xlu0 %1077
        %1079 = vrot.lane.b32.xlu0 %v976, 125
        %v1080 = vpop.permute.xlu0 %1079
        %1081 = vrot.lane.b32.xlu0 %v977, 125
        %v1082 = vpop.permute.xlu0 %1081
        %v1083 = vld [vmem:[%s986 + $0x6] sm:$0x1]
        %v1084 = vperm.slane %v1083, 0
        %v1085 = vmul.f32 %v1084, %v1076
        %v1086 = vmul.f32 %v1084, %v1078
        %v1087 = vmul.f32 %v1084, %v1080
        %v1088 = vmul.f32 %v1084, %v1082
        %v1089 = vadd.f32 %v1071, %v1085
        %v1090 = vadd.f32 %v1072, %v1086
        %v1091 = vadd.f32 %v1073, %v1087
        %v1092 = vadd.f32 %v1074, %v1088
        %s1093 = scalar_lea.vmem %s223, 96 [#allocation5]
        %1094 = vst [vmem:[%s1093] sm:$0xff] %v1089
        %1095 = vst [vmem:[%s1093 + $0x8] sm:$0xff] %v1090
        %1096 = vst [vmem:[%s1093 + $0x10] sm:$0xff] %v1091
        %1097 = vst [vmem:[%s1093 + $0x18] sm:$0xff] %v1092
        %s1098 = scalar_lea.vmem %s228, 32
        %v1099 = vld [vmem:[%s1098] sm:$0x1]
        %s1100 = scalar_lea.vmem %s190, 160 [#allocation2]
        %v1101 = vld [vmem:[%s1100] sm:$0xff]
        %v1102 = vld [vmem:[%s1100 + $0x8] sm:$0xff]
        %v1103 = vld [vmem:[%s1100 + $0x10] sm:$0xff]
        %v1104 = vld [vmem:[%s1100 + $0x18] sm:$0xff]
        %v1105 = vperm.slane %v1099, 0
        %v1106 = vmul.f32 %v1105, %v1101
        %v1107 = vmul.f32 %v1105, %v1102
        %v1108 = vmul.f32 %v1105, %v1103
        %v1109 = vmul.f32 %v1105, %v1104
        %v1110 = vld [vmem:[%s1098 + $0x1] sm:$0x1]
        %v1111 = vld [vmem:[%s1100 + $0x1] sm:$0xff]
        %v1112 = vld [vmem:[%s1100 + $0x9] sm:$0xff]
        %v1113 = vld [vmem:[%s1100 + $0x11] sm:$0xff]
        %v1114 = vld [vmem:[%s1100 + $0x19] sm:$0xff]
        %v1115 = vperm.slane %v1110, 0
        %v1116 = vmul.f32 %v1115, %v1111
        %v1117 = vmul.f32 %v1115, %v1112
        %v1118 = vmul.f32 %v1115, %v1113
        %v1119 = vmul.f32 %v1115, %v1114
        %v1120 = vadd.f32 %v1106, %v1116
        %v1121 = vadd.f32 %v1107, %v1117
        %v1122 = vadd.f32 %v1108, %v1118
        %v1123 = vadd.f32 %v1109, %v1119
        %v1124 = vld [vmem:[%s1098 + $0x2] sm:$0x1]
        %v1125 = vld [vmem:[%s1100 + $0x2] sm:$0xff]
        %v1126 = vld [vmem:[%s1100 + $0xa] sm:$0xff]
        %v1127 = vld [vmem:[%s1100 + $0x12] sm:$0xff]
        %v1128 = vld [vmem:[%s1100 + $0x1a] sm:$0xff]
        %v1129 = vperm.slane %v1124, 0
        %v1130 = vmul.f32 %v1129, %v1125
        %v1131 = vmul.f32 %v1129, %v1126
        %v1132 = vmul.f32 %v1129, %v1127
        %v1133 = vmul.f32 %v1129, %v1128
        %v1134 = vadd.f32 %v1120, %v1130
        %v1135 = vadd.f32 %v1121, %v1131
        %v1136 = vadd.f32 %v1122, %v1132
        %v1137 = vadd.f32 %v1123, %v1133
        %v1138 = vld [vmem:[%s1098 + $0x3] sm:$0x1]
        %v1139 = vld [vmem:[%s1100 + $0x3] sm:$0xff]
        %v1140 = vld [vmem:[%s1100 + $0xb] sm:$0xff]
        %v1141 = vld [vmem:[%s1100 + $0x13] sm:$0xff]
        %v1142 = vld [vmem:[%s1100 + $0x1b] sm:$0xff]
        %v1143 = vperm.slane %v1138, 0
        %v1144 = vmul.f32 %v1143, %v1139
        %v1145 = vmul.f32 %v1143, %v1140
        %v1146 = vmul.f32 %v1143, %v1141
        %v1147 = vmul.f32 %v1143, %v1142
        %v1148 = vadd.f32 %v1134, %v1144
        %v1149 = vadd.f32 %v1135, %v1145
        %v1150 = vadd.f32 %v1136, %v1146
        %v1151 = vadd.f32 %v1137, %v1147
        %v1152 = vld [vmem:[%s1098 + $0x4] sm:$0x1]
        %v1153 = vld [vmem:[%s1100 + $0x4] sm:$0xff]
        %v1154 = vld [vmem:[%s1100 + $0xc] sm:$0xff]
        %v1155 = vld [vmem:[%s1100 + $0x14] sm:$0xff]
        %v1156 = vld [vmem:[%s1100 + $0x1c] sm:$0xff]
        %v1157 = vperm.slane %v1152, 0
        %v1158 = vmul.f32 %v1157, %v1153
        %v1159 = vmul.f32 %v1157, %v1154
        %v1160 = vmul.f32 %v1157, %v1155
        %v1161 = vmul.f32 %v1157, %v1156
        %v1162 = vadd.f32 %v1148, %v1158
        %v1163 = vadd.f32 %v1149, %v1159
        %v1164 = vadd.f32 %v1150, %v1160
        %v1165 = vadd.f32 %v1151, %v1161
        %v1166 = vld [vmem:[%s1098 + $0x5] sm:$0x1]
        %v1167 = vld [vmem:[%s1100 + $0x5] sm:$0xff]
        %v1168 = vld [vmem:[%s1100 + $0xd] sm:$0xff]
        %v1169 = vld [vmem:[%s1100 + $0x15] sm:$0xff]
        %v1170 = vld [vmem:[%s1100 + $0x1d] sm:$0xff]
        %v1171 = vperm.slane %v1166, 0
        %v1172 = vmul.f32 %v1171, %v1167
        %v1173 = vmul.f32 %v1171, %v1168
        %v1174 = vmul.f32 %v1171, %v1169
        %v1175 = vmul.f32 %v1171, %v1170
        %v1176 = vadd.f32 %v1162, %v1172
        %v1177 = vadd.f32 %v1163, %v1173
        %v1178 = vadd.f32 %v1164, %v1174
        %v1179 = vadd.f32 %v1165, %v1175
        %v1180 = vld [vmem:[%s1098 + $0x6] sm:$0x1]
        %v1181 = vld [vmem:[%s1100 + $0x6] sm:$0xff]
        %v1182 = vld [vmem:[%s1100 + $0xe] sm:$0xff]
        %v1183 = vld [vmem:[%s1100 + $0x16] sm:$0xff]
        %v1184 = vld [vmem:[%s1100 + $0x1e] sm:$0xff]
        %v1185 = vperm.slane %v1180, 0
        %v1186 = vmul.f32 %v1185, %v1181
        %v1187 = vmul.f32 %v1185, %v1182
        %v1188 = vmul.f32 %v1185, %v1183
        %v1189 = vmul.f32 %v1185, %v1184
        %v1190 = vadd.f32 %v1176, %v1186
        %v1191 = vadd.f32 %v1177, %v1187
        %v1192 = vadd.f32 %v1178, %v1188
        %v1193 = vadd.f32 %v1179, %v1189
        %1194 = vrot.lane.b32.xlu0 %v1190, 3
        %v1195 = vpop.permute.xlu0 %1194
        %1196 = vrot.lane.b32.xlu0 %v1191, 3
        %v1197 = vpop.permute.xlu0 %1196
        %1198 = vrot.lane.b32.xlu0 %v1192, 3
        %v1199 = vpop.permute.xlu0 %1198
        %1200 = vrot.lane.b32.xlu0 %v1193, 3
        %v1201 = vpop.permute.xlu0 %1200
        %s1202 = scalar_lea.vmem %s234, 32
        %v1203 = vld [vmem:[%s1202] sm:$0x1]
        %v1204 = vperm.slane %v1203, 0
        %v1205 = vmul.f32 %v1204, %v1195
        %v1206 = vmul.f32 %v1204, %v1197
        %v1207 = vmul.f32 %v1204, %v1199
        %v1208 = vmul.f32 %v1204, %v1201
        %1209 = vrot.lane.b32.xlu0 %v1190, 2
        %v1210 = vpop.permute.xlu0 %1209
        %1211 = vrot.lane.b32.xlu0 %v1191, 2
        %v1212 = vpop.permute.xlu0 %1211
        %1213 = vrot.lane.b32.xlu0 %v1192, 2
        %v1214 = vpop.permute.xlu0 %1213
        %1215 = vrot.lane.b32.xlu0 %v1193, 2
        %v1216 = vpop.permute.xlu0 %1215
        %v1217 = vld [vmem:[%s1202 + $0x1] sm:$0x1]
        %v1218 = vperm.slane %v1217, 0
        %v1219 = vmul.f32 %v1218, %v1210
        %v1220 = vmul.f32 %v1218, %v1212
        %v1221 = vmul.f32 %v1218, %v1214
        %v1222 = vmul.f32 %v1218, %v1216
        %v1223 = vadd.f32 %v1205, %v1219
        %v1224 = vadd.f32 %v1206, %v1220
        %v1225 = vadd.f32 %v1207, %v1221
        %v1226 = vadd.f32 %v1208, %v1222
        %1227 = vrot.lane.b32.xlu0 %v1190, 1
        %v1228 = vpop.permute.xlu0 %1227
        %1229 = vrot.lane.b32.xlu0 %v1191, 1
        %v1230 = vpop.permute.xlu0 %1229
        %1231 = vrot.lane.b32.xlu0 %v1192, 1
        %v1232 = vpop.permute.xlu0 %1231
        %1233 = vrot.lane.b32.xlu0 %v1193, 1
        %v1234 = vpop.permute.xlu0 %1233
        %v1235 = vld [vmem:[%s1202 + $0x2] sm:$0x1]
        %v1236 = vperm.slane %v1235, 0
        %v1237 = vmul.f32 %v1236, %v1228
        %v1238 = vmul.f32 %v1236, %v1230
        %v1239 = vmul.f32 %v1236, %v1232
        %v1240 = vmul.f32 %v1236, %v1234
        %v1241 = vadd.f32 %v1223, %v1237
        %v1242 = vadd.f32 %v1224, %v1238
        %v1243 = vadd.f32 %v1225, %v1239
        %v1244 = vadd.f32 %v1226, %v1240
        %v1245 = vld [vmem:[%s1202 + $0x3] sm:$0x1]
        %v1246 = vperm.slane %v1245, 0
        %v1247 = vmul.f32 %v1246, %v1190
        %v1248 = vmul.f32 %v1246, %v1191
        %v1249 = vmul.f32 %v1246, %v1192
        %v1250 = vmul.f32 %v1246, %v1193
        %v1251 = vadd.f32 %v1241, %v1247
        %v1252 = vadd.f32 %v1242, %v1248
        %v1253 = vadd.f32 %v1243, %v1249
        %v1254 = vadd.f32 %v1244, %v1250
        %1255 = vrot.lane.b32.xlu0 %v1190, 127
        %v1256 = vpop.permute.xlu0 %1255
        %1257 = vrot.lane.b32.xlu0 %v1191, 127
        %v1258 = vpop.permute.xlu0 %1257
        %1259 = vrot.lane.b32.xlu0 %v1192, 127
        %v1260 = vpop.permute.xlu0 %1259
        %1261 = vrot.lane.b32.xlu0 %v1193, 127
        %v1262 = vpop.permute.xlu0 %1261
        %v1263 = vld [vmem:[%s1202 + $0x4] sm:$0x1]
        %v1264 = vperm.slane %v1263, 0
        %v1265 = vmul.f32 %v1264, %v1256
        %v1266 = vmul.f32 %v1264, %v1258
        %v1267 = vmul.f32 %v1264, %v1260
        %v1268 = vmul.f32 %v1264, %v1262
        %v1269 = vadd.f32 %v1251, %v1265
        %v1270 = vadd.f32 %v1252, %v1266
        %v1271 = vadd.f32 %v1253, %v1267
        %v1272 = vadd.f32 %v1254, %v1268
        %1273 = vrot.lane.b32.xlu0 %v1190, 126
        %v1274 = vpop.permute.xlu0 %1273
        %1275 = vrot.lane.b32.xlu0 %v1191, 126
        %v1276 = vpop.permute.xlu0 %1275
        %1277 = vrot.lane.b32.xlu0 %v1192, 126
        %v1278 = vpop.permute.xlu0 %1277
        %1279 = vrot.lane.b32.xlu0 %v1193, 126
        %v1280 = vpop.permute.xlu0 %1279
        %v1281 = vld [vmem:[%s1202 + $0x5] sm:$0x1]
        %v1282 = vperm.slane %v1281, 0
        %v1283 = vmul.f32 %v1282, %v1274
        %v1284 = vmul.f32 %v1282, %v1276
        %v1285 = vmul.f32 %v1282, %v1278
        %v1286 = vmul.f32 %v1282, %v1280
        %v1287 = vadd.f32 %v1269, %v1283
        %v1288 = vadd.f32 %v1270, %v1284
        %v1289 = vadd.f32 %v1271, %v1285
        %v1290 = vadd.f32 %v1272, %v1286
        %1291 = vrot.lane.b32.xlu0 %v1190, 125
        %v1292 = vpop.permute.xlu0 %1291
        %1293 = vrot.lane.b32.xlu0 %v1191, 125
        %v1294 = vpop.permute.xlu0 %1293
        %1295 = vrot.lane.b32.xlu0 %v1192, 125
        %v1296 = vpop.permute.xlu0 %1295
        %1297 = vrot.lane.b32.xlu0 %v1193, 125
        %v1298 = vpop.permute.xlu0 %1297
        %v1299 = vld [vmem:[%s1202 + $0x6] sm:$0x1]
        %v1300 = vperm.slane %v1299, 0
        %v1301 = vmul.f32 %v1300, %v1292
        %v1302 = vmul.f32 %v1300, %v1294
        %v1303 = vmul.f32 %v1300, %v1296
        %v1304 = vmul.f32 %v1300, %v1298
        %v1305 = vadd.f32 %v1287, %v1301
        %v1306 = vadd.f32 %v1288, %v1302
        %v1307 = vadd.f32 %v1289, %v1303
        %v1308 = vadd.f32 %v1290, %v1304
        %s1309 = scalar_lea.vmem %s223, 128 [#allocation5]
        %1310 = vst [vmem:[%s1309] sm:$0xff] %v1305
        %1311 = vst [vmem:[%s1309 + $0x8] sm:$0xff] %v1306
        %1312 = vst [vmem:[%s1309 + $0x10] sm:$0xff] %v1307
        %1313 = vst [vmem:[%s1309 + $0x18] sm:$0xff] %v1308
        %s1314 = scalar_lea.vmem %s228, 40
        %v1315 = vld [vmem:[%s1314] sm:$0x1]
        %s1316 = scalar_lea.vmem %s190, 200 [#allocation2]
        %v1317 = vld [vmem:[%s1316] sm:$0xff]
        %v1318 = vld [vmem:[%s1316 + $0x8] sm:$0xff]
        %v1319 = vld [vmem:[%s1316 + $0x10] sm:$0xff]
        %v1320 = vld [vmem:[%s1316 + $0x18] sm:$0xff]
        %v1321 = vperm.slane %v1315, 0
        %v1322 = vmul.f32 %v1321, %v1317
        %v1323 = vmul.f32 %v1321, %v1318
        %v1324 = vmul.f32 %v1321, %v1319
        %v1325 = vmul.f32 %v1321, %v1320
        %v1326 = vld [vmem:[%s1314 + $0x1] sm:$0x1]
        %v1327 = vld [vmem:[%s1316 + $0x1] sm:$0xff]
        %v1328 = vld [vmem:[%s1316 + $0x9] sm:$0xff]
        %v1329 = vld [vmem:[%s1316 + $0x11] sm:$0xff]
        %v1330 = vld [vmem:[%s1316 + $0x19] sm:$0xff]
        %v1331 = vperm.slane %v1326, 0
        %v1332 = vmul.f32 %v1331, %v1327
        %v1333 = vmul.f32 %v1331, %v1328
        %v1334 = vmul.f32 %v1331, %v1329
        %v1335 = vmul.f32 %v1331, %v1330
        %v1336 = vadd.f32 %v1322, %v1332
        %v1337 = vadd.f32 %v1323, %v1333
        %v1338 = vadd.f32 %v1324, %v1334
        %v1339 = vadd.f32 %v1325, %v1335
        %v1340 = vld [vmem:[%s1314 + $0x2] sm:$0x1]
        %v1341 = vld [vmem:[%s1316 + $0x2] sm:$0xff]
        %v1342 = vld [vmem:[%s1316 + $0xa] sm:$0xff]
        %v1343 = vld [vmem:[%s1316 + $0x12] sm:$0xff]
        %v1344 = vld [vmem:[%s1316 + $0x1a] sm:$0xff]
        %v1345 = vperm.slane %v1340, 0
        %v1346 = vmul.f32 %v1345, %v1341
        %v1347 = vmul.f32 %v1345, %v1342
        %v1348 = vmul.f32 %v1345, %v1343
        %v1349 = vmul.f32 %v1345, %v1344
        %v1350 = vadd.f32 %v1336, %v1346
        %v1351 = vadd.f32 %v1337, %v1347
        %v1352 = vadd.f32 %v1338, %v1348
        %v1353 = vadd.f32 %v1339, %v1349
        %v1354 = vld [vmem:[%s1314 + $0x3] sm:$0x1]
        %v1355 = vld [vmem:[%s1316 + $0x3] sm:$0xff]
        %v1356 = vld [vmem:[%s1316 + $0xb] sm:$0xff]
        %v1357 = vld [vmem:[%s1316 + $0x13] sm:$0xff]
        %v1358 = vld [vmem:[%s1316 + $0x1b] sm:$0xff]
        %v1359 = vperm.slane %v1354, 0
        %v1360 = vmul.f32 %v1359, %v1355
        %v1361 = vmul.f32 %v1359, %v1356
        %v1362 = vmul.f32 %v1359, %v1357
        %v1363 = vmul.f32 %v1359, %v1358
        %v1364 = vadd.f32 %v1350, %v1360
        %v1365 = vadd.f32 %v1351, %v1361
        %v1366 = vadd.f32 %v1352, %v1362
        %v1367 = vadd.f32 %v1353, %v1363
        %v1368 = vld [vmem:[%s1314 + $0x4] sm:$0x1]
        %v1369 = vld [vmem:[%s1316 + $0x4] sm:$0xff]
        %v1370 = vld [vmem:[%s1316 + $0xc] sm:$0xff]
        %v1371 = vld [vmem:[%s1316 + $0x14] sm:$0xff]
        %v1372 = vld [vmem:[%s1316 + $0x1c] sm:$0xff]
        %v1373 = vperm.slane %v1368, 0
        %v1374 = vmul.f32 %v1373, %v1369
        %v1375 = vmul.f32 %v1373, %v1370
        %v1376 = vmul.f32 %v1373, %v1371
        %v1377 = vmul.f32 %v1373, %v1372
        %v1378 = vadd.f32 %v1364, %v1374
        %v1379 = vadd.f32 %v1365, %v1375
        %v1380 = vadd.f32 %v1366, %v1376
        %v1381 = vadd.f32 %v1367, %v1377
        %v1382 = vld [vmem:[%s1314 + $0x5] sm:$0x1]
        %v1383 = vld [vmem:[%s1316 + $0x5] sm:$0xff]
        %v1384 = vld [vmem:[%s1316 + $0xd] sm:$0xff]
        %v1385 = vld [vmem:[%s1316 + $0x15] sm:$0xff]
        %v1386 = vld [vmem:[%s1316 + $0x1d] sm:$0xff]
        %v1387 = vperm.slane %v1382, 0
        %v1388 = vmul.f32 %v1387, %v1383
        %v1389 = vmul.f32 %v1387, %v1384
        %v1390 = vmul.f32 %v1387, %v1385
        %v1391 = vmul.f32 %v1387, %v1386
        %v1392 = vadd.f32 %v1378, %v1388
        %v1393 = vadd.f32 %v1379, %v1389
        %v1394 = vadd.f32 %v1380, %v1390
        %v1395 = vadd.f32 %v1381, %v1391
        %v1396 = vld [vmem:[%s1314 + $0x6] sm:$0x1]
        %v1397 = vld [vmem:[%s1316 + $0x6] sm:$0xff]
        %v1398 = vld [vmem:[%s1316 + $0xe] sm:$0xff]
        %v1399 = vld [vmem:[%s1316 + $0x16] sm:$0xff]
        %v1400 = vld [vmem:[%s1316 + $0x1e] sm:$0xff]
        %v1401 = vperm.slane %v1396, 0
        %v1402 = vmul.f32 %v1401, %v1397
        %v1403 = vmul.f32 %v1401, %v1398
        %v1404 = vmul.f32 %v1401, %v1399
        %v1405 = vmul.f32 %v1401, %v1400
        %v1406 = vadd.f32 %v1392, %v1402
        %v1407 = vadd.f32 %v1393, %v1403
        %v1408 = vadd.f32 %v1394, %v1404
        %v1409 = vadd.f32 %v1395, %v1405
        %1410 = vrot.lane.b32.xlu0 %v1406, 3
        %v1411 = vpop.permute.xlu0 %1410
        %1412 = vrot.lane.b32.xlu0 %v1407, 3
        %v1413 = vpop.permute.xlu0 %1412
        %1414 = vrot.lane.b32.xlu0 %v1408, 3
        %v1415 = vpop.permute.xlu0 %1414
        %1416 = vrot.lane.b32.xlu0 %v1409, 3
        %v1417 = vpop.permute.xlu0 %1416
        %s1418 = scalar_lea.vmem %s234, 40
        %v1419 = vld [vmem:[%s1418] sm:$0x1]
        %v1420 = vperm.slane %v1419, 0
        %v1421 = vmul.f32 %v1420, %v1411
        %v1422 = vmul.f32 %v1420, %v1413
        %v1423 = vmul.f32 %v1420, %v1415
        %v1424 = vmul.f32 %v1420, %v1417
        %1425 = vrot.lane.b32.xlu0 %v1406, 2
        %v1426 = vpop.permute.xlu0 %1425
        %1427 = vrot.lane.b32.xlu0 %v1407, 2
        %v1428 = vpop.permute.xlu0 %1427
        %1429 = vrot.lane.b32.xlu0 %v1408, 2
        %v1430 = vpop.permute.xlu0 %1429
        %1431 = vrot.lane.b32.xlu0 %v1409, 2
        %v1432 = vpop.permute.xlu0 %1431
        %v1433 = vld [vmem:[%s1418 + $0x1] sm:$0x1]
        %v1434 = vperm.slane %v1433, 0
        %v1435 = vmul.f32 %v1434, %v1426
        %v1436 = vmul.f32 %v1434, %v1428
        %v1437 = vmul.f32 %v1434, %v1430
        %v1438 = vmul.f32 %v1434, %v1432
        %v1439 = vadd.f32 %v1421, %v1435
        %v1440 = vadd.f32 %v1422, %v1436
        %v1441 = vadd.f32 %v1423, %v1437
        %v1442 = vadd.f32 %v1424, %v1438
        %1443 = vrot.lane.b32.xlu0 %v1406, 1
        %v1444 = vpop.permute.xlu0 %1443
        %1445 = vrot.lane.b32.xlu0 %v1407, 1
        %v1446 = vpop.permute.xlu0 %1445
        %1447 = vrot.lane.b32.xlu0 %v1408, 1
        %v1448 = vpop.permute.xlu0 %1447
        %1449 = vrot.lane.b32.xlu0 %v1409, 1
        %v1450 = vpop.permute.xlu0 %1449
        %v1451 = vld [vmem:[%s1418 + $0x2] sm:$0x1]
        %v1452 = vperm.slane %v1451, 0
        %v1453 = vmul.f32 %v1452, %v1444
        %v1454 = vmul.f32 %v1452, %v1446
        %v1455 = vmul.f32 %v1452, %v1448
        %v1456 = vmul.f32 %v1452, %v1450
        %v1457 = vadd.f32 %v1439, %v1453
        %v1458 = vadd.f32 %v1440, %v1454
        %v1459 = vadd.f32 %v1441, %v1455
        %v1460 = vadd.f32 %v1442, %v1456
        %v1461 = vld [vmem:[%s1418 + $0x3] sm:$0x1]
        %v1462 = vperm.slane %v1461, 0
        %v1463 = vmul.f32 %v1462, %v1406
        %v1464 = vmul.f32 %v1462, %v1407
        %v1465 = vmul.f32 %v1462, %v1408
        %v1466 = vmul.f32 %v1462, %v1409
        %v1467 = vadd.f32 %v1457, %v1463
        %v1468 = vadd.f32 %v1458, %v1464
        %v1469 = vadd.f32 %v1459, %v1465
        %v1470 = vadd.f32 %v1460, %v1466
        %1471 = vrot.lane.b32.xlu0 %v1406, 127
        %v1472 = vpop.permute.xlu0 %1471
        %1473 = vrot.lane.b32.xlu0 %v1407, 127
        %v1474 = vpop.permute.xlu0 %1473
        %1475 = vrot.lane.b32.xlu0 %v1408, 127
        %v1476 = vpop.permute.xlu0 %1475
        %1477 = vrot.lane.b32.xlu0 %v1409, 127
        %v1478 = vpop.permute.xlu0 %1477
        %v1479 = vld [vmem:[%s1418 + $0x4] sm:$0x1]
        %v1480 = vperm.slane %v1479, 0
        %v1481 = vmul.f32 %v1480, %v1472
        %v1482 = vmul.f32 %v1480, %v1474
        %v1483 = vmul.f32 %v1480, %v1476
        %v1484 = vmul.f32 %v1480, %v1478
        %v1485 = vadd.f32 %v1467, %v1481
        %v1486 = vadd.f32 %v1468, %v1482
        %v1487 = vadd.f32 %v1469, %v1483
        %v1488 = vadd.f32 %v1470, %v1484
        %1489 = vrot.lane.b32.xlu0 %v1406, 126
        %v1490 = vpop.permute.xlu0 %1489
        %1491 = vrot.lane.b32.xlu0 %v1407, 126
        %v1492 = vpop.permute.xlu0 %1491
        %1493 = vrot.lane.b32.xlu0 %v1408, 126
        %v1494 = vpop.permute.xlu0 %1493
        %1495 = vrot.lane.b32.xlu0 %v1409, 126
        %v1496 = vpop.permute.xlu0 %1495
        %v1497 = vld [vmem:[%s1418 + $0x5] sm:$0x1]
        %v1498 = vperm.slane %v1497, 0
        %v1499 = vmul.f32 %v1498, %v1490
        %v1500 = vmul.f32 %v1498, %v1492
        %v1501 = vmul.f32 %v1498, %v1494
        %v1502 = vmul.f32 %v1498, %v1496
        %v1503 = vadd.f32 %v1485, %v1499
        %v1504 = vadd.f32 %v1486, %v1500
        %v1505 = vadd.f32 %v1487, %v1501
        %v1506 = vadd.f32 %v1488, %v1502
        %1507 = vrot.lane.b32.xlu0 %v1406, 125
        %v1508 = vpop.permute.xlu0 %1507
        %1509 = vrot.lane.b32.xlu0 %v1407, 125
        %v1510 = vpop.permute.xlu0 %1509
        %1511 = vrot.lane.b32.xlu0 %v1408, 125
        %v1512 = vpop.permute.xlu0 %1511
        %1513 = vrot.lane.b32.xlu0 %v1409, 125
        %v1514 = vpop.permute.xlu0 %1513
        %v1515 = vld [vmem:[%s1418 + $0x6] sm:$0x1]
        %v1516 = vperm.slane %v1515, 0
        %v1517 = vmul.f32 %v1516, %v1508
        %v1518 = vmul.f32 %v1516, %v1510
        %v1519 = vmul.f32 %v1516, %v1512
        %v1520 = vmul.f32 %v1516, %v1514
        %v1521 = vadd.f32 %v1503, %v1517
        %v1522 = vadd.f32 %v1504, %v1518
        %v1523 = vadd.f32 %v1505, %v1519
        %v1524 = vadd.f32 %v1506, %v1520
        %s1525 = scalar_lea.vmem %s223, 160 [#allocation5]
        %1526 = vst [vmem:[%s1525] sm:$0xff] %v1521
        %1527 = vst [vmem:[%s1525 + $0x8] sm:$0xff] %v1522
        %1528 = vst [vmem:[%s1525 + $0x10] sm:$0xff] %v1523
        %1529 = vst [vmem:[%s1525 + $0x18] sm:$0xff] %v1524
        %s1530 = scalar_lea.vmem %s228, 48
        %v1531 = vld [vmem:[%s1530] sm:$0x1]
        %s1532 = scalar_lea.vmem %s190, 240 [#allocation2]
        %v1533 = vld [vmem:[%s1532] sm:$0xff]
        %v1534 = vld [vmem:[%s1532 + $0x8] sm:$0xff]
        %v1535 = vld [vmem:[%s1532 + $0x10] sm:$0xff]
        %v1536 = vld [vmem:[%s1532 + $0x18] sm:$0xff]
        %v1537 = vperm.slane %v1531, 0
        %v1538 = vmul.f32 %v1537, %v1533
        %v1539 = vmul.f32 %v1537, %v1534
        %v1540 = vmul.f32 %v1537, %v1535
        %v1541 = vmul.f32 %v1537, %v1536
        %v1542 = vld [vmem:[%s1530 + $0x1] sm:$0x1]
        %v1543 = vld [vmem:[%s1532 + $0x1] sm:$0xff]
        %v1544 = vld [vmem:[%s1532 + $0x9] sm:$0xff]
        %v1545 = vld [vmem:[%s1532 + $0x11] sm:$0xff]
        %v1546 = vld [vmem:[%s1532 + $0x19] sm:$0xff]
        %v1547 = vperm.slane %v1542, 0
        %v1548 = vmul.f32 %v1547, %v1543
        %v1549 = vmul.f32 %v1547, %v1544
        %v1550 = vmul.f32 %v1547, %v1545
        %v1551 = vmul.f32 %v1547, %v1546
        %v1552 = vadd.f32 %v1538, %v1548
        %v1553 = vadd.f32 %v1539, %v1549
        %v1554 = vadd.f32 %v1540, %v1550
        %v1555 = vadd.f32 %v1541, %v1551
        %v1556 = vld [vmem:[%s1530 + $0x2] sm:$0x1]
        %v1557 = vld [vmem:[%s1532 + $0x2] sm:$0xff]
        %v1558 = vld [vmem:[%s1532 + $0xa] sm:$0xff]
        %v1559 = vld [vmem:[%s1532 + $0x12] sm:$0xff]
        %v1560 = vld [vmem:[%s1532 + $0x1a] sm:$0xff]
        %v1561 = vperm.slane %v1556, 0
        %v1562 = vmul.f32 %v1561, %v1557
        %v1563 = vmul.f32 %v1561, %v1558
        %v1564 = vmul.f32 %v1561, %v1559
        %v1565 = vmul.f32 %v1561, %v1560
        %v1566 = vadd.f32 %v1552, %v1562
        %v1567 = vadd.f32 %v1553, %v1563
        %v1568 = vadd.f32 %v1554, %v1564
        %v1569 = vadd.f32 %v1555, %v1565
        %v1570 = vld [vmem:[%s1530 + $0x3] sm:$0x1]
        %v1571 = vld [vmem:[%s1532 + $0x3] sm:$0xff]
        %v1572 = vld [vmem:[%s1532 + $0xb] sm:$0xff]
        %v1573 = vld [vmem:[%s1532 + $0x13] sm:$0xff]
        %v1574 = vld [vmem:[%s1532 + $0x1b] sm:$0xff]
        %v1575 = vperm.slane %v1570, 0
        %v1576 = vmul.f32 %v1575, %v1571
        %v1577 = vmul.f32 %v1575, %v1572
        %v1578 = vmul.f32 %v1575, %v1573
        %v1579 = vmul.f32 %v1575, %v1574
        %v1580 = vadd.f32 %v1566, %v1576
        %v1581 = vadd.f32 %v1567, %v1577
        %v1582 = vadd.f32 %v1568, %v1578
        %v1583 = vadd.f32 %v1569, %v1579
        %v1584 = vld [vmem:[%s1530 + $0x4] sm:$0x1]
        %v1585 = vld [vmem:[%s1532 + $0x4] sm:$0xff]
        %v1586 = vld [vmem:[%s1532 + $0xc] sm:$0xff]
        %v1587 = vld [vmem:[%s1532 + $0x14] sm:$0xff]
        %v1588 = vld [vmem:[%s1532 + $0x1c] sm:$0xff]
        %v1589 = vperm.slane %v1584, 0
        %v1590 = vmul.f32 %v1589, %v1585
        %v1591 = vmul.f32 %v1589, %v1586
        %v1592 = vmul.f32 %v1589, %v1587
        %v1593 = vmul.f32 %v1589, %v1588
        %v1594 = vadd.f32 %v1580, %v1590
        %v1595 = vadd.f32 %v1581, %v1591
        %v1596 = vadd.f32 %v1582, %v1592
        %v1597 = vadd.f32 %v1583, %v1593
        %v1598 = vld [vmem:[%s1530 + $0x5] sm:$0x1]
        %v1599 = vld [vmem:[%s1532 + $0x5] sm:$0xff]
        %v1600 = vld [vmem:[%s1532 + $0xd] sm:$0xff]
        %v1601 = vld [vmem:[%s1532 + $0x15] sm:$0xff]
        %v1602 = vld [vmem:[%s1532 + $0x1d] sm:$0xff]
        %v1603 = vperm.slane %v1598, 0
        %v1604 = vmul.f32 %v1603, %v1599
        %v1605 = vmul.f32 %v1603, %v1600
        %v1606 = vmul.f32 %v1603, %v1601
        %v1607 = vmul.f32 %v1603, %v1602
        %v1608 = vadd.f32 %v1594, %v1604
        %v1609 = vadd.f32 %v1595, %v1605
        %v1610 = vadd.f32 %v1596, %v1606
        %v1611 = vadd.f32 %v1597, %v1607
        %v1612 = vld [vmem:[%s1530 + $0x6] sm:$0x1]
        %v1613 = vld [vmem:[%s1532 + $0x6] sm:$0xff]
        %v1614 = vld [vmem:[%s1532 + $0xe] sm:$0xff]
        %v1615 = vld [vmem:[%s1532 + $0x16] sm:$0xff]
        %v1616 = vld [vmem:[%s1532 + $0x1e] sm:$0xff]
        %v1617 = vperm.slane %v1612, 0
        %v1618 = vmul.f32 %v1617, %v1613
        %v1619 = vmul.f32 %v1617, %v1614
        %v1620 = vmul.f32 %v1617, %v1615
        %v1621 = vmul.f32 %v1617, %v1616
        %v1622 = vadd.f32 %v1608, %v1618
        %v1623 = vadd.f32 %v1609, %v1619
        %v1624 = vadd.f32 %v1610, %v1620
        %v1625 = vadd.f32 %v1611, %v1621
        %1626 = vrot.lane.b32.xlu0 %v1622, 3
        %v1627 = vpop.permute.xlu0 %1626
        %1628 = vrot.lane.b32.xlu0 %v1623, 3
        %v1629 = vpop.permute.xlu0 %1628
        %1630 = vrot.lane.b32.xlu0 %v1624, 3
        %v1631 = vpop.permute.xlu0 %1630
        %1632 = vrot.lane.b32.xlu0 %v1625, 3
        %v1633 = vpop.permute.xlu0 %1632
        %s1634 = scalar_lea.vmem %s234, 48
        %v1635 = vld [vmem:[%s1634] sm:$0x1]
        %v1636 = vperm.slane %v1635, 0
        %v1637 = vmul.f32 %v1636, %v1627
        %v1638 = vmul.f32 %v1636, %v1629
        %v1639 = vmul.f32 %v1636, %v1631
        %v1640 = vmul.f32 %v1636, %v1633
        %1641 = vrot.lane.b32.xlu0 %v1622, 2
        %v1642 = vpop.permute.xlu0 %1641
        %1643 = vrot.lane.b32.xlu0 %v1623, 2
        %v1644 = vpop.permute.xlu0 %1643
        %1645 = vrot.lane.b32.xlu0 %v1624, 2
        %v1646 = vpop.permute.xlu0 %1645
        %1647 = vrot.lane.b32.xlu0 %v1625, 2
        %v1648 = vpop.permute.xlu0 %1647
        %v1649 = vld [vmem:[%s1634 + $0x1] sm:$0x1]
        %v1650 = vperm.slane %v1649, 0
        %v1651 = vmul.f32 %v1650, %v1642
        %v1652 = vmul.f32 %v1650, %v1644
        %v1653 = vmul.f32 %v1650, %v1646
        %v1654 = vmul.f32 %v1650, %v1648
        %v1655 = vadd.f32 %v1637, %v1651
        %v1656 = vadd.f32 %v1638, %v1652
        %v1657 = vadd.f32 %v1639, %v1653
        %v1658 = vadd.f32 %v1640, %v1654
        %1659 = vrot.lane.b32.xlu0 %v1622, 1
        %v1660 = vpop.permute.xlu0 %1659
        %1661 = vrot.lane.b32.xlu0 %v1623, 1
        %v1662 = vpop.permute.xlu0 %1661
        %1663 = vrot.lane.b32.xlu0 %v1624, 1
        %v1664 = vpop.permute.xlu0 %1663
        %1665 = vrot.lane.b32.xlu0 %v1625, 1
        %v1666 = vpop.permute.xlu0 %1665
        %v1667 = vld [vmem:[%s1634 + $0x2] sm:$0x1]
        %v1668 = vperm.slane %v1667, 0
        %v1669 = vmul.f32 %v1668, %v1660
        %v1670 = vmul.f32 %v1668, %v1662
        %v1671 = vmul.f32 %v1668, %v1664
        %v1672 = vmul.f32 %v1668, %v1666
        %v1673 = vadd.f32 %v1655, %v1669
        %v1674 = vadd.f32 %v1656, %v1670
        %v1675 = vadd.f32 %v1657, %v1671
        %v1676 = vadd.f32 %v1658, %v1672
        %v1677 = vld [vmem:[%s1634 + $0x3] sm:$0x1]
        %v1678 = vperm.slane %v1677, 0
        %v1679 = vmul.f32 %v1678, %v1622
        %v1680 = vmul.f32 %v1678, %v1623
        %v1681 = vmul.f32 %v1678, %v1624
        %v1682 = vmul.f32 %v1678, %v1625
        %v1683 = vadd.f32 %v1673, %v1679
        %v1684 = vadd.f32 %v1674, %v1680
        %v1685 = vadd.f32 %v1675, %v1681
        %v1686 = vadd.f32 %v1676, %v1682
        %1687 = vrot.lane.b32.xlu0 %v1622, 127
        %v1688 = vpop.permute.xlu0 %1687
        %1689 = vrot.lane.b32.xlu0 %v1623, 127
        %v1690 = vpop.permute.xlu0 %1689
        %1691 = vrot.lane.b32.xlu0 %v1624, 127
        %v1692 = vpop.permute.xlu0 %1691
        %1693 = vrot.lane.b32.xlu0 %v1625, 127
        %v1694 = vpop.permute.xlu0 %1693
        %v1695 = vld [vmem:[%s1634 + $0x4] sm:$0x1]
        %v1696 = vperm.slane %v1695, 0
        %v1697 = vmul.f32 %v1696, %v1688
        %v1698 = vmul.f32 %v1696, %v1690
        %v1699 = vmul.f32 %v1696, %v1692
        %v1700 = vmul.f32 %v1696, %v1694
        %v1701 = vadd.f32 %v1683, %v1697
        %v1702 = vadd.f32 %v1684, %v1698
        %v1703 = vadd.f32 %v1685, %v1699
        %v1704 = vadd.f32 %v1686, %v1700
        %1705 = vrot.lane.b32.xlu0 %v1622, 126
        %v1706 = vpop.permute.xlu0 %1705
        %1707 = vrot.lane.b32.xlu0 %v1623, 126
        %v1708 = vpop.permute.xlu0 %1707
        %1709 = vrot.lane.b32.xlu0 %v1624, 126
        %v1710 = vpop.permute.xlu0 %1709
        %1711 = vrot.lane.b32.xlu0 %v1625, 126
        %v1712 = vpop.permute.xlu0 %1711
        %v1713 = vld [vmem:[%s1634 + $0x5] sm:$0x1]
        %v1714 = vperm.slane %v1713, 0
        %v1715 = vmul.f32 %v1714, %v1706
        %v1716 = vmul.f32 %v1714, %v1708
        %v1717 = vmul.f32 %v1714, %v1710
        %v1718 = vmul.f32 %v1714, %v1712
        %v1719 = vadd.f32 %v1701, %v1715
        %v1720 = vadd.f32 %v1702, %v1716
        %v1721 = vadd.f32 %v1703, %v1717
        %v1722 = vadd.f32 %v1704, %v1718
        %1723 = vrot.lane.b32.xlu0 %v1622, 125
        %v1724 = vpop.permute.xlu0 %1723
        %1725 = vrot.lane.b32.xlu0 %v1623, 125
        %v1726 = vpop.permute.xlu0 %1725
        %1727 = vrot.lane.b32.xlu0 %v1624, 125
        %v1728 = vpop.permute.xlu0 %1727
        %1729 = vrot.lane.b32.xlu0 %v1625, 125
        %v1730 = vpop.permute.xlu0 %1729
        %v1731 = vld [vmem:[%s1634 + $0x6] sm:$0x1]
        %v1732 = vperm.slane %v1731, 0
        %v1733 = vmul.f32 %v1732, %v1724
        %v1734 = vmul.f32 %v1732, %v1726
        %v1735 = vmul.f32 %v1732, %v1728
        %v1736 = vmul.f32 %v1732, %v1730
        %v1737 = vadd.f32 %v1719, %v1733
        %v1738 = vadd.f32 %v1720, %v1734
        %v1739 = vadd.f32 %v1721, %v1735
        %v1740 = vadd.f32 %v1722, %v1736
        %s1741 = scalar_lea.vmem %s223, 192 [#allocation5]
        %1742 = vst [vmem:[%s1741] sm:$0xff] %v1737
        %1743 = vst [vmem:[%s1741 + $0x8] sm:$0xff] %v1738
        %1744 = vst [vmem:[%s1741 + $0x10] sm:$0xff] %v1739
        %1745 = vst [vmem:[%s1741 + $0x18] sm:$0xff] %v1740
        %s1746 = scalar_lea.vmem %s228, 56
        %v1747 = vld [vmem:[%s1746] sm:$0x1]
        %s1748 = scalar_lea.vmem %s190, 280 [#allocation2]
        %v1749 = vld [vmem:[%s1748] sm:$0xff]
        %v1750 = vld [vmem:[%s1748 + $0x8] sm:$0xff]
        %v1751 = vld [vmem:[%s1748 + $0x10] sm:$0xff]
        %v1752 = vld [vmem:[%s1748 + $0x18] sm:$0xff]
        %v1753 = vperm.slane %v1747, 0
        %v1754 = vmul.f32 %v1753, %v1749
        %v1755 = vmul.f32 %v1753, %v1750
        %v1756 = vmul.f32 %v1753, %v1751
        %v1757 = vmul.f32 %v1753, %v1752
        %v1758 = vld [vmem:[%s1746 + $0x1] sm:$0x1]
        %v1759 = vld [vmem:[%s1748 + $0x1] sm:$0xff]
        %v1760 = vld [vmem:[%s1748 + $0x9] sm:$0xff]
        %v1761 = vld [vmem:[%s1748 + $0x11] sm:$0xff]
        %v1762 = vld [vmem:[%s1748 + $0x19] sm:$0xff]
        %v1763 = vperm.slane %v1758, 0
        %v1764 = vmul.f32 %v1763, %v1759
        %v1765 = vmul.f32 %v1763, %v1760
        %v1766 = vmul.f32 %v1763, %v1761
        %v1767 = vmul.f32 %v1763, %v1762
        %v1768 = vadd.f32 %v1754, %v1764
        %v1769 = vadd.f32 %v1755, %v1765
        %v1770 = vadd.f32 %v1756, %v1766
        %v1771 = vadd.f32 %v1757, %v1767
        %v1772 = vld [vmem:[%s1746 + $0x2] sm:$0x1]
        %v1773 = vld [vmem:[%s1748 + $0x2] sm:$0xff]
        %v1774 = vld [vmem:[%s1748 + $0xa] sm:$0xff]
        %v1775 = vld [vmem:[%s1748 + $0x12] sm:$0xff]
        %v1776 = vld [vmem:[%s1748 + $0x1a] sm:$0xff]
        %v1777 = vperm.slane %v1772, 0
        %v1778 = vmul.f32 %v1777, %v1773
        %v1779 = vmul.f32 %v1777, %v1774
        %v1780 = vmul.f32 %v1777, %v1775
        %v1781 = vmul.f32 %v1777, %v1776
        %v1782 = vadd.f32 %v1768, %v1778
        %v1783 = vadd.f32 %v1769, %v1779
        %v1784 = vadd.f32 %v1770, %v1780
        %v1785 = vadd.f32 %v1771, %v1781
        %v1786 = vld [vmem:[%s1746 + $0x3] sm:$0x1]
        %v1787 = vld [vmem:[%s1748 + $0x3] sm:$0xff]
        %v1788 = vld [vmem:[%s1748 + $0xb] sm:$0xff]
        %v1789 = vld [vmem:[%s1748 + $0x13] sm:$0xff]
        %v1790 = vld [vmem:[%s1748 + $0x1b] sm:$0xff]
        %v1791 = vperm.slane %v1786, 0
        %v1792 = vmul.f32 %v1791, %v1787
        %v1793 = vmul.f32 %v1791, %v1788
        %v1794 = vmul.f32 %v1791, %v1789
        %v1795 = vmul.f32 %v1791, %v1790
        %v1796 = vadd.f32 %v1782, %v1792
        %v1797 = vadd.f32 %v1783, %v1793
        %v1798 = vadd.f32 %v1784, %v1794
        %v1799 = vadd.f32 %v1785, %v1795
        %v1800 = vld [vmem:[%s1746 + $0x4] sm:$0x1]
        %v1801 = vld [vmem:[%s1748 + $0x4] sm:$0xff]
        %v1802 = vld [vmem:[%s1748 + $0xc] sm:$0xff]
        %v1803 = vld [vmem:[%s1748 + $0x14] sm:$0xff]
        %v1804 = vld [vmem:[%s1748 + $0x1c] sm:$0xff]
        %v1805 = vperm.slane %v1800, 0
        %v1806 = vmul.f32 %v1805, %v1801
        %v1807 = vmul.f32 %v1805, %v1802
        %v1808 = vmul.f32 %v1805, %v1803
        %v1809 = vmul.f32 %v1805, %v1804
        %v1810 = vadd.f32 %v1796, %v1806
        %v1811 = vadd.f32 %v1797, %v1807
        %v1812 = vadd.f32 %v1798, %v1808
        %v1813 = vadd.f32 %v1799, %v1809
        %v1814 = vld [vmem:[%s1746 + $0x5] sm:$0x1]
        %v1815 = vld [vmem:[%s1748 + $0x5] sm:$0xff]
        %v1816 = vld [vmem:[%s1748 + $0xd] sm:$0xff]
        %v1817 = vld [vmem:[%s1748 + $0x15] sm:$0xff]
        %v1818 = vld [vmem:[%s1748 + $0x1d] sm:$0xff]
        %v1819 = vperm.slane %v1814, 0
        %v1820 = vmul.f32 %v1819, %v1815
        %v1821 = vmul.f32 %v1819, %v1816
        %v1822 = vmul.f32 %v1819, %v1817
        %v1823 = vmul.f32 %v1819, %v1818
        %v1824 = vadd.f32 %v1810, %v1820
        %v1825 = vadd.f32 %v1811, %v1821
        %v1826 = vadd.f32 %v1812, %v1822
        %v1827 = vadd.f32 %v1813, %v1823
        %v1828 = vld [vmem:[%s1746 + $0x6] sm:$0x1]
        %v1829 = vld [vmem:[%s1748 + $0x6] sm:$0xff]
        %v1830 = vld [vmem:[%s1748 + $0xe] sm:$0xff]
        %v1831 = vld [vmem:[%s1748 + $0x16] sm:$0xff]
        %v1832 = vld [vmem:[%s1748 + $0x1e] sm:$0xff]
        %v1833 = vperm.slane %v1828, 0
        %v1834 = vmul.f32 %v1833, %v1829
        %v1835 = vmul.f32 %v1833, %v1830
        %v1836 = vmul.f32 %v1833, %v1831
        %v1837 = vmul.f32 %v1833, %v1832
        %v1838 = vadd.f32 %v1824, %v1834
        %v1839 = vadd.f32 %v1825, %v1835
        %v1840 = vadd.f32 %v1826, %v1836
        %v1841 = vadd.f32 %v1827, %v1837
        %1842 = vrot.lane.b32.xlu0 %v1838, 3
        %v1843 = vpop.permute.xlu0 %1842
        %1844 = vrot.lane.b32.xlu0 %v1839, 3
        %v1845 = vpop.permute.xlu0 %1844
        %1846 = vrot.lane.b32.xlu0 %v1840, 3
        %v1847 = vpop.permute.xlu0 %1846
        %1848 = vrot.lane.b32.xlu0 %v1841, 3
        %v1849 = vpop.permute.xlu0 %1848
        %s1850 = scalar_lea.vmem %s234, 56
        %v1851 = vld [vmem:[%s1850] sm:$0x1]
        %v1852 = vperm.slane %v1851, 0
        %v1853 = vmul.f32 %v1852, %v1843
        %v1854 = vmul.f32 %v1852, %v1845
        %v1855 = vmul.f32 %v1852, %v1847
        %v1856 = vmul.f32 %v1852, %v1849
        %1857 = vrot.lane.b32.xlu0 %v1838, 2
        %v1858 = vpop.permute.xlu0 %1857
        %1859 = vrot.lane.b32.xlu0 %v1839, 2
        %v1860 = vpop.permute.xlu0 %1859
        %1861 = vrot.lane.b32.xlu0 %v1840, 2
        %v1862 = vpop.permute.xlu0 %1861
        %1863 = vrot.lane.b32.xlu0 %v1841, 2
        %v1864 = vpop.permute.xlu0 %1863
        %v1865 = vld [vmem:[%s1850 + $0x1] sm:$0x1]
        %v1866 = vperm.slane %v1865, 0
        %v1867 = vmul.f32 %v1866, %v1858
        %v1868 = vmul.f32 %v1866, %v1860
        %v1869 = vmul.f32 %v1866, %v1862
        %v1870 = vmul.f32 %v1866, %v1864
        %v1871 = vadd.f32 %v1853, %v1867
        %v1872 = vadd.f32 %v1854, %v1868
        %v1873 = vadd.f32 %v1855, %v1869
        %v1874 = vadd.f32 %v1856, %v1870
        %1875 = vrot.lane.b32.xlu0 %v1838, 1
        %v1876 = vpop.permute.xlu0 %1875
        %1877 = vrot.lane.b32.xlu0 %v1839, 1
        %v1878 = vpop.permute.xlu0 %1877
        %1879 = vrot.lane.b32.xlu0 %v1840, 1
        %v1880 = vpop.permute.xlu0 %1879
        %1881 = vrot.lane.b32.xlu0 %v1841, 1
        %v1882 = vpop.permute.xlu0 %1881
        %v1883 = vld [vmem:[%s1850 + $0x2] sm:$0x1]
        %v1884 = vperm.slane %v1883, 0
        %v1885 = vmul.f32 %v1884, %v1876
        %v1886 = vmul.f32 %v1884, %v1878
        %v1887 = vmul.f32 %v1884, %v1880
        %v1888 = vmul.f32 %v1884, %v1882
        %v1889 = vadd.f32 %v1871, %v1885
        %v1890 = vadd.f32 %v1872, %v1886
        %v1891 = vadd.f32 %v1873, %v1887
        %v1892 = vadd.f32 %v1874, %v1888
        %v1893 = vld [vmem:[%s1850 + $0x3] sm:$0x1]
        %v1894 = vperm.slane %v1893, 0
        %v1895 = vmul.f32 %v1894, %v1838
        %v1896 = vmul.f32 %v1894, %v1839
        %v1897 = vmul.f32 %v1894, %v1840
        %v1898 = vmul.f32 %v1894, %v1841
        %v1899 = vadd.f32 %v1889, %v1895
        %v1900 = vadd.f32 %v1890, %v1896
        %v1901 = vadd.f32 %v1891, %v1897
        %v1902 = vadd.f32 %v1892, %v1898
        %1903 = vrot.lane.b32.xlu0 %v1838, 127
        %v1904 = vpop.permute.xlu0 %1903
        %1905 = vrot.lane.b32.xlu0 %v1839, 127
        %v1906 = vpop.permute.xlu0 %1905
        %1907 = vrot.lane.b32.xlu0 %v1840, 127
        %v1908 = vpop.permute.xlu0 %1907
        %1909 = vrot.lane.b32.xlu0 %v1841, 127
        %v1910 = vpop.permute.xlu0 %1909
        %v1911 = vld [vmem:[%s1850 + $0x4] sm:$0x1]
        %v1912 = vperm.slane %v1911, 0
        %v1913 = vmul.f32 %v1912, %v1904
        %v1914 = vmul.f32 %v1912, %v1906
        %v1915 = vmul.f32 %v1912, %v1908
        %v1916 = vmul.f32 %v1912, %v1910
        %v1917 = vadd.f32 %v1899, %v1913
        %v1918 = vadd.f32 %v1900, %v1914
        %v1919 = vadd.f32 %v1901, %v1915
        %v1920 = vadd.f32 %v1902, %v1916
        %1921 = vrot.lane.b32.xlu0 %v1838, 126
        %v1922 = vpop.permute.xlu0 %1921
        %1923 = vrot.lane.b32.xlu0 %v1839, 126
        %v1924 = vpop.permute.xlu0 %1923
        %1925 = vrot.lane.b32.xlu0 %v1840, 126
        %v1926 = vpop.permute.xlu0 %1925
        %1927 = vrot.lane.b32.xlu0 %v1841, 126
        %v1928 = vpop.permute.xlu0 %1927
        %v1929 = vld [vmem:[%s1850 + $0x5] sm:$0x1]
        %v1930 = vperm.slane %v1929, 0
        %v1931 = vmul.f32 %v1930, %v1922
        %v1932 = vmul.f32 %v1930, %v1924
        %v1933 = vmul.f32 %v1930, %v1926
        %v1934 = vmul.f32 %v1930, %v1928
        %v1935 = vadd.f32 %v1917, %v1931
        %v1936 = vadd.f32 %v1918, %v1932
        %v1937 = vadd.f32 %v1919, %v1933
        %v1938 = vadd.f32 %v1920, %v1934
        %1939 = vrot.lane.b32.xlu0 %v1838, 125
        %v1940 = vpop.permute.xlu0 %1939
        %1941 = vrot.lane.b32.xlu0 %v1839, 125
        %v1942 = vpop.permute.xlu0 %1941
        %1943 = vrot.lane.b32.xlu0 %v1840, 125
        %v1944 = vpop.permute.xlu0 %1943
        %1945 = vrot.lane.b32.xlu0 %v1841, 125
        %v1946 = vpop.permute.xlu0 %1945
        %v1947 = vld [vmem:[%s1850 + $0x6] sm:$0x1]
        %v1948 = vperm.slane %v1947, 0
        %v1949 = vmul.f32 %v1948, %v1940
        %v1950 = vmul.f32 %v1948, %v1942
        %v1951 = vmul.f32 %v1948, %v1944
        %v1952 = vmul.f32 %v1948, %v1946
        %v1953 = vadd.f32 %v1935, %v1949
        %v1954 = vadd.f32 %v1936, %v1950
        %v1955 = vadd.f32 %v1937, %v1951
        %v1956 = vadd.f32 %v1938, %v1952
        %s1957 = scalar_lea.vmem %s223, 224 [#allocation5]
        %1958 = vst [vmem:[%s1957] sm:$0xff] %v1953
        %1959 = vst [vmem:[%s1957 + $0x8] sm:$0xff] %v1954
        %1960 = vst [vmem:[%s1957 + $0x10] sm:$0xff] %v1955
        %1961 = vst [vmem:[%s1957 + $0x18] sm:$0xff] %v1956
        %s1962 = scalar_lea.vmem %s228, 64
        %v1963 = vld [vmem:[%s1962] sm:$0x1]
        %s1964 = scalar_lea.vmem %s190, 320 [#allocation2]
        %v1965 = vld [vmem:[%s1964] sm:$0xff]
        %v1966 = vld [vmem:[%s1964 + $0x8] sm:$0xff]
        %v1967 = vld [vmem:[%s1964 + $0x10] sm:$0xff]
        %v1968 = vld [vmem:[%s1964 + $0x18] sm:$0xff]
        %v1969 = vperm.slane %v1963, 0
        %v1970 = vmul.f32 %v1969, %v1965
        %v1971 = vmul.f32 %v1969, %v1966
        %v1972 = vmul.f32 %v1969, %v1967
        %v1973 = vmul.f32 %v1969, %v1968
        %v1974 = vld [vmem:[%s1962 + $0x1] sm:$0x1]
        %v1975 = vld [vmem:[%s1964 + $0x1] sm:$0xff]
        %v1976 = vld [vmem:[%s1964 + $0x9] sm:$0xff]
        %v1977 = vld [vmem:[%s1964 + $0x11] sm:$0xff]
        %v1978 = vld [vmem:[%s1964 + $0x19] sm:$0xff]
        %v1979 = vperm.slane %v1974, 0
        %v1980 = vmul.f32 %v1979, %v1975
        %v1981 = vmul.f32 %v1979, %v1976
        %v1982 = vmul.f32 %v1979, %v1977
        %v1983 = vmul.f32 %v1979, %v1978
        %v1984 = vadd.f32 %v1970, %v1980
        %v1985 = vadd.f32 %v1971, %v1981
        %v1986 = vadd.f32 %v1972, %v1982
        %v1987 = vadd.f32 %v1973, %v1983
        %v1988 = vld [vmem:[%s1962 + $0x2] sm:$0x1]
        %v1989 = vld [vmem:[%s1964 + $0x2] sm:$0xff]
        %v1990 = vld [vmem:[%s1964 + $0xa] sm:$0xff]
        %v1991 = vld [vmem:[%s1964 + $0x12] sm:$0xff]
        %v1992 = vld [vmem:[%s1964 + $0x1a] sm:$0xff]
        %v1993 = vperm.slane %v1988, 0
        %v1994 = vmul.f32 %v1993, %v1989
        %v1995 = vmul.f32 %v1993, %v1990
        %v1996 = vmul.f32 %v1993, %v1991
        %v1997 = vmul.f32 %v1993, %v1992
        %v1998 = vadd.f32 %v1984, %v1994
        %v1999 = vadd.f32 %v1985, %v1995
        %v2000 = vadd.f32 %v1986, %v1996
        %v2001 = vadd.f32 %v1987, %v1997
        %v2002 = vld [vmem:[%s1962 + $0x3] sm:$0x1]
        %v2003 = vld [vmem:[%s1964 + $0x3] sm:$0xff]
        %v2004 = vld [vmem:[%s1964 + $0xb] sm:$0xff]
        %v2005 = vld [vmem:[%s1964 + $0x13] sm:$0xff]
        %v2006 = vld [vmem:[%s1964 + $0x1b] sm:$0xff]
        %v2007 = vperm.slane %v2002, 0
        %v2008 = vmul.f32 %v2007, %v2003
        %v2009 = vmul.f32 %v2007, %v2004
        %v2010 = vmul.f32 %v2007, %v2005
        %v2011 = vmul.f32 %v2007, %v2006
        %v2012 = vadd.f32 %v1998, %v2008
        %v2013 = vadd.f32 %v1999, %v2009
        %v2014 = vadd.f32 %v2000, %v2010
        %v2015 = vadd.f32 %v2001, %v2011
        %v2016 = vld [vmem:[%s1962 + $0x4] sm:$0x1]
        %v2017 = vld [vmem:[%s1964 + $0x4] sm:$0xff]
        %v2018 = vld [vmem:[%s1964 + $0xc] sm:$0xff]
        %v2019 = vld [vmem:[%s1964 + $0x14] sm:$0xff]
        %v2020 = vld [vmem:[%s1964 + $0x1c] sm:$0xff]
        %v2021 = vperm.slane %v2016, 0
        %v2022 = vmul.f32 %v2021, %v2017
        %v2023 = vmul.f32 %v2021, %v2018
        %v2024 = vmul.f32 %v2021, %v2019
        %v2025 = vmul.f32 %v2021, %v2020
        %v2026 = vadd.f32 %v2012, %v2022
        %v2027 = vadd.f32 %v2013, %v2023
        %v2028 = vadd.f32 %v2014, %v2024
        %v2029 = vadd.f32 %v2015, %v2025
        %v2030 = vld [vmem:[%s1962 + $0x5] sm:$0x1]
        %v2031 = vld [vmem:[%s1964 + $0x5] sm:$0xff]
        %v2032 = vld [vmem:[%s1964 + $0xd] sm:$0xff]
        %v2033 = vld [vmem:[%s1964 + $0x15] sm:$0xff]
        %v2034 = vld [vmem:[%s1964 + $0x1d] sm:$0xff]
        %v2035 = vperm.slane %v2030, 0
        %v2036 = vmul.f32 %v2035, %v2031
        %v2037 = vmul.f32 %v2035, %v2032
        %v2038 = vmul.f32 %v2035, %v2033
        %v2039 = vmul.f32 %v2035, %v2034
        %v2040 = vadd.f32 %v2026, %v2036
        %v2041 = vadd.f32 %v2027, %v2037
        %v2042 = vadd.f32 %v2028, %v2038
        %v2043 = vadd.f32 %v2029, %v2039
        %v2044 = vld [vmem:[%s1962 + $0x6] sm:$0x1]
        %v2045 = vld [vmem:[%s1964 + $0x6] sm:$0xff]
        %v2046 = vld [vmem:[%s1964 + $0xe] sm:$0xff]
        %v2047 = vld [vmem:[%s1964 + $0x16] sm:$0xff]
        %v2048 = vld [vmem:[%s1964 + $0x1e] sm:$0xff]
        %v2049 = vperm.slane %v2044, 0
        %v2050 = vmul.f32 %v2049, %v2045
        %v2051 = vmul.f32 %v2049, %v2046
        %v2052 = vmul.f32 %v2049, %v2047
        %v2053 = vmul.f32 %v2049, %v2048
        %v2054 = vadd.f32 %v2040, %v2050
        %v2055 = vadd.f32 %v2041, %v2051
        %v2056 = vadd.f32 %v2042, %v2052
        %v2057 = vadd.f32 %v2043, %v2053
        %2058 = vrot.lane.b32.xlu0 %v2054, 3
        %v2059 = vpop.permute.xlu0 %2058
        %2060 = vrot.lane.b32.xlu0 %v2055, 3
        %v2061 = vpop.permute.xlu0 %2060
        %2062 = vrot.lane.b32.xlu0 %v2056, 3
        %v2063 = vpop.permute.xlu0 %2062
        %2064 = vrot.lane.b32.xlu0 %v2057, 3
        %v2065 = vpop.permute.xlu0 %2064
        %s2066 = scalar_lea.vmem %s234, 64
        %v2067 = vld [vmem:[%s2066] sm:$0x1]
        %v2068 = vperm.slane %v2067, 0
        %v2069 = vmul.f32 %v2068, %v2059
        %v2070 = vmul.f32 %v2068, %v2061
        %v2071 = vmul.f32 %v2068, %v2063
        %v2072 = vmul.f32 %v2068, %v2065
        %2073 = vrot.lane.b32.xlu0 %v2054, 2
        %v2074 = vpop.permute.xlu0 %2073
        %2075 = vrot.lane.b32.xlu0 %v2055, 2
        %v2076 = vpop.permute.xlu0 %2075
        %2077 = vrot.lane.b32.xlu0 %v2056, 2
        %v2078 = vpop.permute.xlu0 %2077
        %2079 = vrot.lane.b32.xlu0 %v2057, 2
        %v2080 = vpop.permute.xlu0 %2079
        %v2081 = vld [vmem:[%s2066 + $0x1] sm:$0x1]
        %v2082 = vperm.slane %v2081, 0
        %v2083 = vmul.f32 %v2082, %v2074
        %v2084 = vmul.f32 %v2082, %v2076
        %v2085 = vmul.f32 %v2082, %v2078
        %v2086 = vmul.f32 %v2082, %v2080
        %v2087 = vadd.f32 %v2069, %v2083
        %v2088 = vadd.f32 %v2070, %v2084
        %v2089 = vadd.f32 %v2071, %v2085
        %v2090 = vadd.f32 %v2072, %v2086
        %2091 = vrot.lane.b32.xlu0 %v2054, 1
        %v2092 = vpop.permute.xlu0 %2091
        %2093 = vrot.lane.b32.xlu0 %v2055, 1
        %v2094 = vpop.permute.xlu0 %2093
        %2095 = vrot.lane.b32.xlu0 %v2056, 1
        %v2096 = vpop.permute.xlu0 %2095
        %2097 = vrot.lane.b32.xlu0 %v2057, 1
        %v2098 = vpop.permute.xlu0 %2097
        %v2099 = vld [vmem:[%s2066 + $0x2] sm:$0x1]
        %v2100 = vperm.slane %v2099, 0
        %v2101 = vmul.f32 %v2100, %v2092
        %v2102 = vmul.f32 %v2100, %v2094
        %v2103 = vmul.f32 %v2100, %v2096
        %v2104 = vmul.f32 %v2100, %v2098
        %v2105 = vadd.f32 %v2087, %v2101
        %v2106 = vadd.f32 %v2088, %v2102
        %v2107 = vadd.f32 %v2089, %v2103
        %v2108 = vadd.f32 %v2090, %v2104
        %v2109 = vld [vmem:[%s2066 + $0x3] sm:$0x1]
        %v2110 = vperm.slane %v2109, 0
        %v2111 = vmul.f32 %v2110, %v2054
        %v2112 = vmul.f32 %v2110, %v2055
        %v2113 = vmul.f32 %v2110, %v2056
        %v2114 = vmul.f32 %v2110, %v2057
        %v2115 = vadd.f32 %v2105, %v2111
        %v2116 = vadd.f32 %v2106, %v2112
        %v2117 = vadd.f32 %v2107, %v2113
        %v2118 = vadd.f32 %v2108, %v2114
        %2119 = vrot.lane.b32.xlu0 %v2054, 127
        %v2120 = vpop.permute.xlu0 %2119
        %2121 = vrot.lane.b32.xlu0 %v2055, 127
        %v2122 = vpop.permute.xlu0 %2121
        %2123 = vrot.lane.b32.xlu0 %v2056, 127
        %v2124 = vpop.permute.xlu0 %2123
        %2125 = vrot.lane.b32.xlu0 %v2057, 127
        %v2126 = vpop.permute.xlu0 %2125
        %v2127 = vld [vmem:[%s2066 + $0x4] sm:$0x1]
        %v2128 = vperm.slane %v2127, 0
        %v2129 = vmul.f32 %v2128, %v2120
        %v2130 = vmul.f32 %v2128, %v2122
        %v2131 = vmul.f32 %v2128, %v2124
        %v2132 = vmul.f32 %v2128, %v2126
        %v2133 = vadd.f32 %v2115, %v2129
        %v2134 = vadd.f32 %v2116, %v2130
        %v2135 = vadd.f32 %v2117, %v2131
        %v2136 = vadd.f32 %v2118, %v2132
        %2137 = vrot.lane.b32.xlu0 %v2054, 126
        %v2138 = vpop.permute.xlu0 %2137
        %2139 = vrot.lane.b32.xlu0 %v2055, 126
        %v2140 = vpop.permute.xlu0 %2139
        %2141 = vrot.lane.b32.xlu0 %v2056, 126
        %v2142 = vpop.permute.xlu0 %2141
        %2143 = vrot.lane.b32.xlu0 %v2057, 126
        %v2144 = vpop.permute.xlu0 %2143
        %v2145 = vld [vmem:[%s2066 + $0x5] sm:$0x1]
        %v2146 = vperm.slane %v2145, 0
        %v2147 = vmul.f32 %v2146, %v2138
        %v2148 = vmul.f32 %v2146, %v2140
        %v2149 = vmul.f32 %v2146, %v2142
        %v2150 = vmul.f32 %v2146, %v2144
        %v2151 = vadd.f32 %v2133, %v2147
        %v2152 = vadd.f32 %v2134, %v2148
        %v2153 = vadd.f32 %v2135, %v2149
        %v2154 = vadd.f32 %v2136, %v2150
        %2155 = vrot.lane.b32.xlu0 %v2054, 125
        %v2156 = vpop.permute.xlu0 %2155
        %2157 = vrot.lane.b32.xlu0 %v2055, 125
        %v2158 = vpop.permute.xlu0 %2157
        %2159 = vrot.lane.b32.xlu0 %v2056, 125
        %v2160 = vpop.permute.xlu0 %2159
        %2161 = vrot.lane.b32.xlu0 %v2057, 125
        %v2162 = vpop.permute.xlu0 %2161
        %v2163 = vld [vmem:[%s2066 + $0x6] sm:$0x1]
        %v2164 = vperm.slane %v2163, 0
        %v2165 = vmul.f32 %v2164, %v2156
        %v2166 = vmul.f32 %v2164, %v2158
        %v2167 = vmul.f32 %v2164, %v2160
        %v2168 = vmul.f32 %v2164, %v2162
        %v2169 = vadd.f32 %v2151, %v2165
        %v2170 = vadd.f32 %v2152, %v2166
        %v2171 = vadd.f32 %v2153, %v2167
        %v2172 = vadd.f32 %v2154, %v2168
        %s2173 = scalar_lea.vmem %s223, 256 [#allocation5]
        %2174 = vst [vmem:[%s2173] sm:$0xff] %v2169
        %2175 = vst [vmem:[%s2173 + $0x8] sm:$0xff] %v2170
        %2176 = vst [vmem:[%s2173 + $0x10] sm:$0xff] %v2171
        %2177 = vst [vmem:[%s2173 + $0x18] sm:$0xff] %v2172
        %s2178 = scalar_lea.vmem %s228, 72
        %v2179 = vld [vmem:[%s2178] sm:$0x1]
        %s2180 = scalar_lea.vmem %s190, 360 [#allocation2]
        %v2181 = vld [vmem:[%s2180] sm:$0xff]
        %v2182 = vld [vmem:[%s2180 + $0x8] sm:$0xff]
        %v2183 = vld [vmem:[%s2180 + $0x10] sm:$0xff]
        %v2184 = vld [vmem:[%s2180 + $0x18] sm:$0xff]
        %v2185 = vperm.slane %v2179, 0
        %v2186 = vmul.f32 %v2185, %v2181
        %v2187 = vmul.f32 %v2185, %v2182
        %v2188 = vmul.f32 %v2185, %v2183
        %v2189 = vmul.f32 %v2185, %v2184
        %v2190 = vld [vmem:[%s2178 + $0x1] sm:$0x1]
        %v2191 = vld [vmem:[%s2180 + $0x1] sm:$0xff]
        %v2192 = vld [vmem:[%s2180 + $0x9] sm:$0xff]
        %v2193 = vld [vmem:[%s2180 + $0x11] sm:$0xff]
        %v2194 = vld [vmem:[%s2180 + $0x19] sm:$0xff]
        %v2195 = vperm.slane %v2190, 0
        %v2196 = vmul.f32 %v2195, %v2191
        %v2197 = vmul.f32 %v2195, %v2192
        %v2198 = vmul.f32 %v2195, %v2193
        %v2199 = vmul.f32 %v2195, %v2194
        %v2200 = vadd.f32 %v2186, %v2196
        %v2201 = vadd.f32 %v2187, %v2197
        %v2202 = vadd.f32 %v2188, %v2198
        %v2203 = vadd.f32 %v2189, %v2199
        %v2204 = vld [vmem:[%s2178 + $0x2] sm:$0x1]
        %v2205 = vld [vmem:[%s2180 + $0x2] sm:$0xff]
        %v2206 = vld [vmem:[%s2180 + $0xa] sm:$0xff]
        %v2207 = vld [vmem:[%s2180 + $0x12] sm:$0xff]
        %v2208 = vld [vmem:[%s2180 + $0x1a] sm:$0xff]
        %v2209 = vperm.slane %v2204, 0
        %v2210 = vmul.f32 %v2209, %v2205
        %v2211 = vmul.f32 %v2209, %v2206
        %v2212 = vmul.f32 %v2209, %v2207
        %v2213 = vmul.f32 %v2209, %v2208
        %v2214 = vadd.f32 %v2200, %v2210
        %v2215 = vadd.f32 %v2201, %v2211
        %v2216 = vadd.f32 %v2202, %v2212
        %v2217 = vadd.f32 %v2203, %v2213
        %v2218 = vld [vmem:[%s2178 + $0x3] sm:$0x1]
        %v2219 = vld [vmem:[%s2180 + $0x3] sm:$0xff]
        %v2220 = vld [vmem:[%s2180 + $0xb] sm:$0xff]
        %v2221 = vld [vmem:[%s2180 + $0x13] sm:$0xff]
        %v2222 = vld [vmem:[%s2180 + $0x1b] sm:$0xff]
        %v2223 = vperm.slane %v2218, 0
        %v2224 = vmul.f32 %v2223, %v2219
        %v2225 = vmul.f32 %v2223, %v2220
        %v2226 = vmul.f32 %v2223, %v2221
        %v2227 = vmul.f32 %v2223, %v2222
        %v2228 = vadd.f32 %v2214, %v2224
        %v2229 = vadd.f32 %v2215, %v2225
        %v2230 = vadd.f32 %v2216, %v2226
        %v2231 = vadd.f32 %v2217, %v2227
        %v2232 = vld [vmem:[%s2178 + $0x4] sm:$0x1]
        %v2233 = vld [vmem:[%s2180 + $0x4] sm:$0xff]
        %v2234 = vld [vmem:[%s2180 + $0xc] sm:$0xff]
        %v2235 = vld [vmem:[%s2180 + $0x14] sm:$0xff]
        %v2236 = vld [vmem:[%s2180 + $0x1c] sm:$0xff]
        %v2237 = vperm.slane %v2232, 0
        %v2238 = vmul.f32 %v2237, %v2233
        %v2239 = vmul.f32 %v2237, %v2234
        %v2240 = vmul.f32 %v2237, %v2235
        %v2241 = vmul.f32 %v2237, %v2236
        %v2242 = vadd.f32 %v2228, %v2238
        %v2243 = vadd.f32 %v2229, %v2239
        %v2244 = vadd.f32 %v2230, %v2240
        %v2245 = vadd.f32 %v2231, %v2241
        %v2246 = vld [vmem:[%s2178 + $0x5] sm:$0x1]
        %v2247 = vld [vmem:[%s2180 + $0x5] sm:$0xff]
        %v2248 = vld [vmem:[%s2180 + $0xd] sm:$0xff]
        %v2249 = vld [vmem:[%s2180 + $0x15] sm:$0xff]
        %v2250 = vld [vmem:[%s2180 + $0x1d] sm:$0xff]
        %v2251 = vperm.slane %v2246, 0
        %v2252 = vmul.f32 %v2251, %v2247
        %v2253 = vmul.f32 %v2251, %v2248
        %v2254 = vmul.f32 %v2251, %v2249
        %v2255 = vmul.f32 %v2251, %v2250
        %v2256 = vadd.f32 %v2242, %v2252
        %v2257 = vadd.f32 %v2243, %v2253
        %v2258 = vadd.f32 %v2244, %v2254
        %v2259 = vadd.f32 %v2245, %v2255
        %v2260 = vld [vmem:[%s2178 + $0x6] sm:$0x1]
        %v2261 = vld [vmem:[%s2180 + $0x6] sm:$0xff]
        %v2262 = vld [vmem:[%s2180 + $0xe] sm:$0xff]
        %v2263 = vld [vmem:[%s2180 + $0x16] sm:$0xff]
        %v2264 = vld [vmem:[%s2180 + $0x1e] sm:$0xff]
        %v2265 = vperm.slane %v2260, 0
        %v2266 = vmul.f32 %v2265, %v2261
        %v2267 = vmul.f32 %v2265, %v2262
        %v2268 = vmul.f32 %v2265, %v2263
        %v2269 = vmul.f32 %v2265, %v2264
        %v2270 = vadd.f32 %v2256, %v2266
        %v2271 = vadd.f32 %v2257, %v2267
        %v2272 = vadd.f32 %v2258, %v2268
        %v2273 = vadd.f32 %v2259, %v2269
        %2274 = vrot.lane.b32.xlu0 %v2270, 3
        %v2275 = vpop.permute.xlu0 %2274
        %2276 = vrot.lane.b32.xlu0 %v2271, 3
        %v2277 = vpop.permute.xlu0 %2276
        %2278 = vrot.lane.b32.xlu0 %v2272, 3
        %v2279 = vpop.permute.xlu0 %2278
        %2280 = vrot.lane.b32.xlu0 %v2273, 3
        %v2281 = vpop.permute.xlu0 %2280
        %s2282 = scalar_lea.vmem %s234, 72
        %v2283 = vld [vmem:[%s2282] sm:$0x1]
        %v2284 = vperm.slane %v2283, 0
        %v2285 = vmul.f32 %v2284, %v2275
        %v2286 = vmul.f32 %v2284, %v2277
        %v2287 = vmul.f32 %v2284, %v2279
        %v2288 = vmul.f32 %v2284, %v2281
        %2289 = vrot.lane.b32.xlu0 %v2270, 2
        %v2290 = vpop.permute.xlu0 %2289
        %2291 = vrot.lane.b32.xlu0 %v2271, 2
        %v2292 = vpop.permute.xlu0 %2291
        %2293 = vrot.lane.b32.xlu0 %v2272, 2
        %v2294 = vpop.permute.xlu0 %2293
        %2295 = vrot.lane.b32.xlu0 %v2273, 2
        %v2296 = vpop.permute.xlu0 %2295
        %v2297 = vld [vmem:[%s2282 + $0x1] sm:$0x1]
        %v2298 = vperm.slane %v2297, 0
        %v2299 = vmul.f32 %v2298, %v2290
        %v2300 = vmul.f32 %v2298, %v2292
        %v2301 = vmul.f32 %v2298, %v2294
        %v2302 = vmul.f32 %v2298, %v2296
        %v2303 = vadd.f32 %v2285, %v2299
        %v2304 = vadd.f32 %v2286, %v2300
        %v2305 = vadd.f32 %v2287, %v2301
        %v2306 = vadd.f32 %v2288, %v2302
        %2307 = vrot.lane.b32.xlu0 %v2270, 1
        %v2308 = vpop.permute.xlu0 %2307
        %2309 = vrot.lane.b32.xlu0 %v2271, 1
        %v2310 = vpop.permute.xlu0 %2309
        %2311 = vrot.lane.b32.xlu0 %v2272, 1
        %v2312 = vpop.permute.xlu0 %2311
        %2313 = vrot.lane.b32.xlu0 %v2273, 1
        %v2314 = vpop.permute.xlu0 %2313
        %v2315 = vld [vmem:[%s2282 + $0x2] sm:$0x1]
        %v2316 = vperm.slane %v2315, 0
        %v2317 = vmul.f32 %v2316, %v2308
        %v2318 = vmul.f32 %v2316, %v2310
        %v2319 = vmul.f32 %v2316, %v2312
        %v2320 = vmul.f32 %v2316, %v2314
        %v2321 = vadd.f32 %v2303, %v2317
        %v2322 = vadd.f32 %v2304, %v2318
        %v2323 = vadd.f32 %v2305, %v2319
        %v2324 = vadd.f32 %v2306, %v2320
        %v2325 = vld [vmem:[%s2282 + $0x3] sm:$0x1]
        %v2326 = vperm.slane %v2325, 0
        %v2327 = vmul.f32 %v2326, %v2270
        %v2328 = vmul.f32 %v2326, %v2271
        %v2329 = vmul.f32 %v2326, %v2272
        %v2330 = vmul.f32 %v2326, %v2273
        %v2331 = vadd.f32 %v2321, %v2327
        %v2332 = vadd.f32 %v2322, %v2328
        %v2333 = vadd.f32 %v2323, %v2329
        %v2334 = vadd.f32 %v2324, %v2330
        %2335 = vrot.lane.b32.xlu0 %v2270, 127
        %v2336 = vpop.permute.xlu0 %2335
        %2337 = vrot.lane.b32.xlu0 %v2271, 127
        %v2338 = vpop.permute.xlu0 %2337
        %2339 = vrot.lane.b32.xlu0 %v2272, 127
        %v2340 = vpop.permute.xlu0 %2339
        %2341 = vrot.lane.b32.xlu0 %v2273, 127
        %v2342 = vpop.permute.xlu0 %2341
        %v2343 = vld [vmem:[%s2282 + $0x4] sm:$0x1]
        %v2344 = vperm.slane %v2343, 0
        %v2345 = vmul.f32 %v2344, %v2336
        %v2346 = vmul.f32 %v2344, %v2338
        %v2347 = vmul.f32 %v2344, %v2340
        %v2348 = vmul.f32 %v2344, %v2342
        %v2349 = vadd.f32 %v2331, %v2345
        %v2350 = vadd.f32 %v2332, %v2346
        %v2351 = vadd.f32 %v2333, %v2347
        %v2352 = vadd.f32 %v2334, %v2348
        %2353 = vrot.lane.b32.xlu0 %v2270, 126
        %v2354 = vpop.permute.xlu0 %2353
        %2355 = vrot.lane.b32.xlu0 %v2271, 126
        %v2356 = vpop.permute.xlu0 %2355
        %2357 = vrot.lane.b32.xlu0 %v2272, 126
        %v2358 = vpop.permute.xlu0 %2357
        %2359 = vrot.lane.b32.xlu0 %v2273, 126
        %v2360 = vpop.permute.xlu0 %2359
        %v2361 = vld [vmem:[%s2282 + $0x5] sm:$0x1]
        %v2362 = vperm.slane %v2361, 0
        %v2363 = vmul.f32 %v2362, %v2354
        %v2364 = vmul.f32 %v2362, %v2356
        %v2365 = vmul.f32 %v2362, %v2358
        %v2366 = vmul.f32 %v2362, %v2360
        %v2367 = vadd.f32 %v2349, %v2363
        %v2368 = vadd.f32 %v2350, %v2364
        %v2369 = vadd.f32 %v2351, %v2365
        %v2370 = vadd.f32 %v2352, %v2366
        %2371 = vrot.lane.b32.xlu0 %v2270, 125
        %v2372 = vpop.permute.xlu0 %2371
        %2373 = vrot.lane.b32.xlu0 %v2271, 125
        %v2374 = vpop.permute.xlu0 %2373
        %2375 = vrot.lane.b32.xlu0 %v2272, 125
        %v2376 = vpop.permute.xlu0 %2375
        %2377 = vrot.lane.b32.xlu0 %v2273, 125
        %v2378 = vpop.permute.xlu0 %2377
        %v2379 = vld [vmem:[%s2282 + $0x6] sm:$0x1]
        %v2380 = vperm.slane %v2379, 0
        %v2381 = vmul.f32 %v2380, %v2372
        %v2382 = vmul.f32 %v2380, %v2374
        %v2383 = vmul.f32 %v2380, %v2376
        %v2384 = vmul.f32 %v2380, %v2378
        %v2385 = vadd.f32 %v2367, %v2381
        %v2386 = vadd.f32 %v2368, %v2382
        %v2387 = vadd.f32 %v2369, %v2383
        %v2388 = vadd.f32 %v2370, %v2384
        %s2389 = scalar_lea.vmem %s223, 288 [#allocation5]
        %2390 = vst [vmem:[%s2389] sm:$0xff] %v2385
        %2391 = vst [vmem:[%s2389 + $0x8] sm:$0xff] %v2386
        %2392 = vst [vmem:[%s2389 + $0x10] sm:$0xff] %v2387
        %2393 = vst [vmem:[%s2389 + $0x18] sm:$0xff] %v2388
        %s2394 = scalar_lea.vmem %s228, 80
        %v2395 = vld [vmem:[%s2394] sm:$0x1]
        %s2396 = scalar_lea.vmem %s190, 400 [#allocation2]
        %v2397 = vld [vmem:[%s2396] sm:$0xff]
        %v2398 = vld [vmem:[%s2396 + $0x8] sm:$0xff]
        %v2399 = vld [vmem:[%s2396 + $0x10] sm:$0xff]
        %v2400 = vld [vmem:[%s2396 + $0x18] sm:$0xff]
        %v2401 = vperm.slane %v2395, 0
        %v2402 = vmul.f32 %v2401, %v2397
        %v2403 = vmul.f32 %v2401, %v2398
        %v2404 = vmul.f32 %v2401, %v2399
        %v2405 = vmul.f32 %v2401, %v2400
        %v2406 = vld [vmem:[%s2394 + $0x1] sm:$0x1]
        %v2407 = vld [vmem:[%s2396 + $0x1] sm:$0xff]
        %v2408 = vld [vmem:[%s2396 + $0x9] sm:$0xff]
        %v2409 = vld [vmem:[%s2396 + $0x11] sm:$0xff]
        %v2410 = vld [vmem:[%s2396 + $0x19] sm:$0xff]
        %v2411 = vperm.slane %v2406, 0
        %v2412 = vmul.f32 %v2411, %v2407
        %v2413 = vmul.f32 %v2411, %v2408
        %v2414 = vmul.f32 %v2411, %v2409
        %v2415 = vmul.f32 %v2411, %v2410
        %v2416 = vadd.f32 %v2402, %v2412
        %v2417 = vadd.f32 %v2403, %v2413
        %v2418 = vadd.f32 %v2404, %v2414
        %v2419 = vadd.f32 %v2405, %v2415
        %v2420 = vld [vmem:[%s2394 + $0x2] sm:$0x1]
        %v2421 = vld [vmem:[%s2396 + $0x2] sm:$0xff]
        %v2422 = vld [vmem:[%s2396 + $0xa] sm:$0xff]
        %v2423 = vld [vmem:[%s2396 + $0x12] sm:$0xff]
        %v2424 = vld [vmem:[%s2396 + $0x1a] sm:$0xff]
        %v2425 = vperm.slane %v2420, 0
        %v2426 = vmul.f32 %v2425, %v2421
        %v2427 = vmul.f32 %v2425, %v2422
        %v2428 = vmul.f32 %v2425, %v2423
        %v2429 = vmul.f32 %v2425, %v2424
        %v2430 = vadd.f32 %v2416, %v2426
        %v2431 = vadd.f32 %v2417, %v2427
        %v2432 = vadd.f32 %v2418, %v2428
        %v2433 = vadd.f32 %v2419, %v2429
        %v2434 = vld [vmem:[%s2394 + $0x3] sm:$0x1]
        %v2435 = vld [vmem:[%s2396 + $0x3] sm:$0xff]
        %v2436 = vld [vmem:[%s2396 + $0xb] sm:$0xff]
        %v2437 = vld [vmem:[%s2396 + $0x13] sm:$0xff]
        %v2438 = vld [vmem:[%s2396 + $0x1b] sm:$0xff]
        %v2439 = vperm.slane %v2434, 0
        %v2440 = vmul.f32 %v2439, %v2435
        %v2441 = vmul.f32 %v2439, %v2436
        %v2442 = vmul.f32 %v2439, %v2437
        %v2443 = vmul.f32 %v2439, %v2438
        %v2444 = vadd.f32 %v2430, %v2440
        %v2445 = vadd.f32 %v2431, %v2441
        %v2446 = vadd.f32 %v2432, %v2442
        %v2447 = vadd.f32 %v2433, %v2443
        %v2448 = vld [vmem:[%s2394 + $0x4] sm:$0x1]
        %v2449 = vld [vmem:[%s2396 + $0x4] sm:$0xff]
        %v2450 = vld [vmem:[%s2396 + $0xc] sm:$0xff]
        %v2451 = vld [vmem:[%s2396 + $0x14] sm:$0xff]
        %v2452 = vld [vmem:[%s2396 + $0x1c] sm:$0xff]
        %v2453 = vperm.slane %v2448, 0
        %v2454 = vmul.f32 %v2453, %v2449
        %v2455 = vmul.f32 %v2453, %v2450
        %v2456 = vmul.f32 %v2453, %v2451
        %v2457 = vmul.f32 %v2453, %v2452
        %v2458 = vadd.f32 %v2444, %v2454
        %v2459 = vadd.f32 %v2445, %v2455
        %v2460 = vadd.f32 %v2446, %v2456
        %v2461 = vadd.f32 %v2447, %v2457
        %v2462 = vld [vmem:[%s2394 + $0x5] sm:$0x1]
        %v2463 = vld [vmem:[%s2396 + $0x5] sm:$0xff]
        %v2464 = vld [vmem:[%s2396 + $0xd] sm:$0xff]
        %v2465 = vld [vmem:[%s2396 + $0x15] sm:$0xff]
        %v2466 = vld [vmem:[%s2396 + $0x1d] sm:$0xff]
        %v2467 = vperm.slane %v2462, 0
        %v2468 = vmul.f32 %v2467, %v2463
        %v2469 = vmul.f32 %v2467, %v2464
        %v2470 = vmul.f32 %v2467, %v2465
        %v2471 = vmul.f32 %v2467, %v2466
        %v2472 = vadd.f32 %v2458, %v2468
        %v2473 = vadd.f32 %v2459, %v2469
        %v2474 = vadd.f32 %v2460, %v2470
        %v2475 = vadd.f32 %v2461, %v2471
        %v2476 = vld [vmem:[%s2394 + $0x6] sm:$0x1]
        %v2477 = vld [vmem:[%s2396 + $0x6] sm:$0xff]
        %v2478 = vld [vmem:[%s2396 + $0xe] sm:$0xff]
        %v2479 = vld [vmem:[%s2396 + $0x16] sm:$0xff]
        %v2480 = vld [vmem:[%s2396 + $0x1e] sm:$0xff]
        %v2481 = vperm.slane %v2476, 0
        %v2482 = vmul.f32 %v2481, %v2477
        %v2483 = vmul.f32 %v2481, %v2478
        %v2484 = vmul.f32 %v2481, %v2479
        %v2485 = vmul.f32 %v2481, %v2480
        %v2486 = vadd.f32 %v2472, %v2482
        %v2487 = vadd.f32 %v2473, %v2483
        %v2488 = vadd.f32 %v2474, %v2484
        %v2489 = vadd.f32 %v2475, %v2485
        %2490 = vrot.lane.b32.xlu0 %v2486, 3
        %v2491 = vpop.permute.xlu0 %2490
        %2492 = vrot.lane.b32.xlu0 %v2487, 3
        %v2493 = vpop.permute.xlu0 %2492
        %2494 = vrot.lane.b32.xlu0 %v2488, 3
        %v2495 = vpop.permute.xlu0 %2494
        %2496 = vrot.lane.b32.xlu0 %v2489, 3
        %v2497 = vpop.permute.xlu0 %2496
        %s2498 = scalar_lea.vmem %s234, 80
        %v2499 = vld [vmem:[%s2498] sm:$0x1]
        %v2500 = vperm.slane %v2499, 0
        %v2501 = vmul.f32 %v2500, %v2491
        %v2502 = vmul.f32 %v2500, %v2493
        %v2503 = vmul.f32 %v2500, %v2495
        %v2504 = vmul.f32 %v2500, %v2497
        %2505 = vrot.lane.b32.xlu0 %v2486, 2
        %v2506 = vpop.permute.xlu0 %2505
        %2507 = vrot.lane.b32.xlu0 %v2487, 2
        %v2508 = vpop.permute.xlu0 %2507
        %2509 = vrot.lane.b32.xlu0 %v2488, 2
        %v2510 = vpop.permute.xlu0 %2509
        %2511 = vrot.lane.b32.xlu0 %v2489, 2
        %v2512 = vpop.permute.xlu0 %2511
        %v2513 = vld [vmem:[%s2498 + $0x1] sm:$0x1]
        %v2514 = vperm.slane %v2513, 0
        %v2515 = vmul.f32 %v2514, %v2506
        %v2516 = vmul.f32 %v2514, %v2508
        %v2517 = vmul.f32 %v2514, %v2510
        %v2518 = vmul.f32 %v2514, %v2512
        %v2519 = vadd.f32 %v2501, %v2515
        %v2520 = vadd.f32 %v2502, %v2516
        %v2521 = vadd.f32 %v2503, %v2517
        %v2522 = vadd.f32 %v2504, %v2518
        %2523 = vrot.lane.b32.xlu0 %v2486, 1
        %v2524 = vpop.permute.xlu0 %2523
        %2525 = vrot.lane.b32.xlu0 %v2487, 1
        %v2526 = vpop.permute.xlu0 %2525
        %2527 = vrot.lane.b32.xlu0 %v2488, 1
        %v2528 = vpop.permute.xlu0 %2527
        %2529 = vrot.lane.b32.xlu0 %v2489, 1
        %v2530 = vpop.permute.xlu0 %2529
        %v2531 = vld [vmem:[%s2498 + $0x2] sm:$0x1]
        %v2532 = vperm.slane %v2531, 0
        %v2533 = vmul.f32 %v2532, %v2524
        %v2534 = vmul.f32 %v2532, %v2526
        %v2535 = vmul.f32 %v2532, %v2528
        %v2536 = vmul.f32 %v2532, %v2530
        %v2537 = vadd.f32 %v2519, %v2533
        %v2538 = vadd.f32 %v2520, %v2534
        %v2539 = vadd.f32 %v2521, %v2535
        %v2540 = vadd.f32 %v2522, %v2536
        %v2541 = vld [vmem:[%s2498 + $0x3] sm:$0x1]
        %v2542 = vperm.slane %v2541, 0
        %v2543 = vmul.f32 %v2542, %v2486
        %v2544 = vmul.f32 %v2542, %v2487
        %v2545 = vmul.f32 %v2542, %v2488
        %v2546 = vmul.f32 %v2542, %v2489
        %v2547 = vadd.f32 %v2537, %v2543
        %v2548 = vadd.f32 %v2538, %v2544
        %v2549 = vadd.f32 %v2539, %v2545
        %v2550 = vadd.f32 %v2540, %v2546
        %2551 = vrot.lane.b32.xlu0 %v2486, 127
        %v2552 = vpop.permute.xlu0 %2551
        %2553 = vrot.lane.b32.xlu0 %v2487, 127
        %v2554 = vpop.permute.xlu0 %2553
        %2555 = vrot.lane.b32.xlu0 %v2488, 127
        %v2556 = vpop.permute.xlu0 %2555
        %2557 = vrot.lane.b32.xlu0 %v2489, 127
        %v2558 = vpop.permute.xlu0 %2557
        %v2559 = vld [vmem:[%s2498 + $0x4] sm:$0x1]
        %v2560 = vperm.slane %v2559, 0
        %v2561 = vmul.f32 %v2560, %v2552
        %v2562 = vmul.f32 %v2560, %v2554
        %v2563 = vmul.f32 %v2560, %v2556
        %v2564 = vmul.f32 %v2560, %v2558
        %v2565 = vadd.f32 %v2547, %v2561
        %v2566 = vadd.f32 %v2548, %v2562
        %v2567 = vadd.f32 %v2549, %v2563
        %v2568 = vadd.f32 %v2550, %v2564
        %2569 = vrot.lane.b32.xlu0 %v2486, 126
        %v2570 = vpop.permute.xlu0 %2569
        %2571 = vrot.lane.b32.xlu0 %v2487, 126
        %v2572 = vpop.permute.xlu0 %2571
        %2573 = vrot.lane.b32.xlu0 %v2488, 126
        %v2574 = vpop.permute.xlu0 %2573
        %2575 = vrot.lane.b32.xlu0 %v2489, 126
        %v2576 = vpop.permute.xlu0 %2575
        %v2577 = vld [vmem:[%s2498 + $0x5] sm:$0x1]
        %v2578 = vperm.slane %v2577, 0
        %v2579 = vmul.f32 %v2578, %v2570
        %v2580 = vmul.f32 %v2578, %v2572
        %v2581 = vmul.f32 %v2578, %v2574
        %v2582 = vmul.f32 %v2578, %v2576
        %v2583 = vadd.f32 %v2565, %v2579
        %v2584 = vadd.f32 %v2566, %v2580
        %v2585 = vadd.f32 %v2567, %v2581
        %v2586 = vadd.f32 %v2568, %v2582
        %2587 = vrot.lane.b32.xlu0 %v2486, 125
        %v2588 = vpop.permute.xlu0 %2587
        %2589 = vrot.lane.b32.xlu0 %v2487, 125
        %v2590 = vpop.permute.xlu0 %2589
        %2591 = vrot.lane.b32.xlu0 %v2488, 125
        %v2592 = vpop.permute.xlu0 %2591
        %2593 = vrot.lane.b32.xlu0 %v2489, 125
        %v2594 = vpop.permute.xlu0 %2593
        %v2595 = vld [vmem:[%s2498 + $0x6] sm:$0x1]
        %v2596 = vperm.slane %v2595, 0
        %v2597 = vmul.f32 %v2596, %v2588
        %v2598 = vmul.f32 %v2596, %v2590
        %v2599 = vmul.f32 %v2596, %v2592
        %v2600 = vmul.f32 %v2596, %v2594
        %v2601 = vadd.f32 %v2583, %v2597
        %v2602 = vadd.f32 %v2584, %v2598
        %v2603 = vadd.f32 %v2585, %v2599
        %v2604 = vadd.f32 %v2586, %v2600
        %s2605 = scalar_lea.vmem %s223, 320 [#allocation5]
        %2606 = vst [vmem:[%s2605] sm:$0xff] %v2601
        %2607 = vst [vmem:[%s2605 + $0x8] sm:$0xff] %v2602
        %2608 = vst [vmem:[%s2605 + $0x10] sm:$0xff] %v2603
        %2609 = vst [vmem:[%s2605 + $0x18] sm:$0xff] %v2604
        %s2610 = scalar_lea.vmem %s228, 88
        %v2611 = vld [vmem:[%s2610] sm:$0x1]
        %s2612 = scalar_lea.vmem %s190, 440 [#allocation2]
        %v2613 = vld [vmem:[%s2612] sm:$0xff]
        %v2614 = vld [vmem:[%s2612 + $0x8] sm:$0xff]
        %v2615 = vld [vmem:[%s2612 + $0x10] sm:$0xff]
        %v2616 = vld [vmem:[%s2612 + $0x18] sm:$0xff]
        %v2617 = vperm.slane %v2611, 0
        %v2618 = vmul.f32 %v2617, %v2613
        %v2619 = vmul.f32 %v2617, %v2614
        %v2620 = vmul.f32 %v2617, %v2615
        %v2621 = vmul.f32 %v2617, %v2616
        %v2622 = vld [vmem:[%s2610 + $0x1] sm:$0x1]
        %v2623 = vld [vmem:[%s2612 + $0x1] sm:$0xff]
        %v2624 = vld [vmem:[%s2612 + $0x9] sm:$0xff]
        %v2625 = vld [vmem:[%s2612 + $0x11] sm:$0xff]
        %v2626 = vld [vmem:[%s2612 + $0x19] sm:$0xff]
        %v2627 = vperm.slane %v2622, 0
        %v2628 = vmul.f32 %v2627, %v2623
        %v2629 = vmul.f32 %v2627, %v2624
        %v2630 = vmul.f32 %v2627, %v2625
        %v2631 = vmul.f32 %v2627, %v2626
        %v2632 = vadd.f32 %v2618, %v2628
        %v2633 = vadd.f32 %v2619, %v2629
        %v2634 = vadd.f32 %v2620, %v2630
        %v2635 = vadd.f32 %v2621, %v2631
        %v2636 = vld [vmem:[%s2610 + $0x2] sm:$0x1]
        %v2637 = vld [vmem:[%s2612 + $0x2] sm:$0xff]
        %v2638 = vld [vmem:[%s2612 + $0xa] sm:$0xff]
        %v2639 = vld [vmem:[%s2612 + $0x12] sm:$0xff]
        %v2640 = vld [vmem:[%s2612 + $0x1a] sm:$0xff]
        %v2641 = vperm.slane %v2636, 0
        %v2642 = vmul.f32 %v2641, %v2637
        %v2643 = vmul.f32 %v2641, %v2638
        %v2644 = vmul.f32 %v2641, %v2639
        %v2645 = vmul.f32 %v2641, %v2640
        %v2646 = vadd.f32 %v2632, %v2642
        %v2647 = vadd.f32 %v2633, %v2643
        %v2648 = vadd.f32 %v2634, %v2644
        %v2649 = vadd.f32 %v2635, %v2645
        %v2650 = vld [vmem:[%s2610 + $0x3] sm:$0x1]
        %v2651 = vld [vmem:[%s2612 + $0x3] sm:$0xff]
        %v2652 = vld [vmem:[%s2612 + $0xb] sm:$0xff]
        %v2653 = vld [vmem:[%s2612 + $0x13] sm:$0xff]
        %v2654 = vld [vmem:[%s2612 + $0x1b] sm:$0xff]
        %v2655 = vperm.slane %v2650, 0
        %v2656 = vmul.f32 %v2655, %v2651
        %v2657 = vmul.f32 %v2655, %v2652
        %v2658 = vmul.f32 %v2655, %v2653
        %v2659 = vmul.f32 %v2655, %v2654
        %v2660 = vadd.f32 %v2646, %v2656
        %v2661 = vadd.f32 %v2647, %v2657
        %v2662 = vadd.f32 %v2648, %v2658
        %v2663 = vadd.f32 %v2649, %v2659
        %v2664 = vld [vmem:[%s2610 + $0x4] sm:$0x1]
        %v2665 = vld [vmem:[%s2612 + $0x4] sm:$0xff]
        %v2666 = vld [vmem:[%s2612 + $0xc] sm:$0xff]
        %v2667 = vld [vmem:[%s2612 + $0x14] sm:$0xff]
        %v2668 = vld [vmem:[%s2612 + $0x1c] sm:$0xff]
        %v2669 = vperm.slane %v2664, 0
        %v2670 = vmul.f32 %v2669, %v2665
        %v2671 = vmul.f32 %v2669, %v2666
        %v2672 = vmul.f32 %v2669, %v2667
        %v2673 = vmul.f32 %v2669, %v2668
        %v2674 = vadd.f32 %v2660, %v2670
        %v2675 = vadd.f32 %v2661, %v2671
        %v2676 = vadd.f32 %v2662, %v2672
        %v2677 = vadd.f32 %v2663, %v2673
        %v2678 = vld [vmem:[%s2610 + $0x5] sm:$0x1]
        %v2679 = vld [vmem:[%s2612 + $0x5] sm:$0xff]
        %v2680 = vld [vmem:[%s2612 + $0xd] sm:$0xff]
        %v2681 = vld [vmem:[%s2612 + $0x15] sm:$0xff]
        %v2682 = vld [vmem:[%s2612 + $0x1d] sm:$0xff]
        %v2683 = vperm.slane %v2678, 0
        %v2684 = vmul.f32 %v2683, %v2679
        %v2685 = vmul.f32 %v2683, %v2680
        %v2686 = vmul.f32 %v2683, %v2681
        %v2687 = vmul.f32 %v2683, %v2682
        %v2688 = vadd.f32 %v2674, %v2684
        %v2689 = vadd.f32 %v2675, %v2685
        %v2690 = vadd.f32 %v2676, %v2686
        %v2691 = vadd.f32 %v2677, %v2687
        %v2692 = vld [vmem:[%s2610 + $0x6] sm:$0x1]
        %v2693 = vld [vmem:[%s2612 + $0x6] sm:$0xff]
        %v2694 = vld [vmem:[%s2612 + $0xe] sm:$0xff]
        %v2695 = vld [vmem:[%s2612 + $0x16] sm:$0xff]
        %v2696 = vld [vmem:[%s2612 + $0x1e] sm:$0xff]
        %v2697 = vperm.slane %v2692, 0
        %v2698 = vmul.f32 %v2697, %v2693
        %v2699 = vmul.f32 %v2697, %v2694
        %v2700 = vmul.f32 %v2697, %v2695
        %v2701 = vmul.f32 %v2697, %v2696
        %v2702 = vadd.f32 %v2688, %v2698
        %v2703 = vadd.f32 %v2689, %v2699
        %v2704 = vadd.f32 %v2690, %v2700
        %v2705 = vadd.f32 %v2691, %v2701
        %2706 = vrot.lane.b32.xlu0 %v2702, 3
        %v2707 = vpop.permute.xlu0 %2706
        %2708 = vrot.lane.b32.xlu0 %v2703, 3
        %v2709 = vpop.permute.xlu0 %2708
        %2710 = vrot.lane.b32.xlu0 %v2704, 3
        %v2711 = vpop.permute.xlu0 %2710
        %2712 = vrot.lane.b32.xlu0 %v2705, 3
        %v2713 = vpop.permute.xlu0 %2712
        %s2714 = scalar_lea.vmem %s234, 88
        %v2715 = vld [vmem:[%s2714] sm:$0x1]
        %v2716 = vperm.slane %v2715, 0
        %v2717 = vmul.f32 %v2716, %v2707
        %v2718 = vmul.f32 %v2716, %v2709
        %v2719 = vmul.f32 %v2716, %v2711
        %v2720 = vmul.f32 %v2716, %v2713
        %2721 = vrot.lane.b32.xlu0 %v2702, 2
        %v2722 = vpop.permute.xlu0 %2721
        %2723 = vrot.lane.b32.xlu0 %v2703, 2
        %v2724 = vpop.permute.xlu0 %2723
        %2725 = vrot.lane.b32.xlu0 %v2704, 2
        %v2726 = vpop.permute.xlu0 %2725
        %2727 = vrot.lane.b32.xlu0 %v2705, 2
        %v2728 = vpop.permute.xlu0 %2727
        %v2729 = vld [vmem:[%s2714 + $0x1] sm:$0x1]
        %v2730 = vperm.slane %v2729, 0
        %v2731 = vmul.f32 %v2730, %v2722
        %v2732 = vmul.f32 %v2730, %v2724
        %v2733 = vmul.f32 %v2730, %v2726
        %v2734 = vmul.f32 %v2730, %v2728
        %v2735 = vadd.f32 %v2717, %v2731
        %v2736 = vadd.f32 %v2718, %v2732
        %v2737 = vadd.f32 %v2719, %v2733
        %v2738 = vadd.f32 %v2720, %v2734
        %2739 = vrot.lane.b32.xlu0 %v2702, 1
        %v2740 = vpop.permute.xlu0 %2739
        %2741 = vrot.lane.b32.xlu0 %v2703, 1
        %v2742 = vpop.permute.xlu0 %2741
        %2743 = vrot.lane.b32.xlu0 %v2704, 1
        %v2744 = vpop.permute.xlu0 %2743
        %2745 = vrot.lane.b32.xlu0 %v2705, 1
        %v2746 = vpop.permute.xlu0 %2745
        %v2747 = vld [vmem:[%s2714 + $0x2] sm:$0x1]
        %v2748 = vperm.slane %v2747, 0
        %v2749 = vmul.f32 %v2748, %v2740
        %v2750 = vmul.f32 %v2748, %v2742
        %v2751 = vmul.f32 %v2748, %v2744
        %v2752 = vmul.f32 %v2748, %v2746
        %v2753 = vadd.f32 %v2735, %v2749
        %v2754 = vadd.f32 %v2736, %v2750
        %v2755 = vadd.f32 %v2737, %v2751
        %v2756 = vadd.f32 %v2738, %v2752
        %v2757 = vld [vmem:[%s2714 + $0x3] sm:$0x1]
        %v2758 = vperm.slane %v2757, 0
        %v2759 = vmul.f32 %v2758, %v2702
        %v2760 = vmul.f32 %v2758, %v2703
        %v2761 = vmul.f32 %v2758, %v2704
        %v2762 = vmul.f32 %v2758, %v2705
        %v2763 = vadd.f32 %v2753, %v2759
        %v2764 = vadd.f32 %v2754, %v2760
        %v2765 = vadd.f32 %v2755, %v2761
        %v2766 = vadd.f32 %v2756, %v2762
        %2767 = vrot.lane.b32.xlu0 %v2702, 127
        %v2768 = vpop.permute.xlu0 %2767
        %2769 = vrot.lane.b32.xlu0 %v2703, 127
        %v2770 = vpop.permute.xlu0 %2769
        %2771 = vrot.lane.b32.xlu0 %v2704, 127
        %v2772 = vpop.permute.xlu0 %2771
        %2773 = vrot.lane.b32.xlu0 %v2705, 127
        %v2774 = vpop.permute.xlu0 %2773
        %v2775 = vld [vmem:[%s2714 + $0x4] sm:$0x1]
        %v2776 = vperm.slane %v2775, 0
        %v2777 = vmul.f32 %v2776, %v2768
        %v2778 = vmul.f32 %v2776, %v2770
        %v2779 = vmul.f32 %v2776, %v2772
        %v2780 = vmul.f32 %v2776, %v2774
        %v2781 = vadd.f32 %v2763, %v2777
        %v2782 = vadd.f32 %v2764, %v2778
        %v2783 = vadd.f32 %v2765, %v2779
        %v2784 = vadd.f32 %v2766, %v2780
        %2785 = vrot.lane.b32.xlu0 %v2702, 126
        %v2786 = vpop.permute.xlu0 %2785
        %2787 = vrot.lane.b32.xlu0 %v2703, 126
        %v2788 = vpop.permute.xlu0 %2787
        %2789 = vrot.lane.b32.xlu0 %v2704, 126
        %v2790 = vpop.permute.xlu0 %2789
        %2791 = vrot.lane.b32.xlu0 %v2705, 126
        %v2792 = vpop.permute.xlu0 %2791
        %v2793 = vld [vmem:[%s2714 + $0x5] sm:$0x1]
        %v2794 = vperm.slane %v2793, 0
        %v2795 = vmul.f32 %v2794, %v2786
        %v2796 = vmul.f32 %v2794, %v2788
        %v2797 = vmul.f32 %v2794, %v2790
        %v2798 = vmul.f32 %v2794, %v2792
        %v2799 = vadd.f32 %v2781, %v2795
        %v2800 = vadd.f32 %v2782, %v2796
        %v2801 = vadd.f32 %v2783, %v2797
        %v2802 = vadd.f32 %v2784, %v2798
        %2803 = vrot.lane.b32.xlu0 %v2702, 125
        %v2804 = vpop.permute.xlu0 %2803
        %2805 = vrot.lane.b32.xlu0 %v2703, 125
        %v2806 = vpop.permute.xlu0 %2805
        %2807 = vrot.lane.b32.xlu0 %v2704, 125
        %v2808 = vpop.permute.xlu0 %2807
        %2809 = vrot.lane.b32.xlu0 %v2705, 125
        %v2810 = vpop.permute.xlu0 %2809
        %v2811 = vld [vmem:[%s2714 + $0x6] sm:$0x1]
        %v2812 = vperm.slane %v2811, 0
        %v2813 = vmul.f32 %v2812, %v2804
        %v2814 = vmul.f32 %v2812, %v2806
        %v2815 = vmul.f32 %v2812, %v2808
        %v2816 = vmul.f32 %v2812, %v2810
        %v2817 = vadd.f32 %v2799, %v2813
        %v2818 = vadd.f32 %v2800, %v2814
        %v2819 = vadd.f32 %v2801, %v2815
        %v2820 = vadd.f32 %v2802, %v2816
        %s2821 = scalar_lea.vmem %s223, 352 [#allocation5]
        %2822 = vst [vmem:[%s2821] sm:$0xff] %v2817
        %2823 = vst [vmem:[%s2821 + $0x8] sm:$0xff] %v2818
        %2824 = vst [vmem:[%s2821 + $0x10] sm:$0xff] %v2819
        %2825 = vst [vmem:[%s2821 + $0x18] sm:$0xff] %v2820
        %s2826 = scalar_lea.vmem %s228, 96
        %v2827 = vld [vmem:[%s2826] sm:$0x1]
        %s2828 = scalar_lea.vmem %s190, 480 [#allocation2]
        %v2829 = vld [vmem:[%s2828] sm:$0xff]
        %v2830 = vld [vmem:[%s2828 + $0x8] sm:$0xff]
        %v2831 = vld [vmem:[%s2828 + $0x10] sm:$0xff]
        %v2832 = vld [vmem:[%s2828 + $0x18] sm:$0xff]
        %v2833 = vperm.slane %v2827, 0
        %v2834 = vmul.f32 %v2833, %v2829
        %v2835 = vmul.f32 %v2833, %v2830
        %v2836 = vmul.f32 %v2833, %v2831
        %v2837 = vmul.f32 %v2833, %v2832
        %v2838 = vld [vmem:[%s2826 + $0x1] sm:$0x1]
        %v2839 = vld [vmem:[%s2828 + $0x1] sm:$0xff]
        %v2840 = vld [vmem:[%s2828 + $0x9] sm:$0xff]
        %v2841 = vld [vmem:[%s2828 + $0x11] sm:$0xff]
        %v2842 = vld [vmem:[%s2828 + $0x19] sm:$0xff]
        %v2843 = vperm.slane %v2838, 0
        %v2844 = vmul.f32 %v2843, %v2839
        %v2845 = vmul.f32 %v2843, %v2840
        %v2846 = vmul.f32 %v2843, %v2841
        %v2847 = vmul.f32 %v2843, %v2842
        %v2848 = vadd.f32 %v2834, %v2844
        %v2849 = vadd.f32 %v2835, %v2845
        %v2850 = vadd.f32 %v2836, %v2846
        %v2851 = vadd.f32 %v2837, %v2847
        %v2852 = vld [vmem:[%s2826 + $0x2] sm:$0x1]
        %v2853 = vld [vmem:[%s2828 + $0x2] sm:$0xff]
        %v2854 = vld [vmem:[%s2828 + $0xa] sm:$0xff]
        %v2855 = vld [vmem:[%s2828 + $0x12] sm:$0xff]
        %v2856 = vld [vmem:[%s2828 + $0x1a] sm:$0xff]
        %v2857 = vperm.slane %v2852, 0
        %v2858 = vmul.f32 %v2857, %v2853
        %v2859 = vmul.f32 %v2857, %v2854
        %v2860 = vmul.f32 %v2857, %v2855
        %v2861 = vmul.f32 %v2857, %v2856
        %v2862 = vadd.f32 %v2848, %v2858
        %v2863 = vadd.f32 %v2849, %v2859
        %v2864 = vadd.f32 %v2850, %v2860
        %v2865 = vadd.f32 %v2851, %v2861
        %v2866 = vld [vmem:[%s2826 + $0x3] sm:$0x1]
        %v2867 = vld [vmem:[%s2828 + $0x3] sm:$0xff]
        %v2868 = vld [vmem:[%s2828 + $0xb] sm:$0xff]
        %v2869 = vld [vmem:[%s2828 + $0x13] sm:$0xff]
        %v2870 = vld [vmem:[%s2828 + $0x1b] sm:$0xff]
        %v2871 = vperm.slane %v2866, 0
        %v2872 = vmul.f32 %v2871, %v2867
        %v2873 = vmul.f32 %v2871, %v2868
        %v2874 = vmul.f32 %v2871, %v2869
        %v2875 = vmul.f32 %v2871, %v2870
        %v2876 = vadd.f32 %v2862, %v2872
        %v2877 = vadd.f32 %v2863, %v2873
        %v2878 = vadd.f32 %v2864, %v2874
        %v2879 = vadd.f32 %v2865, %v2875
        %v2880 = vld [vmem:[%s2826 + $0x4] sm:$0x1]
        %v2881 = vld [vmem:[%s2828 + $0x4] sm:$0xff]
        %v2882 = vld [vmem:[%s2828 + $0xc] sm:$0xff]
        %v2883 = vld [vmem:[%s2828 + $0x14] sm:$0xff]
        %v2884 = vld [vmem:[%s2828 + $0x1c] sm:$0xff]
        %v2885 = vperm.slane %v2880, 0
        %v2886 = vmul.f32 %v2885, %v2881
        %v2887 = vmul.f32 %v2885, %v2882
        %v2888 = vmul.f32 %v2885, %v2883
        %v2889 = vmul.f32 %v2885, %v2884
        %v2890 = vadd.f32 %v2876, %v2886
        %v2891 = vadd.f32 %v2877, %v2887
        %v2892 = vadd.f32 %v2878, %v2888
        %v2893 = vadd.f32 %v2879, %v2889
        %v2894 = vld [vmem:[%s2826 + $0x5] sm:$0x1]
        %v2895 = vld [vmem:[%s2828 + $0x5] sm:$0xff]
        %v2896 = vld [vmem:[%s2828 + $0xd] sm:$0xff]
        %v2897 = vld [vmem:[%s2828 + $0x15] sm:$0xff]
        %v2898 = vld [vmem:[%s2828 + $0x1d] sm:$0xff]
        %v2899 = vperm.slane %v2894, 0
        %v2900 = vmul.f32 %v2899, %v2895
        %v2901 = vmul.f32 %v2899, %v2896
        %v2902 = vmul.f32 %v2899, %v2897
        %v2903 = vmul.f32 %v2899, %v2898
        %v2904 = vadd.f32 %v2890, %v2900
        %v2905 = vadd.f32 %v2891, %v2901
        %v2906 = vadd.f32 %v2892, %v2902
        %v2907 = vadd.f32 %v2893, %v2903
        %v2908 = vld [vmem:[%s2826 + $0x6] sm:$0x1]
        %v2909 = vld [vmem:[%s2828 + $0x6] sm:$0xff]
        %v2910 = vld [vmem:[%s2828 + $0xe] sm:$0xff]
        %v2911 = vld [vmem:[%s2828 + $0x16] sm:$0xff]
        %v2912 = vld [vmem:[%s2828 + $0x1e] sm:$0xff]
        %v2913 = vperm.slane %v2908, 0
        %v2914 = vmul.f32 %v2913, %v2909
        %v2915 = vmul.f32 %v2913, %v2910
        %v2916 = vmul.f32 %v2913, %v2911
        %v2917 = vmul.f32 %v2913, %v2912
        %v2918 = vadd.f32 %v2904, %v2914
        %v2919 = vadd.f32 %v2905, %v2915
        %v2920 = vadd.f32 %v2906, %v2916
        %v2921 = vadd.f32 %v2907, %v2917
        %2922 = vrot.lane.b32.xlu0 %v2918, 3
        %v2923 = vpop.permute.xlu0 %2922
        %2924 = vrot.lane.b32.xlu0 %v2919, 3
        %v2925 = vpop.permute.xlu0 %2924
        %2926 = vrot.lane.b32.xlu0 %v2920, 3
        %v2927 = vpop.permute.xlu0 %2926
        %2928 = vrot.lane.b32.xlu0 %v2921, 3
        %v2929 = vpop.permute.xlu0 %2928
        %s2930 = scalar_lea.vmem %s234, 96
        %v2931 = vld [vmem:[%s2930] sm:$0x1]
        %v2932 = vperm.slane %v2931, 0
        %v2933 = vmul.f32 %v2932, %v2923
        %v2934 = vmul.f32 %v2932, %v2925
        %v2935 = vmul.f32 %v2932, %v2927
        %v2936 = vmul.f32 %v2932, %v2929
        %2937 = vrot.lane.b32.xlu0 %v2918, 2
        %v2938 = vpop.permute.xlu0 %2937
        %2939 = vrot.lane.b32.xlu0 %v2919, 2
        %v2940 = vpop.permute.xlu0 %2939
        %2941 = vrot.lane.b32.xlu0 %v2920, 2
        %v2942 = vpop.permute.xlu0 %2941
        %2943 = vrot.lane.b32.xlu0 %v2921, 2
        %v2944 = vpop.permute.xlu0 %2943
        %v2945 = vld [vmem:[%s2930 + $0x1] sm:$0x1]
        %v2946 = vperm.slane %v2945, 0
        %v2947 = vmul.f32 %v2946, %v2938
        %v2948 = vmul.f32 %v2946, %v2940
        %v2949 = vmul.f32 %v2946, %v2942
        %v2950 = vmul.f32 %v2946, %v2944
        %v2951 = vadd.f32 %v2933, %v2947
        %v2952 = vadd.f32 %v2934, %v2948
        %v2953 = vadd.f32 %v2935, %v2949
        %v2954 = vadd.f32 %v2936, %v2950
        %2955 = vrot.lane.b32.xlu0 %v2918, 1
        %v2956 = vpop.permute.xlu0 %2955
        %2957 = vrot.lane.b32.xlu0 %v2919, 1
        %v2958 = vpop.permute.xlu0 %2957
        %2959 = vrot.lane.b32.xlu0 %v2920, 1
        %v2960 = vpop.permute.xlu0 %2959
        %2961 = vrot.lane.b32.xlu0 %v2921, 1
        %v2962 = vpop.permute.xlu0 %2961
        %v2963 = vld [vmem:[%s2930 + $0x2] sm:$0x1]
        %v2964 = vperm.slane %v2963, 0
        %v2965 = vmul.f32 %v2964, %v2956
        %v2966 = vmul.f32 %v2964, %v2958
        %v2967 = vmul.f32 %v2964, %v2960
        %v2968 = vmul.f32 %v2964, %v2962
        %v2969 = vadd.f32 %v2951, %v2965
        %v2970 = vadd.f32 %v2952, %v2966
        %v2971 = vadd.f32 %v2953, %v2967
        %v2972 = vadd.f32 %v2954, %v2968
        %v2973 = vld [vmem:[%s2930 + $0x3] sm:$0x1]
        %v2974 = vperm.slane %v2973, 0
        %v2975 = vmul.f32 %v2974, %v2918
        %v2976 = vmul.f32 %v2974, %v2919
        %v2977 = vmul.f32 %v2974, %v2920
        %v2978 = vmul.f32 %v2974, %v2921
        %v2979 = vadd.f32 %v2969, %v2975
        %v2980 = vadd.f32 %v2970, %v2976
        %v2981 = vadd.f32 %v2971, %v2977
        %v2982 = vadd.f32 %v2972, %v2978
        %2983 = vrot.lane.b32.xlu0 %v2918, 127
        %v2984 = vpop.permute.xlu0 %2983
        %2985 = vrot.lane.b32.xlu0 %v2919, 127
        %v2986 = vpop.permute.xlu0 %2985
        %2987 = vrot.lane.b32.xlu0 %v2920, 127
        %v2988 = vpop.permute.xlu0 %2987
        %2989 = vrot.lane.b32.xlu0 %v2921, 127
        %v2990 = vpop.permute.xlu0 %2989
        %v2991 = vld [vmem:[%s2930 + $0x4] sm:$0x1]
        %v2992 = vperm.slane %v2991, 0
        %v2993 = vmul.f32 %v2992, %v2984
        %v2994 = vmul.f32 %v2992, %v2986
        %v2995 = vmul.f32 %v2992, %v2988
        %v2996 = vmul.f32 %v2992, %v2990
        %v2997 = vadd.f32 %v2979, %v2993
        %v2998 = vadd.f32 %v2980, %v2994
        %v2999 = vadd.f32 %v2981, %v2995
        %v3000 = vadd.f32 %v2982, %v2996
        %3001 = vrot.lane.b32.xlu0 %v2918, 126
        %v3002 = vpop.permute.xlu0 %3001
        %3003 = vrot.lane.b32.xlu0 %v2919, 126
        %v3004 = vpop.permute.xlu0 %3003
        %3005 = vrot.lane.b32.xlu0 %v2920, 126
        %v3006 = vpop.permute.xlu0 %3005
        %3007 = vrot.lane.b32.xlu0 %v2921, 126
        %v3008 = vpop.permute.xlu0 %3007
        %v3009 = vld [vmem:[%s2930 + $0x5] sm:$0x1]
        %v3010 = vperm.slane %v3009, 0
        %v3011 = vmul.f32 %v3010, %v3002
        %v3012 = vmul.f32 %v3010, %v3004
        %v3013 = vmul.f32 %v3010, %v3006
        %v3014 = vmul.f32 %v3010, %v3008
        %v3015 = vadd.f32 %v2997, %v3011
        %v3016 = vadd.f32 %v2998, %v3012
        %v3017 = vadd.f32 %v2999, %v3013
        %v3018 = vadd.f32 %v3000, %v3014
        %3019 = vrot.lane.b32.xlu0 %v2918, 125
        %v3020 = vpop.permute.xlu0 %3019
        %3021 = vrot.lane.b32.xlu0 %v2919, 125
        %v3022 = vpop.permute.xlu0 %3021
        %3023 = vrot.lane.b32.xlu0 %v2920, 125
        %v3024 = vpop.permute.xlu0 %3023
        %3025 = vrot.lane.b32.xlu0 %v2921, 125
        %v3026 = vpop.permute.xlu0 %3025
        %v3027 = vld [vmem:[%s2930 + $0x6] sm:$0x1]
        %v3028 = vperm.slane %v3027, 0
        %v3029 = vmul.f32 %v3028, %v3020
        %v3030 = vmul.f32 %v3028, %v3022
        %v3031 = vmul.f32 %v3028, %v3024
        %v3032 = vmul.f32 %v3028, %v3026
        %v3033 = vadd.f32 %v3015, %v3029
        %v3034 = vadd.f32 %v3016, %v3030
        %v3035 = vadd.f32 %v3017, %v3031
        %v3036 = vadd.f32 %v3018, %v3032
        %s3037 = scalar_lea.vmem %s223, 384 [#allocation5]
        %3038 = vst [vmem:[%s3037] sm:$0xff] %v3033
        %3039 = vst [vmem:[%s3037 + $0x8] sm:$0xff] %v3034
        %3040 = vst [vmem:[%s3037 + $0x10] sm:$0xff] %v3035
        %3041 = vst [vmem:[%s3037 + $0x18] sm:$0xff] %v3036
        %s3042 = scalar_lea.vmem %s228, 104
        %v3043 = vld [vmem:[%s3042] sm:$0x1]
        %s3044 = scalar_lea.vmem %s190, 520 [#allocation2]
        %v3045 = vld [vmem:[%s3044] sm:$0xff]
        %v3046 = vld [vmem:[%s3044 + $0x8] sm:$0xff]
        %v3047 = vld [vmem:[%s3044 + $0x10] sm:$0xff]
        %v3048 = vld [vmem:[%s3044 + $0x18] sm:$0xff]
        %v3049 = vperm.slane %v3043, 0
        %v3050 = vmul.f32 %v3049, %v3045
        %v3051 = vmul.f32 %v3049, %v3046
        %v3052 = vmul.f32 %v3049, %v3047
        %v3053 = vmul.f32 %v3049, %v3048
        %v3054 = vld [vmem:[%s3042 + $0x1] sm:$0x1]
        %v3055 = vld [vmem:[%s3044 + $0x1] sm:$0xff]
        %v3056 = vld [vmem:[%s3044 + $0x9] sm:$0xff]
        %v3057 = vld [vmem:[%s3044 + $0x11] sm:$0xff]
        %v3058 = vld [vmem:[%s3044 + $0x19] sm:$0xff]
        %v3059 = vperm.slane %v3054, 0
        %v3060 = vmul.f32 %v3059, %v3055
        %v3061 = vmul.f32 %v3059, %v3056
        %v3062 = vmul.f32 %v3059, %v3057
        %v3063 = vmul.f32 %v3059, %v3058
        %v3064 = vadd.f32 %v3050, %v3060
        %v3065 = vadd.f32 %v3051, %v3061
        %v3066 = vadd.f32 %v3052, %v3062
        %v3067 = vadd.f32 %v3053, %v3063
        %v3068 = vld [vmem:[%s3042 + $0x2] sm:$0x1]
        %v3069 = vld [vmem:[%s3044 + $0x2] sm:$0xff]
        %v3070 = vld [vmem:[%s3044 + $0xa] sm:$0xff]
        %v3071 = vld [vmem:[%s3044 + $0x12] sm:$0xff]
        %v3072 = vld [vmem:[%s3044 + $0x1a] sm:$0xff]
        %v3073 = vperm.slane %v3068, 0
        %v3074 = vmul.f32 %v3073, %v3069
        %v3075 = vmul.f32 %v3073, %v3070
        %v3076 = vmul.f32 %v3073, %v3071
        %v3077 = vmul.f32 %v3073, %v3072
        %v3078 = vadd.f32 %v3064, %v3074
        %v3079 = vadd.f32 %v3065, %v3075
        %v3080 = vadd.f32 %v3066, %v3076
        %v3081 = vadd.f32 %v3067, %v3077
        %v3082 = vld [vmem:[%s3042 + $0x3] sm:$0x1]
        %v3083 = vld [vmem:[%s3044 + $0x3] sm:$0xff]
        %v3084 = vld [vmem:[%s3044 + $0xb] sm:$0xff]
        %v3085 = vld [vmem:[%s3044 + $0x13] sm:$0xff]
        %v3086 = vld [vmem:[%s3044 + $0x1b] sm:$0xff]
        %v3087 = vperm.slane %v3082, 0
        %v3088 = vmul.f32 %v3087, %v3083
        %v3089 = vmul.f32 %v3087, %v3084
        %v3090 = vmul.f32 %v3087, %v3085
        %v3091 = vmul.f32 %v3087, %v3086
        %v3092 = vadd.f32 %v3078, %v3088
        %v3093 = vadd.f32 %v3079, %v3089
        %v3094 = vadd.f32 %v3080, %v3090
        %v3095 = vadd.f32 %v3081, %v3091
        %v3096 = vld [vmem:[%s3042 + $0x4] sm:$0x1]
        %v3097 = vld [vmem:[%s3044 + $0x4] sm:$0xff]
        %v3098 = vld [vmem:[%s3044 + $0xc] sm:$0xff]
        %v3099 = vld [vmem:[%s3044 + $0x14] sm:$0xff]
        %v3100 = vld [vmem:[%s3044 + $0x1c] sm:$0xff]
        %v3101 = vperm.slane %v3096, 0
        %v3102 = vmul.f32 %v3101, %v3097
        %v3103 = vmul.f32 %v3101, %v3098
        %v3104 = vmul.f32 %v3101, %v3099
        %v3105 = vmul.f32 %v3101, %v3100
        %v3106 = vadd.f32 %v3092, %v3102
        %v3107 = vadd.f32 %v3093, %v3103
        %v3108 = vadd.f32 %v3094, %v3104
        %v3109 = vadd.f32 %v3095, %v3105
        %v3110 = vld [vmem:[%s3042 + $0x5] sm:$0x1]
        %v3111 = vld [vmem:[%s3044 + $0x5] sm:$0xff]
        %v3112 = vld [vmem:[%s3044 + $0xd] sm:$0xff]
        %v3113 = vld [vmem:[%s3044 + $0x15] sm:$0xff]
        %v3114 = vld [vmem:[%s3044 + $0x1d] sm:$0xff]
        %v3115 = vperm.slane %v3110, 0
        %v3116 = vmul.f32 %v3115, %v3111
        %v3117 = vmul.f32 %v3115, %v3112
        %v3118 = vmul.f32 %v3115, %v3113
        %v3119 = vmul.f32 %v3115, %v3114
        %v3120 = vadd.f32 %v3106, %v3116
        %v3121 = vadd.f32 %v3107, %v3117
        %v3122 = vadd.f32 %v3108, %v3118
        %v3123 = vadd.f32 %v3109, %v3119
        %v3124 = vld [vmem:[%s3042 + $0x6] sm:$0x1]
        %v3125 = vld [vmem:[%s3044 + $0x6] sm:$0xff]
        %v3126 = vld [vmem:[%s3044 + $0xe] sm:$0xff]
        %v3127 = vld [vmem:[%s3044 + $0x16] sm:$0xff]
        %v3128 = vld [vmem:[%s3044 + $0x1e] sm:$0xff]
        %v3129 = vperm.slane %v3124, 0
        %v3130 = vmul.f32 %v3129, %v3125
        %v3131 = vmul.f32 %v3129, %v3126
        %v3132 = vmul.f32 %v3129, %v3127
        %v3133 = vmul.f32 %v3129, %v3128
        %v3134 = vadd.f32 %v3120, %v3130
        %v3135 = vadd.f32 %v3121, %v3131
        %v3136 = vadd.f32 %v3122, %v3132
        %v3137 = vadd.f32 %v3123, %v3133
        %3138 = vrot.lane.b32.xlu0 %v3134, 3
        %v3139 = vpop.permute.xlu0 %3138
        %3140 = vrot.lane.b32.xlu0 %v3135, 3
        %v3141 = vpop.permute.xlu0 %3140
        %3142 = vrot.lane.b32.xlu0 %v3136, 3
        %v3143 = vpop.permute.xlu0 %3142
        %3144 = vrot.lane.b32.xlu0 %v3137, 3
        %v3145 = vpop.permute.xlu0 %3144
        %s3146 = scalar_lea.vmem %s234, 104
        %v3147 = vld [vmem:[%s3146] sm:$0x1]
        %v3148 = vperm.slane %v3147, 0
        %v3149 = vmul.f32 %v3148, %v3139
        %v3150 = vmul.f32 %v3148, %v3141
        %v3151 = vmul.f32 %v3148, %v3143
        %v3152 = vmul.f32 %v3148, %v3145
        %3153 = vrot.lane.b32.xlu0 %v3134, 2
        %v3154 = vpop.permute.xlu0 %3153
        %3155 = vrot.lane.b32.xlu0 %v3135, 2
        %v3156 = vpop.permute.xlu0 %3155
        %3157 = vrot.lane.b32.xlu0 %v3136, 2
        %v3158 = vpop.permute.xlu0 %3157
        %3159 = vrot.lane.b32.xlu0 %v3137, 2
        %v3160 = vpop.permute.xlu0 %3159
        %v3161 = vld [vmem:[%s3146 + $0x1] sm:$0x1]
        %v3162 = vperm.slane %v3161, 0
        %v3163 = vmul.f32 %v3162, %v3154
        %v3164 = vmul.f32 %v3162, %v3156
        %v3165 = vmul.f32 %v3162, %v3158
        %v3166 = vmul.f32 %v3162, %v3160
        %v3167 = vadd.f32 %v3149, %v3163
        %v3168 = vadd.f32 %v3150, %v3164
        %v3169 = vadd.f32 %v3151, %v3165
        %v3170 = vadd.f32 %v3152, %v3166
        %3171 = vrot.lane.b32.xlu0 %v3134, 1
        %v3172 = vpop.permute.xlu0 %3171
        %3173 = vrot.lane.b32.xlu0 %v3135, 1
        %v3174 = vpop.permute.xlu0 %3173
        %3175 = vrot.lane.b32.xlu0 %v3136, 1
        %v3176 = vpop.permute.xlu0 %3175
        %3177 = vrot.lane.b32.xlu0 %v3137, 1
        %v3178 = vpop.permute.xlu0 %3177
        %v3179 = vld [vmem:[%s3146 + $0x2] sm:$0x1]
        %v3180 = vperm.slane %v3179, 0
        %v3181 = vmul.f32 %v3180, %v3172
        %v3182 = vmul.f32 %v3180, %v3174
        %v3183 = vmul.f32 %v3180, %v3176
        %v3184 = vmul.f32 %v3180, %v3178
        %v3185 = vadd.f32 %v3167, %v3181
        %v3186 = vadd.f32 %v3168, %v3182
        %v3187 = vadd.f32 %v3169, %v3183
        %v3188 = vadd.f32 %v3170, %v3184
        %v3189 = vld [vmem:[%s3146 + $0x3] sm:$0x1]
        %v3190 = vperm.slane %v3189, 0
        %v3191 = vmul.f32 %v3190, %v3134
        %v3192 = vmul.f32 %v3190, %v3135
        %v3193 = vmul.f32 %v3190, %v3136
        %v3194 = vmul.f32 %v3190, %v3137
        %v3195 = vadd.f32 %v3185, %v3191
        %v3196 = vadd.f32 %v3186, %v3192
        %v3197 = vadd.f32 %v3187, %v3193
        %v3198 = vadd.f32 %v3188, %v3194
        %3199 = vrot.lane.b32.xlu0 %v3134, 127
        %v3200 = vpop.permute.xlu0 %3199
        %3201 = vrot.lane.b32.xlu0 %v3135, 127
        %v3202 = vpop.permute.xlu0 %3201
        %3203 = vrot.lane.b32.xlu0 %v3136, 127
        %v3204 = vpop.permute.xlu0 %3203
        %3205 = vrot.lane.b32.xlu0 %v3137, 127
        %v3206 = vpop.permute.xlu0 %3205
        %v3207 = vld [vmem:[%s3146 + $0x4] sm:$0x1]
        %v3208 = vperm.slane %v3207, 0
        %v3209 = vmul.f32 %v3208, %v3200
        %v3210 = vmul.f32 %v3208, %v3202
        %v3211 = vmul.f32 %v3208, %v3204
        %v3212 = vmul.f32 %v3208, %v3206
        %v3213 = vadd.f32 %v3195, %v3209
        %v3214 = vadd.f32 %v3196, %v3210
        %v3215 = vadd.f32 %v3197, %v3211
        %v3216 = vadd.f32 %v3198, %v3212
        %3217 = vrot.lane.b32.xlu0 %v3134, 126
        %v3218 = vpop.permute.xlu0 %3217
        %3219 = vrot.lane.b32.xlu0 %v3135, 126
        %v3220 = vpop.permute.xlu0 %3219
        %3221 = vrot.lane.b32.xlu0 %v3136, 126
        %v3222 = vpop.permute.xlu0 %3221
        %3223 = vrot.lane.b32.xlu0 %v3137, 126
        %v3224 = vpop.permute.xlu0 %3223
        %v3225 = vld [vmem:[%s3146 + $0x5] sm:$0x1]
        %v3226 = vperm.slane %v3225, 0
        %v3227 = vmul.f32 %v3226, %v3218
        %v3228 = vmul.f32 %v3226, %v3220
        %v3229 = vmul.f32 %v3226, %v3222
        %v3230 = vmul.f32 %v3226, %v3224
        %v3231 = vadd.f32 %v3213, %v3227
        %v3232 = vadd.f32 %v3214, %v3228
        %v3233 = vadd.f32 %v3215, %v3229
        %v3234 = vadd.f32 %v3216, %v3230
        %3235 = vrot.lane.b32.xlu0 %v3134, 125
        %v3236 = vpop.permute.xlu0 %3235
        %3237 = vrot.lane.b32.xlu0 %v3135, 125
        %v3238 = vpop.permute.xlu0 %3237
        %3239 = vrot.lane.b32.xlu0 %v3136, 125
        %v3240 = vpop.permute.xlu0 %3239
        %3241 = vrot.lane.b32.xlu0 %v3137, 125
        %v3242 = vpop.permute.xlu0 %3241
        %v3243 = vld [vmem:[%s3146 + $0x6] sm:$0x1]
        %v3244 = vperm.slane %v3243, 0
        %v3245 = vmul.f32 %v3244, %v3236
        %v3246 = vmul.f32 %v3244, %v3238
        %v3247 = vmul.f32 %v3244, %v3240
        %v3248 = vmul.f32 %v3244, %v3242
        %v3249 = vadd.f32 %v3231, %v3245
        %v3250 = vadd.f32 %v3232, %v3246
        %v3251 = vadd.f32 %v3233, %v3247
        %v3252 = vadd.f32 %v3234, %v3248
        %s3253 = scalar_lea.vmem %s223, 416 [#allocation5]
        %3254 = vst [vmem:[%s3253] sm:$0xff] %v3249
        %3255 = vst [vmem:[%s3253 + $0x8] sm:$0xff] %v3250
        %3256 = vst [vmem:[%s3253 + $0x10] sm:$0xff] %v3251
        %3257 = vst [vmem:[%s3253 + $0x18] sm:$0xff] %v3252
        %s3258 = scalar_lea.vmem %s228, 112
        %v3259 = vld [vmem:[%s3258] sm:$0x1]
        %s3260 = scalar_lea.vmem %s190, 560 [#allocation2]
        %v3261 = vld [vmem:[%s3260] sm:$0xff]
        %v3262 = vld [vmem:[%s3260 + $0x8] sm:$0xff]
        %v3263 = vld [vmem:[%s3260 + $0x10] sm:$0xff]
        %v3264 = vld [vmem:[%s3260 + $0x18] sm:$0xff]
        %v3265 = vperm.slane %v3259, 0
        %v3266 = vmul.f32 %v3265, %v3261
        %v3267 = vmul.f32 %v3265, %v3262
        %v3268 = vmul.f32 %v3265, %v3263
        %v3269 = vmul.f32 %v3265, %v3264
        %v3270 = vld [vmem:[%s3258 + $0x1] sm:$0x1]
        %v3271 = vld [vmem:[%s3260 + $0x1] sm:$0xff]
        %v3272 = vld [vmem:[%s3260 + $0x9] sm:$0xff]
        %v3273 = vld [vmem:[%s3260 + $0x11] sm:$0xff]
        %v3274 = vld [vmem:[%s3260 + $0x19] sm:$0xff]
        %v3275 = vperm.slane %v3270, 0
        %v3276 = vmul.f32 %v3275, %v3271
        %v3277 = vmul.f32 %v3275, %v3272
        %v3278 = vmul.f32 %v3275, %v3273
        %v3279 = vmul.f32 %v3275, %v3274
        %v3280 = vadd.f32 %v3266, %v3276
        %v3281 = vadd.f32 %v3267, %v3277
        %v3282 = vadd.f32 %v3268, %v3278
        %v3283 = vadd.f32 %v3269, %v3279
        %v3284 = vld [vmem:[%s3258 + $0x2] sm:$0x1]
        %v3285 = vld [vmem:[%s3260 + $0x2] sm:$0xff]
        %v3286 = vld [vmem:[%s3260 + $0xa] sm:$0xff]
        %v3287 = vld [vmem:[%s3260 + $0x12] sm:$0xff]
        %v3288 = vld [vmem:[%s3260 + $0x1a] sm:$0xff]
        %v3289 = vperm.slane %v3284, 0
        %v3290 = vmul.f32 %v3289, %v3285
        %v3291 = vmul.f32 %v3289, %v3286
        %v3292 = vmul.f32 %v3289, %v3287
        %v3293 = vmul.f32 %v3289, %v3288
        %v3294 = vadd.f32 %v3280, %v3290
        %v3295 = vadd.f32 %v3281, %v3291
        %v3296 = vadd.f32 %v3282, %v3292
        %v3297 = vadd.f32 %v3283, %v3293
        %v3298 = vld [vmem:[%s3258 + $0x3] sm:$0x1]
        %v3299 = vld [vmem:[%s3260 + $0x3] sm:$0xff]
        %v3300 = vld [vmem:[%s3260 + $0xb] sm:$0xff]
        %v3301 = vld [vmem:[%s3260 + $0x13] sm:$0xff]
        %v3302 = vld [vmem:[%s3260 + $0x1b] sm:$0xff]
        %v3303 = vperm.slane %v3298, 0
        %v3304 = vmul.f32 %v3303, %v3299
        %v3305 = vmul.f32 %v3303, %v3300
        %v3306 = vmul.f32 %v3303, %v3301
        %v3307 = vmul.f32 %v3303, %v3302
        %v3308 = vadd.f32 %v3294, %v3304
        %v3309 = vadd.f32 %v3295, %v3305
        %v3310 = vadd.f32 %v3296, %v3306
        %v3311 = vadd.f32 %v3297, %v3307
        %v3312 = vld [vmem:[%s3258 + $0x4] sm:$0x1]
        %v3313 = vld [vmem:[%s3260 + $0x4] sm:$0xff]
        %v3314 = vld [vmem:[%s3260 + $0xc] sm:$0xff]
        %v3315 = vld [vmem:[%s3260 + $0x14] sm:$0xff]
        %v3316 = vld [vmem:[%s3260 + $0x1c] sm:$0xff]
        %v3317 = vperm.slane %v3312, 0
        %v3318 = vmul.f32 %v3317, %v3313
        %v3319 = vmul.f32 %v3317, %v3314
        %v3320 = vmul.f32 %v3317, %v3315
        %v3321 = vmul.f32 %v3317, %v3316
        %v3322 = vadd.f32 %v3308, %v3318
        %v3323 = vadd.f32 %v3309, %v3319
        %v3324 = vadd.f32 %v3310, %v3320
        %v3325 = vadd.f32 %v3311, %v3321
        %v3326 = vld [vmem:[%s3258 + $0x5] sm:$0x1]
        %v3327 = vld [vmem:[%s3260 + $0x5] sm:$0xff]
        %v3328 = vld [vmem:[%s3260 + $0xd] sm:$0xff]
        %v3329 = vld [vmem:[%s3260 + $0x15] sm:$0xff]
        %v3330 = vld [vmem:[%s3260 + $0x1d] sm:$0xff]
        %v3331 = vperm.slane %v3326, 0
        %v3332 = vmul.f32 %v3331, %v3327
        %v3333 = vmul.f32 %v3331, %v3328
        %v3334 = vmul.f32 %v3331, %v3329
        %v3335 = vmul.f32 %v3331, %v3330
        %v3336 = vadd.f32 %v3322, %v3332
        %v3337 = vadd.f32 %v3323, %v3333
        %v3338 = vadd.f32 %v3324, %v3334
        %v3339 = vadd.f32 %v3325, %v3335
        %v3340 = vld [vmem:[%s3258 + $0x6] sm:$0x1]
        %v3341 = vld [vmem:[%s3260 + $0x6] sm:$0xff]
        %v3342 = vld [vmem:[%s3260 + $0xe] sm:$0xff]
        %v3343 = vld [vmem:[%s3260 + $0x16] sm:$0xff]
        %v3344 = vld [vmem:[%s3260 + $0x1e] sm:$0xff]
        %v3345 = vperm.slane %v3340, 0
        %v3346 = vmul.f32 %v3345, %v3341
        %v3347 = vmul.f32 %v3345, %v3342
        %v3348 = vmul.f32 %v3345, %v3343
        %v3349 = vmul.f32 %v3345, %v3344
        %v3350 = vadd.f32 %v3336, %v3346
        %v3351 = vadd.f32 %v3337, %v3347
        %v3352 = vadd.f32 %v3338, %v3348
        %v3353 = vadd.f32 %v3339, %v3349
        %3354 = vrot.lane.b32.xlu0 %v3350, 3
        %v3355 = vpop.permute.xlu0 %3354
        %3356 = vrot.lane.b32.xlu0 %v3351, 3
        %v3357 = vpop.permute.xlu0 %3356
        %3358 = vrot.lane.b32.xlu0 %v3352, 3
        %v3359 = vpop.permute.xlu0 %3358
        %3360 = vrot.lane.b32.xlu0 %v3353, 3
        %v3361 = vpop.permute.xlu0 %3360
        %s3362 = scalar_lea.vmem %s234, 112
        %v3363 = vld [vmem:[%s3362] sm:$0x1]
        %v3364 = vperm.slane %v3363, 0
        %v3365 = vmul.f32 %v3364, %v3355
        %v3366 = vmul.f32 %v3364, %v3357
        %v3367 = vmul.f32 %v3364, %v3359
        %v3368 = vmul.f32 %v3364, %v3361
        %3369 = vrot.lane.b32.xlu0 %v3350, 2
        %v3370 = vpop.permute.xlu0 %3369
        %3371 = vrot.lane.b32.xlu0 %v3351, 2
        %v3372 = vpop.permute.xlu0 %3371
        %3373 = vrot.lane.b32.xlu0 %v3352, 2
        %v3374 = vpop.permute.xlu0 %3373
        %3375 = vrot.lane.b32.xlu0 %v3353, 2
        %v3376 = vpop.permute.xlu0 %3375
        %v3377 = vld [vmem:[%s3362 + $0x1] sm:$0x1]
        %v3378 = vperm.slane %v3377, 0
        %v3379 = vmul.f32 %v3378, %v3370
        %v3380 = vmul.f32 %v3378, %v3372
        %v3381 = vmul.f32 %v3378, %v3374
        %v3382 = vmul.f32 %v3378, %v3376
        %v3383 = vadd.f32 %v3365, %v3379
        %v3384 = vadd.f32 %v3366, %v3380
        %v3385 = vadd.f32 %v3367, %v3381
        %v3386 = vadd.f32 %v3368, %v3382
        %3387 = vrot.lane.b32.xlu0 %v3350, 1
        %v3388 = vpop.permute.xlu0 %3387
        %3389 = vrot.lane.b32.xlu0 %v3351, 1
        %v3390 = vpop.permute.xlu0 %3389
        %3391 = vrot.lane.b32.xlu0 %v3352, 1
        %v3392 = vpop.permute.xlu0 %3391
        %3393 = vrot.lane.b32.xlu0 %v3353, 1
        %v3394 = vpop.permute.xlu0 %3393
        %v3395 = vld [vmem:[%s3362 + $0x2] sm:$0x1]
        %v3396 = vperm.slane %v3395, 0
        %v3397 = vmul.f32 %v3396, %v3388
        %v3398 = vmul.f32 %v3396, %v3390
        %v3399 = vmul.f32 %v3396, %v3392
        %v3400 = vmul.f32 %v3396, %v3394
        %v3401 = vadd.f32 %v3383, %v3397
        %v3402 = vadd.f32 %v3384, %v3398
        %v3403 = vadd.f32 %v3385, %v3399
        %v3404 = vadd.f32 %v3386, %v3400
        %v3405 = vld [vmem:[%s3362 + $0x3] sm:$0x1]
        %v3406 = vperm.slane %v3405, 0
        %v3407 = vmul.f32 %v3406, %v3350
        %v3408 = vmul.f32 %v3406, %v3351
        %v3409 = vmul.f32 %v3406, %v3352
        %v3410 = vmul.f32 %v3406, %v3353
        %v3411 = vadd.f32 %v3401, %v3407
        %v3412 = vadd.f32 %v3402, %v3408
        %v3413 = vadd.f32 %v3403, %v3409
        %v3414 = vadd.f32 %v3404, %v3410
        %3415 = vrot.lane.b32.xlu0 %v3350, 127
        %v3416 = vpop.permute.xlu0 %3415
        %3417 = vrot.lane.b32.xlu0 %v3351, 127
        %v3418 = vpop.permute.xlu0 %3417
        %3419 = vrot.lane.b32.xlu0 %v3352, 127
        %v3420 = vpop.permute.xlu0 %3419
        %3421 = vrot.lane.b32.xlu0 %v3353, 127
        %v3422 = vpop.permute.xlu0 %3421
        %v3423 = vld [vmem:[%s3362 + $0x4] sm:$0x1]
        %v3424 = vperm.slane %v3423, 0
        %v3425 = vmul.f32 %v3424, %v3416
        %v3426 = vmul.f32 %v3424, %v3418
        %v3427 = vmul.f32 %v3424, %v3420
        %v3428 = vmul.f32 %v3424, %v3422
        %v3429 = vadd.f32 %v3411, %v3425
        %v3430 = vadd.f32 %v3412, %v3426
        %v3431 = vadd.f32 %v3413, %v3427
        %v3432 = vadd.f32 %v3414, %v3428
        %3433 = vrot.lane.b32.xlu0 %v3350, 126
        %v3434 = vpop.permute.xlu0 %3433
        %3435 = vrot.lane.b32.xlu0 %v3351, 126
        %v3436 = vpop.permute.xlu0 %3435
        %3437 = vrot.lane.b32.xlu0 %v3352, 126
        %v3438 = vpop.permute.xlu0 %3437
        %3439 = vrot.lane.b32.xlu0 %v3353, 126
        %v3440 = vpop.permute.xlu0 %3439
        %v3441 = vld [vmem:[%s3362 + $0x5] sm:$0x1]
        %v3442 = vperm.slane %v3441, 0
        %v3443 = vmul.f32 %v3442, %v3434
        %v3444 = vmul.f32 %v3442, %v3436
        %v3445 = vmul.f32 %v3442, %v3438
        %v3446 = vmul.f32 %v3442, %v3440
        %v3447 = vadd.f32 %v3429, %v3443
        %v3448 = vadd.f32 %v3430, %v3444
        %v3449 = vadd.f32 %v3431, %v3445
        %v3450 = vadd.f32 %v3432, %v3446
        %3451 = vrot.lane.b32.xlu0 %v3350, 125
        %v3452 = vpop.permute.xlu0 %3451
        %3453 = vrot.lane.b32.xlu0 %v3351, 125
        %v3454 = vpop.permute.xlu0 %3453
        %3455 = vrot.lane.b32.xlu0 %v3352, 125
        %v3456 = vpop.permute.xlu0 %3455
        %3457 = vrot.lane.b32.xlu0 %v3353, 125
        %v3458 = vpop.permute.xlu0 %3457
        %v3459 = vld [vmem:[%s3362 + $0x6] sm:$0x1]
        %v3460 = vperm.slane %v3459, 0
        %v3461 = vmul.f32 %v3460, %v3452
        %v3462 = vmul.f32 %v3460, %v3454
        %v3463 = vmul.f32 %v3460, %v3456
        %v3464 = vmul.f32 %v3460, %v3458
        %v3465 = vadd.f32 %v3447, %v3461
        %v3466 = vadd.f32 %v3448, %v3462
        %v3467 = vadd.f32 %v3449, %v3463
        %v3468 = vadd.f32 %v3450, %v3464
        %s3469 = scalar_lea.vmem %s223, 448 [#allocation5]
        %3470 = vst [vmem:[%s3469] sm:$0xff] %v3465
        %3471 = vst [vmem:[%s3469 + $0x8] sm:$0xff] %v3466
        %3472 = vst [vmem:[%s3469 + $0x10] sm:$0xff] %v3467
        %3473 = vst [vmem:[%s3469 + $0x18] sm:$0xff] %v3468
        %s3474 = scalar_lea.vmem %s228, 120
        %v3475 = vld [vmem:[%s3474] sm:$0x1]
        %s3476 = scalar_lea.vmem %s190, 600 [#allocation2]
        %v3477 = vld [vmem:[%s3476] sm:$0xff]
        %v3478 = vld [vmem:[%s3476 + $0x8] sm:$0xff]
        %v3479 = vld [vmem:[%s3476 + $0x10] sm:$0xff]
        %v3480 = vld [vmem:[%s3476 + $0x18] sm:$0xff]
        %v3481 = vperm.slane %v3475, 0
        %v3482 = vmul.f32 %v3481, %v3477
        %v3483 = vmul.f32 %v3481, %v3478
        %v3484 = vmul.f32 %v3481, %v3479
        %v3485 = vmul.f32 %v3481, %v3480
        %v3486 = vld [vmem:[%s3474 + $0x1] sm:$0x1]
        %v3487 = vld [vmem:[%s3476 + $0x1] sm:$0xff]
        %v3488 = vld [vmem:[%s3476 + $0x9] sm:$0xff]
        %v3489 = vld [vmem:[%s3476 + $0x11] sm:$0xff]
        %v3490 = vld [vmem:[%s3476 + $0x19] sm:$0xff]
        %v3491 = vperm.slane %v3486, 0
        %v3492 = vmul.f32 %v3491, %v3487
        %v3493 = vmul.f32 %v3491, %v3488
        %v3494 = vmul.f32 %v3491, %v3489
        %v3495 = vmul.f32 %v3491, %v3490
        %v3496 = vadd.f32 %v3482, %v3492
        %v3497 = vadd.f32 %v3483, %v3493
        %v3498 = vadd.f32 %v3484, %v3494
        %v3499 = vadd.f32 %v3485, %v3495
        %v3500 = vld [vmem:[%s3474 + $0x2] sm:$0x1]
        %v3501 = vld [vmem:[%s3476 + $0x2] sm:$0xff]
        %v3502 = vld [vmem:[%s3476 + $0xa] sm:$0xff]
        %v3503 = vld [vmem:[%s3476 + $0x12] sm:$0xff]
        %v3504 = vld [vmem:[%s3476 + $0x1a] sm:$0xff]
        %v3505 = vperm.slane %v3500, 0
        %v3506 = vmul.f32 %v3505, %v3501
        %v3507 = vmul.f32 %v3505, %v3502
        %v3508 = vmul.f32 %v3505, %v3503
        %v3509 = vmul.f32 %v3505, %v3504
        %v3510 = vadd.f32 %v3496, %v3506
        %v3511 = vadd.f32 %v3497, %v3507
        %v3512 = vadd.f32 %v3498, %v3508
        %v3513 = vadd.f32 %v3499, %v3509
        %v3514 = vld [vmem:[%s3474 + $0x3] sm:$0x1]
        %v3515 = vld [vmem:[%s3476 + $0x3] sm:$0xff]
        %v3516 = vld [vmem:[%s3476 + $0xb] sm:$0xff]
        %v3517 = vld [vmem:[%s3476 + $0x13] sm:$0xff]
        %v3518 = vld [vmem:[%s3476 + $0x1b] sm:$0xff]
        %v3519 = vperm.slane %v3514, 0
        %v3520 = vmul.f32 %v3519, %v3515
        %v3521 = vmul.f32 %v3519, %v3516
        %v3522 = vmul.f32 %v3519, %v3517
        %v3523 = vmul.f32 %v3519, %v3518
        %v3524 = vadd.f32 %v3510, %v3520
        %v3525 = vadd.f32 %v3511, %v3521
        %v3526 = vadd.f32 %v3512, %v3522
        %v3527 = vadd.f32 %v3513, %v3523
        %v3528 = vld [vmem:[%s3474 + $0x4] sm:$0x1]
        %v3529 = vld [vmem:[%s3476 + $0x4] sm:$0xff]
        %v3530 = vld [vmem:[%s3476 + $0xc] sm:$0xff]
        %v3531 = vld [vmem:[%s3476 + $0x14] sm:$0xff]
        %v3532 = vld [vmem:[%s3476 + $0x1c] sm:$0xff]
        %v3533 = vperm.slane %v3528, 0
        %v3534 = vmul.f32 %v3533, %v3529
        %v3535 = vmul.f32 %v3533, %v3530
        %v3536 = vmul.f32 %v3533, %v3531
        %v3537 = vmul.f32 %v3533, %v3532
        %v3538 = vadd.f32 %v3524, %v3534
        %v3539 = vadd.f32 %v3525, %v3535
        %v3540 = vadd.f32 %v3526, %v3536
        %v3541 = vadd.f32 %v3527, %v3537
        %v3542 = vld [vmem:[%s3474 + $0x5] sm:$0x1]
        %v3543 = vld [vmem:[%s3476 + $0x5] sm:$0xff]
        %v3544 = vld [vmem:[%s3476 + $0xd] sm:$0xff]
        %v3545 = vld [vmem:[%s3476 + $0x15] sm:$0xff]
        %v3546 = vld [vmem:[%s3476 + $0x1d] sm:$0xff]
        %v3547 = vperm.slane %v3542, 0
        %v3548 = vmul.f32 %v3547, %v3543
        %v3549 = vmul.f32 %v3547, %v3544
        %v3550 = vmul.f32 %v3547, %v3545
        %v3551 = vmul.f32 %v3547, %v3546
        %v3552 = vadd.f32 %v3538, %v3548
        %v3553 = vadd.f32 %v3539, %v3549
        %v3554 = vadd.f32 %v3540, %v3550
        %v3555 = vadd.f32 %v3541, %v3551
        %v3556 = vld [vmem:[%s3474 + $0x6] sm:$0x1]
        %v3557 = vld [vmem:[%s3476 + $0x6] sm:$0xff]
        %v3558 = vld [vmem:[%s3476 + $0xe] sm:$0xff]
        %v3559 = vld [vmem:[%s3476 + $0x16] sm:$0xff]
        %v3560 = vld [vmem:[%s3476 + $0x1e] sm:$0xff]
        %v3561 = vperm.slane %v3556, 0
        %v3562 = vmul.f32 %v3561, %v3557
        %v3563 = vmul.f32 %v3561, %v3558
        %v3564 = vmul.f32 %v3561, %v3559
        %v3565 = vmul.f32 %v3561, %v3560
        %v3566 = vadd.f32 %v3552, %v3562
        %v3567 = vadd.f32 %v3553, %v3563
        %v3568 = vadd.f32 %v3554, %v3564
        %v3569 = vadd.f32 %v3555, %v3565
        %3570 = vrot.lane.b32.xlu0 %v3566, 3
        %v3571 = vpop.permute.xlu0 %3570
        %3572 = vrot.lane.b32.xlu0 %v3567, 3
        %v3573 = vpop.permute.xlu0 %3572
        %3574 = vrot.lane.b32.xlu0 %v3568, 3
        %v3575 = vpop.permute.xlu0 %3574
        %3576 = vrot.lane.b32.xlu0 %v3569, 3
        %v3577 = vpop.permute.xlu0 %3576
        %s3578 = scalar_lea.vmem %s234, 120
        %v3579 = vld [vmem:[%s3578] sm:$0x1]
        %v3580 = vperm.slane %v3579, 0
        %v3581 = vmul.f32 %v3580, %v3571
        %v3582 = vmul.f32 %v3580, %v3573
        %v3583 = vmul.f32 %v3580, %v3575
        %v3584 = vmul.f32 %v3580, %v3577
        %3585 = vrot.lane.b32.xlu0 %v3566, 2
        %v3586 = vpop.permute.xlu0 %3585
        %3587 = vrot.lane.b32.xlu0 %v3567, 2
        %v3588 = vpop.permute.xlu0 %3587
        %3589 = vrot.lane.b32.xlu0 %v3568, 2
        %v3590 = vpop.permute.xlu0 %3589
        %3591 = vrot.lane.b32.xlu0 %v3569, 2
        %v3592 = vpop.permute.xlu0 %3591
        %v3593 = vld [vmem:[%s3578 + $0x1] sm:$0x1]
        %v3594 = vperm.slane %v3593, 0
        %v3595 = vmul.f32 %v3594, %v3586
        %v3596 = vmul.f32 %v3594, %v3588
        %v3597 = vmul.f32 %v3594, %v3590
        %v3598 = vmul.f32 %v3594, %v3592
        %v3599 = vadd.f32 %v3581, %v3595
        %v3600 = vadd.f32 %v3582, %v3596
        %v3601 = vadd.f32 %v3583, %v3597
        %v3602 = vadd.f32 %v3584, %v3598
        %3603 = vrot.lane.b32.xlu0 %v3566, 1
        %v3604 = vpop.permute.xlu0 %3603
        %3605 = vrot.lane.b32.xlu0 %v3567, 1
        %v3606 = vpop.permute.xlu0 %3605
        %3607 = vrot.lane.b32.xlu0 %v3568, 1
        %v3608 = vpop.permute.xlu0 %3607
        %3609 = vrot.lane.b32.xlu0 %v3569, 1
        %v3610 = vpop.permute.xlu0 %3609
        %v3611 = vld [vmem:[%s3578 + $0x2] sm:$0x1]
        %v3612 = vperm.slane %v3611, 0
        %v3613 = vmul.f32 %v3612, %v3604
        %v3614 = vmul.f32 %v3612, %v3606
        %v3615 = vmul.f32 %v3612, %v3608
        %v3616 = vmul.f32 %v3612, %v3610
        %v3617 = vadd.f32 %v3599, %v3613
        %v3618 = vadd.f32 %v3600, %v3614
        %v3619 = vadd.f32 %v3601, %v3615
        %v3620 = vadd.f32 %v3602, %v3616
        %v3621 = vld [vmem:[%s3578 + $0x3] sm:$0x1]
        %v3622 = vperm.slane %v3621, 0
        %v3623 = vmul.f32 %v3622, %v3566
        %v3624 = vmul.f32 %v3622, %v3567
        %v3625 = vmul.f32 %v3622, %v3568
        %v3626 = vmul.f32 %v3622, %v3569
        %v3627 = vadd.f32 %v3617, %v3623
        %v3628 = vadd.f32 %v3618, %v3624
        %v3629 = vadd.f32 %v3619, %v3625
        %v3630 = vadd.f32 %v3620, %v3626
        %3631 = vrot.lane.b32.xlu0 %v3566, 127
        %v3632 = vpop.permute.xlu0 %3631
        %3633 = vrot.lane.b32.xlu0 %v3567, 127
        %v3634 = vpop.permute.xlu0 %3633
        %3635 = vrot.lane.b32.xlu0 %v3568, 127
        %v3636 = vpop.permute.xlu0 %3635
        %3637 = vrot.lane.b32.xlu0 %v3569, 127
        %v3638 = vpop.permute.xlu0 %3637
        %v3639 = vld [vmem:[%s3578 + $0x4] sm:$0x1]
        %v3640 = vperm.slane %v3639, 0
        %v3641 = vmul.f32 %v3640, %v3632
        %v3642 = vmul.f32 %v3640, %v3634
        %v3643 = vmul.f32 %v3640, %v3636
        %v3644 = vmul.f32 %v3640, %v3638
        %v3645 = vadd.f32 %v3627, %v3641
        %v3646 = vadd.f32 %v3628, %v3642
        %v3647 = vadd.f32 %v3629, %v3643
        %v3648 = vadd.f32 %v3630, %v3644
        %3649 = vrot.lane.b32.xlu0 %v3566, 126
        %v3650 = vpop.permute.xlu0 %3649
        %3651 = vrot.lane.b32.xlu0 %v3567, 126
        %v3652 = vpop.permute.xlu0 %3651
        %3653 = vrot.lane.b32.xlu0 %v3568, 126
        %v3654 = vpop.permute.xlu0 %3653
        %3655 = vrot.lane.b32.xlu0 %v3569, 126
        %v3656 = vpop.permute.xlu0 %3655
        %v3657 = vld [vmem:[%s3578 + $0x5] sm:$0x1]
        %v3658 = vperm.slane %v3657, 0
        %v3659 = vmul.f32 %v3658, %v3650
        %v3660 = vmul.f32 %v3658, %v3652
        %v3661 = vmul.f32 %v3658, %v3654
        %v3662 = vmul.f32 %v3658, %v3656
        %v3663 = vadd.f32 %v3645, %v3659
        %v3664 = vadd.f32 %v3646, %v3660
        %v3665 = vadd.f32 %v3647, %v3661
        %v3666 = vadd.f32 %v3648, %v3662
        %3667 = vrot.lane.b32.xlu0 %v3566, 125
        %v3668 = vpop.permute.xlu0 %3667
        %3669 = vrot.lane.b32.xlu0 %v3567, 125
        %v3670 = vpop.permute.xlu0 %3669
        %3671 = vrot.lane.b32.xlu0 %v3568, 125
        %v3672 = vpop.permute.xlu0 %3671
        %3673 = vrot.lane.b32.xlu0 %v3569, 125
        %v3674 = vpop.permute.xlu0 %3673
        %v3675 = vld [vmem:[%s3578 + $0x6] sm:$0x1]
        %v3676 = vperm.slane %v3675, 0
        %v3677 = vmul.f32 %v3676, %v3668
        %v3678 = vmul.f32 %v3676, %v3670
        %v3679 = vmul.f32 %v3676, %v3672
        %v3680 = vmul.f32 %v3676, %v3674
        %v3681 = vadd.f32 %v3663, %v3677
        %v3682 = vadd.f32 %v3664, %v3678
        %v3683 = vadd.f32 %v3665, %v3679
        %v3684 = vadd.f32 %v3666, %v3680
        %s3685 = scalar_lea.vmem %s223, 480 [#allocation5]
        %3686 = vst [vmem:[%s3685] sm:$0xff] %v3681
        %3687 = vst [vmem:[%s3685 + $0x8] sm:$0xff] %v3682
        %3688 = vst [vmem:[%s3685 + $0x10] sm:$0xff] %v3683
        %3689 = vst [vmem:[%s3685 + $0x18] sm:$0xff] %v3684
        %s3690 = sand.u32 %s106, 1
        %s3691 = scalar_lea.sflag [#allocation4], %s3690
        %s3692 = sand.u32 %s106, 1
        %s3693 = smul.addr %s3692, 512
        %s3694 = scalar_lea.vmem [#allocation5], %s3693
        // Predicated region
        $region37: #{tpu_custom_call.1} parent=31 // pred_check
          %p3695 = pneg %p116
        $region38: #{tpu_custom_call.1} parent=31 // pred_check_branch
          %3697 = sbr.rel (%p3695) target = $region40
        $region39: #{tpu_custom_call.1} parent=31 // pred_region
          %s3698 = smul.u32 16, %s20
          %3700 = vsyncadd %s3691, 0
          %s3701 = smul.addr %s3698, 4
          %s3702 = smul.addr %s3701, 8
          %s3703 = scalar_lea.hbm %s3, %s3702
          %s3704 = sshll.u32 %s3694, 4
          %s3705 = int_to_ptr.vmem [resolvable:$true] %s3704
          %s3706 = sshll.u32 %s3703, 4
          %s3707 = int_to_ptr.hbm [resolvable:$true] %s3706
          %3712 = dma.vmem_to_hbm [thread:$0]  %s3705, 8192, %s3707, %s3691, 128, 128, 8
        $region40: #{tpu_custom_call.1} parent=31 // pred_fallthru
          _
      $region32: #{tpu_custom_call.1} parent=5 // pred_fallthru
        _
      %p3713 = scmp.le.s32.totalorder 2, %s15
      // Predicated region
      $region41: #{tpu_custom_call.1} parent=5 // pred_check
        %p3714 = pneg %p3713
      $region42: #{tpu_custom_call.1} parent=5 // pred_check_branch
        %3716 = sbr.rel (%p3714) target = $region44
      $region43: #{tpu_custom_call.1} parent=5 // pred_region
        %s3717 = ssub.s32 %s15, 2
        // Predicated region
        $region45: #{tpu_custom_call.1} parent=43 // pred_check
          %p3718 = pneg %p122
        $region46: #{tpu_custom_call.1} parent=43 // pred_check_branch
          %3720 = sbr.rel (%p3718) target = $region48
        $region47: #{tpu_custom_call.1} parent=43 // pred_region
          %s3721 = sand.u32 %s107, 1
          %s3722 = scalar_lea.sflag [#allocation4], %s3721
          %s3723 = sand.u32 %s107, 1
          %s3724 = smul.addr %s3723, 512
          %s3725 = scalar_lea.vmem [#allocation5], %s3724
          %3727 = dma.done %s3722, 8192
        $region48: #{tpu_custom_call.1} parent=43 // pred_fallthru
          _
      $region44: #{tpu_custom_call.1} parent=5 // pred_fallthru
        _
    $region6: #{tpu_custom_call.1} parent=1 // loop_footer
      %s19 = sadd.s32 1, %s15
    $region7: #{tpu_custom_call.1} parent=1 // loop_footer_branch
      %14 = sbr.rel target = $region3
    $region8: #{tpu_custom_call.1} parent=1 // loop_exit
      _
    %3728 = vsyncpa [#allocation3], 1
    %s3729 = scalar_lea.sflag [#allocation3], 1
    %3730 = vsyncpa %s3729, 1
    %3731 = vsyncpa [#allocation4], 1
    %s3732 = scalar_lea.sflag [#allocation4], 1
    %3733 = vsyncpa %s3732, 1

</llo_original>
